<compile_context>
chip_gen: v7x
topology: tpu7x:2x2x1
jax: 0.10.0
libtpu: 0.0.40
codegen_flags: <defaults>
</compile_context>

<pallas_src>
import functools

import jax
import jax.numpy as jnp
import numpy as np
from jax import lax
from jax.experimental import pallas as pl
from jax.experimental.pallas import tpu as pltpu

EPS = 1e-5
# Per-step VMEM use here is well under 2 MiB; 32 MiB scoped limit is safe on
# v5e/v6e (128 MiB physical) and v7x (64 MiB physical).
_VMEM_LIMIT = 32 * 1024 * 1024


# ---------------------------------------------------------------------------
# Fully fused SKblock kernel (one grid step == one batch element)
# ---------------------------------------------------------------------------
def _skblock_kernel(x_ref, w1_ref, s1_ref, b1_ref,
                    wbr_ref, sbr_ref, bbr_ref,
                    f1w_ref, f1b_ref, f2w_ref, f2b_ref,
                    sks_ref, skb_ref, w2d_ref, b2d_ref,
                    o_ref, hp_ref, *, H, W, has_downsample):
    Cin = x_ref.shape[-1]
    mid = w1_ref.shape[-1]
    planes = o_ref.shape[-1]
    HW = H * W

    xm = x_ref[...].reshape(HW, Cin)

    # conv1 (1x1) + folded BN + ReLU: one pixel-matmul on the MXU.
    h = jnp.dot(xm, w1_ref[...], preferred_element_type=jnp.float32)
    h = jnp.maximum(h * s1_ref[...] + b1_ref[...], 0.0)

    # Shared zero-padded halo (halo=2 covers both the 3x3 and the 5x5 taps).
    # Only the 2-wide border is zeroed per step (interior fully overwritten);
    # per-step zeroing stays correct if the batch axis is megacore-sharded.
    zr = jnp.zeros((2, W + 4, mid), jnp.float32)
    zc = jnp.zeros((H, 2, mid), jnp.float32)
    hp_ref[0:2, :, :] = zr
    hp_ref[H + 2:H + 4, :, :] = zr
    hp_ref[2:H + 2, 0:2, :] = zc
    hp_ref[2:H + 2, W + 2:W + 4, :] = zc
    hp_ref[2:H + 2, 2:W + 2, :] = h.reshape(H, W, mid)

    # Both SK branches as ONE im2col contraction: (HW, 25*mid) @ (25*mid, 2*mid).
    # The 3x3 branch columns have zero weights at the 16 taps outside its
    # footprint.  Folded BN + ReLU fused.
    parts = [hp_ref[dy:dy + H, dx:dx + W, :].reshape(HW, mid)
             for dy in range(5) for dx in range(5)]
    patches = jnp.concatenate(parts, axis=-1)                       # (HW, 25*mid)
    yb = jnp.dot(patches, wbr_ref[...], preferred_element_type=jnp.float32)
    yb = jnp.maximum(yb * sbr_ref[...] + bbr_ref[...], 0.0)         # [y0 | y1]
    y0 = yb[:, :mid]
    y1 = yb[:, mid:]

    # SK attention: GAP -> fc1 -> fused fc2 -> exact 2-way softmax.
    ub = jnp.sum(yb, axis=0, keepdims=True) * (1.0 / HW)            # (1, 2*mid)
    s = ub[:, :mid] + ub[:, mid:]                                   # GAP of U = y0 + y1
    z = jnp.dot(s, f1w_ref[...], preferred_element_type=jnp.float32) + f1b_ref[...]
    lg = jnp.dot(z, f2w_ref[...], preferred_element_type=jnp.float32) + f2b_ref[...]
    l0 = lg[:, :mid]
    l1 = lg[:, mid:]
    m = jnp.maximum(l0, l1)
    e0 = jnp.exp(l0 - m)
    e1 = jnp.exp(l1 - m)
    inv = 1.0 / (e0 + e1)          # exact reciprocal (approx EUP recip failed tolerance)
    a0 = e0 * inv
    a1 = e1 * inv

    # SK weighted sum + following BN + ReLU.
    v = jnp.maximum((y0 * a0 + y1 * a1) * sks_ref[...] + skb_ref[...], 0.0)

    # conv2(1x1)+BN, downsample(1x1)+BN and residual add fused into ONE dot
    # over K = mid + Cin (BN scales pre-folded into weights, biases summed).
    if has_downsample:
        cat = jnp.concatenate([v, xm], axis=-1)                     # (HW, mid+Cin)
        out = jnp.dot(cat, w2d_ref[...], preferred_element_type=jnp.float32) + b2d_ref[...]
    else:
        # Identity residual: skip the eye() matmul entirely, just add x.
        out = jnp.dot(v, w2d_ref[...], preferred_element_type=jnp.float32) + b2d_ref[...] + xm

    o_ref[...] = jnp.maximum(out, 0.0).reshape(1, H, W, planes).astype(o_ref.dtype)


def skblock_forward(x_nchw, p, has_downsample=True):
    # TODO(synk): stride > 1 not implemented (module default stride=1 supported).
    x = jnp.transpose(x_nchw, (0, 2, 3, 1)).astype(jnp.float32)     # NCHW -> NHWC
    B, H, W, Cin = x.shape
    mid = p["conv1_w"].shape[1]
    planes = p["conv2_w"].shape[1]
    cr = p["fc1_w"].shape[1]

    # Combined branch weight: 3x3 kernel zero-padded onto the 5x5 tap grid,
    # branches stacked along the output (N) axis -> (25*mid, 2*mid).
    w3pad = jnp.zeros((5, 5, mid, mid), jnp.float32).at[1:4, 1:4, :, :].set(p["sk_w3"])
    wbr = jnp.concatenate([w3pad.reshape(25 * mid, mid),
                           p["sk_w5"].reshape(25 * mid, mid)], axis=-1)
    sbr = jnp.concatenate([p["sk_bn3_scale"], p["sk_bn5_scale"]]).reshape(1, 2 * mid)
    bbr = jnp.concatenate([p["sk_bn3_bias"], p["sk_bn5_bias"]]).reshape(1, 2 * mid)

    # Fused fc2: one dot produces both logit sets.
    f2w = jnp.concatenate([p["fc2_w0"], p["fc2_w1"]], axis=-1)      # (cr, 2*mid)
    f2b = jnp.concatenate([p["fc2_b0"], p["fc2_b1"]]).reshape(1, 2 * mid)

    # conv2 + downsample + residual fusion: fold BN scales into the weights.
    w2s = p["conv2_w"] * p["bn2_scale"][None, :]
    if has_downsample:
        wds = p["down_w"] * p["bnd_scale"][None, :]
        w2d = jnp.concatenate([w2s, wds], axis=0)                   # (mid + Cin, planes)
        b2d = (p["bn2_bias"] + p["bnd_bias"]).reshape(1, planes)
    else:
        assert Cin == planes, "identity residual requires inplanes == planes"
        w2d = w2s
        b2d = p["bn2_bias"].reshape(1, planes)
    kd = w2d.shape[0]

    def full(shape):
        return pl.BlockSpec(shape, lambda b, _n=len(shape): (0,) * _n)

    grid_spec = pltpu.PrefetchScalarGridSpec(
        num_scalar_prefetch=0,
        grid=(B,),                                                  # >=2 parallel steps keeps both v7x TCs busy
        in_specs=[
            pl.BlockSpec((1, H, W, Cin), lambda b: (b, 0, 0, 0)),
            full((Cin, mid)), full((1, mid)), full((1, mid)),
            full((25 * mid, 2 * mid)), full((1, 2 * mid)), full((1, 2 * mid)),
            full((mid, cr)), full((1, cr)),
            full((cr, 2 * mid)), full((1, 2 * mid)),
            full((1, mid)), full((1, mid)),
            full((kd, planes)), full((1, planes)),
        ],
        out_specs=pl.BlockSpec((1, H, W, planes), lambda b: (b, 0, 0, 0)),
        scratch_shapes=[pltpu.VMEM((H + 4, W + 4, mid), jnp.float32)],
    )
    out = pl.pallas_call(
        functools.partial(_skblock_kernel, H=H, W=W, has_downsample=has_downsample),
        out_shape=jax.ShapeDtypeStruct((B, H, W, planes), jnp.float32),
        grid_spec=grid_spec,
        compiler_params=pltpu.CompilerParams(
            dimension_semantics=("parallel",),
            vmem_limit_bytes=_VMEM_LIMIT,
        ),
    )(x, p["conv1_w"], p["bn1_scale"].reshape(1, mid), p["bn1_bias"].reshape(1, mid),
      wbr, sbr, bbr,
      p["fc1_w"], p["fc1_b"].reshape(1, cr),
      f2w, f2b,
      p["bn_sk_scale"].reshape(1, mid), p["bn_sk_bias"].reshape(1, mid),
      w2d, b2d)
    return jnp.transpose(out, (0, 3, 1, 2))                         # NHWC -> NCHW


# ---------------------------------------------------------------------------
# Parameters (deterministic synthetic init) and pure-JAX reference
# ---------------------------------------------------------------------------
def _fold_bn(gamma, beta, mean, var):
    scale = gamma / jnp.sqrt(var + EPS)
    return scale, beta - mean * scale


def init_params(key, inplanes, planes, r=8):
    mid = planes // 2
    cr = max(mid // r, 1)
    keys = iter(jax.random.split(key, 40))

    def w(shape, fan_in):
        return jax.random.normal(next(keys), shape, jnp.float32) / jnp.sqrt(float(fan_in))

    def bn(c):
        gamma = 1.0 + 0.1 * jax.random.normal(next(keys), (c,), jnp.float32)
        beta = 0.1 * jax.random.normal(next(keys), (c,), jnp.float32)
        mean = 0.1 * jax.random.normal(next(keys), (c,), jnp.float32)
        var = 0.5 + jax.random.uniform(next(keys), (c,), jnp.float32)
        return _fold_bn(gamma, beta, mean, var)

    p = {}
    p["conv1_w"] = w((inplanes, mid), inplanes)                     # 1x1 conv (Cin, Cout)
    p["bn1_scale"], p["bn1_bias"] = bn(mid)
    p["sk_w3"] = w((3, 3, mid, mid), 9 * mid)                       # HWIO
    p["sk_bn3_scale"], p["sk_bn3_bias"] = bn(mid)
    p["sk_w5"] = w((5, 5, mid, mid), 25 * mid)                      # HWIO
    p["sk_bn5_scale"], p["sk_bn5_bias"] = bn(mid)
    p["fc1_w"] = w((mid, cr), mid)
    p["fc1_b"] = 0.1 * jax.random.normal(next(keys), (cr,), jnp.float32)
    p["fc2_w0"] = w((cr, mid), cr)
    p["fc2_b0"] = 0.1 * jax.random.normal(next(keys), (mid,), jnp.float32)
    p["fc2_w1"] = w((cr, mid), cr)
    p["fc2_b1"] = 0.1 * jax.random.normal(next(keys), (mid,), jnp.float32)
    p["bn_sk_scale"], p["bn_sk_bias"] = bn(mid)                     # BN after SKconv
    p["conv2_w"] = w((mid, planes), mid)
    p["bn2_scale"], p["bn2_bias"] = bn(planes)
    p["down_w"] = w((inplanes, planes), inplanes)                   # downsample 1x1
    p["bnd_scale"], p["bnd_bias"] = bn(planes)
    return p


def ref_forward(x_nchw, p):
    x = jnp.transpose(x_nchw, (0, 2, 3, 1))

    def conv1x1(t, w, s, b, relu):
        y = jnp.einsum("bhwc,cd->bhwd", t, w) * s + b
        return jnp.maximum(y, 0.0) if relu else y

    def convk(t, w, s, b):
        pad = (w.shape[0] - 1) // 2
        y = lax.conv_general_dilated(t, w, (1, 1), ((pad, pad), (pad, pad)),
                                     dimension_numbers=("NHWC", "HWIO", "NHWC"))
        return jnp.maximum(y * s + b, 0.0)

    h = conv1x1(x, p["conv1_w"], p["bn1_scale"], p["bn1_bias"], True)
    y0 = convk(h, p["sk_w3"], p["sk_bn3_scale"], p["sk_bn3_bias"])
    y1 = convk(h, p["sk_w5"], p["sk_bn5_scale"], p["sk_bn5_bias"])
    U = y0 + y1
    s = jnp.mean(U, axis=(1, 2))
    z = s @ p["fc1_w"] + p["fc1_b"]
    logits = jnp.stack([z @ p["fc2_w0"] + p["fc2_b0"],
                        z @ p["fc2_w1"] + p["fc2_b1"]], axis=1)     # (B, M, C)
    a = jax.nn.softmax(logits, axis=1)
    V = y0 * a[:, 0][:, None, None, :] + y1 * a[:, 1][:, None, None, :]
    v = jnp.maximum(V * p["bn_sk_scale"] + p["bn_sk_bias"], 0.0)
    out = conv1x1(v, p["conv2_w"], p["bn2_scale"], p["bn2_bias"], False)
    idn = conv1x1(x, p["down_w"], p["bnd_scale"], p["bnd_bias"], False)
    return jnp.transpose(jnp.maximum(out + idn, 0.0), (0, 3, 1, 2))


if __name__ == "__main__":
    B, inplanes, planes, H, W = 2, 16, 32, 16, 16                   # midplanes=16, r=8 -> cr=2
    key = jax.random.PRNGKey(0)
    kx, kp = jax.random.split(key)
    x = jax.random.normal(kx, (B, inplanes, H, W), jnp.float32)     # NCHW, as in PyTorch
    params = init_params(kp, inplanes, planes)

    out = skblock_forward(x, params, has_downsample=(inplanes != planes))
    out = jax.block_until_ready(out)
    assert out.shape == (B, planes, H, W)

    ref = ref_forward(x, params)
    # All math in f32 with an exact softmax reciprocal -> tight agreement.
    np.testing.assert_allclose(np.asarray(out), np.asarray(ref), rtol=2e-3, atol=2e-3)
    print("KERNEL_OK")
</pallas_src>

<mosaic_0001>
module attributes {stable_mosaic.version = 11 : i64} {
  func.func @_skblock_kernel(%arg0: i32, %arg1: memref<1x16x16x16xf32, #tpu.memory_space<vmem>>, %arg2: memref<16x16xf32, #tpu.memory_space<vmem>>, %arg3: memref<1x16xf32, #tpu.memory_space<vmem>>, %arg4: memref<1x16xf32, #tpu.memory_space<vmem>>, %arg5: memref<400x32xf32, #tpu.memory_space<vmem>>, %arg6: memref<1x32xf32, #tpu.memory_space<vmem>>, %arg7: memref<1x32xf32, #tpu.memory_space<vmem>>, %arg8: memref<16x2xf32, #tpu.memory_space<vmem>>, %arg9: memref<1x2xf32, #tpu.memory_space<vmem>>, %arg10: memref<2x32xf32, #tpu.memory_space<vmem>>, %arg11: memref<1x32xf32, #tpu.memory_space<vmem>>, %arg12: memref<1x16xf32, #tpu.memory_space<vmem>>, %arg13: memref<1x16xf32, #tpu.memory_space<vmem>>, %arg14: memref<32x32xf32, #tpu.memory_space<vmem>>, %arg15: memref<1x32xf32, #tpu.memory_space<vmem>>, %arg16: memref<1x16x16x32xf32, #tpu.memory_space<vmem>>, %arg17: memref<20x20x16xf32, #tpu.memory_space<vmem>>) attributes {dimension_semantics = [#tpu.dimension_semantics<parallel>], iteration_bounds = array<i64: 2>, scalar_prefetch = 0 : i64, scratch_operands = 1 : i64, tpu.core_type = #tpu.core_type<tc>, window_params = [{transform_indices = @transform_0, window_bounds = array<i64: 1, 16, 16, 16>}, {pipeline_mode = #tpu.pipeline_mode<synchronous>, transform_indices = @transform_1, window_bounds = array<i64: 16, 16>}, {pipeline_mode = #tpu.pipeline_mode<synchronous>, transform_indices = @transform_2, window_bounds = array<i64: 1, 16>}, {pipeline_mode = #tpu.pipeline_mode<synchronous>, transform_indices = @transform_3, window_bounds = array<i64: 1, 16>}, {pipeline_mode = #tpu.pipeline_mode<synchronous>, transform_indices = @transform_4, window_bounds = array<i64: 400, 32>}, {pipeline_mode = #tpu.pipeline_mode<synchronous>, transform_indices = @transform_5, window_bounds = array<i64: 1, 32>}, {pipeline_mode = #tpu.pipeline_mode<synchronous>, transform_indices = @transform_6, window_bounds = array<i64: 1, 32>}, {pipeline_mode = #tpu.pipeline_mode<synchronous>, transform_indices = @transform_7, window_bounds = array<i64: 16, 2>}, {pipeline_mode = #tpu.pipeline_mode<synchronous>, transform_indices = @transform_8, window_bounds = array<i64: 1, 2>}, {pipeline_mode = #tpu.pipeline_mode<synchronous>, transform_indices = @transform_9, window_bounds = array<i64: 2, 32>}, {pipeline_mode = #tpu.pipeline_mode<synchronous>, transform_indices = @transform_10, window_bounds = array<i64: 1, 32>}, {pipeline_mode = #tpu.pipeline_mode<synchronous>, transform_indices = @transform_11, window_bounds = array<i64: 1, 16>}, {pipeline_mode = #tpu.pipeline_mode<synchronous>, transform_indices = @transform_12, window_bounds = array<i64: 1, 16>}, {pipeline_mode = #tpu.pipeline_mode<synchronous>, transform_indices = @transform_13, window_bounds = array<i64: 32, 32>}, {pipeline_mode = #tpu.pipeline_mode<synchronous>, transform_indices = @transform_14, window_bounds = array<i64: 1, 32>}, {transform_indices = @transform_15, window_bounds = array<i64: 1, 16, 16, 32>}]} {
    %c0 = arith.constant 0 : index
    %c0_0 = arith.constant 0 : index
    %c0_1 = arith.constant 0 : index
    %c0_2 = arith.constant 0 : index
    %0 = vector.load %arg1[%c0, %c0_0, %c0_1, %c0_2] : memref<1x16x16x16xf32, #tpu.memory_space<vmem>>, vector<1x16x16x16xf32>
    %1 = vector.shape_cast %0 : vector<1x16x16x16xf32> to vector<256x16xf32>
    %c0_3 = arith.constant 0 : index
    %c0_4 = arith.constant 0 : index
    %2 = vector.load %arg2[%c0_3, %c0_4] : memref<16x16xf32, #tpu.memory_space<vmem>>, vector<16x16xf32>
    %cst = arith.constant dense<0.000000e+00> : vector<256x16xf32>
    %3 = tpu.matmul %1, %2, %cst {dimension_numbers = #tpu.dot_dimension_numbers<[1], [0], [0], [1], [0, 0, 1, 1], [], []>} : vector<256x16xf32>, vector<16x16xf32>, vector<256x16xf32> -> vector<256x16xf32>
    %c0_5 = arith.constant 0 : index
    %c0_6 = arith.constant 0 : index
    %4 = vector.load %arg3[%c0_5, %c0_6] : memref<1x16xf32, #tpu.memory_space<vmem>>, vector<1x16xf32>
    %5 = vector.broadcast %4 : vector<1x16xf32> to vector<256x16xf32>
    %6 = arith.mulf %3, %5 : vector<256x16xf32>
    %c0_7 = arith.constant 0 : index
    %c0_8 = arith.constant 0 : index
    %7 = vector.load %arg4[%c0_7, %c0_8] : memref<1x16xf32, #tpu.memory_space<vmem>>, vector<1x16xf32>
    %8 = vector.broadcast %7 : vector<1x16xf32> to vector<256x16xf32>
    %9 = arith.addf %6, %8 : vector<256x16xf32>
    %cst_9 = arith.constant 0.000000e+00 : f32
    %10 = vector.broadcast %cst_9 : f32 to vector<256x16xf32>
    %11 = arith.maximumf %9, %10 : vector<256x16xf32>
    %cst_10 = arith.constant 0.000000e+00 : f32
    %12 = vector.broadcast %cst_10 : f32 to vector<2x20x16xf32>
    %cst_11 = arith.constant 0.000000e+00 : f32
    %13 = vector.broadcast %cst_11 : f32 to vector<16x2x16xf32>
    %c0_12 = arith.constant 0 : index
    %c0_13 = arith.constant 0 : index
    %c0_14 = arith.constant 0 : index
    %14 = vector.load %arg17[%c0_12, %c0_13, %c0_14] : memref<20x20x16xf32, #tpu.memory_space<vmem>>, vector<2x20x16xf32>
    tpu.vector_store %arg17[%c0_12, %c0_13, %c0_14], %12 {strides = array<i32>} : memref<20x20x16xf32, #tpu.memory_space<vmem>>, vector<2x20x16xf32>,
    %c18 = arith.constant 18 : index
    %c0_15 = arith.constant 0 : index
    %c0_16 = arith.constant 0 : index
    %15 = vector.load %arg17[%c18, %c0_15, %c0_16] : memref<20x20x16xf32, #tpu.memory_space<vmem>>, vector<2x20x16xf32>
    tpu.vector_store %arg17[%c18, %c0_15, %c0_16], %12 {strides = array<i32>} : memref<20x20x16xf32, #tpu.memory_space<vmem>>, vector<2x20x16xf32>,
    %c2 = arith.constant 2 : index
    %c0_17 = arith.constant 0 : index
    %c0_18 = arith.constant 0 : index
    %16 = vector.load %arg17[%c2, %c0_17, %c0_18] : memref<20x20x16xf32, #tpu.memory_space<vmem>>, vector<16x2x16xf32>
    tpu.vector_store %arg17[%c2, %c0_17, %c0_18], %13 {strides = array<i32>} : memref<20x20x16xf32, #tpu.memory_space<vmem>>, vector<16x2x16xf32>,
    %c2_19 = arith.constant 2 : index
    %c18_20 = arith.constant 18 : index
    %c0_21 = arith.constant 0 : index
    %17 = vector.load %arg17[%c2_19, %c18_20, %c0_21] : memref<20x20x16xf32, #tpu.memory_space<vmem>>, vector<16x2x16xf32>
    tpu.vector_store %arg17[%c2_19, %c18_20, %c0_21], %13 {strides = array<i32>} : memref<20x20x16xf32, #tpu.memory_space<vmem>>, vector<16x2x16xf32>,
    %18 = vector.shape_cast %11 : vector<256x16xf32> to vector<16x16x16xf32>
    %c2_22 = arith.constant 2 : index
    %c2_23 = arith.constant 2 : index
    %c0_24 = arith.constant 0 : index
    %19 = vector.load %arg17[%c2_22, %c2_23, %c0_24] : memref<20x20x16xf32, #tpu.memory_space<vmem>>, vector<16x16x16xf32>
    tpu.vector_store %arg17[%c2_22, %c2_23, %c0_24], %18 {strides = array<i32>} : memref<20x20x16xf32, #tpu.memory_space<vmem>>, vector<16x16x16xf32>,
    %c0_25 = arith.constant 0 : index
    %c0_26 = arith.constant 0 : index
    %c0_27 = arith.constant 0 : index
    %20 = vector.load %arg17[%c0_25, %c0_26, %c0_27] : memref<20x20x16xf32, #tpu.memory_space<vmem>>, vector<16x16x16xf32>
    %21 = vector.shape_cast %20 : vector<16x16x16xf32> to vector<256x16xf32>
    %c0_28 = arith.constant 0 : index
    %c1 = arith.constant 1 : index
    %c0_29 = arith.constant 0 : index
    %22 = vector.load %arg17[%c0_28, %c1, %c0_29] : memref<20x20x16xf32, #tpu.memory_space<vmem>>, vector<16x16x16xf32>
    %23 = vector.shape_cast %22 : vector<16x16x16xf32> to vector<256x16xf32>
    %c0_30 = arith.constant 0 : index
    %c2_31 = arith.constant 2 : index
    %c0_32 = arith.constant 0 : index
    %24 = vector.load %arg17[%c0_30, %c2_31, %c0_32] : memref<20x20x16xf32, #tpu.memory_space<vmem>>, vector<16x16x16xf32>
    %25 = vector.shape_cast %24 : vector<16x16x16xf32> to vector<256x16xf32>
    %c0_33 = arith.constant 0 : index
    %c3 = arith.constant 3 : index
    %c0_34 = arith.constant 0 : index
    %26 = vector.load %arg17[%c0_33, %c3, %c0_34] : memref<20x20x16xf32, #tpu.memory_space<vmem>>, vector<16x16x16xf32>
    %27 = vector.shape_cast %26 : vector<16x16x16xf32> to vector<256x16xf32>
    %c0_35 = arith.constant 0 : index
    %c4 = arith.constant 4 : index
    %c0_36 = arith.constant 0 : index
    %28 = vector.load %arg17[%c0_35, %c4, %c0_36] : memref<20x20x16xf32, #tpu.memory_space<vmem>>, vector<16x16x16xf32>
    %29 = vector.shape_cast %28 : vector<16x16x16xf32> to vector<256x16xf32>
    %c1_37 = arith.constant 1 : index
    %c0_38 = arith.constant 0 : index
    %c0_39 = arith.constant 0 : index
    %30 = vector.load %arg17[%c1_37, %c0_38, %c0_39] : memref<20x20x16xf32, #tpu.memory_space<vmem>>, vector<16x16x16xf32>
    %31 = vector.shape_cast %30 : vector<16x16x16xf32> to vector<256x16xf32>
    %c1_40 = arith.constant 1 : index
    %c1_41 = arith.constant 1 : index
    %c0_42 = arith.constant 0 : index
    %32 = vector.load %arg17[%c1_40, %c1_41, %c0_42] : memref<20x20x16xf32, #tpu.memory_space<vmem>>, vector<16x16x16xf32>
    %33 = vector.shape_cast %32 : vector<16x16x16xf32> to vector<256x16xf32>
    %c1_43 = arith.constant 1 : index
    %c2_44 = arith.constant 2 : index
    %c0_45 = arith.constant 0 : index
    %34 = vector.load %arg17[%c1_43, %c2_44, %c0_45] : memref<20x20x16xf32, #tpu.memory_space<vmem>>, vector<16x16x16xf32>
    %35 = vector.shape_cast %34 : vector<16x16x16xf32> to vector<256x16xf32>
    %c1_46 = arith.constant 1 : index
    %c3_47 = arith.constant 3 : index
    %c0_48 = arith.constant 0 : index
    %36 = vector.load %arg17[%c1_46, %c3_47, %c0_48] : memref<20x20x16xf32, #tpu.memory_space<vmem>>, vector<16x16x16xf32>
    %37 = vector.shape_cast %36 : vector<16x16x16xf32> to vector<256x16xf32>
    %c1_49 = arith.constant 1 : index
    %c4_50 = arith.constant 4 : index
    %c0_51 = arith.constant 0 : index
    %38 = vector.load %arg17[%c1_49, %c4_50, %c0_51] : memref<20x20x16xf32, #tpu.memory_space<vmem>>, vector<16x16x16xf32>
    %39 = vector.shape_cast %38 : vector<16x16x16xf32> to vector<256x16xf32>
    %c2_52 = arith.constant 2 : index
    %c0_53 = arith.constant 0 : index
    %c0_54 = arith.constant 0 : index
    %40 = vector.load %arg17[%c2_52, %c0_53, %c0_54] : memref<20x20x16xf32, #tpu.memory_space<vmem>>, vector<16x16x16xf32>
    %41 = vector.shape_cast %40 : vector<16x16x16xf32> to vector<256x16xf32>
    %c2_55 = arith.constant 2 : index
    %c1_56 = arith.constant 1 : index
    %c0_57 = arith.constant 0 : index
    %42 = vector.load %arg17[%c2_55, %c1_56, %c0_57] : memref<20x20x16xf32, #tpu.memory_space<vmem>>, vector<16x16x16xf32>
    %43 = vector.shape_cast %42 : vector<16x16x16xf32> to vector<256x16xf32>
    %c2_58 = arith.constant 2 : index
    %c2_59 = arith.constant 2 : index
    %c0_60 = arith.constant 0 : index
    %44 = vector.load %arg17[%c2_58, %c2_59, %c0_60] : memref<20x20x16xf32, #tpu.memory_space<vmem>>, vector<16x16x16xf32>
    %45 = vector.shape_cast %44 : vector<16x16x16xf32> to vector<256x16xf32>
    %c2_61 = arith.constant 2 : index
    %c3_62 = arith.constant 3 : index
    %c0_63 = arith.constant 0 : index
    %46 = vector.load %arg17[%c2_61, %c3_62, %c0_63] : memref<20x20x16xf32, #tpu.memory_space<vmem>>, vector<16x16x16xf32>
    %47 = vector.shape_cast %46 : vector<16x16x16xf32> to vector<256x16xf32>
    %c2_64 = arith.constant 2 : index
    %c4_65 = arith.constant 4 : index
    %c0_66 = arith.constant 0 : index
    %48 = vector.load %arg17[%c2_64, %c4_65, %c0_66] : memref<20x20x16xf32, #tpu.memory_space<vmem>>, vector<16x16x16xf32>
    %49 = vector.shape_cast %48 : vector<16x16x16xf32> to vector<256x16xf32>
    %c3_67 = arith.constant 3 : index
    %c0_68 = arith.constant 0 : index
    %c0_69 = arith.constant 0 : index
    %50 = vector.load %arg17[%c3_67, %c0_68, %c0_69] : memref<20x20x16xf32, #tpu.memory_space<vmem>>, vector<16x16x16xf32>
    %51 = vector.shape_cast %50 : vector<16x16x16xf32> to vector<256x16xf32>
    %c3_70 = arith.constant 3 : index
    %c1_71 = arith.constant 1 : index
    %c0_72 = arith.constant 0 : index
    %52 = vector.load %arg17[%c3_70, %c1_71, %c0_72] : memref<20x20x16xf32, #tpu.memory_space<vmem>>, vector<16x16x16xf32>
    %53 = vector.shape_cast %52 : vector<16x16x16xf32> to vector<256x16xf32>
    %c3_73 = arith.constant 3 : index
    %c2_74 = arith.constant 2 : index
    %c0_75 = arith.constant 0 : index
    %54 = vector.load %arg17[%c3_73, %c2_74, %c0_75] : memref<20x20x16xf32, #tpu.memory_space<vmem>>, vector<16x16x16xf32>
    %55 = vector.shape_cast %54 : vector<16x16x16xf32> to vector<256x16xf32>
    %c3_76 = arith.constant 3 : index
    %c3_77 = arith.constant 3 : index
    %c0_78 = arith.constant 0 : index
    %56 = vector.load %arg17[%c3_76, %c3_77, %c0_78] : memref<20x20x16xf32, #tpu.memory_space<vmem>>, vector<16x16x16xf32>
    %57 = vector.shape_cast %56 : vector<16x16x16xf32> to vector<256x16xf32>
    %c3_79 = arith.constant 3 : index
    %c4_80 = arith.constant 4 : index
    %c0_81 = arith.constant 0 : index
    %58 = vector.load %arg17[%c3_79, %c4_80, %c0_81] : memref<20x20x16xf32, #tpu.memory_space<vmem>>, vector<16x16x16xf32>
    %59 = vector.shape_cast %58 : vector<16x16x16xf32> to vector<256x16xf32>
    %c4_82 = arith.constant 4 : index
    %c0_83 = arith.constant 0 : index
    %c0_84 = arith.constant 0 : index
    %60 = vector.load %arg17[%c4_82, %c0_83, %c0_84] : memref<20x20x16xf32, #tpu.memory_space<vmem>>, vector<16x16x16xf32>
    %61 = vector.shape_cast %60 : vector<16x16x16xf32> to vector<256x16xf32>
    %c4_85 = arith.constant 4 : index
    %c1_86 = arith.constant 1 : index
    %c0_87 = arith.constant 0 : index
    %62 = vector.load %arg17[%c4_85, %c1_86, %c0_87] : memref<20x20x16xf32, #tpu.memory_space<vmem>>, vector<16x16x16xf32>
    %63 = vector.shape_cast %62 : vector<16x16x16xf32> to vector<256x16xf32>
    %c4_88 = arith.constant 4 : index
    %c2_89 = arith.constant 2 : index
    %c0_90 = arith.constant 0 : index
    %64 = vector.load %arg17[%c4_88, %c2_89, %c0_90] : memref<20x20x16xf32, #tpu.memory_space<vmem>>, vector<16x16x16xf32>
    %65 = vector.shape_cast %64 : vector<16x16x16xf32> to vector<256x16xf32>
    %c4_91 = arith.constant 4 : index
    %c3_92 = arith.constant 3 : index
    %c0_93 = arith.constant 0 : index
    %66 = vector.load %arg17[%c4_91, %c3_92, %c0_93] : memref<20x20x16xf32, #tpu.memory_space<vmem>>, vector<16x16x16xf32>
    %67 = vector.shape_cast %66 : vector<16x16x16xf32> to vector<256x16xf32>
    %c4_94 = arith.constant 4 : index
    %c4_95 = arith.constant 4 : index
    %c0_96 = arith.constant 0 : index
    %68 = vector.load %arg17[%c4_94, %c4_95, %c0_96] : memref<20x20x16xf32, #tpu.memory_space<vmem>>, vector<16x16x16xf32>
    %69 = vector.shape_cast %68 : vector<16x16x16xf32> to vector<256x16xf32>
    %70 = tpu.concatenate %21, %23, %25, %27, %29, %31, %33, %35, %37, %39, %41, %43, %45, %47, %49, %51 in 1 : vector<256x16xf32>, vector<256x16xf32>, vector<256x16xf32>, vector<256x16xf32>, vector<256x16xf32>, vector<256x16xf32>, vector<256x16xf32>, vector<256x16xf32>, vector<256x16xf32>, vector<256x16xf32>, vector<256x16xf32>, vector<256x16xf32>, vector<256x16xf32>, vector<256x16xf32>, vector<256x16xf32>, vector<256x16xf32> -> vector<256x256xf32>
    %71 = tpu.concatenate %53, %55, %57, %59, %61, %63, %65, %67, %69 in 1 : vector<256x16xf32>, vector<256x16xf32>, vector<256x16xf32>, vector<256x16xf32>, vector<256x16xf32>, vector<256x16xf32>, vector<256x16xf32>, vector<256x16xf32>, vector<256x16xf32> -> vector<256x144xf32>
    %72 = tpu.concatenate %70, %71 in 1 : vector<256x256xf32>, vector<256x144xf32> -> vector<256x400xf32>
    %c0_97 = arith.constant 0 : index
    %c0_98 = arith.constant 0 : index
    %73 = vector.load %arg5[%c0_97, %c0_98] : memref<400x32xf32, #tpu.memory_space<vmem>>, vector<400x32xf32>
    %cst_99 = arith.constant dense<0.000000e+00> : vector<256x32xf32>
    %74 = tpu.matmul %72, %73, %cst_99 {dimension_numbers = #tpu.dot_dimension_numbers<[1], [0], [0], [1], [0, 0, 1, 1], [], []>} : vector<256x400xf32>, vector<400x32xf32>, vector<256x32xf32> -> vector<256x32xf32>
    %c0_100 = arith.constant 0 : index
    %c0_101 = arith.constant 0 : index
    %75 = vector.load %arg6[%c0_100, %c0_101] : memref<1x32xf32, #tpu.memory_space<vmem>>, vector<1x32xf32>
    %76 = vector.broadcast %75 : vector<1x32xf32> to vector<256x32xf32>
    %77 = arith.mulf %74, %76 : vector<256x32xf32>
    %c0_102 = arith.constant 0 : index
    %c0_103 = arith.constant 0 : index
    %78 = vector.load %arg7[%c0_102, %c0_103] : memref<1x32xf32, #tpu.memory_space<vmem>>, vector<1x32xf32>
    %79 = vector.broadcast %78 : vector<1x32xf32> to vector<256x32xf32>
    %80 = arith.addf %77, %79 : vector<256x32xf32>
    %cst_104 = arith.constant 0.000000e+00 : f32
    %81 = vector.broadcast %cst_104 : f32 to vector<256x32xf32>
    %82 = arith.maximumf %80, %81 : vector<256x32xf32>
    %83 = vector.extract_strided_slice %82 {offsets = [0, 0], sizes = [256, 16], strides = [1, 1]} : vector<256x32xf32> to vector<256x16xf32>
    %84 = vector.extract_strided_slice %82 {offsets = [0, 16], sizes = [256, 16], strides = [1, 1]} : vector<256x32xf32> to vector<256x16xf32>
    %cst_105 = arith.constant dense<0.000000e+00> : vector<32xf32>
    %85 = vector.multi_reduction <add>, %82, %cst_105 [0] : vector<256x32xf32> to vector<32xf32>
    %86 = vector.shape_cast %85 : vector<32xf32> to vector<1x32xf32>
    %cst_106 = arith.constant 3.906250e-03 : f32
    %87 = vector.broadcast %cst_106 : f32 to vector<1x32xf32>
    %88 = arith.mulf %86, %87 : vector<1x32xf32>
    %89 = vector.extract_strided_slice %88 {offsets = [0, 0], sizes = [1, 16], strides = [1, 1]} : vector<1x32xf32> to vector<1x16xf32>
    %90 = vector.extract_strided_slice %88 {offsets = [0, 16], sizes = [1, 16], strides = [1, 1]} : vector<1x32xf32> to vector<1x16xf32>
    %91 = arith.addf %89, %90 : vector<1x16xf32>
    %c0_107 = arith.constant 0 : index
    %c0_108 = arith.constant 0 : index
    %92 = vector.load %arg8[%c0_107, %c0_108] : memref<16x2xf32, #tpu.memory_space<vmem>>, vector<16x2xf32>
    %cst_109 = arith.constant dense<0.000000e+00> : vector<1x2xf32>
    %93 = tpu.matmul %91, %92, %cst_109 {dimension_numbers = #tpu.dot_dimension_numbers<[1], [0], [0], [1], [0, 0, 1, 1], [], []>} : vector<1x16xf32>, vector<16x2xf32>, vector<1x2xf32> -> vector<1x2xf32>
    %c0_110 = arith.constant 0 : index
    %c0_111 = arith.constant 0 : index
    %94 = vector.load %arg9[%c0_110, %c0_111] : memref<1x2xf32, #tpu.memory_space<vmem>>, vector<1x2xf32>
    %95 = arith.addf %93, %94 : vector<1x2xf32>
    %c0_112 = arith.constant 0 : index
    %c0_113 = arith.constant 0 : index
    %96 = vector.load %arg10[%c0_112, %c0_113] : memref<2x32xf32, #tpu.memory_space<vmem>>, vector<2x32xf32>
    %cst_114 = arith.constant dense<0.000000e+00> : vector<1x32xf32>
    %97 = tpu.matmul %95, %96, %cst_114 {dimension_numbers = #tpu.dot_dimension_numbers<[1], [0], [0], [1], [0, 0, 1, 1], [], []>} : vector<1x2xf32>, vector<2x32xf32>, vector<1x32xf32> -> vector<1x32xf32>
    %c0_115 = arith.constant 0 : index
    %c0_116 = arith.constant 0 : index
    %98 = vector.load %arg11[%c0_115, %c0_116] : memref<1x32xf32, #tpu.memory_space<vmem>>, vector<1x32xf32>
    %99 = arith.addf %97, %98 : vector<1x32xf32>
    %100 = vector.extract_strided_slice %99 {offsets = [0, 0], sizes = [1, 16], strides = [1, 1]} : vector<1x32xf32> to vector<1x16xf32>
    %101 = vector.extract_strided_slice %99 {offsets = [0, 16], sizes = [1, 16], strides = [1, 1]} : vector<1x32xf32> to vector<1x16xf32>
    %102 = arith.maximumf %100, %101 : vector<1x16xf32>
    %103 = arith.subf %100, %102 : vector<1x16xf32>
    %104 = math.exp %103 : vector<1x16xf32>
    %105 = arith.subf %101, %102 : vector<1x16xf32>
    %106 = math.exp %105 : vector<1x16xf32>
    %107 = arith.addf %104, %106 : vector<1x16xf32>
    %cst_117 = arith.constant 1.000000e+00 : f32
    %108 = vector.broadcast %cst_117 : f32 to vector<1x16xf32>
    %109 = arith.divf %108, %107 : vector<1x16xf32>
    %110 = arith.mulf %104, %109 : vector<1x16xf32>
    %111 = arith.mulf %106, %109 : vector<1x16xf32>
    %112 = vector.broadcast %110 : vector<1x16xf32> to vector<256x16xf32>
    %113 = arith.mulf %83, %112 : vector<256x16xf32>
    %114 = vector.broadcast %111 : vector<1x16xf32> to vector<256x16xf32>
    %115 = arith.mulf %84, %114 : vector<256x16xf32>
    %116 = arith.addf %113, %115 : vector<256x16xf32>
    %c0_118 = arith.constant 0 : index
    %c0_119 = arith.constant 0 : index
    %117 = vector.load %arg12[%c0_118, %c0_119] : memref<1x16xf32, #tpu.memory_space<vmem>>, vector<1x16xf32>
    %118 = vector.broadcast %117 : vector<1x16xf32> to vector<256x16xf32>
    %119 = arith.mulf %116, %118 : vector<256x16xf32>
    %c0_120 = arith.constant 0 : index
    %c0_121 = arith.constant 0 : index
    %120 = vector.load %arg13[%c0_120, %c0_121] : memref<1x16xf32, #tpu.memory_space<vmem>>, vector<1x16xf32>
    %121 = vector.broadcast %120 : vector<1x16xf32> to vector<256x16xf32>
    %122 = arith.addf %119, %121 : vector<256x16xf32>
    %cst_122 = arith.constant 0.000000e+00 : f32
    %123 = vector.broadcast %cst_122 : f32 to vector<256x16xf32>
    %124 = arith.maximumf %122, %123 : vector<256x16xf32>
    %125 = tpu.concatenate %124, %1 in 1 : vector<256x16xf32>, vector<256x16xf32> -> vector<256x32xf32>
    %c0_123 = arith.constant 0 : index
    %c0_124 = arith.constant 0 : index
    %126 = vector.load %arg14[%c0_123, %c0_124] : memref<32x32xf32, #tpu.memory_space<vmem>>, vector<32x32xf32>
    %cst_125 = arith.constant dense<0.000000e+00> : vector<256x32xf32>
    %127 = tpu.matmul %125, %126, %cst_125 {dimension_numbers = #tpu.dot_dimension_numbers<[1], [0], [0], [1], [0, 0, 1, 1], [], []>} : vector<256x32xf32>, vector<32x32xf32>, vector<256x32xf32> -> vector<256x32xf32>
    %c0_126 = arith.constant 0 : index
    %c0_127 = arith.constant 0 : index
    %128 = vector.load %arg15[%c0_126, %c0_127] : memref<1x32xf32, #tpu.memory_space<vmem>>, vector<1x32xf32>
    %129 = vector.broadcast %128 : vector<1x32xf32> to vector<256x32xf32>
    %130 = arith.addf %127, %129 : vector<256x32xf32>
    %cst_128 = arith.constant 0.000000e+00 : f32
    %131 = vector.broadcast %cst_128 : f32 to vector<256x32xf32>
    %132 = arith.maximumf %130, %131 : vector<256x32xf32>
    %133 = vector.shape_cast %132 : vector<256x32xf32> to vector<1x16x16x32xf32>
    %c0_129 = arith.constant 0 : index
    %c0_130 = arith.constant 0 : index
    %c0_131 = arith.constant 0 : index
    %c0_132 = arith.constant 0 : index
    %134 = vector.load %arg16[%c0_129, %c0_130, %c0_131, %c0_132] : memref<1x16x16x32xf32, #tpu.memory_space<vmem>>, vector<1x16x16x32xf32>
    tpu.vector_store %arg16[%c0_129, %c0_130, %c0_131, %c0_132], %133 {strides = array<i32>} : memref<1x16x16x32xf32, #tpu.memory_space<vmem>>, vector<1x16x16x32xf32>,
    return
  }
  func.func @transform_0(%arg0: i32) -> (i32, i32, i32, i32) {
    %c0_i32 = arith.constant 0 : i32
    %c0_i32_0 = arith.constant 0 : i32
    %c0_i32_1 = arith.constant 0 : i32
    %c0_i32_2 = arith.constant 0 : i32
    return %arg0, %c0_i32, %c0_i32_0, %c0_i32_1 : i32, i32, i32, i32
  }
  func.func @transform_1(%arg0: i32) -> (i32, i32) {
    %c0_i32 = arith.constant 0 : i32
    %c0_i32_0 = arith.constant 0 : i32
    %c0_i32_1 = arith.constant 0 : i32
    return %c0_i32, %c0_i32_0 : i32, i32
  }
  func.func @transform_2(%arg0: i32) -> (i32, i32) {
    %c0_i32 = arith.constant 0 : i32
    %c0_i32_0 = arith.constant 0 : i32
    %c0_i32_1 = arith.constant 0 : i32
    return %c0_i32, %c0_i32_0 : i32, i32
  }
  func.func @transform_3(%arg0: i32) -> (i32, i32) {
    %c0_i32 = arith.constant 0 : i32
    %c0_i32_0 = arith.constant 0 : i32
    %c0_i32_1 = arith.constant 0 : i32
    return %c0_i32, %c0_i32_0 : i32, i32
  }
  func.func @transform_4(%arg0: i32) -> (i32, i32) {
    %c0_i32 = arith.constant 0 : i32
    %c0_i32_0 = arith.constant 0 : i32
    %c0_i32_1 = arith.constant 0 : i32
    return %c0_i32, %c0_i32_0 : i32, i32
  }
  func.func @transform_5(%arg0: i32) -> (i32, i32) {
    %c0_i32 = arith.constant 0 : i32
    %c0_i32_0 = arith.constant 0 : i32
    %c0_i32_1 = arith.constant 0 : i32
    return %c0_i32, %c0_i32_0 : i32, i32
  }
  func.func @transform_6(%arg0: i32) -> (i32, i32) {
    %c0_i32 = arith.constant 0 : i32
    %c0_i32_0 = arith.constant 0 : i32
    %c0_i32_1 = arith.constant 0 : i32
    return %c0_i32, %c0_i32_0 : i32, i32
  }
  func.func @transform_7(%arg0: i32) -> (i32, i32) {
    %c0_i32 = arith.constant 0 : i32
    %c0_i32_0 = arith.constant 0 : i32
    %c0_i32_1 = arith.constant 0 : i32
    return %c0_i32, %c0_i32_0 : i32, i32
  }
  func.func @transform_8(%arg0: i32) -> (i32, i32) {
    %c0_i32 = arith.constant 0 : i32
    %c0_i32_0 = arith.constant 0 : i32
    %c0_i32_1 = arith.constant 0 : i32
    return %c0_i32, %c0_i32_0 : i32, i32
  }
  func.func @transform_9(%arg0: i32) -> (i32, i32) {
    %c0_i32 = arith.constant 0 : i32
    %c0_i32_0 = arith.constant 0 : i32
    %c0_i32_1 = arith.constant 0 : i32
    return %c0_i32, %c0_i32_0 : i32, i32
  }
  func.func @transform_10(%arg0: i32) -> (i32, i32) {
    %c0_i32 = arith.constant 0 : i32
    %c0_i32_0 = arith.constant 0 : i32
    %c0_i32_1 = arith.constant 0 : i32
    return %c0_i32, %c0_i32_0 : i32, i32
  }
  func.func @transform_11(%arg0: i32) -> (i32, i32) {
    %c0_i32 = arith.constant 0 : i32
    %c0_i32_0 = arith.constant 0 : i32
    %c0_i32_1 = arith.constant 0 : i32
    return %c0_i32, %c0_i32_0 : i32, i32
  }
  func.func @transform_12(%arg0: i32) -> (i32, i32) {
    %c0_i32 = arith.constant 0 : i32
    %c0_i32_0 = arith.constant 0 : i32
    %c0_i32_1 = arith.constant 0 : i32
    return %c0_i32, %c0_i32_0 : i32, i32
  }
  func.func @transform_13(%arg0: i32) -> (i32, i32) {
    %c0_i32 = arith.constant 0 : i32
    %c0_i32_0 = arith.constant 0 : i32
    %c0_i32_1 = arith.constant 0 : i32
    return %c0_i32, %c0_i32_0 : i32, i32
  }
  func.func @transform_14(%arg0: i32) -> (i32, i32) {
    %c0_i32 = arith.constant 0 : i32
    %c0_i32_0 = arith.constant 0 : i32
    %c0_i32_1 = arith.constant 0 : i32
    return %c0_i32, %c0_i32_0 : i32, i32
  }
  func.func @transform_15(%arg0: i32) -> (i32, i32, i32, i32) {
    %c0_i32 = arith.constant 0 : i32
    %c0_i32_0 = arith.constant 0 : i32
    %c0_i32_1 = arith.constant 0 : i32
    %c0_i32_2 = arith.constant 0 : i32
    return %arg0, %c0_i32, %c0_i32_0, %c0_i32_1 : i32, i32, i32, i32
  }
}

</mosaic_0001>

<llo_original>
// kernel: tpu_custom_call.1
$region0: #{tpu_custom_call.1}
  #allocation0 [shape = 'u32[]', space=smem, size = 0x4, offset = 0x4, fixed_abs, tag = 'smem constant byte address 0x4 - core index']
  #allocation1 [shape = 'u32[144,128]{1,0:T(1,128)}', space=vmem, size = 0x12000, scoped, tag = 'internal scratch']
  #allocation2 [shape = 'f32[20,20,16]{2,1,0:T(8,128)}', space=vmem, size = 0x3c000, scoped, tag = 'scratch operand']
  %s0 = inlined_call_operand.vmem [shape: f32[2,16,16,16], index: 0, kind: input, shape index: {}]
  %s1 = inlined_call_operand.hbm [shape: f32[16,16], index: 1, kind: input, shape index: {}]
  %s2 = inlined_call_operand.vmem [shape: f32[1,16], index: 2, kind: input, shape index: {}]
  %s3 = inlined_call_operand.vmem [shape: f32[1,16], index: 3, kind: input, shape index: {}]
  %s4 = inlined_call_operand.vmem [shape: f32[400,32], index: 4, kind: input, shape index: {}]
  %s5 = inlined_call_operand.vmem [shape: f32[1,32], index: 5, kind: input, shape index: {}]
  %s6 = inlined_call_operand.vmem [shape: f32[1,32], index: 6, kind: input, shape index: {}]
  %s7 = inlined_call_operand.vmem [shape: f32[16,2], index: 7, kind: input, shape index: {}]
  %s8 = inlined_call_operand.vmem [shape: f32[1,2], index: 8, kind: input, shape index: {}]
  %s9 = inlined_call_operand.vmem [shape: f32[2,32], index: 9, kind: input, shape index: {}]
  %s10 = inlined_call_operand.vmem [shape: f32[1,32], index: 10, kind: input, shape index: {}]
  %s11 = inlined_call_operand.vmem [shape: f32[1,16], index: 11, kind: input, shape index: {}]
  %s12 = inlined_call_operand.vmem [shape: f32[1,16], index: 12, kind: input, shape index: {}]
  %s13 = inlined_call_operand.vmem [shape: f32[32,32], index: 13, kind: input, shape index: {}]
  %s14 = inlined_call_operand.vmem [shape: f32[1,32], index: 14, kind: input, shape index: {}]
  %s15 = inlined_call_operand.hbm [shape: f32[2,16,16,32], index: 15, kind: output, shape index: {}]
  %s16 = sld [smem:[#allocation0]]
  $region97: #{tpu_custom_call.1} parent=0
    _
  %s18 = ssub.s32 1, %s16
  %s19 = scalar_select 0, %s18, %s16
  $region1: #{tpu_custom_call.1} parent=0
    #allocation3 [shape = 'u8[8192]{0}', space=vmem, size = 0x2000, scoped, tag = 'input window, operand 1, single buffered']
    #allocation4 [shape = 's32[2]{0}', space=sflag, size = 0x8, scoped, tag = 'scoped memory for tpu_custom_call.1']
    #allocation5 [shape = 's32[2]{0}', space=sflag, size = 0x8, scoped, tag = 'scoped memory for tpu_custom_call.1']
    #allocation6 [shape = 'u8[262144]{0}', space=vmem, size = 0x40000, scoped, tag = 'output window, operand 0']
    %20 = vsyncpa [#allocation4], 0
    %21 = vsyncpa [#allocation5], 0
    %s22 = scalar_lea.sflag [#allocation5], 1
    %23 = vsyncpa %s22, 0
    loop: start=0, step=1, limit=4
    $region2: #{tpu_custom_call.1} parent=1 // loop_pre_header
      _
    $region3: #{tpu_custom_call.1} parent=1 // loop_header
      %s25 = sphi 0, %s29
      %p26 = scmp.ge.s32.totalorder %s25, 4
      %s35 = sphi 0, %s37
      %s38 = sphi 0, %s35
      %s39 = sphi 0, %s38
      %s55 = sphi 0, %s39
      %s59 = sphi 0, %s59
      %s61 = sphi 0, %s59
      %s62 = sphi 0, %s61
      %s76 = sphi 0, %s62
      %s80 = sphi 0, %s80
      %s82 = sphi 0, %s80
      %s83 = sphi 0, %s82
      %s97 = sphi 0, %s83
      %s101 = sphi 0, %s101
      %s103 = sphi 0, %s101
      %s104 = sphi 0, %s103
      %s118 = sphi 0, %s104
      %s122 = sphi 0, %s122
      %s124 = sphi 0, %s122
      %s125 = sphi 0, %s124
      %s139 = sphi 0, %s125
      %s143 = sphi 0, %s143
      %s145 = sphi 0, %s143
      %s146 = sphi 0, %s145
      %s160 = sphi 0, %s146
      %s164 = sphi 0, %s164
      %s166 = sphi 0, %s164
      %s167 = sphi 0, %s166
      %s181 = sphi 0, %s167
      %s185 = sphi 0, %s185
      %s187 = sphi 0, %s185
      %s188 = sphi 0, %s187
      %s202 = sphi 0, %s188
      %s206 = sphi 0, %s206
      %s208 = sphi 0, %s206
      %s209 = sphi 0, %s208
      %s223 = sphi 0, %s209
      %s227 = sphi 0, %s227
      %s229 = sphi 0, %s227
      %s230 = sphi 0, %s229
      %s244 = sphi 0, %s230
      %s248 = sphi 0, %s248
      %s250 = sphi 0, %s248
      %s251 = sphi 0, %s250
      %s265 = sphi 0, %s251
      %s269 = sphi 0, %s269
      %s271 = sphi 0, %s269
      %s272 = sphi 0, %s271
      %s286 = sphi 0, %s272
      %s290 = sphi 0, %s290
      %s292 = sphi 0, %s290
      %s293 = sphi 0, %s292
      %s307 = sphi 0, %s293
      %s311 = sphi 0, %s311
      %s313 = sphi 0, %s311
      %s314 = sphi 0, %s313
      %s328 = sphi 0, %s314
      %s332 = sphi 0, %s332
      %s334 = sphi 0, %s332
      %s335 = sphi 0, %s334
      %s349 = sphi 0, %s335
      %s355 = sphi 0, %s357
      %s358 = sphi 0, %s355
      %s359 = sphi 0, %s358
      %s375 = sphi 0, %s359
    $region4: #{tpu_custom_call.1} parent=1 // loop_header_branch
      %28 = sbr.rel (%p26) target = $region8
    $region5: #{tpu_custom_call.1} parent=1 // loop_body
      %s30 = ssub.s32 %s25, 1
      %s31 = ssub.s32 %s25, 2
      %s32 = sadd.s32 %s25, 1
      %s33 = ssub.s32 %s25, %s32
      %p34 = scmp.eq.s32.totalorder %s33, 0
      %s36 = sadd.s32 %s35, 1
      %s37 = scalar_select %p34, %s35, %s36
      %p40 = pneg %p34
      %p41 = scmp.eq.s32.totalorder %s25, 1
      %p42 = por %p40, %p41
      %p43 = scmp.ne.s32.totalorder %s35, %s38
      %p44 = scmp.eq.s32.totalorder %s25, 0
      %p45 = por %p43, %p44
      %p46 = scmp.ne.s32.totalorder %s35, %s38
      %p47 = scmp.eq.s32.totalorder %s30, 1
      %p48 = por %p46, %p47
      %p49 = scmp.ne.s32.totalorder %s38, %s39
      %p50 = scmp.eq.s32.totalorder %s30, 0
      %p51 = por %p49, %p50
      %p52 = scmp.ne.s32.totalorder %s38, %s39
      %p53 = scmp.eq.s32.totalorder %s31, 1
      %p54 = por %p52, %p53
      %p56 = scmp.ne.s32.totalorder %s39, %s55
      %p57 = scmp.eq.s32.totalorder %s31, 0
      %p58 = por %p56, %p57
      %s60 = sadd.s32 %s59, 1
      %p63 = scmp.eq.s32.totalorder %s25, 1
      %p64 = scmp.ne.s32.totalorder %s59, %s61
      %p65 = scmp.eq.s32.totalorder %s25, 0
      %p66 = por %p64, %p65
      %p67 = scmp.ne.s32.totalorder %s59, %s61
      %p68 = scmp.eq.s32.totalorder %s30, 1
      %p69 = por %p67, %p68
      %p70 = scmp.ne.s32.totalorder %s61, %s62
      %p71 = scmp.eq.s32.totalorder %s30, 0
      %p72 = por %p70, %p71
      %p73 = scmp.ne.s32.totalorder %s61, %s62
      %p74 = scmp.eq.s32.totalorder %s31, 1
      %p75 = por %p73, %p74
      %p77 = scmp.ne.s32.totalorder %s62, %s76
      %p78 = scmp.eq.s32.totalorder %s31, 0
      %p79 = por %p77, %p78
      %s81 = sadd.s32 %s80, 1
      %p84 = scmp.eq.s32.totalorder %s25, 1
      %p85 = scmp.ne.s32.totalorder %s80, %s82
      %p86 = scmp.eq.s32.totalorder %s25, 0
      %p87 = por %p85, %p86
      %p88 = scmp.ne.s32.totalorder %s80, %s82
      %p89 = scmp.eq.s32.totalorder %s30, 1
      %p90 = por %p88, %p89
      %p91 = scmp.ne.s32.totalorder %s82, %s83
      %p92 = scmp.eq.s32.totalorder %s30, 0
      %p93 = por %p91, %p92
      %p94 = scmp.ne.s32.totalorder %s82, %s83
      %p95 = scmp.eq.s32.totalorder %s31, 1
      %p96 = por %p94, %p95
      %p98 = scmp.ne.s32.totalorder %s83, %s97
      %p99 = scmp.eq.s32.totalorder %s31, 0
      %p100 = por %p98, %p99
      %s102 = sadd.s32 %s101, 1
      %p105 = scmp.eq.s32.totalorder %s25, 1
      %p106 = scmp.ne.s32.totalorder %s101, %s103
      %p107 = scmp.eq.s32.totalorder %s25, 0
      %p108 = por %p106, %p107
      %p109 = scmp.ne.s32.totalorder %s101, %s103
      %p110 = scmp.eq.s32.totalorder %s30, 1
      %p111 = por %p109, %p110
      %p112 = scmp.ne.s32.totalorder %s103, %s104
      %p113 = scmp.eq.s32.totalorder %s30, 0
      %p114 = por %p112, %p113
      %p115 = scmp.ne.s32.totalorder %s103, %s104
      %p116 = scmp.eq.s32.totalorder %s31, 1
      %p117 = por %p115, %p116
      %p119 = scmp.ne.s32.totalorder %s104, %s118
      %p120 = scmp.eq.s32.totalorder %s31, 0
      %p121 = por %p119, %p120
      %s123 = sadd.s32 %s122, 1
      %p126 = scmp.eq.s32.totalorder %s25, 1
      %p127 = scmp.ne.s32.totalorder %s122, %s124
      %p128 = scmp.eq.s32.totalorder %s25, 0
      %p129 = por %p127, %p128
      %p130 = scmp.ne.s32.totalorder %s122, %s124
      %p131 = scmp.eq.s32.totalorder %s30, 1
      %p132 = por %p130, %p131
      %p133 = scmp.ne.s32.totalorder %s124, %s125
      %p134 = scmp.eq.s32.totalorder %s30, 0
      %p135 = por %p133, %p134
      %p136 = scmp.ne.s32.totalorder %s124, %s125
      %p137 = scmp.eq.s32.totalorder %s31, 1
      %p138 = por %p136, %p137
      %p140 = scmp.ne.s32.totalorder %s125, %s139
      %p141 = scmp.eq.s32.totalorder %s31, 0
      %p142 = por %p140, %p141
      %s144 = sadd.s32 %s143, 1
      %p147 = scmp.eq.s32.totalorder %s25, 1
      %p148 = scmp.ne.s32.totalorder %s143, %s145
      %p149 = scmp.eq.s32.totalorder %s25, 0
      %p150 = por %p148, %p149
      %p151 = scmp.ne.s32.totalorder %s143, %s145
      %p152 = scmp.eq.s32.totalorder %s30, 1
      %p153 = por %p151, %p152
      %p154 = scmp.ne.s32.totalorder %s145, %s146
      %p155 = scmp.eq.s32.totalorder %s30, 0
      %p156 = por %p154, %p155
      %p157 = scmp.ne.s32.totalorder %s145, %s146
      %p158 = scmp.eq.s32.totalorder %s31, 1
      %p159 = por %p157, %p158
      %p161 = scmp.ne.s32.totalorder %s146, %s160
      %p162 = scmp.eq.s32.totalorder %s31, 0
      %p163 = por %p161, %p162
      %s165 = sadd.s32 %s164, 1
      %p168 = scmp.eq.s32.totalorder %s25, 1
      %p169 = scmp.ne.s32.totalorder %s164, %s166
      %p170 = scmp.eq.s32.totalorder %s25, 0
      %p171 = por %p169, %p170
      %p172 = scmp.ne.s32.totalorder %s164, %s166
      %p173 = scmp.eq.s32.totalorder %s30, 1
      %p174 = por %p172, %p173
      %p175 = scmp.ne.s32.totalorder %s166, %s167
      %p176 = scmp.eq.s32.totalorder %s30, 0
      %p177 = por %p175, %p176
      %p178 = scmp.ne.s32.totalorder %s166, %s167
      %p179 = scmp.eq.s32.totalorder %s31, 1
      %p180 = por %p178, %p179
      %p182 = scmp.ne.s32.totalorder %s167, %s181
      %p183 = scmp.eq.s32.totalorder %s31, 0
      %p184 = por %p182, %p183
      %s186 = sadd.s32 %s185, 1
      %p189 = scmp.eq.s32.totalorder %s25, 1
      %p190 = scmp.ne.s32.totalorder %s185, %s187
      %p191 = scmp.eq.s32.totalorder %s25, 0
      %p192 = por %p190, %p191
      %p193 = scmp.ne.s32.totalorder %s185, %s187
      %p194 = scmp.eq.s32.totalorder %s30, 1
      %p195 = por %p193, %p194
      %p196 = scmp.ne.s32.totalorder %s187, %s188
      %p197 = scmp.eq.s32.totalorder %s30, 0
      %p198 = por %p196, %p197
      %p199 = scmp.ne.s32.totalorder %s187, %s188
      %p200 = scmp.eq.s32.totalorder %s31, 1
      %p201 = por %p199, %p200
      %p203 = scmp.ne.s32.totalorder %s188, %s202
      %p204 = scmp.eq.s32.totalorder %s31, 0
      %p205 = por %p203, %p204
      %s207 = sadd.s32 %s206, 1
      %p210 = scmp.eq.s32.totalorder %s25, 1
      %p211 = scmp.ne.s32.totalorder %s206, %s208
      %p212 = scmp.eq.s32.totalorder %s25, 0
      %p213 = por %p211, %p212
      %p214 = scmp.ne.s32.totalorder %s206, %s208
      %p215 = scmp.eq.s32.totalorder %s30, 1
      %p216 = por %p214, %p215
      %p217 = scmp.ne.s32.totalorder %s208, %s209
      %p218 = scmp.eq.s32.totalorder %s30, 0
      %p219 = por %p217, %p218
      %p220 = scmp.ne.s32.totalorder %s208, %s209
      %p221 = scmp.eq.s32.totalorder %s31, 1
      %p222 = por %p220, %p221
      %p224 = scmp.ne.s32.totalorder %s209, %s223
      %p225 = scmp.eq.s32.totalorder %s31, 0
      %p226 = por %p224, %p225
      %s228 = sadd.s32 %s227, 1
      %p231 = scmp.eq.s32.totalorder %s25, 1
      %p232 = scmp.ne.s32.totalorder %s227, %s229
      %p233 = scmp.eq.s32.totalorder %s25, 0
      %p234 = por %p232, %p233
      %p235 = scmp.ne.s32.totalorder %s227, %s229
      %p236 = scmp.eq.s32.totalorder %s30, 1
      %p237 = por %p235, %p236
      %p238 = scmp.ne.s32.totalorder %s229, %s230
      %p239 = scmp.eq.s32.totalorder %s30, 0
      %p240 = por %p238, %p239
      %p241 = scmp.ne.s32.totalorder %s229, %s230
      %p242 = scmp.eq.s32.totalorder %s31, 1
      %p243 = por %p241, %p242
      %p245 = scmp.ne.s32.totalorder %s230, %s244
      %p246 = scmp.eq.s32.totalorder %s31, 0
      %p247 = por %p245, %p246
      %s249 = sadd.s32 %s248, 1
      %p252 = scmp.eq.s32.totalorder %s25, 1
      %p253 = scmp.ne.s32.totalorder %s248, %s250
      %p254 = scmp.eq.s32.totalorder %s25, 0
      %p255 = por %p253, %p254
      %p256 = scmp.ne.s32.totalorder %s248, %s250
      %p257 = scmp.eq.s32.totalorder %s30, 1
      %p258 = por %p256, %p257
      %p259 = scmp.ne.s32.totalorder %s250, %s251
      %p260 = scmp.eq.s32.totalorder %s30, 0
      %p261 = por %p259, %p260
      %p262 = scmp.ne.s32.totalorder %s250, %s251
      %p263 = scmp.eq.s32.totalorder %s31, 1
      %p264 = por %p262, %p263
      %p266 = scmp.ne.s32.totalorder %s251, %s265
      %p267 = scmp.eq.s32.totalorder %s31, 0
      %p268 = por %p266, %p267
      %s270 = sadd.s32 %s269, 1
      %p273 = scmp.eq.s32.totalorder %s25, 1
      %p274 = scmp.ne.s32.totalorder %s269, %s271
      %p275 = scmp.eq.s32.totalorder %s25, 0
      %p276 = por %p274, %p275
      %p277 = scmp.ne.s32.totalorder %s269, %s271
      %p278 = scmp.eq.s32.totalorder %s30, 1
      %p279 = por %p277, %p278
      %p280 = scmp.ne.s32.totalorder %s271, %s272
      %p281 = scmp.eq.s32.totalorder %s30, 0
      %p282 = por %p280, %p281
      %p283 = scmp.ne.s32.totalorder %s271, %s272
      %p284 = scmp.eq.s32.totalorder %s31, 1
      %p285 = por %p283, %p284
      %p287 = scmp.ne.s32.totalorder %s272, %s286
      %p288 = scmp.eq.s32.totalorder %s31, 0
      %p289 = por %p287, %p288
      %s291 = sadd.s32 %s290, 1
      %p294 = scmp.eq.s32.totalorder %s25, 1
      %p295 = scmp.ne.s32.totalorder %s290, %s292
      %p296 = scmp.eq.s32.totalorder %s25, 0
      %p297 = por %p295, %p296
      %p298 = scmp.ne.s32.totalorder %s290, %s292
      %p299 = scmp.eq.s32.totalorder %s30, 1
      %p300 = por %p298, %p299
      %p301 = scmp.ne.s32.totalorder %s292, %s293
      %p302 = scmp.eq.s32.totalorder %s30, 0
      %p303 = por %p301, %p302
      %p304 = scmp.ne.s32.totalorder %s292, %s293
      %p305 = scmp.eq.s32.totalorder %s31, 1
      %p306 = por %p304, %p305
      %p308 = scmp.ne.s32.totalorder %s293, %s307
      %p309 = scmp.eq.s32.totalorder %s31, 0
      %p310 = por %p308, %p309
      %s312 = sadd.s32 %s311, 1
      %p315 = scmp.eq.s32.totalorder %s25, 1
      %p316 = scmp.ne.s32.totalorder %s311, %s313
      %p317 = scmp.eq.s32.totalorder %s25, 0
      %p318 = por %p316, %p317
      %p319 = scmp.ne.s32.totalorder %s311, %s313
      %p320 = scmp.eq.s32.totalorder %s30, 1
      %p321 = por %p319, %p320
      %p322 = scmp.ne.s32.totalorder %s313, %s314
      %p323 = scmp.eq.s32.totalorder %s30, 0
      %p324 = por %p322, %p323
      %p325 = scmp.ne.s32.totalorder %s313, %s314
      %p326 = scmp.eq.s32.totalorder %s31, 1
      %p327 = por %p325, %p326
      %p329 = scmp.ne.s32.totalorder %s314, %s328
      %p330 = scmp.eq.s32.totalorder %s31, 0
      %p331 = por %p329, %p330
      %s333 = sadd.s32 %s332, 1
      %p336 = scmp.eq.s32.totalorder %s25, 1
      %p337 = scmp.ne.s32.totalorder %s332, %s334
      %p338 = scmp.eq.s32.totalorder %s25, 0
      %p339 = por %p337, %p338
      %p340 = scmp.ne.s32.totalorder %s332, %s334
      %p341 = scmp.eq.s32.totalorder %s30, 1
      %p342 = por %p340, %p341
      %p343 = scmp.ne.s32.totalorder %s334, %s335
      %p344 = scmp.eq.s32.totalorder %s30, 0
      %p345 = por %p343, %p344
      %p346 = scmp.ne.s32.totalorder %s334, %s335
      %p347 = scmp.eq.s32.totalorder %s31, 1
      %p348 = por %p346, %p347
      %p350 = scmp.ne.s32.totalorder %s335, %s349
      %p351 = scmp.eq.s32.totalorder %s31, 0
      %p352 = por %p350, %p351
      %s353 = ssub.s32 %s25, %s32
      %p354 = scmp.eq.s32.totalorder %s353, 0
      %s356 = sadd.s32 %s355, 1
      %s357 = scalar_select %p354, %s355, %s356
      %p360 = pneg %p354
      %p361 = scmp.eq.s32.totalorder %s25, 1
      %p362 = por %p360, %p361
      %p363 = scmp.ne.s32.totalorder %s355, %s358
      %p364 = scmp.eq.s32.totalorder %s25, 0
      %p365 = por %p363, %p364
      %p366 = scmp.ne.s32.totalorder %s355, %s358
      %p367 = scmp.eq.s32.totalorder %s30, 1
      %p368 = por %p366, %p367
      %p369 = scmp.ne.s32.totalorder %s358, %s359
      %p370 = scmp.eq.s32.totalorder %s30, 0
      %p371 = por %p369, %p370
      %p372 = scmp.ne.s32.totalorder %s358, %s359
      %p373 = scmp.eq.s32.totalorder %s31, 1
      %p374 = por %p372, %p373
      %p376 = scmp.ne.s32.totalorder %s359, %s375
      %p377 = scmp.eq.s32.totalorder %s31, 0
      %p378 = por %p376, %p377
      %p379 = scmp.le.s32.totalorder 1, %s25
      %p380 = scmp.lt.s32.totalorder %s25, 3
      %p381 = pnand %p379, %p380
      %p382 = pneg %p381
      // Predicated region
      $region9: #{tpu_custom_call.1} parent=5 // pred_check
        _
      $region10: #{tpu_custom_call.1} parent=5 // pred_check_branch
        %384 = sbr.rel (%p381) target = $region12
      $region11: #{tpu_custom_call.1} parent=5 // pred_region
        %s385 = ssub.s32 %s25, 1
        // Predicated region
        $region13: #{tpu_custom_call.1} parent=11 // pred_check
          %p386 = pneg %p72
        $region14: #{tpu_custom_call.1} parent=11 // pred_check_branch
          %388 = sbr.rel (%p386) target = $region16
        $region15: #{tpu_custom_call.1} parent=11 // pred_region
          %s390 = ssub.s32 256, 256
          %391 = vsyncadd [#allocation4], %s390
          %s392 = sshll.u32 [#allocation3], 4
          %s393 = int_to_ptr.vmem [resolvable:$true] %s392
          %398 = dma.hbm_to_vmem [thread:$0]  %s1, 256, %s393, [#allocation4], 128, 128, 8
        $region16: #{tpu_custom_call.1} parent=11 // pred_fallthru
          _
        // Predicated region
        $region17: #{tpu_custom_call.1} parent=11 // pred_check
          %p399 = pneg %p93
        $region18: #{tpu_custom_call.1} parent=11 // pred_check_branch
          %401 = sbr.rel (%p399) target = $region20
        $region19: #{tpu_custom_call.1} parent=11 // pred_region
          _
        $region20: #{tpu_custom_call.1} parent=11 // pred_fallthru
          _
        // Predicated region
        $region21: #{tpu_custom_call.1} parent=11 // pred_check
          %p402 = pneg %p114
        $region22: #{tpu_custom_call.1} parent=11 // pred_check_branch
          %404 = sbr.rel (%p402) target = $region24
        $region23: #{tpu_custom_call.1} parent=11 // pred_region
          _
        $region24: #{tpu_custom_call.1} parent=11 // pred_fallthru
          _
        // Predicated region
        $region25: #{tpu_custom_call.1} parent=11 // pred_check
          %p405 = pneg %p135
        $region26: #{tpu_custom_call.1} parent=11 // pred_check_branch
          %407 = sbr.rel (%p405) target = $region28
        $region27: #{tpu_custom_call.1} parent=11 // pred_region
          _
        $region28: #{tpu_custom_call.1} parent=11 // pred_fallthru
          _
        // Predicated region
        $region29: #{tpu_custom_call.1} parent=11 // pred_check
          %p408 = pneg %p156
        $region30: #{tpu_custom_call.1} parent=11 // pred_check_branch
          %410 = sbr.rel (%p408) target = $region32
        $region31: #{tpu_custom_call.1} parent=11 // pred_region
          _
        $region32: #{tpu_custom_call.1} parent=11 // pred_fallthru
          _
        // Predicated region
        $region33: #{tpu_custom_call.1} parent=11 // pred_check
          %p411 = pneg %p177
        $region34: #{tpu_custom_call.1} parent=11 // pred_check_branch
          %413 = sbr.rel (%p411) target = $region36
        $region35: #{tpu_custom_call.1} parent=11 // pred_region
          _
        $region36: #{tpu_custom_call.1} parent=11 // pred_fallthru
          _
        // Predicated region
        $region37: #{tpu_custom_call.1} parent=11 // pred_check
          %p414 = pneg %p198
        $region38: #{tpu_custom_call.1} parent=11 // pred_check_branch
          %416 = sbr.rel (%p414) target = $region40
        $region39: #{tpu_custom_call.1} parent=11 // pred_region
          _
        $region40: #{tpu_custom_call.1} parent=11 // pred_fallthru
          _
        // Predicated region
        $region41: #{tpu_custom_call.1} parent=11 // pred_check
          %p417 = pneg %p219
        $region42: #{tpu_custom_call.1} parent=11 // pred_check_branch
          %419 = sbr.rel (%p417) target = $region44
        $region43: #{tpu_custom_call.1} parent=11 // pred_region
          _
        $region44: #{tpu_custom_call.1} parent=11 // pred_fallthru
          _
        // Predicated region
        $region45: #{tpu_custom_call.1} parent=11 // pred_check
          %p420 = pneg %p240
        $region46: #{tpu_custom_call.1} parent=11 // pred_check_branch
          %422 = sbr.rel (%p420) target = $region48
        $region47: #{tpu_custom_call.1} parent=11 // pred_region
          _
        $region48: #{tpu_custom_call.1} parent=11 // pred_fallthru
          _
        // Predicated region
        $region49: #{tpu_custom_call.1} parent=11 // pred_check
          %p423 = pneg %p261
        $region50: #{tpu_custom_call.1} parent=11 // pred_check_branch
          %425 = sbr.rel (%p423) target = $region52
        $region51: #{tpu_custom_call.1} parent=11 // pred_region
          _
        $region52: #{tpu_custom_call.1} parent=11 // pred_fallthru
          _
        // Predicated region
        $region53: #{tpu_custom_call.1} parent=11 // pred_check
          %p426 = pneg %p282
        $region54: #{tpu_custom_call.1} parent=11 // pred_check_branch
          %428 = sbr.rel (%p426) target = $region56
        $region55: #{tpu_custom_call.1} parent=11 // pred_region
          _
        $region56: #{tpu_custom_call.1} parent=11 // pred_fallthru
          _
        // Predicated region
        $region57: #{tpu_custom_call.1} parent=11 // pred_check
          %p429 = pneg %p303
        $region58: #{tpu_custom_call.1} parent=11 // pred_check_branch
          %431 = sbr.rel (%p429) target = $region60
        $region59: #{tpu_custom_call.1} parent=11 // pred_region
          _
        $region60: #{tpu_custom_call.1} parent=11 // pred_fallthru
          _
        // Predicated region
        $region61: #{tpu_custom_call.1} parent=11 // pred_check
          %p432 = pneg %p324
        $region62: #{tpu_custom_call.1} parent=11 // pred_check_branch
          %434 = sbr.rel (%p432) target = $region64
        $region63: #{tpu_custom_call.1} parent=11 // pred_region
          _
        $region64: #{tpu_custom_call.1} parent=11 // pred_fallthru
          _
        // Predicated region
        $region65: #{tpu_custom_call.1} parent=11 // pred_check
          %p435 = pneg %p345
        $region66: #{tpu_custom_call.1} parent=11 // pred_check_branch
          %437 = sbr.rel (%p435) target = $region68
        $region67: #{tpu_custom_call.1} parent=11 // pred_region
          _
        $region68: #{tpu_custom_call.1} parent=11 // pred_fallthru
          _
      $region12: #{tpu_custom_call.1} parent=5 // pred_fallthru
        _
      %p438 = scmp.lt.s32.totalorder %s25, 2
      // Predicated region
      $region69: #{tpu_custom_call.1} parent=5 // pred_check
        %p439 = pneg %p438
      $region70: #{tpu_custom_call.1} parent=5 // pred_check_branch
        %441 = sbr.rel (%p439) target = $region72
      $region71: #{tpu_custom_call.1} parent=5 // pred_region
        // Predicated region
        $region73: #{tpu_custom_call.1} parent=71 // pred_check
          %p442 = pneg %p45
        $region74: #{tpu_custom_call.1} parent=71 // pred_check_branch
          %444 = sbr.rel (%p442) target = $region76
        $region75: #{tpu_custom_call.1} parent=71 // pred_region
          %p445 = scmp.lt.s32.totalorder %s25, 1
          %s446 = scalar_select %p445, %s25, 1
          %s447 = smul.addr %s446, 32
          %s448 = smul.addr %s447, 8
          %s449 = scalar_lea.vmem %s0, %s448
        $region76: #{tpu_custom_call.1} parent=71 // pred_fallthru
          _
      $region72: #{tpu_custom_call.1} parent=5 // pred_fallthru
        _
      %p450 = scmp.le.s32.totalorder 1, %s25
      %p451 = scmp.lt.s32.totalorder %s25, 3
      %p452 = pnand %p450, %p451
      %p453 = pneg %p452
      // Predicated region
      $region77: #{tpu_custom_call.1} parent=5 // pred_check
        _
      $region78: #{tpu_custom_call.1} parent=5 // pred_check_branch
        %455 = sbr.rel (%p452) target = $region80
      $region79: #{tpu_custom_call.1} parent=5 // pred_region
        %s456 = ssub.s32 %s25, 1
        // Predicated region
        $region81: #{tpu_custom_call.1} parent=79 // pred_check
          %p457 = pneg %p72
        $region82: #{tpu_custom_call.1} parent=79 // pred_check_branch
          %459 = sbr.rel (%p457) target = $region84
        $region83: #{tpu_custom_call.1} parent=79 // pred_region
          %460 = dma.done [#allocation4], 256
        $region84: #{tpu_custom_call.1} parent=79 // pred_fallthru
          _
        %p461 = scmp.lt.s32.totalorder %s30, 1
        %s462 = scalar_select %p461, %s30, 1
        %s463 = smul.addr %s462, 32
        %s464 = smul.addr %s463, 8
        %s465 = scalar_lea.vmem %s0, %s464
        %p466 = pneg %p51
        %p467 = pneg %p48
        %p468 = pneg %p72
        %p469 = pneg %p69
        %p470 = pneg %p93
        %p471 = pneg %p90
        %p472 = pneg %p114
        %p473 = pneg %p111
        %p474 = pneg %p135
        %p475 = pneg %p132
        %p476 = pneg %p156
        %p477 = pneg %p153
        %p478 = pneg %p177
        %p479 = pneg %p174
        %p480 = pneg %p198
        %p481 = pneg %p195
        %p482 = pneg %p219
        %p483 = pneg %p216
        %p484 = pneg %p240
        %p485 = pneg %p237
        %p486 = pneg %p261
        %p487 = pneg %p258
        %p488 = pneg %p282
        %p489 = pneg %p279
        %p490 = pneg %p303
        %p491 = pneg %p300
        %p492 = pneg %p324
        %p493 = pneg %p321
        %p494 = pneg %p345
        %p495 = pneg %p342
        %p496 = pneg %p371
        %p497 = pneg %p368
        %s498 = sand.u32 %s358, 1
        %s499 = scalar_lea.sflag [#allocation5], %s498
        %s500 = sand.u32 %s358, 1
        %s501 = smul.addr %s500, 256
        %s502 = scalar_lea.vmem [#allocation6], %s501
        %p503 = scmp.lt.s32.totalorder %s30, 1
        %s504 = scalar_select %p503, %s30, 1
        %s505 = smul.addr %s504, 32
        %s506 = smul.addr %s505, 8
        %s507 = scalar_lea.vmem %s0, %s506
        %v508 = vld [vmem:[%s507] sm:$0xff]
        %v509 = vld [vmem:[%s507 + $0x8] sm:$0xff]
        %v510 = vld [vmem:[%s507 + $0x10] sm:$0xff]
        %v511 = vld [vmem:[%s507 + $0x18] sm:$0xff]
        %v512 = vld [vmem:[%s507 + $0x20] sm:$0xff]
        %v513 = vld [vmem:[%s507 + $0x28] sm:$0xff]
        %v514 = vld [vmem:[%s507 + $0x30] sm:$0xff]
        %v515 = vld [vmem:[%s507 + $0x38] sm:$0xff]
        %v516 = vld [vmem:[%s507 + $0x40] sm:$0xff]
        %v517 = vld [vmem:[%s507 + $0x48] sm:$0xff]
        %v518 = vld [vmem:[%s507 + $0x50] sm:$0xff]
        %v519 = vld [vmem:[%s507 + $0x58] sm:$0xff]
        %v520 = vld [vmem:[%s507 + $0x60] sm:$0xff]
        %v521 = vld [vmem:[%s507 + $0x68] sm:$0xff]
        %v522 = vld [vmem:[%s507 + $0x70] sm:$0xff]
        %v523 = vld [vmem:[%s507 + $0x78] sm:$0xff]
        %v524 = vld [vmem:[%s507 + $0x80] sm:$0xff]
        %v525 = vld [vmem:[%s507 + $0x88] sm:$0xff]
        %v526 = vld [vmem:[%s507 + $0x90] sm:$0xff]
        %v527 = vld [vmem:[%s507 + $0x98] sm:$0xff]
        %v528 = vld [vmem:[%s507 + $0xa0] sm:$0xff]
        %v529 = vld [vmem:[%s507 + $0xa8] sm:$0xff]
        %v530 = vld [vmem:[%s507 + $0xb0] sm:$0xff]
        %v531 = vld [vmem:[%s507 + $0xb8] sm:$0xff]
        %v532 = vld [vmem:[%s507 + $0xc0] sm:$0xff]
        %v533 = vld [vmem:[%s507 + $0xc8] sm:$0xff]
        %v534 = vld [vmem:[%s507 + $0xd0] sm:$0xff]
        %v535 = vld [vmem:[%s507 + $0xd8] sm:$0xff]
        %v536 = vld [vmem:[%s507 + $0xe0] sm:$0xff]
        %v537 = vld [vmem:[%s507 + $0xe8] sm:$0xff]
        %v538 = vld [vmem:[%s507 + $0xf0] sm:$0xff]
        %v539 = vld [vmem:[%s507 + $0xf8] sm:$0xff]
        %v540 = vld [vmem:[#allocation3] sm:$0xff]
        %v541 = vld [vmem:[#allocation3 + $0x8] sm:$0xff]
        %vm542 = vcmask 130048
        %v544 = vsel %vm542, %v508, 0
        %v547 = vsel %vm542, %v509, 0
        %v550 = vsel %vm542, %v510, 0
        %v553 = vsel %vm542, %v511, 0
        %v556 = vsel %vm542, %v512, 0
        %v559 = vsel %vm542, %v513, 0
        %v562 = vsel %vm542, %v514, 0
        %v565 = vsel %vm542, %v515, 0
        %v568 = vsel %vm542, %v516, 0
        %v571 = vsel %vm542, %v517, 0
        %v574 = vsel %vm542, %v518, 0
        %v577 = vsel %vm542, %v519, 0
        %v580 = vsel %vm542, %v520, 0
        %v583 = vsel %vm542, %v521, 0
        %v586 = vsel %vm542, %v522, 0
        %v589 = vsel %vm542, %v523, 0
        %v592 = vsel %vm542, %v524, 0
        %v595 = vsel %vm542, %v525, 0
        %v598 = vsel %vm542, %v526, 0
        %v601 = vsel %vm542, %v527, 0
        %v604 = vsel %vm542, %v528, 0
        %v607 = vsel %vm542, %v529, 0
        %v610 = vsel %vm542, %v530, 0
        %v613 = vsel %vm542, %v531, 0
        %v616 = vsel %vm542, %v532, 0
        %v619 = vsel %vm542, %v533, 0
        %v622 = vsel %vm542, %v534, 0
        %v625 = vsel %vm542, %v535, 0
        %v628 = vsel %vm542, %v536, 0
        %v631 = vsel %vm542, %v537, 0
        %v634 = vsel %vm542, %v538, 0
        %v637 = vsel %vm542, %v539, 0
        %639 = vmatprep.subr.mxu0 0.0
        %640 = vmatpush1.msra.mxu0 %v540
        %641 = vmatprep.subr.mxu0 0.0
        %642 = vmatpush1.msra.mxu0 %v541
        %643 = vmatprep.subr.mxu0 0.0
        %644 = vmatpush1.msra.mxu0 0.0
        %645 = vmatprep.subr.mxu0 0.0
        %646 = vmatpush1.msra.mxu0 0.0
        %647 = vmatprep.subr.mxu0 0.0
        %648 = vmatpush1.msra.mxu0 0.0
        %649 = vmatprep.subr.mxu0 0.0
        %650 = vmatpush1.msra.mxu0 0.0
        %651 = vmatprep.subr.mxu0 0.0
        %652 = vmatpush1.msra.mxu0 0.0
        %653 = vmatprep.subr.mxu0 0.0
        %654 = vmatpush1.msra.mxu0 0.0
        %655 = vmatprep.subr.mxu0 0.0
        %656 = vmatpush1.msra.mxu0 0.0
        %657 = vmatprep.subr.mxu0 0.0
        %658 = vmatpush1.msra.mxu0 0.0
        %659 = vmatprep.subr.mxu0 0.0
        %660 = vmatpush1.msra.mxu0 0.0
        %661 = vmatprep.subr.mxu0 0.0
        %662 = vmatpush1.msra.mxu0 0.0
        %663 = vmatprep.subr.mxu0 0.0
        %664 = vmatpush1.msra.mxu0 0.0
        %665 = vmatprep.subr.mxu0 0.0
        %666 = vmatpush1.msra.mxu0 0.0
        %667 = vmatprep.subr.mxu0 0.0
        %668 = vmatpush1.msra.mxu0 0.0
        %669 = vmatprep.subr.mxu0 0.0
        %670 = vmatpush1.msra.mxu0 0.0
        %671 = vmatprep.subr.mxu0 0.0
        %672 = vmatpush1.msra.mxu0 0.0
        %673 = vmatprep.subr.mxu0 0.0
        %674 = vmatpush1.msra.mxu0 0.0
        %675 = vmatprep.subr.mxu0 0.0
        %676 = vmatpush1.msra.mxu0 0.0
        %677 = vmatprep.subr.mxu0 0.0
        %678 = vmatpush1.msra.mxu0 0.0
        %679 = vmatprep.subr.mxu0 0.0
        %680 = vmatpush1.msra.mxu0 0.0
        %681 = vmatprep.subr.mxu0 0.0
        %682 = vmatpush1.msra.mxu0 0.0
        %683 = vmatprep.subr.mxu0 0.0
        %684 = vmatpush1.msra.mxu0 0.0
        %685 = vmatprep.subr.mxu0 0.0
        %686 = vmatpush1.msra.mxu0 0.0
        %687 = vmatprep.subr.mxu0 0.0
        %688 = vmatpush1.msra.mxu0 0.0
        %689 = vmatprep.subr.mxu0 0.0
        %690 = vmatpush1.msra.mxu0 0.0
        %691 = vmatprep.subr.mxu0 0.0
        %692 = vmatpush1.msra.mxu0 0.0
        %693 = vmatprep.subr.mxu0 0.0
        %694 = vmatpush1.msra.mxu0 0.0
        %695 = vmatprep.subr.mxu0 0.0
        %696 = vmatpush1.msra.mxu0 0.0
        %697 = vmatprep.subr.mxu0 0.0
        %698 = vmatpush1.msra.mxu0 0.0
        %699 = vmatprep.subr.mxu0 0.0
        %700 = vmatpush1.msra.mxu0 0.0
        %701 = vmatprep.subr.mxu0 0.0
        %702 = vmatpush1.msra.mxu0 0.0
        %703 = vmatprep.mubr.f32.mxu0 0.0
        %704 = vmatmul.mubr.f32.gmra.mrb[0].mxu0 %v544
        %v705 = vpop.f32.mrb[0].mxu0
        %v706 = vadd.f32 0.0, %v705
        %v707 = vpop.f32.mrb[0].mxu0
        %708 = vmatprep.mubr.f32.mxu0 0.0
        %709 = vmatmul.mubr.f32.gmra.mrb[0].mxu0 %v547
        %v710 = vpop.f32.mrb[0].mxu0
        %v711 = vadd.f32 0.0, %v710
        %v712 = vpop.f32.mrb[0].mxu0
        %713 = vmatprep.mubr.f32.mxu0 0.0
        %714 = vmatmul.mubr.f32.gmra.mrb[0].mxu0 %v550
        %v715 = vpop.f32.mrb[0].mxu0
        %v716 = vadd.f32 0.0, %v715
        %v717 = vpop.f32.mrb[0].mxu0
        %718 = vmatprep.mubr.f32.mxu0 0.0
        %719 = vmatmul.mubr.f32.gmra.mrb[0].mxu0 %v553
        %v720 = vpop.f32.mrb[0].mxu0
        %v721 = vadd.f32 0.0, %v720
        %v722 = vpop.f32.mrb[0].mxu0
        %723 = vmatprep.mubr.f32.mxu0 0.0
        %724 = vmatmul.mubr.f32.gmra.mrb[0].mxu0 %v556
        %v725 = vpop.f32.mrb[0].mxu0
        %v726 = vadd.f32 0.0, %v725
        %v727 = vpop.f32.mrb[0].mxu0
        %728 = vmatprep.mubr.f32.mxu0 0.0
        %729 = vmatmul.mubr.f32.gmra.mrb[0].mxu0 %v559
        %v730 = vpop.f32.mrb[0].mxu0
        %v731 = vadd.f32 0.0, %v730
        %v732 = vpop.f32.mrb[0].mxu0
        %733 = vmatprep.mubr.f32.mxu0 0.0
        %734 = vmatmul.mubr.f32.gmra.mrb[0].mxu0 %v562
        %v735 = vpop.f32.mrb[0].mxu0
        %v736 = vadd.f32 0.0, %v735
        %v737 = vpop.f32.mrb[0].mxu0
        %738 = vmatprep.mubr.f32.mxu0 0.0
        %739 = vmatmul.mubr.f32.gmra.mrb[0].mxu0 %v565
        %v740 = vpop.f32.mrb[0].mxu0
        %v741 = vadd.f32 0.0, %v740
        %v742 = vpop.f32.mrb[0].mxu0
        %743 = vmatprep.mubr.f32.mxu0 0.0
        %744 = vmatmul.mubr.f32.gmra.mrb[0].mxu0 %v568
        %v745 = vpop.f32.mrb[0].mxu0
        %v746 = vadd.f32 0.0, %v745
        %v747 = vpop.f32.mrb[0].mxu0
        %748 = vmatprep.mubr.f32.mxu0 0.0
        %749 = vmatmul.mubr.f32.gmra.mrb[0].mxu0 %v571
        %v750 = vpop.f32.mrb[0].mxu0
        %v751 = vadd.f32 0.0, %v750
        %v752 = vpop.f32.mrb[0].mxu0
        %753 = vmatprep.mubr.f32.mxu0 0.0
        %754 = vmatmul.mubr.f32.gmra.mrb[0].mxu0 %v574
        %v755 = vpop.f32.mrb[0].mxu0
        %v756 = vadd.f32 0.0, %v755
        %v757 = vpop.f32.mrb[0].mxu0
        %758 = vmatprep.mubr.f32.mxu0 0.0
        %759 = vmatmul.mubr.f32.gmra.mrb[0].mxu0 %v577
        %v760 = vpop.f32.mrb[0].mxu0
        %v761 = vadd.f32 0.0, %v760
        %v762 = vpop.f32.mrb[0].mxu0
        %763 = vmatprep.mubr.f32.mxu0 0.0
        %764 = vmatmul.mubr.f32.gmra.mrb[0].mxu0 %v580
        %v765 = vpop.f32.mrb[0].mxu0
        %v766 = vadd.f32 0.0, %v765
        %v767 = vpop.f32.mrb[0].mxu0
        %768 = vmatprep.mubr.f32.mxu0 0.0
        %769 = vmatmul.mubr.f32.gmra.mrb[0].mxu0 %v583
        %v770 = vpop.f32.mrb[0].mxu0
        %v771 = vadd.f32 0.0, %v770
        %v772 = vpop.f32.mrb[0].mxu0
        %773 = vmatprep.mubr.f32.mxu0 0.0
        %774 = vmatmul.mubr.f32.gmra.mrb[0].mxu0 %v586
        %v775 = vpop.f32.mrb[0].mxu0
        %v776 = vadd.f32 0.0, %v775
        %v777 = vpop.f32.mrb[0].mxu0
        %778 = vmatprep.mubr.f32.mxu0 0.0
        %779 = vmatmul.mubr.f32.gmra.mrb[0].mxu0 %v589
        %v780 = vpop.f32.mrb[0].mxu0
        %v781 = vadd.f32 0.0, %v780
        %v782 = vpop.f32.mrb[0].mxu0
        %783 = vmatprep.mubr.f32.mxu0 0.0
        %784 = vmatmul.mubr.f32.gmra.mrb[0].mxu0 %v592
        %v785 = vpop.f32.mrb[0].mxu0
        %v786 = vadd.f32 0.0, %v785
        %v787 = vpop.f32.mrb[0].mxu0
        %788 = vmatprep.mubr.f32.mxu0 0.0
        %789 = vmatmul.mubr.f32.gmra.mrb[0].mxu0 %v595
        %v790 = vpop.f32.mrb[0].mxu0
        %v791 = vadd.f32 0.0, %v790
        %v792 = vpop.f32.mrb[0].mxu0
        %793 = vmatprep.mubr.f32.mxu0 0.0
        %794 = vmatmul.mubr.f32.gmra.mrb[0].mxu0 %v598
        %v795 = vpop.f32.mrb[0].mxu0
        %v796 = vadd.f32 0.0, %v795
        %v797 = vpop.f32.mrb[0].mxu0
        %798 = vmatprep.mubr.f32.mxu0 0.0
        %799 = vmatmul.mubr.f32.gmra.mrb[0].mxu0 %v601
        %v800 = vpop.f32.mrb[0].mxu0
        %v801 = vadd.f32 0.0, %v800
        %v802 = vpop.f32.mrb[0].mxu0
        %803 = vmatprep.mubr.f32.mxu0 0.0
        %804 = vmatmul.mubr.f32.gmra.mrb[0].mxu0 %v604
        %v805 = vpop.f32.mrb[0].mxu0
        %v806 = vadd.f32 0.0, %v805
        %v807 = vpop.f32.mrb[0].mxu0
        %808 = vmatprep.mubr.f32.mxu0 0.0
        %809 = vmatmul.mubr.f32.gmra.mrb[0].mxu0 %v607
        %v810 = vpop.f32.mrb[0].mxu0
        %v811 = vadd.f32 0.0, %v810
        %v812 = vpop.f32.mrb[0].mxu0
        %813 = vmatprep.mubr.f32.mxu0 0.0
        %814 = vmatmul.mubr.f32.gmra.mrb[0].mxu0 %v610
        %v815 = vpop.f32.mrb[0].mxu0
        %v816 = vadd.f32 0.0, %v815
        %v817 = vpop.f32.mrb[0].mxu0
        %818 = vmatprep.mubr.f32.mxu0 0.0
        %819 = vmatmul.mubr.f32.gmra.mrb[0].mxu0 %v613
        %v820 = vpop.f32.mrb[0].mxu0
        %v821 = vadd.f32 0.0, %v820
        %v822 = vpop.f32.mrb[0].mxu0
        %823 = vmatprep.mubr.f32.mxu0 0.0
        %824 = vmatmul.mubr.f32.gmra.mrb[0].mxu0 %v616
        %v825 = vpop.f32.mrb[0].mxu0
        %v826 = vadd.f32 0.0, %v825
        %v827 = vpop.f32.mrb[0].mxu0
        %828 = vmatprep.mubr.f32.mxu0 0.0
        %829 = vmatmul.mubr.f32.gmra.mrb[0].mxu0 %v619
        %v830 = vpop.f32.mrb[0].mxu0
        %v831 = vadd.f32 0.0, %v830
        %v832 = vpop.f32.mrb[0].mxu0
        %833 = vmatprep.mubr.f32.mxu0 0.0
        %834 = vmatmul.mubr.f32.gmra.mrb[0].mxu0 %v622
        %v835 = vpop.f32.mrb[0].mxu0
        %v836 = vadd.f32 0.0, %v835
        %v837 = vpop.f32.mrb[0].mxu0
        %838 = vmatprep.mubr.f32.mxu0 0.0
        %839 = vmatmul.mubr.f32.gmra.mrb[0].mxu0 %v625
        %v840 = vpop.f32.mrb[0].mxu0
        %v841 = vadd.f32 0.0, %v840
        %v842 = vpop.f32.mrb[0].mxu0
        %843 = vmatprep.mubr.f32.mxu0 0.0
        %844 = vmatmul.mubr.f32.gmra.mrb[0].mxu0 %v628
        %v845 = vpop.f32.mrb[0].mxu0
        %v846 = vadd.f32 0.0, %v845
        %v847 = vpop.f32.mrb[0].mxu0
        %848 = vmatprep.mubr.f32.mxu0 0.0
        %849 = vmatmul.mubr.f32.gmra.mrb[0].mxu0 %v631
        %v850 = vpop.f32.mrb[0].mxu0
        %v851 = vadd.f32 0.0, %v850
        %v852 = vpop.f32.mrb[0].mxu0
        %853 = vmatprep.mubr.f32.mxu0 0.0
        %854 = vmatmul.mubr.f32.gmra.mrb[0].mxu0 %v634
        %v855 = vpop.f32.mrb[0].mxu0
        %v856 = vadd.f32 0.0, %v855
        %v857 = vpop.f32.mrb[0].mxu0
        %858 = vmatprep.mubr.f32.mxu0 0.0
        %859 = vmatmul.mubr.f32.gmra.mrb[0].mxu0 %v637
        %v860 = vpop.f32.mrb[0].mxu0
        %v861 = vadd.f32 0.0, %v860
        %v862 = vpop.f32.mrb[0].mxu0
        %863 = vdwg.mxu0
        %v864 = vld [vmem:[%s2] sm:$0x1]
        %v866 = vlaneseq
        %v867 = vshrl.u32 %v866, 7
        %v868 = vsub.s32 0, %v867
        %v869 = vrot.slane %v864, %v868
        %v871 = vmul.f32 %v706, %v869
        %v872 = vmul.f32 %v711, %v869
        %v873 = vmul.f32 %v716, %v869
        %v874 = vmul.f32 %v721, %v869
        %v875 = vmul.f32 %v726, %v869
        %v876 = vmul.f32 %v731, %v869
        %v877 = vmul.f32 %v736, %v869
        %v878 = vmul.f32 %v741, %v869
        %v879 = vmul.f32 %v746, %v869
        %v880 = vmul.f32 %v751, %v869
        %v881 = vmul.f32 %v756, %v869
        %v882 = vmul.f32 %v761, %v869
        %v883 = vmul.f32 %v766, %v869
        %v884 = vmul.f32 %v771, %v869
        %v885 = vmul.f32 %v776, %v869
        %v886 = vmul.f32 %v781, %v869
        %v887 = vmul.f32 %v786, %v869
        %v888 = vmul.f32 %v791, %v869
        %v889 = vmul.f32 %v796, %v869
        %v890 = vmul.f32 %v801, %v869
        %v891 = vmul.f32 %v806, %v869
        %v892 = vmul.f32 %v811, %v869
        %v893 = vmul.f32 %v816, %v869
        %v894 = vmul.f32 %v821, %v869
        %v895 = vmul.f32 %v826, %v869
        %v896 = vmul.f32 %v831, %v869
        %v897 = vmul.f32 %v836, %v869
        %v898 = vmul.f32 %v841, %v869
        %v899 = vmul.f32 %v846, %v869
        %v900 = vmul.f32 %v851, %v869
        %v901 = vmul.f32 %v856, %v869
        %v902 = vmul.f32 %v861, %v869
        %v903 = vld [vmem:[%s3] sm:$0x1]
        %v905 = vlaneseq
        %v906 = vshrl.u32 %v905, 7
        %v907 = vsub.s32 0, %v906
        %v908 = vrot.slane %v903, %v907
        %v910 = vadd.f32 %v871, %v908
        %v911 = vadd.f32 %v872, %v908
        %v912 = vadd.f32 %v873, %v908
        %v913 = vadd.f32 %v874, %v908
        %v914 = vadd.f32 %v875, %v908
        %v915 = vadd.f32 %v876, %v908
        %v916 = vadd.f32 %v877, %v908
        %v917 = vadd.f32 %v878, %v908
        %v918 = vadd.f32 %v879, %v908
        %v919 = vadd.f32 %v880, %v908
        %v920 = vadd.f32 %v881, %v908
        %v921 = vadd.f32 %v882, %v908
        %v922 = vadd.f32 %v883, %v908
        %v923 = vadd.f32 %v884, %v908
        %v924 = vadd.f32 %v885, %v908
        %v925 = vadd.f32 %v886, %v908
        %v926 = vadd.f32 %v887, %v908
        %v927 = vadd.f32 %v888, %v908
        %v928 = vadd.f32 %v889, %v908
        %v929 = vadd.f32 %v890, %v908
        %v930 = vadd.f32 %v891, %v908
        %v931 = vadd.f32 %v892, %v908
        %v932 = vadd.f32 %v893, %v908
        %v933 = vadd.f32 %v894, %v908
        %v934 = vadd.f32 %v895, %v908
        %v935 = vadd.f32 %v896, %v908
        %v936 = vadd.f32 %v897, %v908
        %v937 = vadd.f32 %v898, %v908
        %v938 = vadd.f32 %v899, %v908
        %v939 = vadd.f32 %v900, %v908
        %v940 = vadd.f32 %v901, %v908
        %v941 = vadd.f32 %v902, %v908
        %v942 = vmax.f32 %v910, 0.0
        %v943 = vmax.f32 %v911, 0.0
        %v944 = vmax.f32 %v912, 0.0
        %v945 = vmax.f32 %v913, 0.0
        %v946 = vmax.f32 %v914, 0.0
        %v947 = vmax.f32 %v915, 0.0
        %v948 = vmax.f32 %v916, 0.0
        %v949 = vmax.f32 %v917, 0.0
        %v950 = vmax.f32 %v918, 0.0
        %v951 = vmax.f32 %v919, 0.0
        %v952 = vmax.f32 %v920, 0.0
        %v953 = vmax.f32 %v921, 0.0
        %v954 = vmax.f32 %v922, 0.0
        %v955 = vmax.f32 %v923, 0.0
        %v956 = vmax.f32 %v924, 0.0
        %v957 = vmax.f32 %v925, 0.0
        %v958 = vmax.f32 %v926, 0.0
        %v959 = vmax.f32 %v927, 0.0
        %v960 = vmax.f32 %v928, 0.0
        %v961 = vmax.f32 %v929, 0.0
        %v962 = vmax.f32 %v930, 0.0
        %v963 = vmax.f32 %v931, 0.0
        %v964 = vmax.f32 %v932, 0.0
        %v965 = vmax.f32 %v933, 0.0
        %v966 = vmax.f32 %v934, 0.0
        %v967 = vmax.f32 %v935, 0.0
        %v968 = vmax.f32 %v936, 0.0
        %v969 = vmax.f32 %v937, 0.0
        %v970 = vmax.f32 %v938, 0.0
        %v971 = vmax.f32 %v939, 0.0
        %v972 = vmax.f32 %v940, 0.0
        %v973 = vmax.f32 %v941, 0.0
        %974 = vst.msk [vmem:[#allocation2] sm:$0xff] %vm542, 0.0
        %975 = vst.msk [vmem:[#allocation2 + $0x8] sm:$0xff] %vm542, 0.0
        %vm976 = vcmask 125952
        %977 = vst.msk [vmem:[#allocation2 + $0x10] sm:$0xf] %vm976, 0.0
        %978 = vst.msk [vmem:[#allocation2 + $0x18] sm:$0xff] %vm542, 0.0
        %979 = vst.msk [vmem:[#allocation2 + $0x20] sm:$0xff] %vm542, 0.0
        %980 = vst.msk [vmem:[#allocation2 + $0x28] sm:$0xf] %vm976, 0.0
        %s981 = scalar_lea.vmem [#allocation2], 432
        %982 = vst.msk [vmem:[%s981] sm:$0xff] %vm542, 0.0
        %983 = vst.msk [vmem:[%s981 + $0x8] sm:$0xff] %vm542, 0.0
        %984 = vst.msk [vmem:[%s981 + $0x10] sm:$0xf] %vm976, 0.0
        %985 = vst.msk [vmem:[%s981 + $0x18] sm:$0xff] %vm542, 0.0
        %986 = vst.msk [vmem:[%s981 + $0x20] sm:$0xff] %vm542, 0.0
        %987 = vst.msk [vmem:[%s981 + $0x28] sm:$0xf] %vm976, 0.0
        %s988 = scalar_lea.vmem [#allocation2], 48
        %vm989 = vcmask 123904
        %990 = vst.msk [vmem:[%s988] sm:$0x3] %vm989, 0.0
        %991 = vst.msk [vmem:[%s988 + $0x18] sm:$0x3] %vm989, 0.0
        %992 = vst.msk [vmem:[%s988 + $0x30] sm:$0x3] %vm989, 0.0
        %993 = vst.msk [vmem:[%s988 + $0x48] sm:$0x3] %vm989, 0.0
        %994 = vst.msk [vmem:[%s988 + $0x60] sm:$0x3] %vm989, 0.0
        %995 = vst.msk [vmem:[%s988 + $0x78] sm:$0x3] %vm989, 0.0
        %996 = vst.msk [vmem:[%s988 + $0x90] sm:$0x3] %vm989, 0.0
        %997 = vst.msk [vmem:[%s988 + $0xa8] sm:$0x3] %vm989, 0.0
        %998 = vst.msk [vmem:[%s988 + $0xc0] sm:$0x3] %vm989, 0.0
        %999 = vst.msk [vmem:[%s988 + $0xd8] sm:$0x3] %vm989, 0.0
        %1000 = vst.msk [vmem:[%s988 + $0xf0] sm:$0x3] %vm989, 0.0
        %1001 = vst.msk [vmem:[%s988 + $0x108] sm:$0x3] %vm989, 0.0
        %1002 = vst.msk [vmem:[%s988 + $0x120] sm:$0x3] %vm989, 0.0
        %1003 = vst.msk [vmem:[%s988 + $0x138] sm:$0x3] %vm989, 0.0
        %1004 = vst.msk [vmem:[%s988 + $0x150] sm:$0x3] %vm989, 0.0
        %1005 = vst.msk [vmem:[%s988 + $0x168] sm:$0x3] %vm989, 0.0
        %1006 = vst.msk [vmem:[%s988 + $0x12] sm:$0x3] %vm989, 0.0
        %1007 = vst.msk [vmem:[%s988 + $0x2a] sm:$0x3] %vm989, 0.0
        %1008 = vst.msk [vmem:[%s988 + $0x42] sm:$0x3] %vm989, 0.0
        %1009 = vst.msk [vmem:[%s988 + $0x5a] sm:$0x3] %vm989, 0.0
        %1010 = vst.msk [vmem:[%s988 + $0x72] sm:$0x3] %vm989, 0.0
        %1011 = vst.msk [vmem:[%s988 + $0x8a] sm:$0x3] %vm989, 0.0
        %1012 = vst.msk [vmem:[%s988 + $0xa2] sm:$0x3] %vm989, 0.0
        %1013 = vst.msk [vmem:[%s988 + $0xba] sm:$0x3] %vm989, 0.0
        %1014 = vst.msk [vmem:[%s988 + $0xd2] sm:$0x3] %vm989, 0.0
        %1015 = vst.msk [vmem:[%s988 + $0xea] sm:$0x3] %vm989, 0.0
        %1016 = vst.msk [vmem:[%s988 + $0x102] sm:$0x3] %vm989, 0.0
        %1017 = vst.msk [vmem:[%s988 + $0x11a] sm:$0x3] %vm989, 0.0
        %1018 = vst.msk [vmem:[%s988 + $0x132] sm:$0x3] %vm989, 0.0
        %1019 = vst.msk [vmem:[%s988 + $0x14a] sm:$0x3] %vm989, 0.0
        %1020 = vst.msk [vmem:[%s988 + $0x162] sm:$0x3] %vm989, 0.0
        %1021 = vst.msk [vmem:[%s988 + $0x17a] sm:$0x3] %vm989, 0.0
        %1022 = vst.msk [vmem:[%s988 + $0x2] sm:$0xff] %vm542, %v942
        %1023 = vst.msk [vmem:[%s988 + $0xa] sm:$0xff] %vm542, %v943
        %1024 = vst.msk [vmem:[%s988 + $0x1a] sm:$0xff] %vm542, %v944
        %1025 = vst.msk [vmem:[%s988 + $0x22] sm:$0xff] %vm542, %v945
        %1026 = vst.msk [vmem:[%s988 + $0x32] sm:$0xff] %vm542, %v946
        %1027 = vst.msk [vmem:[%s988 + $0x3a] sm:$0xff] %vm542, %v947
        %1028 = vst.msk [vmem:[%s988 + $0x4a] sm:$0xff] %vm542, %v948
        %1029 = vst.msk [vmem:[%s988 + $0x52] sm:$0xff] %vm542, %v949
        %1030 = vst.msk [vmem:[%s988 + $0x62] sm:$0xff] %vm542, %v950
        %1031 = vst.msk [vmem:[%s988 + $0x6a] sm:$0xff] %vm542, %v951
        %1032 = vst.msk [vmem:[%s988 + $0x7a] sm:$0xff] %vm542, %v952
        %1033 = vst.msk [vmem:[%s988 + $0x82] sm:$0xff] %vm542, %v953
        %1034 = vst.msk [vmem:[%s988 + $0x92] sm:$0xff] %vm542, %v954
        %1035 = vst.msk [vmem:[%s988 + $0x9a] sm:$0xff] %vm542, %v955
        %1036 = vst.msk [vmem:[%s988 + $0xaa] sm:$0xff] %vm542, %v956
        %1037 = vst.msk [vmem:[%s988 + $0xb2] sm:$0xff] %vm542, %v957
        %1038 = vst.msk [vmem:[%s988 + $0xc2] sm:$0xff] %vm542, %v958
        %1039 = vst.msk [vmem:[%s988 + $0xca] sm:$0xff] %vm542, %v959
        %1040 = vst.msk [vmem:[%s988 + $0xda] sm:$0xff] %vm542, %v960
        %1041 = vst.msk [vmem:[%s988 + $0xe2] sm:$0xff] %vm542, %v961
        %1042 = vst.msk [vmem:[%s988 + $0xf2] sm:$0xff] %vm542, %v962
        %1043 = vst.msk [vmem:[%s988 + $0xfa] sm:$0xff] %vm542, %v963
        %1044 = vst.msk [vmem:[%s988 + $0x10a] sm:$0xff] %vm542, %v964
        %1045 = vst.msk [vmem:[%s988 + $0x112] sm:$0xff] %vm542, %v965
        %1046 = vst.msk [vmem:[%s988 + $0x122] sm:$0xff] %vm542, %v966
        %1047 = vst.msk [vmem:[%s988 + $0x12a] sm:$0xff] %vm542, %v967
        %1048 = vst.msk [vmem:[%s988 + $0x13a] sm:$0xff] %vm542, %v968
        %1049 = vst.msk [vmem:[%s988 + $0x142] sm:$0xff] %vm542, %v969
        %1050 = vst.msk [vmem:[%s988 + $0x152] sm:$0xff] %vm542, %v970
        %1051 = vst.msk [vmem:[%s988 + $0x15a] sm:$0xff] %vm542, %v971
        %1052 = vst.msk [vmem:[%s988 + $0x16a] sm:$0xff] %vm542, %v972
        %1053 = vst.msk [vmem:[%s988 + $0x172] sm:$0xff] %vm542, %v973
        %v1054 = vld [vmem:[#allocation2] sm:$0xff]
        %v1055 = vld [vmem:[#allocation2 + $0x8] sm:$0xff]
        %v1056 = vld [vmem:[#allocation2 + $0x18] sm:$0xff]
        %v1057 = vld [vmem:[#allocation2 + $0x20] sm:$0xff]
        %v1058 = vld [vmem:[#allocation2 + $0x30] sm:$0xff]
        %v1059 = vld [vmem:[#allocation2 + $0x38] sm:$0xff]
        %v1060 = vld [vmem:[#allocation2 + $0x48] sm:$0xff]
        %v1061 = vld [vmem:[#allocation2 + $0x50] sm:$0xff]
        %v1062 = vld [vmem:[#allocation2 + $0x60] sm:$0xff]
        %v1063 = vld [vmem:[#allocation2 + $0x68] sm:$0xff]
        %v1064 = vld [vmem:[#allocation2 + $0x78] sm:$0xff]
        %v1065 = vld [vmem:[#allocation2 + $0x80] sm:$0xff]
        %v1066 = vld [vmem:[#allocation2 + $0x90] sm:$0xff]
        %v1067 = vld [vmem:[#allocation2 + $0x98] sm:$0xff]
        %v1068 = vld [vmem:[#allocation2 + $0xa8] sm:$0xff]
        %v1069 = vld [vmem:[#allocation2 + $0xb0] sm:$0xff]
        %v1070 = vld [vmem:[#allocation2 + $0xc0] sm:$0xff]
        %v1071 = vld [vmem:[#allocation2 + $0xc8] sm:$0xff]
        %v1072 = vld [vmem:[#allocation2 + $0xd8] sm:$0xff]
        %v1073 = vld [vmem:[#allocation2 + $0xe0] sm:$0xff]
        %v1074 = vld [vmem:[#allocation2 + $0xf0] sm:$0xff]
        %v1075 = vld [vmem:[#allocation2 + $0xf8] sm:$0xff]
        %v1076 = vld [vmem:[#allocation2 + $0x108] sm:$0xff]
        %v1077 = vld [vmem:[#allocation2 + $0x110] sm:$0xff]
        %v1078 = vld [vmem:[#allocation2 + $0x120] sm:$0xff]
        %v1079 = vld [vmem:[#allocation2 + $0x128] sm:$0xff]
        %v1080 = vld [vmem:[#allocation2 + $0x138] sm:$0xff]
        %v1081 = vld [vmem:[#allocation2 + $0x140] sm:$0xff]
        %v1082 = vld [vmem:[#allocation2 + $0x150] sm:$0xff]
        %v1083 = vld [vmem:[#allocation2 + $0x158] sm:$0xff]
        %v1084 = vld [vmem:[#allocation2 + $0x168] sm:$0xff]
        %v1085 = vld [vmem:[#allocation2 + $0x170] sm:$0xff]
        %v1086 = vld [vmem:[#allocation2 + $0x1] sm:$0xff]
        %v1087 = vld [vmem:[#allocation2 + $0x9] sm:$0xff]
        %v1088 = vld [vmem:[#allocation2 + $0x19] sm:$0xff]
        %v1089 = vld [vmem:[#allocation2 + $0x21] sm:$0xff]
        %v1090 = vld [vmem:[#allocation2 + $0x31] sm:$0xff]
        %v1091 = vld [vmem:[#allocation2 + $0x39] sm:$0xff]
        %v1092 = vld [vmem:[#allocation2 + $0x49] sm:$0xff]
        %v1093 = vld [vmem:[#allocation2 + $0x51] sm:$0xff]
        %v1094 = vld [vmem:[#allocation2 + $0x61] sm:$0xff]
        %v1095 = vld [vmem:[#allocation2 + $0x69] sm:$0xff]
        %v1096 = vld [vmem:[#allocation2 + $0x79] sm:$0xff]
        %v1097 = vld [vmem:[#allocation2 + $0x81] sm:$0xff]
        %v1098 = vld [vmem:[#allocation2 + $0x91] sm:$0xff]
        %v1099 = vld [vmem:[#allocation2 + $0x99] sm:$0xff]
        %v1100 = vld [vmem:[#allocation2 + $0xa9] sm:$0xff]
        %v1101 = vld [vmem:[#allocation2 + $0xb1] sm:$0xff]
        %v1102 = vld [vmem:[#allocation2 + $0xc1] sm:$0xff]
        %v1103 = vld [vmem:[#allocation2 + $0xc9] sm:$0xff]
        %v1104 = vld [vmem:[#allocation2 + $0xd9] sm:$0xff]
        %v1105 = vld [vmem:[#allocation2 + $0xe1] sm:$0xff]
        %v1106 = vld [vmem:[#allocation2 + $0xf1] sm:$0xff]
        %v1107 = vld [vmem:[#allocation2 + $0xf9] sm:$0xff]
        %v1108 = vld [vmem:[#allocation2 + $0x109] sm:$0xff]
        %v1109 = vld [vmem:[#allocation2 + $0x111] sm:$0xff]
        %v1110 = vld [vmem:[#allocation2 + $0x121] sm:$0xff]
        %v1111 = vld [vmem:[#allocation2 + $0x129] sm:$0xff]
        %v1112 = vld [vmem:[#allocation2 + $0x139] sm:$0xff]
        %v1113 = vld [vmem:[#allocation2 + $0x141] sm:$0xff]
        %v1114 = vld [vmem:[#allocation2 + $0x151] sm:$0xff]
        %v1115 = vld [vmem:[#allocation2 + $0x159] sm:$0xff]
        %v1116 = vld [vmem:[#allocation2 + $0x169] sm:$0xff]
        %v1117 = vld [vmem:[#allocation2 + $0x171] sm:$0xff]
        %v1118 = vld [vmem:[#allocation2 + $0x2] sm:$0xff]
        %v1119 = vld [vmem:[#allocation2 + $0xa] sm:$0xff]
        %v1120 = vld [vmem:[#allocation2 + $0x1a] sm:$0xff]
        %v1121 = vld [vmem:[#allocation2 + $0x22] sm:$0xff]
        %v1122 = vld [vmem:[#allocation2 + $0x32] sm:$0xff]
        %v1123 = vld [vmem:[#allocation2 + $0x3a] sm:$0xff]
        %v1124 = vld [vmem:[#allocation2 + $0x4a] sm:$0xff]
        %v1125 = vld [vmem:[#allocation2 + $0x52] sm:$0xff]
        %v1126 = vld [vmem:[#allocation2 + $0x62] sm:$0xff]
        %v1127 = vld [vmem:[#allocation2 + $0x6a] sm:$0xff]
        %v1128 = vld [vmem:[#allocation2 + $0x7a] sm:$0xff]
        %v1129 = vld [vmem:[#allocation2 + $0x82] sm:$0xff]
        %v1130 = vld [vmem:[#allocation2 + $0x92] sm:$0xff]
        %v1131 = vld [vmem:[#allocation2 + $0x9a] sm:$0xff]
        %v1132 = vld [vmem:[#allocation2 + $0xaa] sm:$0xff]
        %v1133 = vld [vmem:[#allocation2 + $0xb2] sm:$0xff]
        %v1134 = vld [vmem:[#allocation2 + $0xc2] sm:$0xff]
        %v1135 = vld [vmem:[#allocation2 + $0xca] sm:$0xff]
        %v1136 = vld [vmem:[#allocation2 + $0xda] sm:$0xff]
        %v1137 = vld [vmem:[#allocation2 + $0xe2] sm:$0xff]
        %v1138 = vld [vmem:[#allocation2 + $0xf2] sm:$0xff]
        %v1139 = vld [vmem:[#allocation2 + $0xfa] sm:$0xff]
        %v1140 = vld [vmem:[#allocation2 + $0x10a] sm:$0xff]
        %v1141 = vld [vmem:[#allocation2 + $0x112] sm:$0xff]
        %v1142 = vld [vmem:[#allocation2 + $0x122] sm:$0xff]
        %v1143 = vld [vmem:[#allocation2 + $0x12a] sm:$0xff]
        %v1144 = vld [vmem:[#allocation2 + $0x13a] sm:$0xff]
        %v1145 = vld [vmem:[#allocation2 + $0x142] sm:$0xff]
        %v1146 = vld [vmem:[#allocation2 + $0x152] sm:$0xff]
        %v1147 = vld [vmem:[#allocation2 + $0x15a] sm:$0xff]
        %v1148 = vld [vmem:[#allocation2 + $0x16a] sm:$0xff]
        %v1149 = vld [vmem:[#allocation2 + $0x172] sm:$0xff]
        %v1150 = vld [vmem:[#allocation2 + $0x3] sm:$0xff]
        %v1151 = vld [vmem:[#allocation2 + $0xb] sm:$0xff]
        %v1152 = vld [vmem:[#allocation2 + $0x1b] sm:$0xff]
        %v1153 = vld [vmem:[#allocation2 + $0x23] sm:$0xff]
        %v1154 = vld [vmem:[#allocation2 + $0x33] sm:$0xff]
        %v1155 = vld [vmem:[#allocation2 + $0x3b] sm:$0xff]
        %v1156 = vld [vmem:[#allocation2 + $0x4b] sm:$0xff]
        %v1157 = vld [vmem:[#allocation2 + $0x53] sm:$0xff]
        %v1158 = vld [vmem:[#allocation2 + $0x63] sm:$0xff]
        %v1159 = vld [vmem:[#allocation2 + $0x6b] sm:$0xff]
        %v1160 = vld [vmem:[#allocation2 + $0x7b] sm:$0xff]
        %v1161 = vld [vmem:[#allocation2 + $0x83] sm:$0xff]
        %v1162 = vld [vmem:[#allocation2 + $0x93] sm:$0xff]
        %v1163 = vld [vmem:[#allocation2 + $0x9b] sm:$0xff]
        %v1164 = vld [vmem:[#allocation2 + $0xab] sm:$0xff]
        %v1165 = vld [vmem:[#allocation2 + $0xb3] sm:$0xff]
        %v1166 = vld [vmem:[#allocation2 + $0xc3] sm:$0xff]
        %v1167 = vld [vmem:[#allocation2 + $0xcb] sm:$0xff]
        %v1168 = vld [vmem:[#allocation2 + $0xdb] sm:$0xff]
        %v1169 = vld [vmem:[#allocation2 + $0xe3] sm:$0xff]
        %v1170 = vld [vmem:[#allocation2 + $0xf3] sm:$0xff]
        %v1171 = vld [vmem:[#allocation2 + $0xfb] sm:$0xff]
        %v1172 = vld [vmem:[#allocation2 + $0x10b] sm:$0xff]
        %v1173 = vld [vmem:[#allocation2 + $0x113] sm:$0xff]
        %v1174 = vld [vmem:[#allocation2 + $0x123] sm:$0xff]
        %v1175 = vld [vmem:[#allocation2 + $0x12b] sm:$0xff]
        %v1176 = vld [vmem:[#allocation2 + $0x13b] sm:$0xff]
        %v1177 = vld [vmem:[#allocation2 + $0x143] sm:$0xff]
        %v1178 = vld [vmem:[#allocation2 + $0x153] sm:$0xff]
        %v1179 = vld [vmem:[#allocation2 + $0x15b] sm:$0xff]
        %v1180 = vld [vmem:[#allocation2 + $0x16b] sm:$0xff]
        %v1181 = vld [vmem:[#allocation2 + $0x173] sm:$0xff]
        %v1182 = vld [vmem:[#allocation2 + $0x4] sm:$0xff]
        %v1183 = vld [vmem:[#allocation2 + $0xc] sm:$0xff]
        %v1184 = vld [vmem:[#allocation2 + $0x1c] sm:$0xff]
        %v1185 = vld [vmem:[#allocation2 + $0x24] sm:$0xff]
        %v1186 = vld [vmem:[#allocation2 + $0x34] sm:$0xff]
        %v1187 = vld [vmem:[#allocation2 + $0x3c] sm:$0xff]
        %v1188 = vld [vmem:[#allocation2 + $0x4c] sm:$0xff]
        %v1189 = vld [vmem:[#allocation2 + $0x54] sm:$0xff]
        %v1190 = vld [vmem:[#allocation2 + $0x64] sm:$0xff]
        %v1191 = vld [vmem:[#allocation2 + $0x6c] sm:$0xff]
        %v1192 = vld [vmem:[#allocation2 + $0x7c] sm:$0xff]
        %v1193 = vld [vmem:[#allocation2 + $0x84] sm:$0xff]
        %v1194 = vld [vmem:[#allocation2 + $0x94] sm:$0xff]
        %v1195 = vld [vmem:[#allocation2 + $0x9c] sm:$0xff]
        %v1196 = vld [vmem:[#allocation2 + $0xac] sm:$0xff]
        %v1197 = vld [vmem:[#allocation2 + $0xb4] sm:$0xff]
        %v1198 = vld [vmem:[#allocation2 + $0xc4] sm:$0xff]
        %v1199 = vld [vmem:[#allocation2 + $0xcc] sm:$0xff]
        %v1200 = vld [vmem:[#allocation2 + $0xdc] sm:$0xff]
        %v1201 = vld [vmem:[#allocation2 + $0xe4] sm:$0xff]
        %v1202 = vld [vmem:[#allocation2 + $0xf4] sm:$0xff]
        %v1203 = vld [vmem:[#allocation2 + $0xfc] sm:$0xff]
        %v1204 = vld [vmem:[#allocation2 + $0x10c] sm:$0xff]
        %v1205 = vld [vmem:[#allocation2 + $0x114] sm:$0xff]
        %v1206 = vld [vmem:[#allocation2 + $0x124] sm:$0xff]
        %v1207 = vld [vmem:[#allocation2 + $0x12c] sm:$0xff]
        %v1208 = vld [vmem:[#allocation2 + $0x13c] sm:$0xff]
        %v1209 = vld [vmem:[#allocation2 + $0x144] sm:$0xff]
        %v1210 = vld [vmem:[#allocation2 + $0x154] sm:$0xff]
        %v1211 = vld [vmem:[#allocation2 + $0x15c] sm:$0xff]
        %v1212 = vld [vmem:[#allocation2 + $0x16c] sm:$0xff]
        %v1213 = vld [vmem:[#allocation2 + $0x174] sm:$0xff]
        %s1214 = scalar_lea.vmem [#allocation2], 24
        %v1215 = vld [vmem:[%s1214] sm:$0xff]
        %v1216 = vld [vmem:[%s1214 + $0x8] sm:$0xff]
        %v1217 = vld [vmem:[%s1214 + $0x18] sm:$0xff]
        %v1218 = vld [vmem:[%s1214 + $0x20] sm:$0xff]
        %v1219 = vld [vmem:[%s1214 + $0x30] sm:$0xff]
        %v1220 = vld [vmem:[%s1214 + $0x38] sm:$0xff]
        %v1221 = vld [vmem:[%s1214 + $0x48] sm:$0xff]
        %v1222 = vld [vmem:[%s1214 + $0x50] sm:$0xff]
        %v1223 = vld [vmem:[%s1214 + $0x60] sm:$0xff]
        %v1224 = vld [vmem:[%s1214 + $0x68] sm:$0xff]
        %v1225 = vld [vmem:[%s1214 + $0x78] sm:$0xff]
        %v1226 = vld [vmem:[%s1214 + $0x80] sm:$0xff]
        %v1227 = vld [vmem:[%s1214 + $0x90] sm:$0xff]
        %v1228 = vld [vmem:[%s1214 + $0x98] sm:$0xff]
        %v1229 = vld [vmem:[%s1214 + $0xa8] sm:$0xff]
        %v1230 = vld [vmem:[%s1214 + $0xb0] sm:$0xff]
        %v1231 = vld [vmem:[%s1214 + $0xc0] sm:$0xff]
        %v1232 = vld [vmem:[%s1214 + $0xc8] sm:$0xff]
        %v1233 = vld [vmem:[%s1214 + $0xd8] sm:$0xff]
        %v1234 = vld [vmem:[%s1214 + $0xe0] sm:$0xff]
        %v1235 = vld [vmem:[%s1214 + $0xf0] sm:$0xff]
        %v1236 = vld [vmem:[%s1214 + $0xf8] sm:$0xff]
        %v1237 = vld [vmem:[%s1214 + $0x108] sm:$0xff]
        %v1238 = vld [vmem:[%s1214 + $0x110] sm:$0xff]
        %v1239 = vld [vmem:[%s1214 + $0x120] sm:$0xff]
        %v1240 = vld [vmem:[%s1214 + $0x128] sm:$0xff]
        %v1241 = vld [vmem:[%s1214 + $0x138] sm:$0xff]
        %v1242 = vld [vmem:[%s1214 + $0x140] sm:$0xff]
        %v1243 = vld [vmem:[%s1214 + $0x150] sm:$0xff]
        %v1244 = vld [vmem:[%s1214 + $0x158] sm:$0xff]
        %v1245 = vld [vmem:[%s1214 + $0x168] sm:$0xff]
        %v1246 = vld [vmem:[%s1214 + $0x170] sm:$0xff]
        %v1247 = vld [vmem:[%s1214 + $0x1] sm:$0xff]
        %v1248 = vld [vmem:[%s1214 + $0x9] sm:$0xff]
        %v1249 = vld [vmem:[%s1214 + $0x19] sm:$0xff]
        %v1250 = vld [vmem:[%s1214 + $0x21] sm:$0xff]
        %v1251 = vld [vmem:[%s1214 + $0x31] sm:$0xff]
        %v1252 = vld [vmem:[%s1214 + $0x39] sm:$0xff]
        %v1253 = vld [vmem:[%s1214 + $0x49] sm:$0xff]
        %v1254 = vld [vmem:[%s1214 + $0x51] sm:$0xff]
        %v1255 = vld [vmem:[%s1214 + $0x61] sm:$0xff]
        %v1256 = vld [vmem:[%s1214 + $0x69] sm:$0xff]
        %v1257 = vld [vmem:[%s1214 + $0x79] sm:$0xff]
        %v1258 = vld [vmem:[%s1214 + $0x81] sm:$0xff]
        %v1259 = vld [vmem:[%s1214 + $0x91] sm:$0xff]
        %v1260 = vld [vmem:[%s1214 + $0x99] sm:$0xff]
        %v1261 = vld [vmem:[%s1214 + $0xa9] sm:$0xff]
        %v1262 = vld [vmem:[%s1214 + $0xb1] sm:$0xff]
        %v1263 = vld [vmem:[%s1214 + $0xc1] sm:$0xff]
        %v1264 = vld [vmem:[%s1214 + $0xc9] sm:$0xff]
        %v1265 = vld [vmem:[%s1214 + $0xd9] sm:$0xff]
        %v1266 = vld [vmem:[%s1214 + $0xe1] sm:$0xff]
        %v1267 = vld [vmem:[%s1214 + $0xf1] sm:$0xff]
        %v1268 = vld [vmem:[%s1214 + $0xf9] sm:$0xff]
        %v1269 = vld [vmem:[%s1214 + $0x109] sm:$0xff]
        %v1270 = vld [vmem:[%s1214 + $0x111] sm:$0xff]
        %v1271 = vld [vmem:[%s1214 + $0x121] sm:$0xff]
        %v1272 = vld [vmem:[%s1214 + $0x129] sm:$0xff]
        %v1273 = vld [vmem:[%s1214 + $0x139] sm:$0xff]
        %v1274 = vld [vmem:[%s1214 + $0x141] sm:$0xff]
        %v1275 = vld [vmem:[%s1214 + $0x151] sm:$0xff]
        %v1276 = vld [vmem:[%s1214 + $0x159] sm:$0xff]
        %v1277 = vld [vmem:[%s1214 + $0x169] sm:$0xff]
        %v1278 = vld [vmem:[%s1214 + $0x171] sm:$0xff]
        %v1279 = vld [vmem:[%s1214 + $0x2] sm:$0xff]
        %v1280 = vld [vmem:[%s1214 + $0xa] sm:$0xff]
        %v1281 = vld [vmem:[%s1214 + $0x1a] sm:$0xff]
        %v1282 = vld [vmem:[%s1214 + $0x22] sm:$0xff]
        %v1283 = vld [vmem:[%s1214 + $0x32] sm:$0xff]
        %v1284 = vld [vmem:[%s1214 + $0x3a] sm:$0xff]
        %v1285 = vld [vmem:[%s1214 + $0x4a] sm:$0xff]
        %v1286 = vld [vmem:[%s1214 + $0x52] sm:$0xff]
        %v1287 = vld [vmem:[%s1214 + $0x62] sm:$0xff]
        %v1288 = vld [vmem:[%s1214 + $0x6a] sm:$0xff]
        %v1289 = vld [vmem:[%s1214 + $0x7a] sm:$0xff]
        %v1290 = vld [vmem:[%s1214 + $0x82] sm:$0xff]
        %v1291 = vld [vmem:[%s1214 + $0x92] sm:$0xff]
        %v1292 = vld [vmem:[%s1214 + $0x9a] sm:$0xff]
        %v1293 = vld [vmem:[%s1214 + $0xaa] sm:$0xff]
        %v1294 = vld [vmem:[%s1214 + $0xb2] sm:$0xff]
        %v1295 = vld [vmem:[%s1214 + $0xc2] sm:$0xff]
        %v1296 = vld [vmem:[%s1214 + $0xca] sm:$0xff]
        %v1297 = vld [vmem:[%s1214 + $0xda] sm:$0xff]
        %v1298 = vld [vmem:[%s1214 + $0xe2] sm:$0xff]
        %v1299 = vld [vmem:[%s1214 + $0xf2] sm:$0xff]
        %v1300 = vld [vmem:[%s1214 + $0xfa] sm:$0xff]
        %v1301 = vld [vmem:[%s1214 + $0x10a] sm:$0xff]
        %v1302 = vld [vmem:[%s1214 + $0x112] sm:$0xff]
        %v1303 = vld [vmem:[%s1214 + $0x122] sm:$0xff]
        %v1304 = vld [vmem:[%s1214 + $0x12a] sm:$0xff]
        %v1305 = vld [vmem:[%s1214 + $0x13a] sm:$0xff]
        %v1306 = vld [vmem:[%s1214 + $0x142] sm:$0xff]
        %v1307 = vld [vmem:[%s1214 + $0x152] sm:$0xff]
        %v1308 = vld [vmem:[%s1214 + $0x15a] sm:$0xff]
        %v1309 = vld [vmem:[%s1214 + $0x16a] sm:$0xff]
        %v1310 = vld [vmem:[%s1214 + $0x172] sm:$0xff]
        %v1311 = vld [vmem:[%s1214 + $0x3] sm:$0xff]
        %v1312 = vld [vmem:[%s1214 + $0xb] sm:$0xff]
        %v1313 = vld [vmem:[%s1214 + $0x1b] sm:$0xff]
        %v1314 = vld [vmem:[%s1214 + $0x23] sm:$0xff]
        %v1315 = vld [vmem:[%s1214 + $0x33] sm:$0xff]
        %v1316 = vld [vmem:[%s1214 + $0x3b] sm:$0xff]
        %v1317 = vld [vmem:[%s1214 + $0x4b] sm:$0xff]
        %v1318 = vld [vmem:[%s1214 + $0x53] sm:$0xff]
        %v1319 = vld [vmem:[%s1214 + $0x63] sm:$0xff]
        %v1320 = vld [vmem:[%s1214 + $0x6b] sm:$0xff]
        %v1321 = vld [vmem:[%s1214 + $0x7b] sm:$0xff]
        %v1322 = vld [vmem:[%s1214 + $0x83] sm:$0xff]
        %v1323 = vld [vmem:[%s1214 + $0x93] sm:$0xff]
        %v1324 = vld [vmem:[%s1214 + $0x9b] sm:$0xff]
        %v1325 = vld [vmem:[%s1214 + $0xab] sm:$0xff]
        %v1326 = vld [vmem:[%s1214 + $0xb3] sm:$0xff]
        %v1327 = vld [vmem:[%s1214 + $0xc3] sm:$0xff]
        %v1328 = vld [vmem:[%s1214 + $0xcb] sm:$0xff]
        %v1329 = vld [vmem:[%s1214 + $0xdb] sm:$0xff]
        %v1330 = vld [vmem:[%s1214 + $0xe3] sm:$0xff]
        %v1331 = vld [vmem:[%s1214 + $0xf3] sm:$0xff]
        %v1332 = vld [vmem:[%s1214 + $0xfb] sm:$0xff]
        %v1333 = vld [vmem:[%s1214 + $0x10b] sm:$0xff]
        %v1334 = vld [vmem:[%s1214 + $0x113] sm:$0xff]
        %v1335 = vld [vmem:[%s1214 + $0x123] sm:$0xff]
        %v1336 = vld [vmem:[%s1214 + $0x12b] sm:$0xff]
        %v1337 = vld [vmem:[%s1214 + $0x13b] sm:$0xff]
        %v1338 = vld [vmem:[%s1214 + $0x143] sm:$0xff]
        %v1339 = vld [vmem:[%s1214 + $0x153] sm:$0xff]
        %v1340 = vld [vmem:[%s1214 + $0x15b] sm:$0xff]
        %v1341 = vld [vmem:[%s1214 + $0x16b] sm:$0xff]
        %v1342 = vld [vmem:[%s1214 + $0x173] sm:$0xff]
        %v1343 = vld [vmem:[%s1214 + $0x4] sm:$0xff]
        %v1344 = vld [vmem:[%s1214 + $0xc] sm:$0xff]
        %v1345 = vld [vmem:[%s1214 + $0x1c] sm:$0xff]
        %v1346 = vld [vmem:[%s1214 + $0x24] sm:$0xff]
        %v1347 = vld [vmem:[%s1214 + $0x34] sm:$0xff]
        %v1348 = vld [vmem:[%s1214 + $0x3c] sm:$0xff]
        %v1349 = vld [vmem:[%s1214 + $0x4c] sm:$0xff]
        %v1350 = vld [vmem:[%s1214 + $0x54] sm:$0xff]
        %v1351 = vld [vmem:[%s1214 + $0x64] sm:$0xff]
        %v1352 = vld [vmem:[%s1214 + $0x6c] sm:$0xff]
        %v1353 = vld [vmem:[%s1214 + $0x7c] sm:$0xff]
        %v1354 = vld [vmem:[%s1214 + $0x84] sm:$0xff]
        %v1355 = vld [vmem:[%s1214 + $0x94] sm:$0xff]
        %v1356 = vld [vmem:[%s1214 + $0x9c] sm:$0xff]
        %v1357 = vld [vmem:[%s1214 + $0xac] sm:$0xff]
        %v1358 = vld [vmem:[%s1214 + $0xb4] sm:$0xff]
        %v1359 = vld [vmem:[%s1214 + $0xc4] sm:$0xff]
        %v1360 = vld [vmem:[%s1214 + $0xcc] sm:$0xff]
        %v1361 = vld [vmem:[%s1214 + $0xdc] sm:$0xff]
        %v1362 = vld [vmem:[%s1214 + $0xe4] sm:$0xff]
        %v1363 = vld [vmem:[%s1214 + $0xf4] sm:$0xff]
        %v1364 = vld [vmem:[%s1214 + $0xfc] sm:$0xff]
        %v1365 = vld [vmem:[%s1214 + $0x10c] sm:$0xff]
        %v1366 = vld [vmem:[%s1214 + $0x114] sm:$0xff]
        %v1367 = vld [vmem:[%s1214 + $0x124] sm:$0xff]
        %v1368 = vld [vmem:[%s1214 + $0x12c] sm:$0xff]
        %v1369 = vld [vmem:[%s1214 + $0x13c] sm:$0xff]
        %v1370 = vld [vmem:[%s1214 + $0x144] sm:$0xff]
        %v1371 = vld [vmem:[%s1214 + $0x154] sm:$0xff]
        %v1372 = vld [vmem:[%s1214 + $0x15c] sm:$0xff]
        %v1373 = vld [vmem:[%s1214 + $0x16c] sm:$0xff]
        %v1374 = vld [vmem:[%s1214 + $0x174] sm:$0xff]
        %v1375 = vld [vmem:[%s988] sm:$0xff]
        %v1376 = vld [vmem:[%s988 + $0x8] sm:$0xff]
        %v1377 = vld [vmem:[%s988 + $0x18] sm:$0xff]
        %v1378 = vld [vmem:[%s988 + $0x20] sm:$0xff]
        %v1379 = vld [vmem:[%s988 + $0x30] sm:$0xff]
        %v1380 = vld [vmem:[%s988 + $0x38] sm:$0xff]
        %v1381 = vld [vmem:[%s988 + $0x48] sm:$0xff]
        %v1382 = vld [vmem:[%s988 + $0x50] sm:$0xff]
        %v1383 = vld [vmem:[%s988 + $0x60] sm:$0xff]
        %v1384 = vld [vmem:[%s988 + $0x68] sm:$0xff]
        %v1385 = vld [vmem:[%s988 + $0x78] sm:$0xff]
        %v1386 = vld [vmem:[%s988 + $0x80] sm:$0xff]
        %v1387 = vld [vmem:[%s988 + $0x90] sm:$0xff]
        %v1388 = vld [vmem:[%s988 + $0x98] sm:$0xff]
        %v1389 = vld [vmem:[%s988 + $0xa8] sm:$0xff]
        %v1390 = vld [vmem:[%s988 + $0xb0] sm:$0xff]
        %v1391 = vld [vmem:[%s988 + $0xc0] sm:$0xff]
        %v1392 = vld [vmem:[%s988 + $0xc8] sm:$0xff]
        %v1393 = vld [vmem:[%s988 + $0xd8] sm:$0xff]
        %v1394 = vld [vmem:[%s988 + $0xe0] sm:$0xff]
        %v1395 = vld [vmem:[%s988 + $0xf0] sm:$0xff]
        %v1396 = vld [vmem:[%s988 + $0xf8] sm:$0xff]
        %v1397 = vld [vmem:[%s988 + $0x108] sm:$0xff]
        %v1398 = vld [vmem:[%s988 + $0x110] sm:$0xff]
        %v1399 = vld [vmem:[%s988 + $0x120] sm:$0xff]
        %v1400 = vld [vmem:[%s988 + $0x128] sm:$0xff]
        %v1401 = vld [vmem:[%s988 + $0x138] sm:$0xff]
        %v1402 = vld [vmem:[%s988 + $0x140] sm:$0xff]
        %v1403 = vld [vmem:[%s988 + $0x150] sm:$0xff]
        %v1404 = vld [vmem:[%s988 + $0x158] sm:$0xff]
        %v1405 = vld [vmem:[%s988 + $0x168] sm:$0xff]
        %v1406 = vld [vmem:[%s988 + $0x170] sm:$0xff]
        %v1407 = vld [vmem:[%s988 + $0x1] sm:$0xff]
        %v1408 = vld [vmem:[%s988 + $0x9] sm:$0xff]
        %v1409 = vld [vmem:[%s988 + $0x19] sm:$0xff]
        %v1410 = vld [vmem:[%s988 + $0x21] sm:$0xff]
        %v1411 = vld [vmem:[%s988 + $0x31] sm:$0xff]
        %v1412 = vld [vmem:[%s988 + $0x39] sm:$0xff]
        %v1413 = vld [vmem:[%s988 + $0x49] sm:$0xff]
        %v1414 = vld [vmem:[%s988 + $0x51] sm:$0xff]
        %v1415 = vld [vmem:[%s988 + $0x61] sm:$0xff]
        %v1416 = vld [vmem:[%s988 + $0x69] sm:$0xff]
        %v1417 = vld [vmem:[%s988 + $0x79] sm:$0xff]
        %v1418 = vld [vmem:[%s988 + $0x81] sm:$0xff]
        %v1419 = vld [vmem:[%s988 + $0x91] sm:$0xff]
        %v1420 = vld [vmem:[%s988 + $0x99] sm:$0xff]
        %v1421 = vld [vmem:[%s988 + $0xa9] sm:$0xff]
        %v1422 = vld [vmem:[%s988 + $0xb1] sm:$0xff]
        %v1423 = vld [vmem:[%s988 + $0xc1] sm:$0xff]
        %v1424 = vld [vmem:[%s988 + $0xc9] sm:$0xff]
        %v1425 = vld [vmem:[%s988 + $0xd9] sm:$0xff]
        %v1426 = vld [vmem:[%s988 + $0xe1] sm:$0xff]
        %v1427 = vld [vmem:[%s988 + $0xf1] sm:$0xff]
        %v1428 = vld [vmem:[%s988 + $0xf9] sm:$0xff]
        %v1429 = vld [vmem:[%s988 + $0x109] sm:$0xff]
        %v1430 = vld [vmem:[%s988 + $0x111] sm:$0xff]
        %v1431 = vld [vmem:[%s988 + $0x121] sm:$0xff]
        %v1432 = vld [vmem:[%s988 + $0x129] sm:$0xff]
        %v1433 = vld [vmem:[%s988 + $0x139] sm:$0xff]
        %v1434 = vld [vmem:[%s988 + $0x141] sm:$0xff]
        %v1435 = vld [vmem:[%s988 + $0x151] sm:$0xff]
        %v1436 = vld [vmem:[%s988 + $0x159] sm:$0xff]
        %v1437 = vld [vmem:[%s988 + $0x169] sm:$0xff]
        %v1438 = vld [vmem:[%s988 + $0x171] sm:$0xff]
        %v1439 = vld [vmem:[%s988 + $0x2] sm:$0xff]
        %v1440 = vld [vmem:[%s988 + $0xa] sm:$0xff]
        %v1441 = vld [vmem:[%s988 + $0x1a] sm:$0xff]
        %v1442 = vld [vmem:[%s988 + $0x22] sm:$0xff]
        %v1443 = vld [vmem:[%s988 + $0x32] sm:$0xff]
        %v1444 = vld [vmem:[%s988 + $0x3a] sm:$0xff]
        %v1445 = vld [vmem:[%s988 + $0x4a] sm:$0xff]
        %v1446 = vld [vmem:[%s988 + $0x52] sm:$0xff]
        %v1447 = vld [vmem:[%s988 + $0x62] sm:$0xff]
        %v1448 = vld [vmem:[%s988 + $0x6a] sm:$0xff]
        %v1449 = vld [vmem:[%s988 + $0x7a] sm:$0xff]
        %v1450 = vld [vmem:[%s988 + $0x82] sm:$0xff]
        %v1451 = vld [vmem:[%s988 + $0x92] sm:$0xff]
        %v1452 = vld [vmem:[%s988 + $0x9a] sm:$0xff]
        %v1453 = vld [vmem:[%s988 + $0xaa] sm:$0xff]
        %v1454 = vld [vmem:[%s988 + $0xb2] sm:$0xff]
        %v1455 = vld [vmem:[%s988 + $0xc2] sm:$0xff]
        %v1456 = vld [vmem:[%s988 + $0xca] sm:$0xff]
        %v1457 = vld [vmem:[%s988 + $0xda] sm:$0xff]
        %v1458 = vld [vmem:[%s988 + $0xe2] sm:$0xff]
        %v1459 = vld [vmem:[%s988 + $0xf2] sm:$0xff]
        %v1460 = vld [vmem:[%s988 + $0xfa] sm:$0xff]
        %v1461 = vld [vmem:[%s988 + $0x10a] sm:$0xff]
        %v1462 = vld [vmem:[%s988 + $0x112] sm:$0xff]
        %v1463 = vld [vmem:[%s988 + $0x122] sm:$0xff]
        %v1464 = vld [vmem:[%s988 + $0x12a] sm:$0xff]
        %v1465 = vld [vmem:[%s988 + $0x13a] sm:$0xff]
        %v1466 = vld [vmem:[%s988 + $0x142] sm:$0xff]
        %v1467 = vld [vmem:[%s988 + $0x152] sm:$0xff]
        %v1468 = vld [vmem:[%s988 + $0x15a] sm:$0xff]
        %v1469 = vld [vmem:[%s988 + $0x16a] sm:$0xff]
        %v1470 = vld [vmem:[%s988 + $0x172] sm:$0xff]
        %v1471 = vld [vmem:[%s988 + $0x3] sm:$0xff]
        %v1472 = vld [vmem:[%s988 + $0xb] sm:$0xff]
        %v1473 = vld [vmem:[%s988 + $0x1b] sm:$0xff]
        %v1474 = vld [vmem:[%s988 + $0x23] sm:$0xff]
        %v1475 = vld [vmem:[%s988 + $0x33] sm:$0xff]
        %v1476 = vld [vmem:[%s988 + $0x3b] sm:$0xff]
        %v1477 = vld [vmem:[%s988 + $0x4b] sm:$0xff]
        %v1478 = vld [vmem:[%s988 + $0x53] sm:$0xff]
        %v1479 = vld [vmem:[%s988 + $0x63] sm:$0xff]
        %v1480 = vld [vmem:[%s988 + $0x6b] sm:$0xff]
        %v1481 = vld [vmem:[%s988 + $0x7b] sm:$0xff]
        %v1482 = vld [vmem:[%s988 + $0x83] sm:$0xff]
        %v1483 = vld [vmem:[%s988 + $0x93] sm:$0xff]
        %v1484 = vld [vmem:[%s988 + $0x9b] sm:$0xff]
        %v1485 = vld [vmem:[%s988 + $0xab] sm:$0xff]
        %v1486 = vld [vmem:[%s988 + $0xb3] sm:$0xff]
        %v1487 = vld [vmem:[%s988 + $0xc3] sm:$0xff]
        %v1488 = vld [vmem:[%s988 + $0xcb] sm:$0xff]
        %v1489 = vld [vmem:[%s988 + $0xdb] sm:$0xff]
        %v1490 = vld [vmem:[%s988 + $0xe3] sm:$0xff]
        %v1491 = vld [vmem:[%s988 + $0xf3] sm:$0xff]
        %v1492 = vld [vmem:[%s988 + $0xfb] sm:$0xff]
        %v1493 = vld [vmem:[%s988 + $0x10b] sm:$0xff]
        %v1494 = vld [vmem:[%s988 + $0x113] sm:$0xff]
        %v1495 = vld [vmem:[%s988 + $0x123] sm:$0xff]
        %v1496 = vld [vmem:[%s988 + $0x12b] sm:$0xff]
        %v1497 = vld [vmem:[%s988 + $0x13b] sm:$0xff]
        %v1498 = vld [vmem:[%s988 + $0x143] sm:$0xff]
        %v1499 = vld [vmem:[%s988 + $0x153] sm:$0xff]
        %v1500 = vld [vmem:[%s988 + $0x15b] sm:$0xff]
        %v1501 = vld [vmem:[%s988 + $0x16b] sm:$0xff]
        %v1502 = vld [vmem:[%s988 + $0x173] sm:$0xff]
        %v1503 = vld [vmem:[%s988 + $0x4] sm:$0xff]
        %v1504 = vld [vmem:[%s988 + $0xc] sm:$0xff]
        %v1505 = vld [vmem:[%s988 + $0x1c] sm:$0xff]
        %v1506 = vld [vmem:[%s988 + $0x24] sm:$0xff]
        %v1507 = vld [vmem:[%s988 + $0x34] sm:$0xff]
        %v1508 = vld [vmem:[%s988 + $0x3c] sm:$0xff]
        %v1509 = vld [vmem:[%s988 + $0x4c] sm:$0xff]
        %v1510 = vld [vmem:[%s988 + $0x54] sm:$0xff]
        %v1511 = vld [vmem:[%s988 + $0x64] sm:$0xff]
        %v1512 = vld [vmem:[%s988 + $0x6c] sm:$0xff]
        %v1513 = vld [vmem:[%s988 + $0x7c] sm:$0xff]
        %v1514 = vld [vmem:[%s988 + $0x84] sm:$0xff]
        %v1515 = vld [vmem:[%s988 + $0x94] sm:$0xff]
        %v1516 = vld [vmem:[%s988 + $0x9c] sm:$0xff]
        %v1517 = vld [vmem:[%s988 + $0xac] sm:$0xff]
        %v1518 = vld [vmem:[%s988 + $0xb4] sm:$0xff]
        %v1519 = vld [vmem:[%s988 + $0xc4] sm:$0xff]
        %v1520 = vld [vmem:[%s988 + $0xcc] sm:$0xff]
        %v1521 = vld [vmem:[%s988 + $0xdc] sm:$0xff]
        %v1522 = vld [vmem:[%s988 + $0xe4] sm:$0xff]
        %v1523 = vld [vmem:[%s988 + $0xf4] sm:$0xff]
        %v1524 = vld [vmem:[%s988 + $0xfc] sm:$0xff]
        %v1525 = vld [vmem:[%s988 + $0x10c] sm:$0xff]
        %v1526 = vld [vmem:[%s988 + $0x114] sm:$0xff]
        %v1527 = vld [vmem:[%s988 + $0x124] sm:$0xff]
        %v1528 = vld [vmem:[%s988 + $0x12c] sm:$0xff]
        %v1529 = vld [vmem:[%s988 + $0x13c] sm:$0xff]
        %v1530 = vld [vmem:[%s988 + $0x144] sm:$0xff]
        %v1531 = vld [vmem:[%s988 + $0x154] sm:$0xff]
        %v1532 = vld [vmem:[%s988 + $0x15c] sm:$0xff]
        %v1533 = vld [vmem:[%s988 + $0x16c] sm:$0xff]
        %v1534 = vld [vmem:[%s988 + $0x174] sm:$0xff]
        %s1535 = scalar_lea.vmem [#allocation2], 72
        %v1536 = vld [vmem:[%s1535] sm:$0xff]
        %v1537 = vld [vmem:[%s1535 + $0x8] sm:$0xff]
        %v1538 = vld [vmem:[%s1535 + $0x18] sm:$0xff]
        %v1539 = vld [vmem:[%s1535 + $0x20] sm:$0xff]
        %v1540 = vld [vmem:[%s1535 + $0x30] sm:$0xff]
        %v1541 = vld [vmem:[%s1535 + $0x38] sm:$0xff]
        %v1542 = vld [vmem:[%s1535 + $0x48] sm:$0xff]
        %v1543 = vld [vmem:[%s1535 + $0x50] sm:$0xff]
        %v1544 = vld [vmem:[%s1535 + $0x60] sm:$0xff]
        %v1545 = vld [vmem:[%s1535 + $0x68] sm:$0xff]
        %v1546 = vld [vmem:[%s1535 + $0x78] sm:$0xff]
        %v1547 = vld [vmem:[%s1535 + $0x80] sm:$0xff]
        %v1548 = vld [vmem:[%s1535 + $0x90] sm:$0xff]
        %v1549 = vld [vmem:[%s1535 + $0x98] sm:$0xff]
        %v1550 = vld [vmem:[%s1535 + $0xa8] sm:$0xff]
        %v1551 = vld [vmem:[%s1535 + $0xb0] sm:$0xff]
        %v1552 = vld [vmem:[%s1535 + $0xc0] sm:$0xff]
        %v1553 = vld [vmem:[%s1535 + $0xc8] sm:$0xff]
        %v1554 = vld [vmem:[%s1535 + $0xd8] sm:$0xff]
        %v1555 = vld [vmem:[%s1535 + $0xe0] sm:$0xff]
        %v1556 = vld [vmem:[%s1535 + $0xf0] sm:$0xff]
        %v1557 = vld [vmem:[%s1535 + $0xf8] sm:$0xff]
        %v1558 = vld [vmem:[%s1535 + $0x108] sm:$0xff]
        %v1559 = vld [vmem:[%s1535 + $0x110] sm:$0xff]
        %v1560 = vld [vmem:[%s1535 + $0x120] sm:$0xff]
        %v1561 = vld [vmem:[%s1535 + $0x128] sm:$0xff]
        %v1562 = vld [vmem:[%s1535 + $0x138] sm:$0xff]
        %v1563 = vld [vmem:[%s1535 + $0x140] sm:$0xff]
        %v1564 = vld [vmem:[%s1535 + $0x150] sm:$0xff]
        %v1565 = vld [vmem:[%s1535 + $0x158] sm:$0xff]
        %v1566 = vld [vmem:[%s1535 + $0x168] sm:$0xff]
        %v1567 = vld [vmem:[%s1535 + $0x170] sm:$0xff]
        %v1568 = vld [vmem:[%s1535 + $0x1] sm:$0xff]
        %v1569 = vld [vmem:[%s1535 + $0x9] sm:$0xff]
        %v1570 = vld [vmem:[%s1535 + $0x19] sm:$0xff]
        %v1571 = vld [vmem:[%s1535 + $0x21] sm:$0xff]
        %v1572 = vld [vmem:[%s1535 + $0x31] sm:$0xff]
        %v1573 = vld [vmem:[%s1535 + $0x39] sm:$0xff]
        %v1574 = vld [vmem:[%s1535 + $0x49] sm:$0xff]
        %v1575 = vld [vmem:[%s1535 + $0x51] sm:$0xff]
        %v1576 = vld [vmem:[%s1535 + $0x61] sm:$0xff]
        %v1577 = vld [vmem:[%s1535 + $0x69] sm:$0xff]
        %v1578 = vld [vmem:[%s1535 + $0x79] sm:$0xff]
        %v1579 = vld [vmem:[%s1535 + $0x81] sm:$0xff]
        %v1580 = vld [vmem:[%s1535 + $0x91] sm:$0xff]
        %v1581 = vld [vmem:[%s1535 + $0x99] sm:$0xff]
        %v1582 = vld [vmem:[%s1535 + $0xa9] sm:$0xff]
        %v1583 = vld [vmem:[%s1535 + $0xb1] sm:$0xff]
        %v1584 = vld [vmem:[%s1535 + $0xc1] sm:$0xff]
        %v1585 = vld [vmem:[%s1535 + $0xc9] sm:$0xff]
        %v1586 = vld [vmem:[%s1535 + $0xd9] sm:$0xff]
        %v1587 = vld [vmem:[%s1535 + $0xe1] sm:$0xff]
        %v1588 = vld [vmem:[%s1535 + $0xf1] sm:$0xff]
        %v1589 = vld [vmem:[%s1535 + $0xf9] sm:$0xff]
        %v1590 = vld [vmem:[%s1535 + $0x109] sm:$0xff]
        %v1591 = vld [vmem:[%s1535 + $0x111] sm:$0xff]
        %v1592 = vld [vmem:[%s1535 + $0x121] sm:$0xff]
        %v1593 = vld [vmem:[%s1535 + $0x129] sm:$0xff]
        %v1594 = vld [vmem:[%s1535 + $0x139] sm:$0xff]
        %v1595 = vld [vmem:[%s1535 + $0x141] sm:$0xff]
        %v1596 = vld [vmem:[%s1535 + $0x151] sm:$0xff]
        %v1597 = vld [vmem:[%s1535 + $0x159] sm:$0xff]
        %v1598 = vld [vmem:[%s1535 + $0x169] sm:$0xff]
        %v1599 = vld [vmem:[%s1535 + $0x171] sm:$0xff]
        %v1600 = vld [vmem:[%s1535 + $0x2] sm:$0xff]
        %v1601 = vld [vmem:[%s1535 + $0xa] sm:$0xff]
        %v1602 = vld [vmem:[%s1535 + $0x1a] sm:$0xff]
        %v1603 = vld [vmem:[%s1535 + $0x22] sm:$0xff]
        %v1604 = vld [vmem:[%s1535 + $0x32] sm:$0xff]
        %v1605 = vld [vmem:[%s1535 + $0x3a] sm:$0xff]
        %v1606 = vld [vmem:[%s1535 + $0x4a] sm:$0xff]
        %v1607 = vld [vmem:[%s1535 + $0x52] sm:$0xff]
        %v1608 = vld [vmem:[%s1535 + $0x62] sm:$0xff]
        %v1609 = vld [vmem:[%s1535 + $0x6a] sm:$0xff]
        %v1610 = vld [vmem:[%s1535 + $0x7a] sm:$0xff]
        %v1611 = vld [vmem:[%s1535 + $0x82] sm:$0xff]
        %v1612 = vld [vmem:[%s1535 + $0x92] sm:$0xff]
        %v1613 = vld [vmem:[%s1535 + $0x9a] sm:$0xff]
        %v1614 = vld [vmem:[%s1535 + $0xaa] sm:$0xff]
        %v1615 = vld [vmem:[%s1535 + $0xb2] sm:$0xff]
        %v1616 = vld [vmem:[%s1535 + $0xc2] sm:$0xff]
        %v1617 = vld [vmem:[%s1535 + $0xca] sm:$0xff]
        %v1618 = vld [vmem:[%s1535 + $0xda] sm:$0xff]
        %v1619 = vld [vmem:[%s1535 + $0xe2] sm:$0xff]
        %v1620 = vld [vmem:[%s1535 + $0xf2] sm:$0xff]
        %v1621 = vld [vmem:[%s1535 + $0xfa] sm:$0xff]
        %v1622 = vld [vmem:[%s1535 + $0x10a] sm:$0xff]
        %v1623 = vld [vmem:[%s1535 + $0x112] sm:$0xff]
        %v1624 = vld [vmem:[%s1535 + $0x122] sm:$0xff]
        %v1625 = vld [vmem:[%s1535 + $0x12a] sm:$0xff]
        %v1626 = vld [vmem:[%s1535 + $0x13a] sm:$0xff]
        %v1627 = vld [vmem:[%s1535 + $0x142] sm:$0xff]
        %v1628 = vld [vmem:[%s1535 + $0x152] sm:$0xff]
        %v1629 = vld [vmem:[%s1535 + $0x15a] sm:$0xff]
        %v1630 = vld [vmem:[%s1535 + $0x16a] sm:$0xff]
        %v1631 = vld [vmem:[%s1535 + $0x172] sm:$0xff]
        %v1632 = vld [vmem:[%s1535 + $0x3] sm:$0xff]
        %v1633 = vld [vmem:[%s1535 + $0xb] sm:$0xff]
        %v1634 = vld [vmem:[%s1535 + $0x1b] sm:$0xff]
        %v1635 = vld [vmem:[%s1535 + $0x23] sm:$0xff]
        %v1636 = vld [vmem:[%s1535 + $0x33] sm:$0xff]
        %v1637 = vld [vmem:[%s1535 + $0x3b] sm:$0xff]
        %v1638 = vld [vmem:[%s1535 + $0x4b] sm:$0xff]
        %v1639 = vld [vmem:[%s1535 + $0x53] sm:$0xff]
        %v1640 = vld [vmem:[%s1535 + $0x63] sm:$0xff]
        %v1641 = vld [vmem:[%s1535 + $0x6b] sm:$0xff]
        %v1642 = vld [vmem:[%s1535 + $0x7b] sm:$0xff]
        %v1643 = vld [vmem:[%s1535 + $0x83] sm:$0xff]
        %v1644 = vld [vmem:[%s1535 + $0x93] sm:$0xff]
        %v1645 = vld [vmem:[%s1535 + $0x9b] sm:$0xff]
        %v1646 = vld [vmem:[%s1535 + $0xab] sm:$0xff]
        %v1647 = vld [vmem:[%s1535 + $0xb3] sm:$0xff]
        %v1648 = vld [vmem:[%s1535 + $0xc3] sm:$0xff]
        %v1649 = vld [vmem:[%s1535 + $0xcb] sm:$0xff]
        %v1650 = vld [vmem:[%s1535 + $0xdb] sm:$0xff]
        %v1651 = vld [vmem:[%s1535 + $0xe3] sm:$0xff]
        %v1652 = vld [vmem:[%s1535 + $0xf3] sm:$0xff]
        %v1653 = vld [vmem:[%s1535 + $0xfb] sm:$0xff]
        %v1654 = vld [vmem:[%s1535 + $0x10b] sm:$0xff]
        %v1655 = vld [vmem:[%s1535 + $0x113] sm:$0xff]
        %v1656 = vld [vmem:[%s1535 + $0x123] sm:$0xff]
        %v1657 = vld [vmem:[%s1535 + $0x12b] sm:$0xff]
        %v1658 = vld [vmem:[%s1535 + $0x13b] sm:$0xff]
        %v1659 = vld [vmem:[%s1535 + $0x143] sm:$0xff]
        %v1660 = vld [vmem:[%s1535 + $0x153] sm:$0xff]
        %v1661 = vld [vmem:[%s1535 + $0x15b] sm:$0xff]
        %v1662 = vld [vmem:[%s1535 + $0x16b] sm:$0xff]
        %v1663 = vld [vmem:[%s1535 + $0x173] sm:$0xff]
        %v1664 = vld [vmem:[%s1535 + $0x4] sm:$0xff]
        %v1665 = vld [vmem:[%s1535 + $0xc] sm:$0xff]
        %v1666 = vld [vmem:[%s1535 + $0x1c] sm:$0xff]
        %v1667 = vld [vmem:[%s1535 + $0x24] sm:$0xff]
        %v1668 = vld [vmem:[%s1535 + $0x34] sm:$0xff]
        %v1669 = vld [vmem:[%s1535 + $0x3c] sm:$0xff]
        %v1670 = vld [vmem:[%s1535 + $0x4c] sm:$0xff]
        %v1671 = vld [vmem:[%s1535 + $0x54] sm:$0xff]
        %v1672 = vld [vmem:[%s1535 + $0x64] sm:$0xff]
        %v1673 = vld [vmem:[%s1535 + $0x6c] sm:$0xff]
        %v1674 = vld [vmem:[%s1535 + $0x7c] sm:$0xff]
        %v1675 = vld [vmem:[%s1535 + $0x84] sm:$0xff]
        %v1676 = vld [vmem:[%s1535 + $0x94] sm:$0xff]
        %v1677 = vld [vmem:[%s1535 + $0x9c] sm:$0xff]
        %v1678 = vld [vmem:[%s1535 + $0xac] sm:$0xff]
        %v1679 = vld [vmem:[%s1535 + $0xb4] sm:$0xff]
        %v1680 = vld [vmem:[%s1535 + $0xc4] sm:$0xff]
        %v1681 = vld [vmem:[%s1535 + $0xcc] sm:$0xff]
        %v1682 = vld [vmem:[%s1535 + $0xdc] sm:$0xff]
        %v1683 = vld [vmem:[%s1535 + $0xe4] sm:$0xff]
        %v1684 = vld [vmem:[%s1535 + $0xf4] sm:$0xff]
        %v1685 = vld [vmem:[%s1535 + $0xfc] sm:$0xff]
        %v1686 = vld [vmem:[%s1535 + $0x10c] sm:$0xff]
        %v1687 = vld [vmem:[%s1535 + $0x114] sm:$0xff]
        %v1688 = vld [vmem:[%s1535 + $0x124] sm:$0xff]
        %v1689 = vld [vmem:[%s1535 + $0x12c] sm:$0xff]
        %v1690 = vld [vmem:[%s1535 + $0x13c] sm:$0xff]
        %v1691 = vld [vmem:[%s1535 + $0x144] sm:$0xff]
        %v1692 = vld [vmem:[%s1535 + $0x154] sm:$0xff]
        %v1693 = vld [vmem:[%s1535 + $0x15c] sm:$0xff]
        %v1694 = vld [vmem:[%s1535 + $0x16c] sm:$0xff]
        %v1695 = vld [vmem:[%s1535 + $0x174] sm:$0xff]
        %s1696 = scalar_lea.vmem [#allocation2], 96
        %v1697 = vld [vmem:[%s1696] sm:$0xff]
        %v1698 = vld [vmem:[%s1696 + $0x8] sm:$0xff]
        %v1699 = vld [vmem:[%s1696 + $0x18] sm:$0xff]
        %v1700 = vld [vmem:[%s1696 + $0x20] sm:$0xff]
        %v1701 = vld [vmem:[%s1696 + $0x30] sm:$0xff]
        %v1702 = vld [vmem:[%s1696 + $0x38] sm:$0xff]
        %v1703 = vld [vmem:[%s1696 + $0x48] sm:$0xff]
        %v1704 = vld [vmem:[%s1696 + $0x50] sm:$0xff]
        %v1705 = vld [vmem:[%s1696 + $0x60] sm:$0xff]
        %v1706 = vld [vmem:[%s1696 + $0x68] sm:$0xff]
        %v1707 = vld [vmem:[%s1696 + $0x78] sm:$0xff]
        %v1708 = vld [vmem:[%s1696 + $0x80] sm:$0xff]
        %v1709 = vld [vmem:[%s1696 + $0x90] sm:$0xff]
        %v1710 = vld [vmem:[%s1696 + $0x98] sm:$0xff]
        %v1711 = vld [vmem:[%s1696 + $0xa8] sm:$0xff]
        %v1712 = vld [vmem:[%s1696 + $0xb0] sm:$0xff]
        %v1713 = vld [vmem:[%s1696 + $0xc0] sm:$0xff]
        %v1714 = vld [vmem:[%s1696 + $0xc8] sm:$0xff]
        %v1715 = vld [vmem:[%s1696 + $0xd8] sm:$0xff]
        %v1716 = vld [vmem:[%s1696 + $0xe0] sm:$0xff]
        %v1717 = vld [vmem:[%s1696 + $0xf0] sm:$0xff]
        %v1718 = vld [vmem:[%s1696 + $0xf8] sm:$0xff]
        %v1719 = vld [vmem:[%s1696 + $0x108] sm:$0xff]
        %v1720 = vld [vmem:[%s1696 + $0x110] sm:$0xff]
        %v1721 = vld [vmem:[%s1696 + $0x120] sm:$0xff]
        %v1722 = vld [vmem:[%s1696 + $0x128] sm:$0xff]
        %v1723 = vld [vmem:[%s1696 + $0x138] sm:$0xff]
        %v1724 = vld [vmem:[%s1696 + $0x140] sm:$0xff]
        %v1725 = vld [vmem:[%s1696 + $0x150] sm:$0xff]
        %v1726 = vld [vmem:[%s1696 + $0x158] sm:$0xff]
        %v1727 = vld [vmem:[%s1696 + $0x168] sm:$0xff]
        %v1728 = vld [vmem:[%s1696 + $0x170] sm:$0xff]
        %v1729 = vld [vmem:[%s1696 + $0x1] sm:$0xff]
        %v1730 = vld [vmem:[%s1696 + $0x9] sm:$0xff]
        %v1731 = vld [vmem:[%s1696 + $0x19] sm:$0xff]
        %v1732 = vld [vmem:[%s1696 + $0x21] sm:$0xff]
        %v1733 = vld [vmem:[%s1696 + $0x31] sm:$0xff]
        %v1734 = vld [vmem:[%s1696 + $0x39] sm:$0xff]
        %v1735 = vld [vmem:[%s1696 + $0x49] sm:$0xff]
        %v1736 = vld [vmem:[%s1696 + $0x51] sm:$0xff]
        %v1737 = vld [vmem:[%s1696 + $0x61] sm:$0xff]
        %v1738 = vld [vmem:[%s1696 + $0x69] sm:$0xff]
        %v1739 = vld [vmem:[%s1696 + $0x79] sm:$0xff]
        %v1740 = vld [vmem:[%s1696 + $0x81] sm:$0xff]
        %v1741 = vld [vmem:[%s1696 + $0x91] sm:$0xff]
        %v1742 = vld [vmem:[%s1696 + $0x99] sm:$0xff]
        %v1743 = vld [vmem:[%s1696 + $0xa9] sm:$0xff]
        %v1744 = vld [vmem:[%s1696 + $0xb1] sm:$0xff]
        %v1745 = vld [vmem:[%s1696 + $0xc1] sm:$0xff]
        %v1746 = vld [vmem:[%s1696 + $0xc9] sm:$0xff]
        %v1747 = vld [vmem:[%s1696 + $0xd9] sm:$0xff]
        %v1748 = vld [vmem:[%s1696 + $0xe1] sm:$0xff]
        %v1749 = vld [vmem:[%s1696 + $0xf1] sm:$0xff]
        %v1750 = vld [vmem:[%s1696 + $0xf9] sm:$0xff]
        %v1751 = vld [vmem:[%s1696 + $0x109] sm:$0xff]
        %v1752 = vld [vmem:[%s1696 + $0x111] sm:$0xff]
        %v1753 = vld [vmem:[%s1696 + $0x121] sm:$0xff]
        %v1754 = vld [vmem:[%s1696 + $0x129] sm:$0xff]
        %v1755 = vld [vmem:[%s1696 + $0x139] sm:$0xff]
        %v1756 = vld [vmem:[%s1696 + $0x141] sm:$0xff]
        %v1757 = vld [vmem:[%s1696 + $0x151] sm:$0xff]
        %v1758 = vld [vmem:[%s1696 + $0x159] sm:$0xff]
        %v1759 = vld [vmem:[%s1696 + $0x169] sm:$0xff]
        %v1760 = vld [vmem:[%s1696 + $0x171] sm:$0xff]
        %v1761 = vld [vmem:[%s1696 + $0x2] sm:$0xff]
        %v1762 = vld [vmem:[%s1696 + $0xa] sm:$0xff]
        %v1763 = vld [vmem:[%s1696 + $0x1a] sm:$0xff]
        %v1764 = vld [vmem:[%s1696 + $0x22] sm:$0xff]
        %v1765 = vld [vmem:[%s1696 + $0x32] sm:$0xff]
        %v1766 = vld [vmem:[%s1696 + $0x3a] sm:$0xff]
        %v1767 = vld [vmem:[%s1696 + $0x4a] sm:$0xff]
        %v1768 = vld [vmem:[%s1696 + $0x52] sm:$0xff]
        %v1769 = vld [vmem:[%s1696 + $0x62] sm:$0xff]
        %v1770 = vld [vmem:[%s1696 + $0x6a] sm:$0xff]
        %v1771 = vld [vmem:[%s1696 + $0x7a] sm:$0xff]
        %v1772 = vld [vmem:[%s1696 + $0x82] sm:$0xff]
        %v1773 = vld [vmem:[%s1696 + $0x92] sm:$0xff]
        %v1774 = vld [vmem:[%s1696 + $0x9a] sm:$0xff]
        %v1775 = vld [vmem:[%s1696 + $0xaa] sm:$0xff]
        %v1776 = vld [vmem:[%s1696 + $0xb2] sm:$0xff]
        %v1777 = vld [vmem:[%s1696 + $0xc2] sm:$0xff]
        %v1778 = vld [vmem:[%s1696 + $0xca] sm:$0xff]
        %v1779 = vld [vmem:[%s1696 + $0xda] sm:$0xff]
        %v1780 = vld [vmem:[%s1696 + $0xe2] sm:$0xff]
        %v1781 = vld [vmem:[%s1696 + $0xf2] sm:$0xff]
        %v1782 = vld [vmem:[%s1696 + $0xfa] sm:$0xff]
        %v1783 = vld [vmem:[%s1696 + $0x10a] sm:$0xff]
        %v1784 = vld [vmem:[%s1696 + $0x112] sm:$0xff]
        %v1785 = vld [vmem:[%s1696 + $0x122] sm:$0xff]
        %v1786 = vld [vmem:[%s1696 + $0x12a] sm:$0xff]
        %v1787 = vld [vmem:[%s1696 + $0x13a] sm:$0xff]
        %v1788 = vld [vmem:[%s1696 + $0x142] sm:$0xff]
        %v1789 = vld [vmem:[%s1696 + $0x152] sm:$0xff]
        %v1790 = vld [vmem:[%s1696 + $0x15a] sm:$0xff]
        %v1791 = vld [vmem:[%s1696 + $0x16a] sm:$0xff]
        %v1792 = vld [vmem:[%s1696 + $0x172] sm:$0xff]
        %v1793 = vld [vmem:[%s1696 + $0x3] sm:$0xff]
        %v1794 = vld [vmem:[%s1696 + $0xb] sm:$0xff]
        %v1795 = vld [vmem:[%s1696 + $0x1b] sm:$0xff]
        %v1796 = vld [vmem:[%s1696 + $0x23] sm:$0xff]
        %v1797 = vld [vmem:[%s1696 + $0x33] sm:$0xff]
        %v1798 = vld [vmem:[%s1696 + $0x3b] sm:$0xff]
        %v1799 = vld [vmem:[%s1696 + $0x4b] sm:$0xff]
        %v1800 = vld [vmem:[%s1696 + $0x53] sm:$0xff]
        %v1801 = vld [vmem:[%s1696 + $0x63] sm:$0xff]
        %v1802 = vld [vmem:[%s1696 + $0x6b] sm:$0xff]
        %v1803 = vld [vmem:[%s1696 + $0x7b] sm:$0xff]
        %v1804 = vld [vmem:[%s1696 + $0x83] sm:$0xff]
        %v1805 = vld [vmem:[%s1696 + $0x93] sm:$0xff]
        %v1806 = vld [vmem:[%s1696 + $0x9b] sm:$0xff]
        %v1807 = vld [vmem:[%s1696 + $0xab] sm:$0xff]
        %v1808 = vld [vmem:[%s1696 + $0xb3] sm:$0xff]
        %v1809 = vld [vmem:[%s1696 + $0xc3] sm:$0xff]
        %v1810 = vld [vmem:[%s1696 + $0xcb] sm:$0xff]
        %v1811 = vld [vmem:[%s1696 + $0xdb] sm:$0xff]
        %v1812 = vld [vmem:[%s1696 + $0xe3] sm:$0xff]
        %v1813 = vld [vmem:[%s1696 + $0xf3] sm:$0xff]
        %v1814 = vld [vmem:[%s1696 + $0xfb] sm:$0xff]
        %v1815 = vld [vmem:[%s1696 + $0x10b] sm:$0xff]
        %v1816 = vld [vmem:[%s1696 + $0x113] sm:$0xff]
        %v1817 = vld [vmem:[%s1696 + $0x123] sm:$0xff]
        %v1818 = vld [vmem:[%s1696 + $0x12b] sm:$0xff]
        %v1819 = vld [vmem:[%s1696 + $0x13b] sm:$0xff]
        %v1820 = vld [vmem:[%s1696 + $0x143] sm:$0xff]
        %v1821 = vld [vmem:[%s1696 + $0x153] sm:$0xff]
        %v1822 = vld [vmem:[%s1696 + $0x15b] sm:$0xff]
        %v1823 = vld [vmem:[%s1696 + $0x16b] sm:$0xff]
        %v1824 = vld [vmem:[%s1696 + $0x173] sm:$0xff]
        %v1825 = vld [vmem:[%s1696 + $0x4] sm:$0xff]
        %v1826 = vld [vmem:[%s1696 + $0xc] sm:$0xff]
        %v1827 = vld [vmem:[%s1696 + $0x1c] sm:$0xff]
        %v1828 = vld [vmem:[%s1696 + $0x24] sm:$0xff]
        %v1829 = vld [vmem:[%s1696 + $0x34] sm:$0xff]
        %v1830 = vld [vmem:[%s1696 + $0x3c] sm:$0xff]
        %v1831 = vld [vmem:[%s1696 + $0x4c] sm:$0xff]
        %v1832 = vld [vmem:[%s1696 + $0x54] sm:$0xff]
        %v1833 = vld [vmem:[%s1696 + $0x64] sm:$0xff]
        %v1834 = vld [vmem:[%s1696 + $0x6c] sm:$0xff]
        %v1835 = vld [vmem:[%s1696 + $0x7c] sm:$0xff]
        %v1836 = vld [vmem:[%s1696 + $0x84] sm:$0xff]
        %v1837 = vld [vmem:[%s1696 + $0x94] sm:$0xff]
        %v1838 = vld [vmem:[%s1696 + $0x9c] sm:$0xff]
        %v1839 = vld [vmem:[%s1696 + $0xac] sm:$0xff]
        %v1840 = vld [vmem:[%s1696 + $0xb4] sm:$0xff]
        %v1841 = vld [vmem:[%s1696 + $0xc4] sm:$0xff]
        %v1842 = vld [vmem:[%s1696 + $0xcc] sm:$0xff]
        %v1843 = vld [vmem:[%s1696 + $0xdc] sm:$0xff]
        %v1844 = vld [vmem:[%s1696 + $0xe4] sm:$0xff]
        %v1845 = vld [vmem:[%s1696 + $0xf4] sm:$0xff]
        %v1846 = vld [vmem:[%s1696 + $0xfc] sm:$0xff]
        %v1847 = vld [vmem:[%s1696 + $0x10c] sm:$0xff]
        %v1848 = vld [vmem:[%s1696 + $0x114] sm:$0xff]
        %v1849 = vld [vmem:[%s1696 + $0x124] sm:$0xff]
        %v1850 = vld [vmem:[%s1696 + $0x12c] sm:$0xff]
        %v1851 = vld [vmem:[%s1696 + $0x13c] sm:$0xff]
        %v1852 = vld [vmem:[%s1696 + $0x144] sm:$0xff]
        %v1853 = vld [vmem:[%s1696 + $0x154] sm:$0xff]
        %v1854 = vld [vmem:[%s1696 + $0x15c] sm:$0xff]
        %v1855 = vld [vmem:[%s1696 + $0x16c] sm:$0xff]
        %v1856 = vld [vmem:[%s1696 + $0x174] sm:$0xff]
        %1889 = vrot.lane.b32.xlu0 %v1086, 16
        %v1890 = vpop.permute.xlu0 %1889
        %1891 = vrot.lane.b32.xlu0 %v1087, 16
        %v1892 = vpop.permute.xlu0 %1891
        %1893 = vrot.lane.b32.xlu0 %v1088, 16
        %v1894 = vpop.permute.xlu0 %1893
        %1895 = vrot.lane.b32.xlu0 %v1089, 16
        %v1896 = vpop.permute.xlu0 %1895
        %1897 = vrot.lane.b32.xlu0 %v1090, 16
        %v1898 = vpop.permute.xlu0 %1897
        %1899 = vrot.lane.b32.xlu0 %v1091, 16
        %v1900 = vpop.permute.xlu0 %1899
        %1901 = vrot.lane.b32.xlu0 %v1092, 16
        %v1902 = vpop.permute.xlu0 %1901
        %1903 = vrot.lane.b32.xlu0 %v1093, 16
        %v1904 = vpop.permute.xlu0 %1903
        %1905 = vrot.lane.b32.xlu0 %v1094, 16
        %v1906 = vpop.permute.xlu0 %1905
        %1907 = vrot.lane.b32.xlu0 %v1095, 16
        %v1908 = vpop.permute.xlu0 %1907
        %1909 = vrot.lane.b32.xlu0 %v1096, 16
        %v1910 = vpop.permute.xlu0 %1909
        %1911 = vrot.lane.b32.xlu0 %v1097, 16
        %v1912 = vpop.permute.xlu0 %1911
        %1913 = vrot.lane.b32.xlu0 %v1098, 16
        %v1914 = vpop.permute.xlu0 %1913
        %1915 = vrot.lane.b32.xlu0 %v1099, 16
        %v1916 = vpop.permute.xlu0 %1915
        %1917 = vrot.lane.b32.xlu0 %v1100, 16
        %v1918 = vpop.permute.xlu0 %1917
        %1919 = vrot.lane.b32.xlu0 %v1101, 16
        %v1920 = vpop.permute.xlu0 %1919
        %1921 = vrot.lane.b32.xlu0 %v1102, 16
        %v1922 = vpop.permute.xlu0 %1921
        %1923 = vrot.lane.b32.xlu0 %v1103, 16
        %v1924 = vpop.permute.xlu0 %1923
        %1925 = vrot.lane.b32.xlu0 %v1104, 16
        %v1926 = vpop.permute.xlu0 %1925
        %1927 = vrot.lane.b32.xlu0 %v1105, 16
        %v1928 = vpop.permute.xlu0 %1927
        %1929 = vrot.lane.b32.xlu0 %v1106, 16
        %v1930 = vpop.permute.xlu0 %1929
        %1931 = vrot.lane.b32.xlu0 %v1107, 16
        %v1932 = vpop.permute.xlu0 %1931
        %1933 = vrot.lane.b32.xlu0 %v1108, 16
        %v1934 = vpop.permute.xlu0 %1933
        %1935 = vrot.lane.b32.xlu0 %v1109, 16
        %v1936 = vpop.permute.xlu0 %1935
        %1937 = vrot.lane.b32.xlu0 %v1110, 16
        %v1938 = vpop.permute.xlu0 %1937
        %1939 = vrot.lane.b32.xlu0 %v1111, 16
        %v1940 = vpop.permute.xlu0 %1939
        %1941 = vrot.lane.b32.xlu0 %v1112, 16
        %v1942 = vpop.permute.xlu0 %1941
        %1943 = vrot.lane.b32.xlu0 %v1113, 16
        %v1944 = vpop.permute.xlu0 %1943
        %1945 = vrot.lane.b32.xlu0 %v1114, 16
        %v1946 = vpop.permute.xlu0 %1945
        %1947 = vrot.lane.b32.xlu0 %v1115, 16
        %v1948 = vpop.permute.xlu0 %1947
        %1949 = vrot.lane.b32.xlu0 %v1116, 16
        %v1950 = vpop.permute.xlu0 %1949
        %1951 = vrot.lane.b32.xlu0 %v1117, 16
        %v1952 = vpop.permute.xlu0 %1951
        %2017 = vrot.lane.b32.xlu0 %v1118, 32
        %v2018 = vpop.permute.xlu0 %2017
        %2019 = vrot.lane.b32.xlu0 %v1119, 32
        %v2020 = vpop.permute.xlu0 %2019
        %2021 = vrot.lane.b32.xlu0 %v1120, 32
        %v2022 = vpop.permute.xlu0 %2021
        %2023 = vrot.lane.b32.xlu0 %v1121, 32
        %v2024 = vpop.permute.xlu0 %2023
        %2025 = vrot.lane.b32.xlu0 %v1122, 32
        %v2026 = vpop.permute.xlu0 %2025
        %2027 = vrot.lane.b32.xlu0 %v1123, 32
        %v2028 = vpop.permute.xlu0 %2027
        %2029 = vrot.lane.b32.xlu0 %v1124, 32
        %v2030 = vpop.permute.xlu0 %2029
        %2031 = vrot.lane.b32.xlu0 %v1125, 32
        %v2032 = vpop.permute.xlu0 %2031
        %2033 = vrot.lane.b32.xlu0 %v1126, 32
        %v2034 = vpop.permute.xlu0 %2033
        %2035 = vrot.lane.b32.xlu0 %v1127, 32
        %v2036 = vpop.permute.xlu0 %2035
        %2037 = vrot.lane.b32.xlu0 %v1128, 32
        %v2038 = vpop.permute.xlu0 %2037
        %2039 = vrot.lane.b32.xlu0 %v1129, 32
        %v2040 = vpop.permute.xlu0 %2039
        %2041 = vrot.lane.b32.xlu0 %v1130, 32
        %v2042 = vpop.permute.xlu0 %2041
        %2043 = vrot.lane.b32.xlu0 %v1131, 32
        %v2044 = vpop.permute.xlu0 %2043
        %2045 = vrot.lane.b32.xlu0 %v1132, 32
        %v2046 = vpop.permute.xlu0 %2045
        %2047 = vrot.lane.b32.xlu0 %v1133, 32
        %v2048 = vpop.permute.xlu0 %2047
        %2049 = vrot.lane.b32.xlu0 %v1134, 32
        %v2050 = vpop.permute.xlu0 %2049
        %2051 = vrot.lane.b32.xlu0 %v1135, 32
        %v2052 = vpop.permute.xlu0 %2051
        %2053 = vrot.lane.b32.xlu0 %v1136, 32
        %v2054 = vpop.permute.xlu0 %2053
        %2055 = vrot.lane.b32.xlu0 %v1137, 32
        %v2056 = vpop.permute.xlu0 %2055
        %2057 = vrot.lane.b32.xlu0 %v1138, 32
        %v2058 = vpop.permute.xlu0 %2057
        %2059 = vrot.lane.b32.xlu0 %v1139, 32
        %v2060 = vpop.permute.xlu0 %2059
        %2061 = vrot.lane.b32.xlu0 %v1140, 32
        %v2062 = vpop.permute.xlu0 %2061
        %2063 = vrot.lane.b32.xlu0 %v1141, 32
        %v2064 = vpop.permute.xlu0 %2063
        %2065 = vrot.lane.b32.xlu0 %v1142, 32
        %v2066 = vpop.permute.xlu0 %2065
        %2067 = vrot.lane.b32.xlu0 %v1143, 32
        %v2068 = vpop.permute.xlu0 %2067
        %2069 = vrot.lane.b32.xlu0 %v1144, 32
        %v2070 = vpop.permute.xlu0 %2069
        %2071 = vrot.lane.b32.xlu0 %v1145, 32
        %v2072 = vpop.permute.xlu0 %2071
        %2073 = vrot.lane.b32.xlu0 %v1146, 32
        %v2074 = vpop.permute.xlu0 %2073
        %2075 = vrot.lane.b32.xlu0 %v1147, 32
        %v2076 = vpop.permute.xlu0 %2075
        %2077 = vrot.lane.b32.xlu0 %v1148, 32
        %v2078 = vpop.permute.xlu0 %2077
        %2079 = vrot.lane.b32.xlu0 %v1149, 32
        %v2080 = vpop.permute.xlu0 %2079
        %2145 = vrot.lane.b32.xlu0 %v1150, 48
        %v2146 = vpop.permute.xlu0 %2145
        %2147 = vrot.lane.b32.xlu0 %v1151, 48
        %v2148 = vpop.permute.xlu0 %2147
        %2149 = vrot.lane.b32.xlu0 %v1152, 48
        %v2150 = vpop.permute.xlu0 %2149
        %2151 = vrot.lane.b32.xlu0 %v1153, 48
        %v2152 = vpop.permute.xlu0 %2151
        %2153 = vrot.lane.b32.xlu0 %v1154, 48
        %v2154 = vpop.permute.xlu0 %2153
        %2155 = vrot.lane.b32.xlu0 %v1155, 48
        %v2156 = vpop.permute.xlu0 %2155
        %2157 = vrot.lane.b32.xlu0 %v1156, 48
        %v2158 = vpop.permute.xlu0 %2157
        %2159 = vrot.lane.b32.xlu0 %v1157, 48
        %v2160 = vpop.permute.xlu0 %2159
        %2161 = vrot.lane.b32.xlu0 %v1158, 48
        %v2162 = vpop.permute.xlu0 %2161
        %2163 = vrot.lane.b32.xlu0 %v1159, 48
        %v2164 = vpop.permute.xlu0 %2163
        %2165 = vrot.lane.b32.xlu0 %v1160, 48
        %v2166 = vpop.permute.xlu0 %2165
        %2167 = vrot.lane.b32.xlu0 %v1161, 48
        %v2168 = vpop.permute.xlu0 %2167
        %2169 = vrot.lane.b32.xlu0 %v1162, 48
        %v2170 = vpop.permute.xlu0 %2169
        %2171 = vrot.lane.b32.xlu0 %v1163, 48
        %v2172 = vpop.permute.xlu0 %2171
        %2173 = vrot.lane.b32.xlu0 %v1164, 48
        %v2174 = vpop.permute.xlu0 %2173
        %2175 = vrot.lane.b32.xlu0 %v1165, 48
        %v2176 = vpop.permute.xlu0 %2175
        %2177 = vrot.lane.b32.xlu0 %v1166, 48
        %v2178 = vpop.permute.xlu0 %2177
        %2179 = vrot.lane.b32.xlu0 %v1167, 48
        %v2180 = vpop.permute.xlu0 %2179
        %2181 = vrot.lane.b32.xlu0 %v1168, 48
        %v2182 = vpop.permute.xlu0 %2181
        %2183 = vrot.lane.b32.xlu0 %v1169, 48
        %v2184 = vpop.permute.xlu0 %2183
        %2185 = vrot.lane.b32.xlu0 %v1170, 48
        %v2186 = vpop.permute.xlu0 %2185
        %2187 = vrot.lane.b32.xlu0 %v1171, 48
        %v2188 = vpop.permute.xlu0 %2187
        %2189 = vrot.lane.b32.xlu0 %v1172, 48
        %v2190 = vpop.permute.xlu0 %2189
        %2191 = vrot.lane.b32.xlu0 %v1173, 48
        %v2192 = vpop.permute.xlu0 %2191
        %2193 = vrot.lane.b32.xlu0 %v1174, 48
        %v2194 = vpop.permute.xlu0 %2193
        %2195 = vrot.lane.b32.xlu0 %v1175, 48
        %v2196 = vpop.permute.xlu0 %2195
        %2197 = vrot.lane.b32.xlu0 %v1176, 48
        %v2198 = vpop.permute.xlu0 %2197
        %2199 = vrot.lane.b32.xlu0 %v1177, 48
        %v2200 = vpop.permute.xlu0 %2199
        %2201 = vrot.lane.b32.xlu0 %v1178, 48
        %v2202 = vpop.permute.xlu0 %2201
        %2203 = vrot.lane.b32.xlu0 %v1179, 48
        %v2204 = vpop.permute.xlu0 %2203
        %2205 = vrot.lane.b32.xlu0 %v1180, 48
        %v2206 = vpop.permute.xlu0 %2205
        %2207 = vrot.lane.b32.xlu0 %v1181, 48
        %v2208 = vpop.permute.xlu0 %2207
        %2273 = vrot.lane.b32.xlu0 %v1182, 64
        %v2274 = vpop.permute.xlu0 %2273
        %2275 = vrot.lane.b32.xlu0 %v1183, 64
        %v2276 = vpop.permute.xlu0 %2275
        %2277 = vrot.lane.b32.xlu0 %v1184, 64
        %v2278 = vpop.permute.xlu0 %2277
        %2279 = vrot.lane.b32.xlu0 %v1185, 64
        %v2280 = vpop.permute.xlu0 %2279
        %2281 = vrot.lane.b32.xlu0 %v1186, 64
        %v2282 = vpop.permute.xlu0 %2281
        %2283 = vrot.lane.b32.xlu0 %v1187, 64
        %v2284 = vpop.permute.xlu0 %2283
        %2285 = vrot.lane.b32.xlu0 %v1188, 64
        %v2286 = vpop.permute.xlu0 %2285
        %2287 = vrot.lane.b32.xlu0 %v1189, 64
        %v2288 = vpop.permute.xlu0 %2287
        %2289 = vrot.lane.b32.xlu0 %v1190, 64
        %v2290 = vpop.permute.xlu0 %2289
        %2291 = vrot.lane.b32.xlu0 %v1191, 64
        %v2292 = vpop.permute.xlu0 %2291
        %2293 = vrot.lane.b32.xlu0 %v1192, 64
        %v2294 = vpop.permute.xlu0 %2293
        %2295 = vrot.lane.b32.xlu0 %v1193, 64
        %v2296 = vpop.permute.xlu0 %2295
        %2297 = vrot.lane.b32.xlu0 %v1194, 64
        %v2298 = vpop.permute.xlu0 %2297
        %2299 = vrot.lane.b32.xlu0 %v1195, 64
        %v2300 = vpop.permute.xlu0 %2299
        %2301 = vrot.lane.b32.xlu0 %v1196, 64
        %v2302 = vpop.permute.xlu0 %2301
        %2303 = vrot.lane.b32.xlu0 %v1197, 64
        %v2304 = vpop.permute.xlu0 %2303
        %2305 = vrot.lane.b32.xlu0 %v1198, 64
        %v2306 = vpop.permute.xlu0 %2305
        %2307 = vrot.lane.b32.xlu0 %v1199, 64
        %v2308 = vpop.permute.xlu0 %2307
        %2309 = vrot.lane.b32.xlu0 %v1200, 64
        %v2310 = vpop.permute.xlu0 %2309
        %2311 = vrot.lane.b32.xlu0 %v1201, 64
        %v2312 = vpop.permute.xlu0 %2311
        %2313 = vrot.lane.b32.xlu0 %v1202, 64
        %v2314 = vpop.permute.xlu0 %2313
        %2315 = vrot.lane.b32.xlu0 %v1203, 64
        %v2316 = vpop.permute.xlu0 %2315
        %2317 = vrot.lane.b32.xlu0 %v1204, 64
        %v2318 = vpop.permute.xlu0 %2317
        %2319 = vrot.lane.b32.xlu0 %v1205, 64
        %v2320 = vpop.permute.xlu0 %2319
        %2321 = vrot.lane.b32.xlu0 %v1206, 64
        %v2322 = vpop.permute.xlu0 %2321
        %2323 = vrot.lane.b32.xlu0 %v1207, 64
        %v2324 = vpop.permute.xlu0 %2323
        %2325 = vrot.lane.b32.xlu0 %v1208, 64
        %v2326 = vpop.permute.xlu0 %2325
        %2327 = vrot.lane.b32.xlu0 %v1209, 64
        %v2328 = vpop.permute.xlu0 %2327
        %2329 = vrot.lane.b32.xlu0 %v1210, 64
        %v2330 = vpop.permute.xlu0 %2329
        %2331 = vrot.lane.b32.xlu0 %v1211, 64
        %v2332 = vpop.permute.xlu0 %2331
        %2333 = vrot.lane.b32.xlu0 %v1212, 64
        %v2334 = vpop.permute.xlu0 %2333
        %2335 = vrot.lane.b32.xlu0 %v1213, 64
        %v2336 = vpop.permute.xlu0 %2335
        %2401 = vrot.lane.b32.xlu0 %v1215, 80
        %v2402 = vpop.permute.xlu0 %2401
        %2403 = vrot.lane.b32.xlu0 %v1216, 80
        %v2404 = vpop.permute.xlu0 %2403
        %2405 = vrot.lane.b32.xlu0 %v1217, 80
        %v2406 = vpop.permute.xlu0 %2405
        %2407 = vrot.lane.b32.xlu0 %v1218, 80
        %v2408 = vpop.permute.xlu0 %2407
        %2409 = vrot.lane.b32.xlu0 %v1219, 80
        %v2410 = vpop.permute.xlu0 %2409
        %2411 = vrot.lane.b32.xlu0 %v1220, 80
        %v2412 = vpop.permute.xlu0 %2411
        %2413 = vrot.lane.b32.xlu0 %v1221, 80
        %v2414 = vpop.permute.xlu0 %2413
        %2415 = vrot.lane.b32.xlu0 %v1222, 80
        %v2416 = vpop.permute.xlu0 %2415
        %2417 = vrot.lane.b32.xlu0 %v1223, 80
        %v2418 = vpop.permute.xlu0 %2417
        %2419 = vrot.lane.b32.xlu0 %v1224, 80
        %v2420 = vpop.permute.xlu0 %2419
        %2421 = vrot.lane.b32.xlu0 %v1225, 80
        %v2422 = vpop.permute.xlu0 %2421
        %2423 = vrot.lane.b32.xlu0 %v1226, 80
        %v2424 = vpop.permute.xlu0 %2423
        %2425 = vrot.lane.b32.xlu0 %v1227, 80
        %v2426 = vpop.permute.xlu0 %2425
        %2427 = vrot.lane.b32.xlu0 %v1228, 80
        %v2428 = vpop.permute.xlu0 %2427
        %2429 = vrot.lane.b32.xlu0 %v1229, 80
        %v2430 = vpop.permute.xlu0 %2429
        %2431 = vrot.lane.b32.xlu0 %v1230, 80
        %v2432 = vpop.permute.xlu0 %2431
        %2433 = vrot.lane.b32.xlu0 %v1231, 80
        %v2434 = vpop.permute.xlu0 %2433
        %2435 = vrot.lane.b32.xlu0 %v1232, 80
        %v2436 = vpop.permute.xlu0 %2435
        %2437 = vrot.lane.b32.xlu0 %v1233, 80
        %v2438 = vpop.permute.xlu0 %2437
        %2439 = vrot.lane.b32.xlu0 %v1234, 80
        %v2440 = vpop.permute.xlu0 %2439
        %2441 = vrot.lane.b32.xlu0 %v1235, 80
        %v2442 = vpop.permute.xlu0 %2441
        %2443 = vrot.lane.b32.xlu0 %v1236, 80
        %v2444 = vpop.permute.xlu0 %2443
        %2445 = vrot.lane.b32.xlu0 %v1237, 80
        %v2446 = vpop.permute.xlu0 %2445
        %2447 = vrot.lane.b32.xlu0 %v1238, 80
        %v2448 = vpop.permute.xlu0 %2447
        %2449 = vrot.lane.b32.xlu0 %v1239, 80
        %v2450 = vpop.permute.xlu0 %2449
        %2451 = vrot.lane.b32.xlu0 %v1240, 80
        %v2452 = vpop.permute.xlu0 %2451
        %2453 = vrot.lane.b32.xlu0 %v1241, 80
        %v2454 = vpop.permute.xlu0 %2453
        %2455 = vrot.lane.b32.xlu0 %v1242, 80
        %v2456 = vpop.permute.xlu0 %2455
        %2457 = vrot.lane.b32.xlu0 %v1243, 80
        %v2458 = vpop.permute.xlu0 %2457
        %2459 = vrot.lane.b32.xlu0 %v1244, 80
        %v2460 = vpop.permute.xlu0 %2459
        %2461 = vrot.lane.b32.xlu0 %v1245, 80
        %v2462 = vpop.permute.xlu0 %2461
        %2463 = vrot.lane.b32.xlu0 %v1246, 80
        %v2464 = vpop.permute.xlu0 %2463
        %2529 = vrot.lane.b32.xlu0 %v1247, 96
        %v2530 = vpop.permute.xlu0 %2529
        %2531 = vrot.lane.b32.xlu0 %v1248, 96
        %v2532 = vpop.permute.xlu0 %2531
        %2533 = vrot.lane.b32.xlu0 %v1249, 96
        %v2534 = vpop.permute.xlu0 %2533
        %2535 = vrot.lane.b32.xlu0 %v1250, 96
        %v2536 = vpop.permute.xlu0 %2535
        %2537 = vrot.lane.b32.xlu0 %v1251, 96
        %v2538 = vpop.permute.xlu0 %2537
        %2539 = vrot.lane.b32.xlu0 %v1252, 96
        %v2540 = vpop.permute.xlu0 %2539
        %2541 = vrot.lane.b32.xlu0 %v1253, 96
        %v2542 = vpop.permute.xlu0 %2541
        %2543 = vrot.lane.b32.xlu0 %v1254, 96
        %v2544 = vpop.permute.xlu0 %2543
        %2545 = vrot.lane.b32.xlu0 %v1255, 96
        %v2546 = vpop.permute.xlu0 %2545
        %2547 = vrot.lane.b32.xlu0 %v1256, 96
        %v2548 = vpop.permute.xlu0 %2547
        %2549 = vrot.lane.b32.xlu0 %v1257, 96
        %v2550 = vpop.permute.xlu0 %2549
        %2551 = vrot.lane.b32.xlu0 %v1258, 96
        %v2552 = vpop.permute.xlu0 %2551
        %2553 = vrot.lane.b32.xlu0 %v1259, 96
        %v2554 = vpop.permute.xlu0 %2553
        %2555 = vrot.lane.b32.xlu0 %v1260, 96
        %v2556 = vpop.permute.xlu0 %2555
        %2557 = vrot.lane.b32.xlu0 %v1261, 96
        %v2558 = vpop.permute.xlu0 %2557
        %2559 = vrot.lane.b32.xlu0 %v1262, 96
        %v2560 = vpop.permute.xlu0 %2559
        %2561 = vrot.lane.b32.xlu0 %v1263, 96
        %v2562 = vpop.permute.xlu0 %2561
        %2563 = vrot.lane.b32.xlu0 %v1264, 96
        %v2564 = vpop.permute.xlu0 %2563
        %2565 = vrot.lane.b32.xlu0 %v1265, 96
        %v2566 = vpop.permute.xlu0 %2565
        %2567 = vrot.lane.b32.xlu0 %v1266, 96
        %v2568 = vpop.permute.xlu0 %2567
        %2569 = vrot.lane.b32.xlu0 %v1267, 96
        %v2570 = vpop.permute.xlu0 %2569
        %2571 = vrot.lane.b32.xlu0 %v1268, 96
        %v2572 = vpop.permute.xlu0 %2571
        %2573 = vrot.lane.b32.xlu0 %v1269, 96
        %v2574 = vpop.permute.xlu0 %2573
        %2575 = vrot.lane.b32.xlu0 %v1270, 96
        %v2576 = vpop.permute.xlu0 %2575
        %2577 = vrot.lane.b32.xlu0 %v1271, 96
        %v2578 = vpop.permute.xlu0 %2577
        %2579 = vrot.lane.b32.xlu0 %v1272, 96
        %v2580 = vpop.permute.xlu0 %2579
        %2581 = vrot.lane.b32.xlu0 %v1273, 96
        %v2582 = vpop.permute.xlu0 %2581
        %2583 = vrot.lane.b32.xlu0 %v1274, 96
        %v2584 = vpop.permute.xlu0 %2583
        %2585 = vrot.lane.b32.xlu0 %v1275, 96
        %v2586 = vpop.permute.xlu0 %2585
        %2587 = vrot.lane.b32.xlu0 %v1276, 96
        %v2588 = vpop.permute.xlu0 %2587
        %2589 = vrot.lane.b32.xlu0 %v1277, 96
        %v2590 = vpop.permute.xlu0 %2589
        %2591 = vrot.lane.b32.xlu0 %v1278, 96
        %v2592 = vpop.permute.xlu0 %2591
        %2657 = vrot.lane.b32.xlu0 %v1279, 112
        %v2658 = vpop.permute.xlu0 %2657
        %2659 = vrot.lane.b32.xlu0 %v1280, 112
        %v2660 = vpop.permute.xlu0 %2659
        %2661 = vrot.lane.b32.xlu0 %v1281, 112
        %v2662 = vpop.permute.xlu0 %2661
        %2663 = vrot.lane.b32.xlu0 %v1282, 112
        %v2664 = vpop.permute.xlu0 %2663
        %2665 = vrot.lane.b32.xlu0 %v1283, 112
        %v2666 = vpop.permute.xlu0 %2665
        %2667 = vrot.lane.b32.xlu0 %v1284, 112
        %v2668 = vpop.permute.xlu0 %2667
        %2669 = vrot.lane.b32.xlu0 %v1285, 112
        %v2670 = vpop.permute.xlu0 %2669
        %2671 = vrot.lane.b32.xlu0 %v1286, 112
        %v2672 = vpop.permute.xlu0 %2671
        %2673 = vrot.lane.b32.xlu0 %v1287, 112
        %v2674 = vpop.permute.xlu0 %2673
        %2675 = vrot.lane.b32.xlu0 %v1288, 112
        %v2676 = vpop.permute.xlu0 %2675
        %2677 = vrot.lane.b32.xlu0 %v1289, 112
        %v2678 = vpop.permute.xlu0 %2677
        %2679 = vrot.lane.b32.xlu0 %v1290, 112
        %v2680 = vpop.permute.xlu0 %2679
        %2681 = vrot.lane.b32.xlu0 %v1291, 112
        %v2682 = vpop.permute.xlu0 %2681
        %2683 = vrot.lane.b32.xlu0 %v1292, 112
        %v2684 = vpop.permute.xlu0 %2683
        %2685 = vrot.lane.b32.xlu0 %v1293, 112
        %v2686 = vpop.permute.xlu0 %2685
        %2687 = vrot.lane.b32.xlu0 %v1294, 112
        %v2688 = vpop.permute.xlu0 %2687
        %2689 = vrot.lane.b32.xlu0 %v1295, 112
        %v2690 = vpop.permute.xlu0 %2689
        %2691 = vrot.lane.b32.xlu0 %v1296, 112
        %v2692 = vpop.permute.xlu0 %2691
        %2693 = vrot.lane.b32.xlu0 %v1297, 112
        %v2694 = vpop.permute.xlu0 %2693
        %2695 = vrot.lane.b32.xlu0 %v1298, 112
        %v2696 = vpop.permute.xlu0 %2695
        %2697 = vrot.lane.b32.xlu0 %v1299, 112
        %v2698 = vpop.permute.xlu0 %2697
        %2699 = vrot.lane.b32.xlu0 %v1300, 112
        %v2700 = vpop.permute.xlu0 %2699
        %2701 = vrot.lane.b32.xlu0 %v1301, 112
        %v2702 = vpop.permute.xlu0 %2701
        %2703 = vrot.lane.b32.xlu0 %v1302, 112
        %v2704 = vpop.permute.xlu0 %2703
        %2705 = vrot.lane.b32.xlu0 %v1303, 112
        %v2706 = vpop.permute.xlu0 %2705
        %2707 = vrot.lane.b32.xlu0 %v1304, 112
        %v2708 = vpop.permute.xlu0 %2707
        %2709 = vrot.lane.b32.xlu0 %v1305, 112
        %v2710 = vpop.permute.xlu0 %2709
        %2711 = vrot.lane.b32.xlu0 %v1306, 112
        %v2712 = vpop.permute.xlu0 %2711
        %2713 = vrot.lane.b32.xlu0 %v1307, 112
        %v2714 = vpop.permute.xlu0 %2713
        %2715 = vrot.lane.b32.xlu0 %v1308, 112
        %v2716 = vpop.permute.xlu0 %2715
        %2717 = vrot.lane.b32.xlu0 %v1309, 112
        %v2718 = vpop.permute.xlu0 %2717
        %2719 = vrot.lane.b32.xlu0 %v1310, 112
        %v2720 = vpop.permute.xlu0 %2719
        %2785 = vrot.lane.b32.xlu0 %v1343, 16
        %v2786 = vpop.permute.xlu0 %2785
        %2787 = vrot.lane.b32.xlu0 %v1344, 16
        %v2788 = vpop.permute.xlu0 %2787
        %2789 = vrot.lane.b32.xlu0 %v1345, 16
        %v2790 = vpop.permute.xlu0 %2789
        %2791 = vrot.lane.b32.xlu0 %v1346, 16
        %v2792 = vpop.permute.xlu0 %2791
        %2793 = vrot.lane.b32.xlu0 %v1347, 16
        %v2794 = vpop.permute.xlu0 %2793
        %2795 = vrot.lane.b32.xlu0 %v1348, 16
        %v2796 = vpop.permute.xlu0 %2795
        %2797 = vrot.lane.b32.xlu0 %v1349, 16
        %v2798 = vpop.permute.xlu0 %2797
        %2799 = vrot.lane.b32.xlu0 %v1350, 16
        %v2800 = vpop.permute.xlu0 %2799
        %2801 = vrot.lane.b32.xlu0 %v1351, 16
        %v2802 = vpop.permute.xlu0 %2801
        %2803 = vrot.lane.b32.xlu0 %v1352, 16
        %v2804 = vpop.permute.xlu0 %2803
        %2805 = vrot.lane.b32.xlu0 %v1353, 16
        %v2806 = vpop.permute.xlu0 %2805
        %2807 = vrot.lane.b32.xlu0 %v1354, 16
        %v2808 = vpop.permute.xlu0 %2807
        %2809 = vrot.lane.b32.xlu0 %v1355, 16
        %v2810 = vpop.permute.xlu0 %2809
        %2811 = vrot.lane.b32.xlu0 %v1356, 16
        %v2812 = vpop.permute.xlu0 %2811
        %2813 = vrot.lane.b32.xlu0 %v1357, 16
        %v2814 = vpop.permute.xlu0 %2813
        %2815 = vrot.lane.b32.xlu0 %v1358, 16
        %v2816 = vpop.permute.xlu0 %2815
        %2817 = vrot.lane.b32.xlu0 %v1359, 16
        %v2818 = vpop.permute.xlu0 %2817
        %2819 = vrot.lane.b32.xlu0 %v1360, 16
        %v2820 = vpop.permute.xlu0 %2819
        %2821 = vrot.lane.b32.xlu0 %v1361, 16
        %v2822 = vpop.permute.xlu0 %2821
        %2823 = vrot.lane.b32.xlu0 %v1362, 16
        %v2824 = vpop.permute.xlu0 %2823
        %2825 = vrot.lane.b32.xlu0 %v1363, 16
        %v2826 = vpop.permute.xlu0 %2825
        %2827 = vrot.lane.b32.xlu0 %v1364, 16
        %v2828 = vpop.permute.xlu0 %2827
        %2829 = vrot.lane.b32.xlu0 %v1365, 16
        %v2830 = vpop.permute.xlu0 %2829
        %2831 = vrot.lane.b32.xlu0 %v1366, 16
        %v2832 = vpop.permute.xlu0 %2831
        %2833 = vrot.lane.b32.xlu0 %v1367, 16
        %v2834 = vpop.permute.xlu0 %2833
        %2835 = vrot.lane.b32.xlu0 %v1368, 16
        %v2836 = vpop.permute.xlu0 %2835
        %2837 = vrot.lane.b32.xlu0 %v1369, 16
        %v2838 = vpop.permute.xlu0 %2837
        %2839 = vrot.lane.b32.xlu0 %v1370, 16
        %v2840 = vpop.permute.xlu0 %2839
        %2841 = vrot.lane.b32.xlu0 %v1371, 16
        %v2842 = vpop.permute.xlu0 %2841
        %2843 = vrot.lane.b32.xlu0 %v1372, 16
        %v2844 = vpop.permute.xlu0 %2843
        %2845 = vrot.lane.b32.xlu0 %v1373, 16
        %v2846 = vpop.permute.xlu0 %2845
        %2847 = vrot.lane.b32.xlu0 %v1374, 16
        %v2848 = vpop.permute.xlu0 %2847
        %2913 = vrot.lane.b32.xlu0 %v1375, 32
        %v2914 = vpop.permute.xlu0 %2913
        %2915 = vrot.lane.b32.xlu0 %v1376, 32
        %v2916 = vpop.permute.xlu0 %2915
        %2917 = vrot.lane.b32.xlu0 %v1377, 32
        %v2918 = vpop.permute.xlu0 %2917
        %2919 = vrot.lane.b32.xlu0 %v1378, 32
        %v2920 = vpop.permute.xlu0 %2919
        %2921 = vrot.lane.b32.xlu0 %v1379, 32
        %v2922 = vpop.permute.xlu0 %2921
        %2923 = vrot.lane.b32.xlu0 %v1380, 32
        %v2924 = vpop.permute.xlu0 %2923
        %2925 = vrot.lane.b32.xlu0 %v1381, 32
        %v2926 = vpop.permute.xlu0 %2925
        %2927 = vrot.lane.b32.xlu0 %v1382, 32
        %v2928 = vpop.permute.xlu0 %2927
        %2929 = vrot.lane.b32.xlu0 %v1383, 32
        %v2930 = vpop.permute.xlu0 %2929
        %2931 = vrot.lane.b32.xlu0 %v1384, 32
        %v2932 = vpop.permute.xlu0 %2931
        %2933 = vrot.lane.b32.xlu0 %v1385, 32
        %v2934 = vpop.permute.xlu0 %2933
        %2935 = vrot.lane.b32.xlu0 %v1386, 32
        %v2936 = vpop.permute.xlu0 %2935
        %2937 = vrot.lane.b32.xlu0 %v1387, 32
        %v2938 = vpop.permute.xlu0 %2937
        %2939 = vrot.lane.b32.xlu0 %v1388, 32
        %v2940 = vpop.permute.xlu0 %2939
        %2941 = vrot.lane.b32.xlu0 %v1389, 32
        %v2942 = vpop.permute.xlu0 %2941
        %2943 = vrot.lane.b32.xlu0 %v1390, 32
        %v2944 = vpop.permute.xlu0 %2943
        %2945 = vrot.lane.b32.xlu0 %v1391, 32
        %v2946 = vpop.permute.xlu0 %2945
        %2947 = vrot.lane.b32.xlu0 %v1392, 32
        %v2948 = vpop.permute.xlu0 %2947
        %2949 = vrot.lane.b32.xlu0 %v1393, 32
        %v2950 = vpop.permute.xlu0 %2949
        %2951 = vrot.lane.b32.xlu0 %v1394, 32
        %v2952 = vpop.permute.xlu0 %2951
        %2953 = vrot.lane.b32.xlu0 %v1395, 32
        %v2954 = vpop.permute.xlu0 %2953
        %2955 = vrot.lane.b32.xlu0 %v1396, 32
        %v2956 = vpop.permute.xlu0 %2955
        %2957 = vrot.lane.b32.xlu0 %v1397, 32
        %v2958 = vpop.permute.xlu0 %2957
        %2959 = vrot.lane.b32.xlu0 %v1398, 32
        %v2960 = vpop.permute.xlu0 %2959
        %2961 = vrot.lane.b32.xlu0 %v1399, 32
        %v2962 = vpop.permute.xlu0 %2961
        %2963 = vrot.lane.b32.xlu0 %v1400, 32
        %v2964 = vpop.permute.xlu0 %2963
        %2965 = vrot.lane.b32.xlu0 %v1401, 32
        %v2966 = vpop.permute.xlu0 %2965
        %2967 = vrot.lane.b32.xlu0 %v1402, 32
        %v2968 = vpop.permute.xlu0 %2967
        %2969 = vrot.lane.b32.xlu0 %v1403, 32
        %v2970 = vpop.permute.xlu0 %2969
        %2971 = vrot.lane.b32.xlu0 %v1404, 32
        %v2972 = vpop.permute.xlu0 %2971
        %2973 = vrot.lane.b32.xlu0 %v1405, 32
        %v2974 = vpop.permute.xlu0 %2973
        %2975 = vrot.lane.b32.xlu0 %v1406, 32
        %v2976 = vpop.permute.xlu0 %2975
        %3041 = vrot.lane.b32.xlu0 %v1407, 48
        %v3042 = vpop.permute.xlu0 %3041
        %3043 = vrot.lane.b32.xlu0 %v1408, 48
        %v3044 = vpop.permute.xlu0 %3043
        %3045 = vrot.lane.b32.xlu0 %v1409, 48
        %v3046 = vpop.permute.xlu0 %3045
        %3047 = vrot.lane.b32.xlu0 %v1410, 48
        %v3048 = vpop.permute.xlu0 %3047
        %3049 = vrot.lane.b32.xlu0 %v1411, 48
        %v3050 = vpop.permute.xlu0 %3049
        %3051 = vrot.lane.b32.xlu0 %v1412, 48
        %v3052 = vpop.permute.xlu0 %3051
        %3053 = vrot.lane.b32.xlu0 %v1413, 48
        %v3054 = vpop.permute.xlu0 %3053
        %3055 = vrot.lane.b32.xlu0 %v1414, 48
        %v3056 = vpop.permute.xlu0 %3055
        %3057 = vrot.lane.b32.xlu0 %v1415, 48
        %v3058 = vpop.permute.xlu0 %3057
        %3059 = vrot.lane.b32.xlu0 %v1416, 48
        %v3060 = vpop.permute.xlu0 %3059
        %3061 = vrot.lane.b32.xlu0 %v1417, 48
        %v3062 = vpop.permute.xlu0 %3061
        %3063 = vrot.lane.b32.xlu0 %v1418, 48
        %v3064 = vpop.permute.xlu0 %3063
        %3065 = vrot.lane.b32.xlu0 %v1419, 48
        %v3066 = vpop.permute.xlu0 %3065
        %3067 = vrot.lane.b32.xlu0 %v1420, 48
        %v3068 = vpop.permute.xlu0 %3067
        %3069 = vrot.lane.b32.xlu0 %v1421, 48
        %v3070 = vpop.permute.xlu0 %3069
        %3071 = vrot.lane.b32.xlu0 %v1422, 48
        %v3072 = vpop.permute.xlu0 %3071
        %3073 = vrot.lane.b32.xlu0 %v1423, 48
        %v3074 = vpop.permute.xlu0 %3073
        %3075 = vrot.lane.b32.xlu0 %v1424, 48
        %v3076 = vpop.permute.xlu0 %3075
        %3077 = vrot.lane.b32.xlu0 %v1425, 48
        %v3078 = vpop.permute.xlu0 %3077
        %3079 = vrot.lane.b32.xlu0 %v1426, 48
        %v3080 = vpop.permute.xlu0 %3079
        %3081 = vrot.lane.b32.xlu0 %v1427, 48
        %v3082 = vpop.permute.xlu0 %3081
        %3083 = vrot.lane.b32.xlu0 %v1428, 48
        %v3084 = vpop.permute.xlu0 %3083
        %3085 = vrot.lane.b32.xlu0 %v1429, 48
        %v3086 = vpop.permute.xlu0 %3085
        %3087 = vrot.lane.b32.xlu0 %v1430, 48
        %v3088 = vpop.permute.xlu0 %3087
        %3089 = vrot.lane.b32.xlu0 %v1431, 48
        %v3090 = vpop.permute.xlu0 %3089
        %3091 = vrot.lane.b32.xlu0 %v1432, 48
        %v3092 = vpop.permute.xlu0 %3091
        %3093 = vrot.lane.b32.xlu0 %v1433, 48
        %v3094 = vpop.permute.xlu0 %3093
        %3095 = vrot.lane.b32.xlu0 %v1434, 48
        %v3096 = vpop.permute.xlu0 %3095
        %3097 = vrot.lane.b32.xlu0 %v1435, 48
        %v3098 = vpop.permute.xlu0 %3097
        %3099 = vrot.lane.b32.xlu0 %v1436, 48
        %v3100 = vpop.permute.xlu0 %3099
        %3101 = vrot.lane.b32.xlu0 %v1437, 48
        %v3102 = vpop.permute.xlu0 %3101
        %3103 = vrot.lane.b32.xlu0 %v1438, 48
        %v3104 = vpop.permute.xlu0 %3103
        %3169 = vrot.lane.b32.xlu0 %v1439, 64
        %v3170 = vpop.permute.xlu0 %3169
        %3171 = vrot.lane.b32.xlu0 %v1440, 64
        %v3172 = vpop.permute.xlu0 %3171
        %3173 = vrot.lane.b32.xlu0 %v1441, 64
        %v3174 = vpop.permute.xlu0 %3173
        %3175 = vrot.lane.b32.xlu0 %v1442, 64
        %v3176 = vpop.permute.xlu0 %3175
        %3177 = vrot.lane.b32.xlu0 %v1443, 64
        %v3178 = vpop.permute.xlu0 %3177
        %3179 = vrot.lane.b32.xlu0 %v1444, 64
        %v3180 = vpop.permute.xlu0 %3179
        %3181 = vrot.lane.b32.xlu0 %v1445, 64
        %v3182 = vpop.permute.xlu0 %3181
        %3183 = vrot.lane.b32.xlu0 %v1446, 64
        %v3184 = vpop.permute.xlu0 %3183
        %3185 = vrot.lane.b32.xlu0 %v1447, 64
        %v3186 = vpop.permute.xlu0 %3185
        %3187 = vrot.lane.b32.xlu0 %v1448, 64
        %v3188 = vpop.permute.xlu0 %3187
        %3189 = vrot.lane.b32.xlu0 %v1449, 64
        %v3190 = vpop.permute.xlu0 %3189
        %3191 = vrot.lane.b32.xlu0 %v1450, 64
        %v3192 = vpop.permute.xlu0 %3191
        %3193 = vrot.lane.b32.xlu0 %v1451, 64
        %v3194 = vpop.permute.xlu0 %3193
        %3195 = vrot.lane.b32.xlu0 %v1452, 64
        %v3196 = vpop.permute.xlu0 %3195
        %3197 = vrot.lane.b32.xlu0 %v1453, 64
        %v3198 = vpop.permute.xlu0 %3197
        %3199 = vrot.lane.b32.xlu0 %v1454, 64
        %v3200 = vpop.permute.xlu0 %3199
        %3201 = vrot.lane.b32.xlu0 %v1455, 64
        %v3202 = vpop.permute.xlu0 %3201
        %3203 = vrot.lane.b32.xlu0 %v1456, 64
        %v3204 = vpop.permute.xlu0 %3203
        %3205 = vrot.lane.b32.xlu0 %v1457, 64
        %v3206 = vpop.permute.xlu0 %3205
        %3207 = vrot.lane.b32.xlu0 %v1458, 64
        %v3208 = vpop.permute.xlu0 %3207
        %3209 = vrot.lane.b32.xlu0 %v1459, 64
        %v3210 = vpop.permute.xlu0 %3209
        %3211 = vrot.lane.b32.xlu0 %v1460, 64
        %v3212 = vpop.permute.xlu0 %3211
        %3213 = vrot.lane.b32.xlu0 %v1461, 64
        %v3214 = vpop.permute.xlu0 %3213
        %3215 = vrot.lane.b32.xlu0 %v1462, 64
        %v3216 = vpop.permute.xlu0 %3215
        %3217 = vrot.lane.b32.xlu0 %v1463, 64
        %v3218 = vpop.permute.xlu0 %3217
        %3219 = vrot.lane.b32.xlu0 %v1464, 64
        %v3220 = vpop.permute.xlu0 %3219
        %3221 = vrot.lane.b32.xlu0 %v1465, 64
        %v3222 = vpop.permute.xlu0 %3221
        %3223 = vrot.lane.b32.xlu0 %v1466, 64
        %v3224 = vpop.permute.xlu0 %3223
        %3225 = vrot.lane.b32.xlu0 %v1467, 64
        %v3226 = vpop.permute.xlu0 %3225
        %3227 = vrot.lane.b32.xlu0 %v1468, 64
        %v3228 = vpop.permute.xlu0 %3227
        %3229 = vrot.lane.b32.xlu0 %v1469, 64
        %v3230 = vpop.permute.xlu0 %3229
        %3231 = vrot.lane.b32.xlu0 %v1470, 64
        %v3232 = vpop.permute.xlu0 %3231
        %3297 = vrot.lane.b32.xlu0 %v1471, 80
        %v3298 = vpop.permute.xlu0 %3297
        %3299 = vrot.lane.b32.xlu0 %v1472, 80
        %v3300 = vpop.permute.xlu0 %3299
        %3301 = vrot.lane.b32.xlu0 %v1473, 80
        %v3302 = vpop.permute.xlu0 %3301
        %3303 = vrot.lane.b32.xlu0 %v1474, 80
        %v3304 = vpop.permute.xlu0 %3303
        %3305 = vrot.lane.b32.xlu0 %v1475, 80
        %v3306 = vpop.permute.xlu0 %3305
        %3307 = vrot.lane.b32.xlu0 %v1476, 80
        %v3308 = vpop.permute.xlu0 %3307
        %3309 = vrot.lane.b32.xlu0 %v1477, 80
        %v3310 = vpop.permute.xlu0 %3309
        %3311 = vrot.lane.b32.xlu0 %v1478, 80
        %v3312 = vpop.permute.xlu0 %3311
        %3313 = vrot.lane.b32.xlu0 %v1479, 80
        %v3314 = vpop.permute.xlu0 %3313
        %3315 = vrot.lane.b32.xlu0 %v1480, 80
        %v3316 = vpop.permute.xlu0 %3315
        %3317 = vrot.lane.b32.xlu0 %v1481, 80
        %v3318 = vpop.permute.xlu0 %3317
        %3319 = vrot.lane.b32.xlu0 %v1482, 80
        %v3320 = vpop.permute.xlu0 %3319
        %3321 = vrot.lane.b32.xlu0 %v1483, 80
        %v3322 = vpop.permute.xlu0 %3321
        %3323 = vrot.lane.b32.xlu0 %v1484, 80
        %v3324 = vpop.permute.xlu0 %3323
        %3325 = vrot.lane.b32.xlu0 %v1485, 80
        %v3326 = vpop.permute.xlu0 %3325
        %3327 = vrot.lane.b32.xlu0 %v1486, 80
        %v3328 = vpop.permute.xlu0 %3327
        %3329 = vrot.lane.b32.xlu0 %v1487, 80
        %v3330 = vpop.permute.xlu0 %3329
        %3331 = vrot.lane.b32.xlu0 %v1488, 80
        %v3332 = vpop.permute.xlu0 %3331
        %3333 = vrot.lane.b32.xlu0 %v1489, 80
        %v3334 = vpop.permute.xlu0 %3333
        %3335 = vrot.lane.b32.xlu0 %v1490, 80
        %v3336 = vpop.permute.xlu0 %3335
        %3337 = vrot.lane.b32.xlu0 %v1491, 80
        %v3338 = vpop.permute.xlu0 %3337
        %3339 = vrot.lane.b32.xlu0 %v1492, 80
        %v3340 = vpop.permute.xlu0 %3339
        %3341 = vrot.lane.b32.xlu0 %v1493, 80
        %v3342 = vpop.permute.xlu0 %3341
        %3343 = vrot.lane.b32.xlu0 %v1494, 80
        %v3344 = vpop.permute.xlu0 %3343
        %3345 = vrot.lane.b32.xlu0 %v1495, 80
        %v3346 = vpop.permute.xlu0 %3345
        %3347 = vrot.lane.b32.xlu0 %v1496, 80
        %v3348 = vpop.permute.xlu0 %3347
        %3349 = vrot.lane.b32.xlu0 %v1497, 80
        %v3350 = vpop.permute.xlu0 %3349
        %3351 = vrot.lane.b32.xlu0 %v1498, 80
        %v3352 = vpop.permute.xlu0 %3351
        %3353 = vrot.lane.b32.xlu0 %v1499, 80
        %v3354 = vpop.permute.xlu0 %3353
        %3355 = vrot.lane.b32.xlu0 %v1500, 80
        %v3356 = vpop.permute.xlu0 %3355
        %3357 = vrot.lane.b32.xlu0 %v1501, 80
        %v3358 = vpop.permute.xlu0 %3357
        %3359 = vrot.lane.b32.xlu0 %v1502, 80
        %v3360 = vpop.permute.xlu0 %3359
        %3425 = vrot.lane.b32.xlu0 %v1503, 96
        %v3426 = vpop.permute.xlu0 %3425
        %3427 = vrot.lane.b32.xlu0 %v1504, 96
        %v3428 = vpop.permute.xlu0 %3427
        %3429 = vrot.lane.b32.xlu0 %v1505, 96
        %v3430 = vpop.permute.xlu0 %3429
        %3431 = vrot.lane.b32.xlu0 %v1506, 96
        %v3432 = vpop.permute.xlu0 %3431
        %3433 = vrot.lane.b32.xlu0 %v1507, 96
        %v3434 = vpop.permute.xlu0 %3433
        %3435 = vrot.lane.b32.xlu0 %v1508, 96
        %v3436 = vpop.permute.xlu0 %3435
        %3437 = vrot.lane.b32.xlu0 %v1509, 96
        %v3438 = vpop.permute.xlu0 %3437
        %3439 = vrot.lane.b32.xlu0 %v1510, 96
        %v3440 = vpop.permute.xlu0 %3439
        %3441 = vrot.lane.b32.xlu0 %v1511, 96
        %v3442 = vpop.permute.xlu0 %3441
        %3443 = vrot.lane.b32.xlu0 %v1512, 96
        %v3444 = vpop.permute.xlu0 %3443
        %3445 = vrot.lane.b32.xlu0 %v1513, 96
        %v3446 = vpop.permute.xlu0 %3445
        %3447 = vrot.lane.b32.xlu0 %v1514, 96
        %v3448 = vpop.permute.xlu0 %3447
        %3449 = vrot.lane.b32.xlu0 %v1515, 96
        %v3450 = vpop.permute.xlu0 %3449
        %3451 = vrot.lane.b32.xlu0 %v1516, 96
        %v3452 = vpop.permute.xlu0 %3451
        %3453 = vrot.lane.b32.xlu0 %v1517, 96
        %v3454 = vpop.permute.xlu0 %3453
        %3455 = vrot.lane.b32.xlu0 %v1518, 96
        %v3456 = vpop.permute.xlu0 %3455
        %3457 = vrot.lane.b32.xlu0 %v1519, 96
        %v3458 = vpop.permute.xlu0 %3457
        %3459 = vrot.lane.b32.xlu0 %v1520, 96
        %v3460 = vpop.permute.xlu0 %3459
        %3461 = vrot.lane.b32.xlu0 %v1521, 96
        %v3462 = vpop.permute.xlu0 %3461
        %3463 = vrot.lane.b32.xlu0 %v1522, 96
        %v3464 = vpop.permute.xlu0 %3463
        %3465 = vrot.lane.b32.xlu0 %v1523, 96
        %v3466 = vpop.permute.xlu0 %3465
        %3467 = vrot.lane.b32.xlu0 %v1524, 96
        %v3468 = vpop.permute.xlu0 %3467
        %3469 = vrot.lane.b32.xlu0 %v1525, 96
        %v3470 = vpop.permute.xlu0 %3469
        %3471 = vrot.lane.b32.xlu0 %v1526, 96
        %v3472 = vpop.permute.xlu0 %3471
        %3473 = vrot.lane.b32.xlu0 %v1527, 96
        %v3474 = vpop.permute.xlu0 %3473
        %3475 = vrot.lane.b32.xlu0 %v1528, 96
        %v3476 = vpop.permute.xlu0 %3475
        %3477 = vrot.lane.b32.xlu0 %v1529, 96
        %v3478 = vpop.permute.xlu0 %3477
        %3479 = vrot.lane.b32.xlu0 %v1530, 96
        %v3480 = vpop.permute.xlu0 %3479
        %3481 = vrot.lane.b32.xlu0 %v1531, 96
        %v3482 = vpop.permute.xlu0 %3481
        %3483 = vrot.lane.b32.xlu0 %v1532, 96
        %v3484 = vpop.permute.xlu0 %3483
        %3485 = vrot.lane.b32.xlu0 %v1533, 96
        %v3486 = vpop.permute.xlu0 %3485
        %3487 = vrot.lane.b32.xlu0 %v1534, 96
        %v3488 = vpop.permute.xlu0 %3487
        %3553 = vrot.lane.b32.xlu0 %v1536, 112
        %v3554 = vpop.permute.xlu0 %3553
        %3555 = vrot.lane.b32.xlu0 %v1537, 112
        %v3556 = vpop.permute.xlu0 %3555
        %3557 = vrot.lane.b32.xlu0 %v1538, 112
        %v3558 = vpop.permute.xlu0 %3557
        %3559 = vrot.lane.b32.xlu0 %v1539, 112
        %v3560 = vpop.permute.xlu0 %3559
        %3561 = vrot.lane.b32.xlu0 %v1540, 112
        %v3562 = vpop.permute.xlu0 %3561
        %3563 = vrot.lane.b32.xlu0 %v1541, 112
        %v3564 = vpop.permute.xlu0 %3563
        %3565 = vrot.lane.b32.xlu0 %v1542, 112
        %v3566 = vpop.permute.xlu0 %3565
        %3567 = vrot.lane.b32.xlu0 %v1543, 112
        %v3568 = vpop.permute.xlu0 %3567
        %3569 = vrot.lane.b32.xlu0 %v1544, 112
        %v3570 = vpop.permute.xlu0 %3569
        %3571 = vrot.lane.b32.xlu0 %v1545, 112
        %v3572 = vpop.permute.xlu0 %3571
        %3573 = vrot.lane.b32.xlu0 %v1546, 112
        %v3574 = vpop.permute.xlu0 %3573
        %3575 = vrot.lane.b32.xlu0 %v1547, 112
        %v3576 = vpop.permute.xlu0 %3575
        %3577 = vrot.lane.b32.xlu0 %v1548, 112
        %v3578 = vpop.permute.xlu0 %3577
        %3579 = vrot.lane.b32.xlu0 %v1549, 112
        %v3580 = vpop.permute.xlu0 %3579
        %3581 = vrot.lane.b32.xlu0 %v1550, 112
        %v3582 = vpop.permute.xlu0 %3581
        %3583 = vrot.lane.b32.xlu0 %v1551, 112
        %v3584 = vpop.permute.xlu0 %3583
        %3585 = vrot.lane.b32.xlu0 %v1552, 112
        %v3586 = vpop.permute.xlu0 %3585
        %3587 = vrot.lane.b32.xlu0 %v1553, 112
        %v3588 = vpop.permute.xlu0 %3587
        %3589 = vrot.lane.b32.xlu0 %v1554, 112
        %v3590 = vpop.permute.xlu0 %3589
        %3591 = vrot.lane.b32.xlu0 %v1555, 112
        %v3592 = vpop.permute.xlu0 %3591
        %3593 = vrot.lane.b32.xlu0 %v1556, 112
        %v3594 = vpop.permute.xlu0 %3593
        %3595 = vrot.lane.b32.xlu0 %v1557, 112
        %v3596 = vpop.permute.xlu0 %3595
        %3597 = vrot.lane.b32.xlu0 %v1558, 112
        %v3598 = vpop.permute.xlu0 %3597
        %3599 = vrot.lane.b32.xlu0 %v1559, 112
        %v3600 = vpop.permute.xlu0 %3599
        %3601 = vrot.lane.b32.xlu0 %v1560, 112
        %v3602 = vpop.permute.xlu0 %3601
        %3603 = vrot.lane.b32.xlu0 %v1561, 112
        %v3604 = vpop.permute.xlu0 %3603
        %3605 = vrot.lane.b32.xlu0 %v1562, 112
        %v3606 = vpop.permute.xlu0 %3605
        %3607 = vrot.lane.b32.xlu0 %v1563, 112
        %v3608 = vpop.permute.xlu0 %3607
        %3609 = vrot.lane.b32.xlu0 %v1564, 112
        %v3610 = vpop.permute.xlu0 %3609
        %3611 = vrot.lane.b32.xlu0 %v1565, 112
        %v3612 = vpop.permute.xlu0 %3611
        %3613 = vrot.lane.b32.xlu0 %v1566, 112
        %v3614 = vpop.permute.xlu0 %3613
        %3615 = vrot.lane.b32.xlu0 %v1567, 112
        %v3616 = vpop.permute.xlu0 %3615
        %v3649 = vsel %vm542, %v1054, %v1890
        %v3650 = vsel %vm542, %v1055, %v1892
        %v3651 = vsel %vm542, %v1056, %v1894
        %v3652 = vsel %vm542, %v1057, %v1896
        %v3653 = vsel %vm542, %v1058, %v1898
        %v3654 = vsel %vm542, %v1059, %v1900
        %v3655 = vsel %vm542, %v1060, %v1902
        %v3656 = vsel %vm542, %v1061, %v1904
        %v3657 = vsel %vm542, %v1062, %v1906
        %v3658 = vsel %vm542, %v1063, %v1908
        %v3659 = vsel %vm542, %v1064, %v1910
        %v3660 = vsel %vm542, %v1065, %v1912
        %v3661 = vsel %vm542, %v1066, %v1914
        %v3662 = vsel %vm542, %v1067, %v1916
        %v3663 = vsel %vm542, %v1068, %v1918
        %v3664 = vsel %vm542, %v1069, %v1920
        %v3665 = vsel %vm542, %v1070, %v1922
        %v3666 = vsel %vm542, %v1071, %v1924
        %v3667 = vsel %vm542, %v1072, %v1926
        %v3668 = vsel %vm542, %v1073, %v1928
        %v3669 = vsel %vm542, %v1074, %v1930
        %v3670 = vsel %vm542, %v1075, %v1932
        %v3671 = vsel %vm542, %v1076, %v1934
        %v3672 = vsel %vm542, %v1077, %v1936
        %v3673 = vsel %vm542, %v1078, %v1938
        %v3674 = vsel %vm542, %v1079, %v1940
        %v3675 = vsel %vm542, %v1080, %v1942
        %v3676 = vsel %vm542, %v1081, %v1944
        %v3677 = vsel %vm542, %v1082, %v1946
        %v3678 = vsel %vm542, %v1083, %v1948
        %v3679 = vsel %vm542, %v1084, %v1950
        %v3680 = vsel %vm542, %v1085, %v1952
        %vm3681 = vcmask 261120
        %v3682 = vsel %vm3681, %v3649, %v2018
        %v3683 = vsel %vm3681, %v3650, %v2020
        %v3684 = vsel %vm3681, %v3651, %v2022
        %v3685 = vsel %vm3681, %v3652, %v2024
        %v3686 = vsel %vm3681, %v3653, %v2026
        %v3687 = vsel %vm3681, %v3654, %v2028
        %v3688 = vsel %vm3681, %v3655, %v2030
        %v3689 = vsel %vm3681, %v3656, %v2032
        %v3690 = vsel %vm3681, %v3657, %v2034
        %v3691 = vsel %vm3681, %v3658, %v2036
        %v3692 = vsel %vm3681, %v3659, %v2038
        %v3693 = vsel %vm3681, %v3660, %v2040
        %v3694 = vsel %vm3681, %v3661, %v2042
        %v3695 = vsel %vm3681, %v3662, %v2044
        %v3696 = vsel %vm3681, %v3663, %v2046
        %v3697 = vsel %vm3681, %v3664, %v2048
        %v3698 = vsel %vm3681, %v3665, %v2050
        %v3699 = vsel %vm3681, %v3666, %v2052
        %v3700 = vsel %vm3681, %v3667, %v2054
        %v3701 = vsel %vm3681, %v3668, %v2056
        %v3702 = vsel %vm3681, %v3669, %v2058
        %v3703 = vsel %vm3681, %v3670, %v2060
        %v3704 = vsel %vm3681, %v3671, %v2062
        %v3705 = vsel %vm3681, %v3672, %v2064
        %v3706 = vsel %vm3681, %v3673, %v2066
        %v3707 = vsel %vm3681, %v3674, %v2068
        %v3708 = vsel %vm3681, %v3675, %v2070
        %v3709 = vsel %vm3681, %v3676, %v2072
        %v3710 = vsel %vm3681, %v3677, %v2074
        %v3711 = vsel %vm3681, %v3678, %v2076
        %v3712 = vsel %vm3681, %v3679, %v2078
        %v3713 = vsel %vm3681, %v3680, %v2080
        %vm3714 = vcmask 392192
        %v3715 = vsel %vm3714, %v3682, %v2146
        %v3716 = vsel %vm3714, %v3683, %v2148
        %v3717 = vsel %vm3714, %v3684, %v2150
        %v3718 = vsel %vm3714, %v3685, %v2152
        %v3719 = vsel %vm3714, %v3686, %v2154
        %v3720 = vsel %vm3714, %v3687, %v2156
        %v3721 = vsel %vm3714, %v3688, %v2158
        %v3722 = vsel %vm3714, %v3689, %v2160
        %v3723 = vsel %vm3714, %v3690, %v2162
        %v3724 = vsel %vm3714, %v3691, %v2164
        %v3725 = vsel %vm3714, %v3692, %v2166
        %v3726 = vsel %vm3714, %v3693, %v2168
        %v3727 = vsel %vm3714, %v3694, %v2170
        %v3728 = vsel %vm3714, %v3695, %v2172
        %v3729 = vsel %vm3714, %v3696, %v2174
        %v3730 = vsel %vm3714, %v3697, %v2176
        %v3731 = vsel %vm3714, %v3698, %v2178
        %v3732 = vsel %vm3714, %v3699, %v2180
        %v3733 = vsel %vm3714, %v3700, %v2182
        %v3734 = vsel %vm3714, %v3701, %v2184
        %v3735 = vsel %vm3714, %v3702, %v2186
        %v3736 = vsel %vm3714, %v3703, %v2188
        %v3737 = vsel %vm3714, %v3704, %v2190
        %v3738 = vsel %vm3714, %v3705, %v2192
        %v3739 = vsel %vm3714, %v3706, %v2194
        %v3740 = vsel %vm3714, %v3707, %v2196
        %v3741 = vsel %vm3714, %v3708, %v2198
        %v3742 = vsel %vm3714, %v3709, %v2200
        %v3743 = vsel %vm3714, %v3710, %v2202
        %v3744 = vsel %vm3714, %v3711, %v2204
        %v3745 = vsel %vm3714, %v3712, %v2206
        %v3746 = vsel %vm3714, %v3713, %v2208
        %vm3747 = vcmask 523264
        %v3748 = vsel %vm3747, %v3715, %v2274
        %v3749 = vsel %vm3747, %v3716, %v2276
        %v3750 = vsel %vm3747, %v3717, %v2278
        %v3751 = vsel %vm3747, %v3718, %v2280
        %v3752 = vsel %vm3747, %v3719, %v2282
        %v3753 = vsel %vm3747, %v3720, %v2284
        %v3754 = vsel %vm3747, %v3721, %v2286
        %v3755 = vsel %vm3747, %v3722, %v2288
        %v3756 = vsel %vm3747, %v3723, %v2290
        %v3757 = vsel %vm3747, %v3724, %v2292
        %v3758 = vsel %vm3747, %v3725, %v2294
        %v3759 = vsel %vm3747, %v3726, %v2296
        %v3760 = vsel %vm3747, %v3727, %v2298
        %v3761 = vsel %vm3747, %v3728, %v2300
        %v3762 = vsel %vm3747, %v3729, %v2302
        %v3763 = vsel %vm3747, %v3730, %v2304
        %v3764 = vsel %vm3747, %v3731, %v2306
        %v3765 = vsel %vm3747, %v3732, %v2308
        %v3766 = vsel %vm3747, %v3733, %v2310
        %v3767 = vsel %vm3747, %v3734, %v2312
        %v3768 = vsel %vm3747, %v3735, %v2314
        %v3769 = vsel %vm3747, %v3736, %v2316
        %v3770 = vsel %vm3747, %v3737, %v2318
        %v3771 = vsel %vm3747, %v3738, %v2320
        %v3772 = vsel %vm3747, %v3739, %v2322
        %v3773 = vsel %vm3747, %v3740, %v2324
        %v3774 = vsel %vm3747, %v3741, %v2326
        %v3775 = vsel %vm3747, %v3742, %v2328
        %v3776 = vsel %vm3747, %v3743, %v2330
        %v3777 = vsel %vm3747, %v3744, %v2332
        %v3778 = vsel %vm3747, %v3745, %v2334
        %v3779 = vsel %vm3747, %v3746, %v2336
        %vm3780 = vcmask 654336
        %v3781 = vsel %vm3780, %v3748, %v2402
        %v3782 = vsel %vm3780, %v3749, %v2404
        %v3783 = vsel %vm3780, %v3750, %v2406
        %v3784 = vsel %vm3780, %v3751, %v2408
        %v3785 = vsel %vm3780, %v3752, %v2410
        %v3786 = vsel %vm3780, %v3753, %v2412
        %v3787 = vsel %vm3780, %v3754, %v2414
        %v3788 = vsel %vm3780, %v3755, %v2416
        %v3789 = vsel %vm3780, %v3756, %v2418
        %v3790 = vsel %vm3780, %v3757, %v2420
        %v3791 = vsel %vm3780, %v3758, %v2422
        %v3792 = vsel %vm3780, %v3759, %v2424
        %v3793 = vsel %vm3780, %v3760, %v2426
        %v3794 = vsel %vm3780, %v3761, %v2428
        %v3795 = vsel %vm3780, %v3762, %v2430
        %v3796 = vsel %vm3780, %v3763, %v2432
        %v3797 = vsel %vm3780, %v3764, %v2434
        %v3798 = vsel %vm3780, %v3765, %v2436
        %v3799 = vsel %vm3780, %v3766, %v2438
        %v3800 = vsel %vm3780, %v3767, %v2440
        %v3801 = vsel %vm3780, %v3768, %v2442
        %v3802 = vsel %vm3780, %v3769, %v2444
        %v3803 = vsel %vm3780, %v3770, %v2446
        %v3804 = vsel %vm3780, %v3771, %v2448
        %v3805 = vsel %vm3780, %v3772, %v2450
        %v3806 = vsel %vm3780, %v3773, %v2452
        %v3807 = vsel %vm3780, %v3774, %v2454
        %v3808 = vsel %vm3780, %v3775, %v2456
        %v3809 = vsel %vm3780, %v3776, %v2458
        %v3810 = vsel %vm3780, %v3777, %v2460
        %v3811 = vsel %vm3780, %v3778, %v2462
        %v3812 = vsel %vm3780, %v3779, %v2464
        %vm3813 = vcmask 785408
        %v3814 = vsel %vm3813, %v3781, %v2530
        %v3815 = vsel %vm3813, %v3782, %v2532
        %v3816 = vsel %vm3813, %v3783, %v2534
        %v3817 = vsel %vm3813, %v3784, %v2536
        %v3818 = vsel %vm3813, %v3785, %v2538
        %v3819 = vsel %vm3813, %v3786, %v2540
        %v3820 = vsel %vm3813, %v3787, %v2542
        %v3821 = vsel %vm3813, %v3788, %v2544
        %v3822 = vsel %vm3813, %v3789, %v2546
        %v3823 = vsel %vm3813, %v3790, %v2548
        %v3824 = vsel %vm3813, %v3791, %v2550
        %v3825 = vsel %vm3813, %v3792, %v2552
        %v3826 = vsel %vm3813, %v3793, %v2554
        %v3827 = vsel %vm3813, %v3794, %v2556
        %v3828 = vsel %vm3813, %v3795, %v2558
        %v3829 = vsel %vm3813, %v3796, %v2560
        %v3830 = vsel %vm3813, %v3797, %v2562
        %v3831 = vsel %vm3813, %v3798, %v2564
        %v3832 = vsel %vm3813, %v3799, %v2566
        %v3833 = vsel %vm3813, %v3800, %v2568
        %v3834 = vsel %vm3813, %v3801, %v2570
        %v3835 = vsel %vm3813, %v3802, %v2572
        %v3836 = vsel %vm3813, %v3803, %v2574
        %v3837 = vsel %vm3813, %v3804, %v2576
        %v3838 = vsel %vm3813, %v3805, %v2578
        %v3839 = vsel %vm3813, %v3806, %v2580
        %v3840 = vsel %vm3813, %v3807, %v2582
        %v3841 = vsel %vm3813, %v3808, %v2584
        %v3842 = vsel %vm3813, %v3809, %v2586
        %v3843 = vsel %vm3813, %v3810, %v2588
        %v3844 = vsel %vm3813, %v3811, %v2590
        %v3845 = vsel %vm3813, %v3812, %v2592
        %vm3846 = vcmask 916480
        %v3847 = vsel %vm3846, %v3814, %v2658
        %v3848 = vsel %vm3846, %v3815, %v2660
        %v3849 = vsel %vm3846, %v3816, %v2662
        %v3850 = vsel %vm3846, %v3817, %v2664
        %v3851 = vsel %vm3846, %v3818, %v2666
        %v3852 = vsel %vm3846, %v3819, %v2668
        %v3853 = vsel %vm3846, %v3820, %v2670
        %v3854 = vsel %vm3846, %v3821, %v2672
        %v3855 = vsel %vm3846, %v3822, %v2674
        %v3856 = vsel %vm3846, %v3823, %v2676
        %v3857 = vsel %vm3846, %v3824, %v2678
        %v3858 = vsel %vm3846, %v3825, %v2680
        %v3859 = vsel %vm3846, %v3826, %v2682
        %v3860 = vsel %vm3846, %v3827, %v2684
        %v3861 = vsel %vm3846, %v3828, %v2686
        %v3862 = vsel %vm3846, %v3829, %v2688
        %v3863 = vsel %vm3846, %v3830, %v2690
        %v3864 = vsel %vm3846, %v3831, %v2692
        %v3865 = vsel %vm3846, %v3832, %v2694
        %v3866 = vsel %vm3846, %v3833, %v2696
        %v3867 = vsel %vm3846, %v3834, %v2698
        %v3868 = vsel %vm3846, %v3835, %v2700
        %v3869 = vsel %vm3846, %v3836, %v2702
        %v3870 = vsel %vm3846, %v3837, %v2704
        %v3871 = vsel %vm3846, %v3838, %v2706
        %v3872 = vsel %vm3846, %v3839, %v2708
        %v3873 = vsel %vm3846, %v3840, %v2710
        %v3874 = vsel %vm3846, %v3841, %v2712
        %v3875 = vsel %vm3846, %v3842, %v2714
        %v3876 = vsel %vm3846, %v3843, %v2716
        %v3877 = vsel %vm3846, %v3844, %v2718
        %v3878 = vsel %vm3846, %v3845, %v2720
        %v3879 = vsel %vm542, %v1311, %v2786
        %v3880 = vsel %vm542, %v1312, %v2788
        %v3881 = vsel %vm542, %v1313, %v2790
        %v3882 = vsel %vm542, %v1314, %v2792
        %v3883 = vsel %vm542, %v1315, %v2794
        %v3884 = vsel %vm542, %v1316, %v2796
        %v3885 = vsel %vm542, %v1317, %v2798
        %v3886 = vsel %vm542, %v1318, %v2800
        %v3887 = vsel %vm542, %v1319, %v2802
        %v3888 = vsel %vm542, %v1320, %v2804
        %v3889 = vsel %vm542, %v1321, %v2806
        %v3890 = vsel %vm542, %v1322, %v2808
        %v3891 = vsel %vm542, %v1323, %v2810
        %v3892 = vsel %vm542, %v1324, %v2812
        %v3893 = vsel %vm542, %v1325, %v2814
        %v3894 = vsel %vm542, %v1326, %v2816
        %v3895 = vsel %vm542, %v1327, %v2818
        %v3896 = vsel %vm542, %v1328, %v2820
        %v3897 = vsel %vm542, %v1329, %v2822
        %v3898 = vsel %vm542, %v1330, %v2824
        %v3899 = vsel %vm542, %v1331, %v2826
        %v3900 = vsel %vm542, %v1332, %v2828
        %v3901 = vsel %vm542, %v1333, %v2830
        %v3902 = vsel %vm542, %v1334, %v2832
        %v3903 = vsel %vm542, %v1335, %v2834
        %v3904 = vsel %vm542, %v1336, %v2836
        %v3905 = vsel %vm542, %v1337, %v2838
        %v3906 = vsel %vm542, %v1338, %v2840
        %v3907 = vsel %vm542, %v1339, %v2842
        %v3908 = vsel %vm542, %v1340, %v2844
        %v3909 = vsel %vm542, %v1341, %v2846
        %v3910 = vsel %vm542, %v1342, %v2848
        %v3911 = vsel %vm3681, %v3879, %v2914
        %v3912 = vsel %vm3681, %v3880, %v2916
        %v3913 = vsel %vm3681, %v3881, %v2918
        %v3914 = vsel %vm3681, %v3882, %v2920
        %v3915 = vsel %vm3681, %v3883, %v2922
        %v3916 = vsel %vm3681, %v3884, %v2924
        %v3917 = vsel %vm3681, %v3885, %v2926
        %v3918 = vsel %vm3681, %v3886, %v2928
        %v3919 = vsel %vm3681, %v3887, %v2930
        %v3920 = vsel %vm3681, %v3888, %v2932
        %v3921 = vsel %vm3681, %v3889, %v2934
        %v3922 = vsel %vm3681, %v3890, %v2936
        %v3923 = vsel %vm3681, %v3891, %v2938
        %v3924 = vsel %vm3681, %v3892, %v2940
        %v3925 = vsel %vm3681, %v3893, %v2942
        %v3926 = vsel %vm3681, %v3894, %v2944
        %v3927 = vsel %vm3681, %v3895, %v2946
        %v3928 = vsel %vm3681, %v3896, %v2948
        %v3929 = vsel %vm3681, %v3897, %v2950
        %v3930 = vsel %vm3681, %v3898, %v2952
        %v3931 = vsel %vm3681, %v3899, %v2954
        %v3932 = vsel %vm3681, %v3900, %v2956
        %v3933 = vsel %vm3681, %v3901, %v2958
        %v3934 = vsel %vm3681, %v3902, %v2960
        %v3935 = vsel %vm3681, %v3903, %v2962
        %v3936 = vsel %vm3681, %v3904, %v2964
        %v3937 = vsel %vm3681, %v3905, %v2966
        %v3938 = vsel %vm3681, %v3906, %v2968
        %v3939 = vsel %vm3681, %v3907, %v2970
        %v3940 = vsel %vm3681, %v3908, %v2972
        %v3941 = vsel %vm3681, %v3909, %v2974
        %v3942 = vsel %vm3681, %v3910, %v2976
        %v3943 = vsel %vm3714, %v3911, %v3042
        %v3944 = vsel %vm3714, %v3912, %v3044
        %v3945 = vsel %vm3714, %v3913, %v3046
        %v3946 = vsel %vm3714, %v3914, %v3048
        %v3947 = vsel %vm3714, %v3915, %v3050
        %v3948 = vsel %vm3714, %v3916, %v3052
        %v3949 = vsel %vm3714, %v3917, %v3054
        %v3950 = vsel %vm3714, %v3918, %v3056
        %v3951 = vsel %vm3714, %v3919, %v3058
        %v3952 = vsel %vm3714, %v3920, %v3060
        %v3953 = vsel %vm3714, %v3921, %v3062
        %v3954 = vsel %vm3714, %v3922, %v3064
        %v3955 = vsel %vm3714, %v3923, %v3066
        %v3956 = vsel %vm3714, %v3924, %v3068
        %v3957 = vsel %vm3714, %v3925, %v3070
        %v3958 = vsel %vm3714, %v3926, %v3072
        %v3959 = vsel %vm3714, %v3927, %v3074
        %v3960 = vsel %vm3714, %v3928, %v3076
        %v3961 = vsel %vm3714, %v3929, %v3078
        %v3962 = vsel %vm3714, %v3930, %v3080
        %v3963 = vsel %vm3714, %v3931, %v3082
        %v3964 = vsel %vm3714, %v3932, %v3084
        %v3965 = vsel %vm3714, %v3933, %v3086
        %v3966 = vsel %vm3714, %v3934, %v3088
        %v3967 = vsel %vm3714, %v3935, %v3090
        %v3968 = vsel %vm3714, %v3936, %v3092
        %v3969 = vsel %vm3714, %v3937, %v3094
        %v3970 = vsel %vm3714, %v3938, %v3096
        %v3971 = vsel %vm3714, %v3939, %v3098
        %v3972 = vsel %vm3714, %v3940, %v3100
        %v3973 = vsel %vm3714, %v3941, %v3102
        %v3974 = vsel %vm3714, %v3942, %v3104
        %v3975 = vsel %vm3747, %v3943, %v3170
        %v3976 = vsel %vm3747, %v3944, %v3172
        %v3977 = vsel %vm3747, %v3945, %v3174
        %v3978 = vsel %vm3747, %v3946, %v3176
        %v3979 = vsel %vm3747, %v3947, %v3178
        %v3980 = vsel %vm3747, %v3948, %v3180
        %v3981 = vsel %vm3747, %v3949, %v3182
        %v3982 = vsel %vm3747, %v3950, %v3184
        %v3983 = vsel %vm3747, %v3951, %v3186
        %v3984 = vsel %vm3747, %v3952, %v3188
        %v3985 = vsel %vm3747, %v3953, %v3190
        %v3986 = vsel %vm3747, %v3954, %v3192
        %v3987 = vsel %vm3747, %v3955, %v3194
        %v3988 = vsel %vm3747, %v3956, %v3196
        %v3989 = vsel %vm3747, %v3957, %v3198
        %v3990 = vsel %vm3747, %v3958, %v3200
        %v3991 = vsel %vm3747, %v3959, %v3202
        %v3992 = vsel %vm3747, %v3960, %v3204
        %v3993 = vsel %vm3747, %v3961, %v3206
        %v3994 = vsel %vm3747, %v3962, %v3208
        %v3995 = vsel %vm3747, %v3963, %v3210
        %v3996 = vsel %vm3747, %v3964, %v3212
        %v3997 = vsel %vm3747, %v3965, %v3214
        %v3998 = vsel %vm3747, %v3966, %v3216
        %v3999 = vsel %vm3747, %v3967, %v3218
        %v4000 = vsel %vm3747, %v3968, %v3220
        %v4001 = vsel %vm3747, %v3969, %v3222
        %v4002 = vsel %vm3747, %v3970, %v3224
        %v4003 = vsel %vm3747, %v3971, %v3226
        %v4004 = vsel %vm3747, %v3972, %v3228
        %v4005 = vsel %vm3747, %v3973, %v3230
        %v4006 = vsel %vm3747, %v3974, %v3232
        %v4007 = vsel %vm3780, %v3975, %v3298
        %v4008 = vsel %vm3780, %v3976, %v3300
        %v4009 = vsel %vm3780, %v3977, %v3302
        %v4010 = vsel %vm3780, %v3978, %v3304
        %v4011 = vsel %vm3780, %v3979, %v3306
        %v4012 = vsel %vm3780, %v3980, %v3308
        %v4013 = vsel %vm3780, %v3981, %v3310
        %v4014 = vsel %vm3780, %v3982, %v3312
        %v4015 = vsel %vm3780, %v3983, %v3314
        %v4016 = vsel %vm3780, %v3984, %v3316
        %v4017 = vsel %vm3780, %v3985, %v3318
        %v4018 = vsel %vm3780, %v3986, %v3320
        %v4019 = vsel %vm3780, %v3987, %v3322
        %v4020 = vsel %vm3780, %v3988, %v3324
        %v4021 = vsel %vm3780, %v3989, %v3326
        %v4022 = vsel %vm3780, %v3990, %v3328
        %v4023 = vsel %vm3780, %v3991, %v3330
        %v4024 = vsel %vm3780, %v3992, %v3332
        %v4025 = vsel %vm3780, %v3993, %v3334
        %v4026 = vsel %vm3780, %v3994, %v3336
        %v4027 = vsel %vm3780, %v3995, %v3338
        %v4028 = vsel %vm3780, %v3996, %v3340
        %v4029 = vsel %vm3780, %v3997, %v3342
        %v4030 = vsel %vm3780, %v3998, %v3344
        %v4031 = vsel %vm3780, %v3999, %v3346
        %v4032 = vsel %vm3780, %v4000, %v3348
        %v4033 = vsel %vm3780, %v4001, %v3350
        %v4034 = vsel %vm3780, %v4002, %v3352
        %v4035 = vsel %vm3780, %v4003, %v3354
        %v4036 = vsel %vm3780, %v4004, %v3356
        %v4037 = vsel %vm3780, %v4005, %v3358
        %v4038 = vsel %vm3780, %v4006, %v3360
        %v4039 = vsel %vm3813, %v4007, %v3426
        %v4040 = vsel %vm3813, %v4008, %v3428
        %v4041 = vsel %vm3813, %v4009, %v3430
        %v4042 = vsel %vm3813, %v4010, %v3432
        %v4043 = vsel %vm3813, %v4011, %v3434
        %v4044 = vsel %vm3813, %v4012, %v3436
        %v4045 = vsel %vm3813, %v4013, %v3438
        %v4046 = vsel %vm3813, %v4014, %v3440
        %v4047 = vsel %vm3813, %v4015, %v3442
        %v4048 = vsel %vm3813, %v4016, %v3444
        %v4049 = vsel %vm3813, %v4017, %v3446
        %v4050 = vsel %vm3813, %v4018, %v3448
        %v4051 = vsel %vm3813, %v4019, %v3450
        %v4052 = vsel %vm3813, %v4020, %v3452
        %v4053 = vsel %vm3813, %v4021, %v3454
        %v4054 = vsel %vm3813, %v4022, %v3456
        %v4055 = vsel %vm3813, %v4023, %v3458
        %v4056 = vsel %vm3813, %v4024, %v3460
        %v4057 = vsel %vm3813, %v4025, %v3462
        %v4058 = vsel %vm3813, %v4026, %v3464
        %v4059 = vsel %vm3813, %v4027, %v3466
        %v4060 = vsel %vm3813, %v4028, %v3468
        %v4061 = vsel %vm3813, %v4029, %v3470
        %v4062 = vsel %vm3813, %v4030, %v3472
        %v4063 = vsel %vm3813, %v4031, %v3474
        %v4064 = vsel %vm3813, %v4032, %v3476
        %v4065 = vsel %vm3813, %v4033, %v3478
        %v4066 = vsel %vm3813, %v4034, %v3480
        %v4067 = vsel %vm3813, %v4035, %v3482
        %v4068 = vsel %vm3813, %v4036, %v3484
        %v4069 = vsel %vm3813, %v4037, %v3486
        %v4070 = vsel %vm3813, %v4038, %v3488
        %v4071 = vsel %vm3846, %v4039, %v3554
        %v4072 = vsel %vm3846, %v4040, %v3556
        %v4073 = vsel %vm3846, %v4041, %v3558
        %v4074 = vsel %vm3846, %v4042, %v3560
        %v4075 = vsel %vm3846, %v4043, %v3562
        %v4076 = vsel %vm3846, %v4044, %v3564
        %v4077 = vsel %vm3846, %v4045, %v3566
        %v4078 = vsel %vm3846, %v4046, %v3568
        %v4079 = vsel %vm3846, %v4047, %v3570
        %v4080 = vsel %vm3846, %v4048, %v3572
        %v4081 = vsel %vm3846, %v4049, %v3574
        %v4082 = vsel %vm3846, %v4050, %v3576
        %v4083 = vsel %vm3846, %v4051, %v3578
        %v4084 = vsel %vm3846, %v4052, %v3580
        %v4085 = vsel %vm3846, %v4053, %v3582
        %v4086 = vsel %vm3846, %v4054, %v3584
        %v4087 = vsel %vm3846, %v4055, %v3586
        %v4088 = vsel %vm3846, %v4056, %v3588
        %v4089 = vsel %vm3846, %v4057, %v3590
        %v4090 = vsel %vm3846, %v4058, %v3592
        %v4091 = vsel %vm3846, %v4059, %v3594
        %v4092 = vsel %vm3846, %v4060, %v3596
        %v4093 = vsel %vm3846, %v4061, %v3598
        %v4094 = vsel %vm3846, %v4062, %v3600
        %v4095 = vsel %vm3846, %v4063, %v3602
        %v4096 = vsel %vm3846, %v4064, %v3604
        %v4097 = vsel %vm3846, %v4065, %v3606
        %v4098 = vsel %vm3846, %v4066, %v3608
        %v4099 = vsel %vm3846, %v4067, %v3610
        %v4100 = vsel %vm3846, %v4068, %v3612
        %v4101 = vsel %vm3846, %v4069, %v3614
        %v4102 = vsel %vm3846, %v4070, %v3616
        %4135 = vrot.lane.b32.xlu0 %v1600, 16
        %v4136 = vpop.permute.xlu0 %4135
        %4137 = vrot.lane.b32.xlu0 %v1601, 16
        %v4138 = vpop.permute.xlu0 %4137
        %4139 = vrot.lane.b32.xlu0 %v1602, 16
        %v4140 = vpop.permute.xlu0 %4139
        %4141 = vrot.lane.b32.xlu0 %v1603, 16
        %v4142 = vpop.permute.xlu0 %4141
        %4143 = vrot.lane.b32.xlu0 %v1604, 16
        %v4144 = vpop.permute.xlu0 %4143
        %4145 = vrot.lane.b32.xlu0 %v1605, 16
        %v4146 = vpop.permute.xlu0 %4145
        %4147 = vrot.lane.b32.xlu0 %v1606, 16
        %v4148 = vpop.permute.xlu0 %4147
        %4149 = vrot.lane.b32.xlu0 %v1607, 16
        %v4150 = vpop.permute.xlu0 %4149
        %4151 = vrot.lane.b32.xlu0 %v1608, 16
        %v4152 = vpop.permute.xlu0 %4151
        %4153 = vrot.lane.b32.xlu0 %v1609, 16
        %v4154 = vpop.permute.xlu0 %4153
        %4155 = vrot.lane.b32.xlu0 %v1610, 16
        %v4156 = vpop.permute.xlu0 %4155
        %4157 = vrot.lane.b32.xlu0 %v1611, 16
        %v4158 = vpop.permute.xlu0 %4157
        %4159 = vrot.lane.b32.xlu0 %v1612, 16
        %v4160 = vpop.permute.xlu0 %4159
        %4161 = vrot.lane.b32.xlu0 %v1613, 16
        %v4162 = vpop.permute.xlu0 %4161
        %4163 = vrot.lane.b32.xlu0 %v1614, 16
        %v4164 = vpop.permute.xlu0 %4163
        %4165 = vrot.lane.b32.xlu0 %v1615, 16
        %v4166 = vpop.permute.xlu0 %4165
        %4167 = vrot.lane.b32.xlu0 %v1616, 16
        %v4168 = vpop.permute.xlu0 %4167
        %4169 = vrot.lane.b32.xlu0 %v1617, 16
        %v4170 = vpop.permute.xlu0 %4169
        %4171 = vrot.lane.b32.xlu0 %v1618, 16
        %v4172 = vpop.permute.xlu0 %4171
        %4173 = vrot.lane.b32.xlu0 %v1619, 16
        %v4174 = vpop.permute.xlu0 %4173
        %4175 = vrot.lane.b32.xlu0 %v1620, 16
        %v4176 = vpop.permute.xlu0 %4175
        %4177 = vrot.lane.b32.xlu0 %v1621, 16
        %v4178 = vpop.permute.xlu0 %4177
        %4179 = vrot.lane.b32.xlu0 %v1622, 16
        %v4180 = vpop.permute.xlu0 %4179
        %4181 = vrot.lane.b32.xlu0 %v1623, 16
        %v4182 = vpop.permute.xlu0 %4181
        %4183 = vrot.lane.b32.xlu0 %v1624, 16
        %v4184 = vpop.permute.xlu0 %4183
        %4185 = vrot.lane.b32.xlu0 %v1625, 16
        %v4186 = vpop.permute.xlu0 %4185
        %4187 = vrot.lane.b32.xlu0 %v1626, 16
        %v4188 = vpop.permute.xlu0 %4187
        %4189 = vrot.lane.b32.xlu0 %v1627, 16
        %v4190 = vpop.permute.xlu0 %4189
        %4191 = vrot.lane.b32.xlu0 %v1628, 16
        %v4192 = vpop.permute.xlu0 %4191
        %4193 = vrot.lane.b32.xlu0 %v1629, 16
        %v4194 = vpop.permute.xlu0 %4193
        %4195 = vrot.lane.b32.xlu0 %v1630, 16
        %v4196 = vpop.permute.xlu0 %4195
        %4197 = vrot.lane.b32.xlu0 %v1631, 16
        %v4198 = vpop.permute.xlu0 %4197
        %4263 = vrot.lane.b32.xlu0 %v1632, 32
        %v4264 = vpop.permute.xlu0 %4263
        %4265 = vrot.lane.b32.xlu0 %v1633, 32
        %v4266 = vpop.permute.xlu0 %4265
        %4267 = vrot.lane.b32.xlu0 %v1634, 32
        %v4268 = vpop.permute.xlu0 %4267
        %4269 = vrot.lane.b32.xlu0 %v1635, 32
        %v4270 = vpop.permute.xlu0 %4269
        %4271 = vrot.lane.b32.xlu0 %v1636, 32
        %v4272 = vpop.permute.xlu0 %4271
        %4273 = vrot.lane.b32.xlu0 %v1637, 32
        %v4274 = vpop.permute.xlu0 %4273
        %4275 = vrot.lane.b32.xlu0 %v1638, 32
        %v4276 = vpop.permute.xlu0 %4275
        %4277 = vrot.lane.b32.xlu0 %v1639, 32
        %v4278 = vpop.permute.xlu0 %4277
        %4279 = vrot.lane.b32.xlu0 %v1640, 32
        %v4280 = vpop.permute.xlu0 %4279
        %4281 = vrot.lane.b32.xlu0 %v1641, 32
        %v4282 = vpop.permute.xlu0 %4281
        %4283 = vrot.lane.b32.xlu0 %v1642, 32
        %v4284 = vpop.permute.xlu0 %4283
        %4285 = vrot.lane.b32.xlu0 %v1643, 32
        %v4286 = vpop.permute.xlu0 %4285
        %4287 = vrot.lane.b32.xlu0 %v1644, 32
        %v4288 = vpop.permute.xlu0 %4287
        %4289 = vrot.lane.b32.xlu0 %v1645, 32
        %v4290 = vpop.permute.xlu0 %4289
        %4291 = vrot.lane.b32.xlu0 %v1646, 32
        %v4292 = vpop.permute.xlu0 %4291
        %4293 = vrot.lane.b32.xlu0 %v1647, 32
        %v4294 = vpop.permute.xlu0 %4293
        %4295 = vrot.lane.b32.xlu0 %v1648, 32
        %v4296 = vpop.permute.xlu0 %4295
        %4297 = vrot.lane.b32.xlu0 %v1649, 32
        %v4298 = vpop.permute.xlu0 %4297
        %4299 = vrot.lane.b32.xlu0 %v1650, 32
        %v4300 = vpop.permute.xlu0 %4299
        %4301 = vrot.lane.b32.xlu0 %v1651, 32
        %v4302 = vpop.permute.xlu0 %4301
        %4303 = vrot.lane.b32.xlu0 %v1652, 32
        %v4304 = vpop.permute.xlu0 %4303
        %4305 = vrot.lane.b32.xlu0 %v1653, 32
        %v4306 = vpop.permute.xlu0 %4305
        %4307 = vrot.lane.b32.xlu0 %v1654, 32
        %v4308 = vpop.permute.xlu0 %4307
        %4309 = vrot.lane.b32.xlu0 %v1655, 32
        %v4310 = vpop.permute.xlu0 %4309
        %4311 = vrot.lane.b32.xlu0 %v1656, 32
        %v4312 = vpop.permute.xlu0 %4311
        %4313 = vrot.lane.b32.xlu0 %v1657, 32
        %v4314 = vpop.permute.xlu0 %4313
        %4315 = vrot.lane.b32.xlu0 %v1658, 32
        %v4316 = vpop.permute.xlu0 %4315
        %4317 = vrot.lane.b32.xlu0 %v1659, 32
        %v4318 = vpop.permute.xlu0 %4317
        %4319 = vrot.lane.b32.xlu0 %v1660, 32
        %v4320 = vpop.permute.xlu0 %4319
        %4321 = vrot.lane.b32.xlu0 %v1661, 32
        %v4322 = vpop.permute.xlu0 %4321
        %4323 = vrot.lane.b32.xlu0 %v1662, 32
        %v4324 = vpop.permute.xlu0 %4323
        %4325 = vrot.lane.b32.xlu0 %v1663, 32
        %v4326 = vpop.permute.xlu0 %4325
        %4391 = vrot.lane.b32.xlu0 %v1664, 48
        %v4392 = vpop.permute.xlu0 %4391
        %4393 = vrot.lane.b32.xlu0 %v1665, 48
        %v4394 = vpop.permute.xlu0 %4393
        %4395 = vrot.lane.b32.xlu0 %v1666, 48
        %v4396 = vpop.permute.xlu0 %4395
        %4397 = vrot.lane.b32.xlu0 %v1667, 48
        %v4398 = vpop.permute.xlu0 %4397
        %4399 = vrot.lane.b32.xlu0 %v1668, 48
        %v4400 = vpop.permute.xlu0 %4399
        %4401 = vrot.lane.b32.xlu0 %v1669, 48
        %v4402 = vpop.permute.xlu0 %4401
        %4403 = vrot.lane.b32.xlu0 %v1670, 48
        %v4404 = vpop.permute.xlu0 %4403
        %4405 = vrot.lane.b32.xlu0 %v1671, 48
        %v4406 = vpop.permute.xlu0 %4405
        %4407 = vrot.lane.b32.xlu0 %v1672, 48
        %v4408 = vpop.permute.xlu0 %4407
        %4409 = vrot.lane.b32.xlu0 %v1673, 48
        %v4410 = vpop.permute.xlu0 %4409
        %4411 = vrot.lane.b32.xlu0 %v1674, 48
        %v4412 = vpop.permute.xlu0 %4411
        %4413 = vrot.lane.b32.xlu0 %v1675, 48
        %v4414 = vpop.permute.xlu0 %4413
        %4415 = vrot.lane.b32.xlu0 %v1676, 48
        %v4416 = vpop.permute.xlu0 %4415
        %4417 = vrot.lane.b32.xlu0 %v1677, 48
        %v4418 = vpop.permute.xlu0 %4417
        %4419 = vrot.lane.b32.xlu0 %v1678, 48
        %v4420 = vpop.permute.xlu0 %4419
        %4421 = vrot.lane.b32.xlu0 %v1679, 48
        %v4422 = vpop.permute.xlu0 %4421
        %4423 = vrot.lane.b32.xlu0 %v1680, 48
        %v4424 = vpop.permute.xlu0 %4423
        %4425 = vrot.lane.b32.xlu0 %v1681, 48
        %v4426 = vpop.permute.xlu0 %4425
        %4427 = vrot.lane.b32.xlu0 %v1682, 48
        %v4428 = vpop.permute.xlu0 %4427
        %4429 = vrot.lane.b32.xlu0 %v1683, 48
        %v4430 = vpop.permute.xlu0 %4429
        %4431 = vrot.lane.b32.xlu0 %v1684, 48
        %v4432 = vpop.permute.xlu0 %4431
        %4433 = vrot.lane.b32.xlu0 %v1685, 48
        %v4434 = vpop.permute.xlu0 %4433
        %4435 = vrot.lane.b32.xlu0 %v1686, 48
        %v4436 = vpop.permute.xlu0 %4435
        %4437 = vrot.lane.b32.xlu0 %v1687, 48
        %v4438 = vpop.permute.xlu0 %4437
        %4439 = vrot.lane.b32.xlu0 %v1688, 48
        %v4440 = vpop.permute.xlu0 %4439
        %4441 = vrot.lane.b32.xlu0 %v1689, 48
        %v4442 = vpop.permute.xlu0 %4441
        %4443 = vrot.lane.b32.xlu0 %v1690, 48
        %v4444 = vpop.permute.xlu0 %4443
        %4445 = vrot.lane.b32.xlu0 %v1691, 48
        %v4446 = vpop.permute.xlu0 %4445
        %4447 = vrot.lane.b32.xlu0 %v1692, 48
        %v4448 = vpop.permute.xlu0 %4447
        %4449 = vrot.lane.b32.xlu0 %v1693, 48
        %v4450 = vpop.permute.xlu0 %4449
        %4451 = vrot.lane.b32.xlu0 %v1694, 48
        %v4452 = vpop.permute.xlu0 %4451
        %4453 = vrot.lane.b32.xlu0 %v1695, 48
        %v4454 = vpop.permute.xlu0 %4453
        %4519 = vrot.lane.b32.xlu0 %v1697, 64
        %v4520 = vpop.permute.xlu0 %4519
        %4521 = vrot.lane.b32.xlu0 %v1698, 64
        %v4522 = vpop.permute.xlu0 %4521
        %4523 = vrot.lane.b32.xlu0 %v1699, 64
        %v4524 = vpop.permute.xlu0 %4523
        %4525 = vrot.lane.b32.xlu0 %v1700, 64
        %v4526 = vpop.permute.xlu0 %4525
        %4527 = vrot.lane.b32.xlu0 %v1701, 64
        %v4528 = vpop.permute.xlu0 %4527
        %4529 = vrot.lane.b32.xlu0 %v1702, 64
        %v4530 = vpop.permute.xlu0 %4529
        %4531 = vrot.lane.b32.xlu0 %v1703, 64
        %v4532 = vpop.permute.xlu0 %4531
        %4533 = vrot.lane.b32.xlu0 %v1704, 64
        %v4534 = vpop.permute.xlu0 %4533
        %4535 = vrot.lane.b32.xlu0 %v1705, 64
        %v4536 = vpop.permute.xlu0 %4535
        %4537 = vrot.lane.b32.xlu0 %v1706, 64
        %v4538 = vpop.permute.xlu0 %4537
        %4539 = vrot.lane.b32.xlu0 %v1707, 64
        %v4540 = vpop.permute.xlu0 %4539
        %4541 = vrot.lane.b32.xlu0 %v1708, 64
        %v4542 = vpop.permute.xlu0 %4541
        %4543 = vrot.lane.b32.xlu0 %v1709, 64
        %v4544 = vpop.permute.xlu0 %4543
        %4545 = vrot.lane.b32.xlu0 %v1710, 64
        %v4546 = vpop.permute.xlu0 %4545
        %4547 = vrot.lane.b32.xlu0 %v1711, 64
        %v4548 = vpop.permute.xlu0 %4547
        %4549 = vrot.lane.b32.xlu0 %v1712, 64
        %v4550 = vpop.permute.xlu0 %4549
        %4551 = vrot.lane.b32.xlu0 %v1713, 64
        %v4552 = vpop.permute.xlu0 %4551
        %4553 = vrot.lane.b32.xlu0 %v1714, 64
        %v4554 = vpop.permute.xlu0 %4553
        %4555 = vrot.lane.b32.xlu0 %v1715, 64
        %v4556 = vpop.permute.xlu0 %4555
        %4557 = vrot.lane.b32.xlu0 %v1716, 64
        %v4558 = vpop.permute.xlu0 %4557
        %4559 = vrot.lane.b32.xlu0 %v1717, 64
        %v4560 = vpop.permute.xlu0 %4559
        %4561 = vrot.lane.b32.xlu0 %v1718, 64
        %v4562 = vpop.permute.xlu0 %4561
        %4563 = vrot.lane.b32.xlu0 %v1719, 64
        %v4564 = vpop.permute.xlu0 %4563
        %4565 = vrot.lane.b32.xlu0 %v1720, 64
        %v4566 = vpop.permute.xlu0 %4565
        %4567 = vrot.lane.b32.xlu0 %v1721, 64
        %v4568 = vpop.permute.xlu0 %4567
        %4569 = vrot.lane.b32.xlu0 %v1722, 64
        %v4570 = vpop.permute.xlu0 %4569
        %4571 = vrot.lane.b32.xlu0 %v1723, 64
        %v4572 = vpop.permute.xlu0 %4571
        %4573 = vrot.lane.b32.xlu0 %v1724, 64
        %v4574 = vpop.permute.xlu0 %4573
        %4575 = vrot.lane.b32.xlu0 %v1725, 64
        %v4576 = vpop.permute.xlu0 %4575
        %4577 = vrot.lane.b32.xlu0 %v1726, 64
        %v4578 = vpop.permute.xlu0 %4577
        %4579 = vrot.lane.b32.xlu0 %v1727, 64
        %v4580 = vpop.permute.xlu0 %4579
        %4581 = vrot.lane.b32.xlu0 %v1728, 64
        %v4582 = vpop.permute.xlu0 %4581
        %4647 = vrot.lane.b32.xlu0 %v1729, 80
        %v4648 = vpop.permute.xlu0 %4647
        %4649 = vrot.lane.b32.xlu0 %v1730, 80
        %v4650 = vpop.permute.xlu0 %4649
        %4651 = vrot.lane.b32.xlu0 %v1731, 80
        %v4652 = vpop.permute.xlu0 %4651
        %4653 = vrot.lane.b32.xlu0 %v1732, 80
        %v4654 = vpop.permute.xlu0 %4653
        %4655 = vrot.lane.b32.xlu0 %v1733, 80
        %v4656 = vpop.permute.xlu0 %4655
        %4657 = vrot.lane.b32.xlu0 %v1734, 80
        %v4658 = vpop.permute.xlu0 %4657
        %4659 = vrot.lane.b32.xlu0 %v1735, 80
        %v4660 = vpop.permute.xlu0 %4659
        %4661 = vrot.lane.b32.xlu0 %v1736, 80
        %v4662 = vpop.permute.xlu0 %4661
        %4663 = vrot.lane.b32.xlu0 %v1737, 80
        %v4664 = vpop.permute.xlu0 %4663
        %4665 = vrot.lane.b32.xlu0 %v1738, 80
        %v4666 = vpop.permute.xlu0 %4665
        %4667 = vrot.lane.b32.xlu0 %v1739, 80
        %v4668 = vpop.permute.xlu0 %4667
        %4669 = vrot.lane.b32.xlu0 %v1740, 80
        %v4670 = vpop.permute.xlu0 %4669
        %4671 = vrot.lane.b32.xlu0 %v1741, 80
        %v4672 = vpop.permute.xlu0 %4671
        %4673 = vrot.lane.b32.xlu0 %v1742, 80
        %v4674 = vpop.permute.xlu0 %4673
        %4675 = vrot.lane.b32.xlu0 %v1743, 80
        %v4676 = vpop.permute.xlu0 %4675
        %4677 = vrot.lane.b32.xlu0 %v1744, 80
        %v4678 = vpop.permute.xlu0 %4677
        %4679 = vrot.lane.b32.xlu0 %v1745, 80
        %v4680 = vpop.permute.xlu0 %4679
        %4681 = vrot.lane.b32.xlu0 %v1746, 80
        %v4682 = vpop.permute.xlu0 %4681
        %4683 = vrot.lane.b32.xlu0 %v1747, 80
        %v4684 = vpop.permute.xlu0 %4683
        %4685 = vrot.lane.b32.xlu0 %v1748, 80
        %v4686 = vpop.permute.xlu0 %4685
        %4687 = vrot.lane.b32.xlu0 %v1749, 80
        %v4688 = vpop.permute.xlu0 %4687
        %4689 = vrot.lane.b32.xlu0 %v1750, 80
        %v4690 = vpop.permute.xlu0 %4689
        %4691 = vrot.lane.b32.xlu0 %v1751, 80
        %v4692 = vpop.permute.xlu0 %4691
        %4693 = vrot.lane.b32.xlu0 %v1752, 80
        %v4694 = vpop.permute.xlu0 %4693
        %4695 = vrot.lane.b32.xlu0 %v1753, 80
        %v4696 = vpop.permute.xlu0 %4695
        %4697 = vrot.lane.b32.xlu0 %v1754, 80
        %v4698 = vpop.permute.xlu0 %4697
        %4699 = vrot.lane.b32.xlu0 %v1755, 80
        %v4700 = vpop.permute.xlu0 %4699
        %4701 = vrot.lane.b32.xlu0 %v1756, 80
        %v4702 = vpop.permute.xlu0 %4701
        %4703 = vrot.lane.b32.xlu0 %v1757, 80
        %v4704 = vpop.permute.xlu0 %4703
        %4705 = vrot.lane.b32.xlu0 %v1758, 80
        %v4706 = vpop.permute.xlu0 %4705
        %4707 = vrot.lane.b32.xlu0 %v1759, 80
        %v4708 = vpop.permute.xlu0 %4707
        %4709 = vrot.lane.b32.xlu0 %v1760, 80
        %v4710 = vpop.permute.xlu0 %4709
        %4775 = vrot.lane.b32.xlu0 %v1761, 96
        %v4776 = vpop.permute.xlu0 %4775
        %4777 = vrot.lane.b32.xlu0 %v1762, 96
        %v4778 = vpop.permute.xlu0 %4777
        %4779 = vrot.lane.b32.xlu0 %v1763, 96
        %v4780 = vpop.permute.xlu0 %4779
        %4781 = vrot.lane.b32.xlu0 %v1764, 96
        %v4782 = vpop.permute.xlu0 %4781
        %4783 = vrot.lane.b32.xlu0 %v1765, 96
        %v4784 = vpop.permute.xlu0 %4783
        %4785 = vrot.lane.b32.xlu0 %v1766, 96
        %v4786 = vpop.permute.xlu0 %4785
        %4787 = vrot.lane.b32.xlu0 %v1767, 96
        %v4788 = vpop.permute.xlu0 %4787
        %4789 = vrot.lane.b32.xlu0 %v1768, 96
        %v4790 = vpop.permute.xlu0 %4789
        %4791 = vrot.lane.b32.xlu0 %v1769, 96
        %v4792 = vpop.permute.xlu0 %4791
        %4793 = vrot.lane.b32.xlu0 %v1770, 96
        %v4794 = vpop.permute.xlu0 %4793
        %4795 = vrot.lane.b32.xlu0 %v1771, 96
        %v4796 = vpop.permute.xlu0 %4795
        %4797 = vrot.lane.b32.xlu0 %v1772, 96
        %v4798 = vpop.permute.xlu0 %4797
        %4799 = vrot.lane.b32.xlu0 %v1773, 96
        %v4800 = vpop.permute.xlu0 %4799
        %4801 = vrot.lane.b32.xlu0 %v1774, 96
        %v4802 = vpop.permute.xlu0 %4801
        %4803 = vrot.lane.b32.xlu0 %v1775, 96
        %v4804 = vpop.permute.xlu0 %4803
        %4805 = vrot.lane.b32.xlu0 %v1776, 96
        %v4806 = vpop.permute.xlu0 %4805
        %4807 = vrot.lane.b32.xlu0 %v1777, 96
        %v4808 = vpop.permute.xlu0 %4807
        %4809 = vrot.lane.b32.xlu0 %v1778, 96
        %v4810 = vpop.permute.xlu0 %4809
        %4811 = vrot.lane.b32.xlu0 %v1779, 96
        %v4812 = vpop.permute.xlu0 %4811
        %4813 = vrot.lane.b32.xlu0 %v1780, 96
        %v4814 = vpop.permute.xlu0 %4813
        %4815 = vrot.lane.b32.xlu0 %v1781, 96
        %v4816 = vpop.permute.xlu0 %4815
        %4817 = vrot.lane.b32.xlu0 %v1782, 96
        %v4818 = vpop.permute.xlu0 %4817
        %4819 = vrot.lane.b32.xlu0 %v1783, 96
        %v4820 = vpop.permute.xlu0 %4819
        %4821 = vrot.lane.b32.xlu0 %v1784, 96
        %v4822 = vpop.permute.xlu0 %4821
        %4823 = vrot.lane.b32.xlu0 %v1785, 96
        %v4824 = vpop.permute.xlu0 %4823
        %4825 = vrot.lane.b32.xlu0 %v1786, 96
        %v4826 = vpop.permute.xlu0 %4825
        %4827 = vrot.lane.b32.xlu0 %v1787, 96
        %v4828 = vpop.permute.xlu0 %4827
        %4829 = vrot.lane.b32.xlu0 %v1788, 96
        %v4830 = vpop.permute.xlu0 %4829
        %4831 = vrot.lane.b32.xlu0 %v1789, 96
        %v4832 = vpop.permute.xlu0 %4831
        %4833 = vrot.lane.b32.xlu0 %v1790, 96
        %v4834 = vpop.permute.xlu0 %4833
        %4835 = vrot.lane.b32.xlu0 %v1791, 96
        %v4836 = vpop.permute.xlu0 %4835
        %4837 = vrot.lane.b32.xlu0 %v1792, 96
        %v4838 = vpop.permute.xlu0 %4837
        %4903 = vrot.lane.b32.xlu0 %v1793, 112
        %v4904 = vpop.permute.xlu0 %4903
        %4905 = vrot.lane.b32.xlu0 %v1794, 112
        %v4906 = vpop.permute.xlu0 %4905
        %4907 = vrot.lane.b32.xlu0 %v1795, 112
        %v4908 = vpop.permute.xlu0 %4907
        %4909 = vrot.lane.b32.xlu0 %v1796, 112
        %v4910 = vpop.permute.xlu0 %4909
        %4911 = vrot.lane.b32.xlu0 %v1797, 112
        %v4912 = vpop.permute.xlu0 %4911
        %4913 = vrot.lane.b32.xlu0 %v1798, 112
        %v4914 = vpop.permute.xlu0 %4913
        %4915 = vrot.lane.b32.xlu0 %v1799, 112
        %v4916 = vpop.permute.xlu0 %4915
        %4917 = vrot.lane.b32.xlu0 %v1800, 112
        %v4918 = vpop.permute.xlu0 %4917
        %4919 = vrot.lane.b32.xlu0 %v1801, 112
        %v4920 = vpop.permute.xlu0 %4919
        %4921 = vrot.lane.b32.xlu0 %v1802, 112
        %v4922 = vpop.permute.xlu0 %4921
        %4923 = vrot.lane.b32.xlu0 %v1803, 112
        %v4924 = vpop.permute.xlu0 %4923
        %4925 = vrot.lane.b32.xlu0 %v1804, 112
        %v4926 = vpop.permute.xlu0 %4925
        %4927 = vrot.lane.b32.xlu0 %v1805, 112
        %v4928 = vpop.permute.xlu0 %4927
        %4929 = vrot.lane.b32.xlu0 %v1806, 112
        %v4930 = vpop.permute.xlu0 %4929
        %4931 = vrot.lane.b32.xlu0 %v1807, 112
        %v4932 = vpop.permute.xlu0 %4931
        %4933 = vrot.lane.b32.xlu0 %v1808, 112
        %v4934 = vpop.permute.xlu0 %4933
        %4935 = vrot.lane.b32.xlu0 %v1809, 112
        %v4936 = vpop.permute.xlu0 %4935
        %4937 = vrot.lane.b32.xlu0 %v1810, 112
        %v4938 = vpop.permute.xlu0 %4937
        %4939 = vrot.lane.b32.xlu0 %v1811, 112
        %v4940 = vpop.permute.xlu0 %4939
        %4941 = vrot.lane.b32.xlu0 %v1812, 112
        %v4942 = vpop.permute.xlu0 %4941
        %4943 = vrot.lane.b32.xlu0 %v1813, 112
        %v4944 = vpop.permute.xlu0 %4943
        %4945 = vrot.lane.b32.xlu0 %v1814, 112
        %v4946 = vpop.permute.xlu0 %4945
        %4947 = vrot.lane.b32.xlu0 %v1815, 112
        %v4948 = vpop.permute.xlu0 %4947
        %4949 = vrot.lane.b32.xlu0 %v1816, 112
        %v4950 = vpop.permute.xlu0 %4949
        %4951 = vrot.lane.b32.xlu0 %v1817, 112
        %v4952 = vpop.permute.xlu0 %4951
        %4953 = vrot.lane.b32.xlu0 %v1818, 112
        %v4954 = vpop.permute.xlu0 %4953
        %4955 = vrot.lane.b32.xlu0 %v1819, 112
        %v4956 = vpop.permute.xlu0 %4955
        %4957 = vrot.lane.b32.xlu0 %v1820, 112
        %v4958 = vpop.permute.xlu0 %4957
        %4959 = vrot.lane.b32.xlu0 %v1821, 112
        %v4960 = vpop.permute.xlu0 %4959
        %4961 = vrot.lane.b32.xlu0 %v1822, 112
        %v4962 = vpop.permute.xlu0 %4961
        %4963 = vrot.lane.b32.xlu0 %v1823, 112
        %v4964 = vpop.permute.xlu0 %4963
        %4965 = vrot.lane.b32.xlu0 %v1824, 112
        %v4966 = vpop.permute.xlu0 %4965
        %v4999 = vsel %vm542, %v1568, %v4136
        %v5000 = vsel %vm542, %v1569, %v4138
        %v5001 = vsel %vm542, %v1570, %v4140
        %v5002 = vsel %vm542, %v1571, %v4142
        %v5003 = vsel %vm542, %v1572, %v4144
        %v5004 = vsel %vm542, %v1573, %v4146
        %v5005 = vsel %vm542, %v1574, %v4148
        %v5006 = vsel %vm542, %v1575, %v4150
        %v5007 = vsel %vm542, %v1576, %v4152
        %v5008 = vsel %vm542, %v1577, %v4154
        %v5009 = vsel %vm542, %v1578, %v4156
        %v5010 = vsel %vm542, %v1579, %v4158
        %v5011 = vsel %vm542, %v1580, %v4160
        %v5012 = vsel %vm542, %v1581, %v4162
        %v5013 = vsel %vm542, %v1582, %v4164
        %v5014 = vsel %vm542, %v1583, %v4166
        %v5015 = vsel %vm542, %v1584, %v4168
        %v5016 = vsel %vm542, %v1585, %v4170
        %v5017 = vsel %vm542, %v1586, %v4172
        %v5018 = vsel %vm542, %v1587, %v4174
        %v5019 = vsel %vm542, %v1588, %v4176
        %v5020 = vsel %vm542, %v1589, %v4178
        %v5021 = vsel %vm542, %v1590, %v4180
        %v5022 = vsel %vm542, %v1591, %v4182
        %v5023 = vsel %vm542, %v1592, %v4184
        %v5024 = vsel %vm542, %v1593, %v4186
        %v5025 = vsel %vm542, %v1594, %v4188
        %v5026 = vsel %vm542, %v1595, %v4190
        %v5027 = vsel %vm542, %v1596, %v4192
        %v5028 = vsel %vm542, %v1597, %v4194
        %v5029 = vsel %vm542, %v1598, %v4196
        %v5030 = vsel %vm542, %v1599, %v4198
        %v5031 = vsel %vm3681, %v4999, %v4264
        %v5032 = vsel %vm3681, %v5000, %v4266
        %v5033 = vsel %vm3681, %v5001, %v4268
        %v5034 = vsel %vm3681, %v5002, %v4270
        %v5035 = vsel %vm3681, %v5003, %v4272
        %v5036 = vsel %vm3681, %v5004, %v4274
        %v5037 = vsel %vm3681, %v5005, %v4276
        %v5038 = vsel %vm3681, %v5006, %v4278
        %v5039 = vsel %vm3681, %v5007, %v4280
        %v5040 = vsel %vm3681, %v5008, %v4282
        %v5041 = vsel %vm3681, %v5009, %v4284
        %v5042 = vsel %vm3681, %v5010, %v4286
        %v5043 = vsel %vm3681, %v5011, %v4288
        %v5044 = vsel %vm3681, %v5012, %v4290
        %v5045 = vsel %vm3681, %v5013, %v4292
        %v5046 = vsel %vm3681, %v5014, %v4294
        %v5047 = vsel %vm3681, %v5015, %v4296
        %v5048 = vsel %vm3681, %v5016, %v4298
        %v5049 = vsel %vm3681, %v5017, %v4300
        %v5050 = vsel %vm3681, %v5018, %v4302
        %v5051 = vsel %vm3681, %v5019, %v4304
        %v5052 = vsel %vm3681, %v5020, %v4306
        %v5053 = vsel %vm3681, %v5021, %v4308
        %v5054 = vsel %vm3681, %v5022, %v4310
        %v5055 = vsel %vm3681, %v5023, %v4312
        %v5056 = vsel %vm3681, %v5024, %v4314
        %v5057 = vsel %vm3681, %v5025, %v4316
        %v5058 = vsel %vm3681, %v5026, %v4318
        %v5059 = vsel %vm3681, %v5027, %v4320
        %v5060 = vsel %vm3681, %v5028, %v4322
        %v5061 = vsel %vm3681, %v5029, %v4324
        %v5062 = vsel %vm3681, %v5030, %v4326
        %v5063 = vsel %vm3714, %v5031, %v4392
        %v5064 = vsel %vm3714, %v5032, %v4394
        %v5065 = vsel %vm3714, %v5033, %v4396
        %v5066 = vsel %vm3714, %v5034, %v4398
        %v5067 = vsel %vm3714, %v5035, %v4400
        %v5068 = vsel %vm3714, %v5036, %v4402
        %v5069 = vsel %vm3714, %v5037, %v4404
        %v5070 = vsel %vm3714, %v5038, %v4406
        %v5071 = vsel %vm3714, %v5039, %v4408
        %v5072 = vsel %vm3714, %v5040, %v4410
        %v5073 = vsel %vm3714, %v5041, %v4412
        %v5074 = vsel %vm3714, %v5042, %v4414
        %v5075 = vsel %vm3714, %v5043, %v4416
        %v5076 = vsel %vm3714, %v5044, %v4418
        %v5077 = vsel %vm3714, %v5045, %v4420
        %v5078 = vsel %vm3714, %v5046, %v4422
        %v5079 = vsel %vm3714, %v5047, %v4424
        %v5080 = vsel %vm3714, %v5048, %v4426
        %v5081 = vsel %vm3714, %v5049, %v4428
        %v5082 = vsel %vm3714, %v5050, %v4430
        %v5083 = vsel %vm3714, %v5051, %v4432
        %v5084 = vsel %vm3714, %v5052, %v4434
        %v5085 = vsel %vm3714, %v5053, %v4436
        %v5086 = vsel %vm3714, %v5054, %v4438
        %v5087 = vsel %vm3714, %v5055, %v4440
        %v5088 = vsel %vm3714, %v5056, %v4442
        %v5089 = vsel %vm3714, %v5057, %v4444
        %v5090 = vsel %vm3714, %v5058, %v4446
        %v5091 = vsel %vm3714, %v5059, %v4448
        %v5092 = vsel %vm3714, %v5060, %v4450
        %v5093 = vsel %vm3714, %v5061, %v4452
        %v5094 = vsel %vm3714, %v5062, %v4454
        %v5095 = vsel %vm3747, %v5063, %v4520
        %v5096 = vsel %vm3747, %v5064, %v4522
        %v5097 = vsel %vm3747, %v5065, %v4524
        %v5098 = vsel %vm3747, %v5066, %v4526
        %v5099 = vsel %vm3747, %v5067, %v4528
        %v5100 = vsel %vm3747, %v5068, %v4530
        %v5101 = vsel %vm3747, %v5069, %v4532
        %v5102 = vsel %vm3747, %v5070, %v4534
        %v5103 = vsel %vm3747, %v5071, %v4536
        %v5104 = vsel %vm3747, %v5072, %v4538
        %v5105 = vsel %vm3747, %v5073, %v4540
        %v5106 = vsel %vm3747, %v5074, %v4542
        %v5107 = vsel %vm3747, %v5075, %v4544
        %v5108 = vsel %vm3747, %v5076, %v4546
        %v5109 = vsel %vm3747, %v5077, %v4548
        %v5110 = vsel %vm3747, %v5078, %v4550
        %v5111 = vsel %vm3747, %v5079, %v4552
        %v5112 = vsel %vm3747, %v5080, %v4554
        %v5113 = vsel %vm3747, %v5081, %v4556
        %v5114 = vsel %vm3747, %v5082, %v4558
        %v5115 = vsel %vm3747, %v5083, %v4560
        %v5116 = vsel %vm3747, %v5084, %v4562
        %v5117 = vsel %vm3747, %v5085, %v4564
        %v5118 = vsel %vm3747, %v5086, %v4566
        %v5119 = vsel %vm3747, %v5087, %v4568
        %v5120 = vsel %vm3747, %v5088, %v4570
        %v5121 = vsel %vm3747, %v5089, %v4572
        %v5122 = vsel %vm3747, %v5090, %v4574
        %v5123 = vsel %vm3747, %v5091, %v4576
        %v5124 = vsel %vm3747, %v5092, %v4578
        %v5125 = vsel %vm3747, %v5093, %v4580
        %v5126 = vsel %vm3747, %v5094, %v4582
        %v5127 = vsel %vm3780, %v5095, %v4648
        %v5128 = vsel %vm3780, %v5096, %v4650
        %v5129 = vsel %vm3780, %v5097, %v4652
        %v5130 = vsel %vm3780, %v5098, %v4654
        %v5131 = vsel %vm3780, %v5099, %v4656
        %v5132 = vsel %vm3780, %v5100, %v4658
        %v5133 = vsel %vm3780, %v5101, %v4660
        %v5134 = vsel %vm3780, %v5102, %v4662
        %v5135 = vsel %vm3780, %v5103, %v4664
        %v5136 = vsel %vm3780, %v5104, %v4666
        %v5137 = vsel %vm3780, %v5105, %v4668
        %v5138 = vsel %vm3780, %v5106, %v4670
        %v5139 = vsel %vm3780, %v5107, %v4672
        %v5140 = vsel %vm3780, %v5108, %v4674
        %v5141 = vsel %vm3780, %v5109, %v4676
        %v5142 = vsel %vm3780, %v5110, %v4678
        %v5143 = vsel %vm3780, %v5111, %v4680
        %v5144 = vsel %vm3780, %v5112, %v4682
        %v5145 = vsel %vm3780, %v5113, %v4684
        %v5146 = vsel %vm3780, %v5114, %v4686
        %v5147 = vsel %vm3780, %v5115, %v4688
        %v5148 = vsel %vm3780, %v5116, %v4690
        %v5149 = vsel %vm3780, %v5117, %v4692
        %v5150 = vsel %vm3780, %v5118, %v4694
        %v5151 = vsel %vm3780, %v5119, %v4696
        %v5152 = vsel %vm3780, %v5120, %v4698
        %v5153 = vsel %vm3780, %v5121, %v4700
        %v5154 = vsel %vm3780, %v5122, %v4702
        %v5155 = vsel %vm3780, %v5123, %v4704
        %v5156 = vsel %vm3780, %v5124, %v4706
        %v5157 = vsel %vm3780, %v5125, %v4708
        %v5158 = vsel %vm3780, %v5126, %v4710
        %v5159 = vsel %vm3813, %v5127, %v4776
        %v5160 = vsel %vm3813, %v5128, %v4778
        %v5161 = vsel %vm3813, %v5129, %v4780
        %v5162 = vsel %vm3813, %v5130, %v4782
        %v5163 = vsel %vm3813, %v5131, %v4784
        %v5164 = vsel %vm3813, %v5132, %v4786
        %v5165 = vsel %vm3813, %v5133, %v4788
        %v5166 = vsel %vm3813, %v5134, %v4790
        %v5167 = vsel %vm3813, %v5135, %v4792
        %v5168 = vsel %vm3813, %v5136, %v4794
        %v5169 = vsel %vm3813, %v5137, %v4796
        %v5170 = vsel %vm3813, %v5138, %v4798
        %v5171 = vsel %vm3813, %v5139, %v4800
        %v5172 = vsel %vm3813, %v5140, %v4802
        %v5173 = vsel %vm3813, %v5141, %v4804
        %v5174 = vsel %vm3813, %v5142, %v4806
        %v5175 = vsel %vm3813, %v5143, %v4808
        %v5176 = vsel %vm3813, %v5144, %v4810
        %v5177 = vsel %vm3813, %v5145, %v4812
        %v5178 = vsel %vm3813, %v5146, %v4814
        %v5179 = vsel %vm3813, %v5147, %v4816
        %v5180 = vsel %vm3813, %v5148, %v4818
        %v5181 = vsel %vm3813, %v5149, %v4820
        %v5182 = vsel %vm3813, %v5150, %v4822
        %v5183 = vsel %vm3813, %v5151, %v4824
        %v5184 = vsel %vm3813, %v5152, %v4826
        %v5185 = vsel %vm3813, %v5153, %v4828
        %v5186 = vsel %vm3813, %v5154, %v4830
        %v5187 = vsel %vm3813, %v5155, %v4832
        %v5188 = vsel %vm3813, %v5156, %v4834
        %v5189 = vsel %vm3813, %v5157, %v4836
        %v5190 = vsel %vm3813, %v5158, %v4838
        %v5191 = vsel %vm3846, %v5159, %v4904
        %v5192 = vsel %vm3846, %v5160, %v4906
        %v5193 = vsel %vm3846, %v5161, %v4908
        %v5194 = vsel %vm3846, %v5162, %v4910
        %v5195 = vsel %vm3846, %v5163, %v4912
        %v5196 = vsel %vm3846, %v5164, %v4914
        %v5197 = vsel %vm3846, %v5165, %v4916
        %v5198 = vsel %vm3846, %v5166, %v4918
        %v5199 = vsel %vm3846, %v5167, %v4920
        %v5200 = vsel %vm3846, %v5168, %v4922
        %v5201 = vsel %vm3846, %v5169, %v4924
        %v5202 = vsel %vm3846, %v5170, %v4926
        %v5203 = vsel %vm3846, %v5171, %v4928
        %v5204 = vsel %vm3846, %v5172, %v4930
        %v5205 = vsel %vm3846, %v5173, %v4932
        %v5206 = vsel %vm3846, %v5174, %v4934
        %v5207 = vsel %vm3846, %v5175, %v4936
        %v5208 = vsel %vm3846, %v5176, %v4938
        %v5209 = vsel %vm3846, %v5177, %v4940
        %v5210 = vsel %vm3846, %v5178, %v4942
        %v5211 = vsel %vm3846, %v5179, %v4944
        %v5212 = vsel %vm3846, %v5180, %v4946
        %v5213 = vsel %vm3846, %v5181, %v4948
        %v5214 = vsel %vm3846, %v5182, %v4950
        %v5215 = vsel %vm3846, %v5183, %v4952
        %v5216 = vsel %vm3846, %v5184, %v4954
        %v5217 = vsel %vm3846, %v5185, %v4956
        %v5218 = vsel %vm3846, %v5186, %v4958
        %v5219 = vsel %vm3846, %v5187, %v4960
        %v5220 = vsel %vm3846, %v5188, %v4962
        %v5221 = vsel %vm3846, %v5189, %v4964
        %v5222 = vsel %vm3846, %v5190, %v4966
        %v5223 = vld [vmem:[%s4] sm:$0xff]
        %v5224 = vld [vmem:[%s4 + $0x8] sm:$0xff]
        %v5225 = vld [vmem:[%s4 + $0x10] sm:$0xff]
        %v5226 = vld [vmem:[%s4 + $0x18] sm:$0xff]
        %v5227 = vld [vmem:[%s4 + $0x20] sm:$0xff]
        %v5228 = vld [vmem:[%s4 + $0x28] sm:$0xff]
        %v5229 = vld [vmem:[%s4 + $0x30] sm:$0xff]
        %v5230 = vld [vmem:[%s4 + $0x38] sm:$0xff]
        %v5231 = vld [vmem:[%s4 + $0x40] sm:$0xff]
        %v5232 = vld [vmem:[%s4 + $0x48] sm:$0xff]
        %v5233 = vld [vmem:[%s4 + $0x50] sm:$0xff]
        %v5234 = vld [vmem:[%s4 + $0x58] sm:$0xff]
        %v5235 = vld [vmem:[%s4 + $0x60] sm:$0xff]
        %v5236 = vld [vmem:[%s4 + $0x68] sm:$0xff]
        %v5237 = vld [vmem:[%s4 + $0x70] sm:$0xff]
        %v5238 = vld [vmem:[%s4 + $0x78] sm:$0xff]
        %v5239 = vld [vmem:[%s4 + $0x80] sm:$0xff]
        %v5240 = vld [vmem:[%s4 + $0x88] sm:$0xff]
        %v5241 = vld [vmem:[%s4 + $0x90] sm:$0xff]
        %v5242 = vld [vmem:[%s4 + $0x98] sm:$0xff]
        %v5243 = vld [vmem:[%s4 + $0xa0] sm:$0xff]
        %v5244 = vld [vmem:[%s4 + $0xa8] sm:$0xff]
        %v5245 = vld [vmem:[%s4 + $0xb0] sm:$0xff]
        %v5246 = vld [vmem:[%s4 + $0xb8] sm:$0xff]
        %v5247 = vld [vmem:[%s4 + $0xc0] sm:$0xff]
        %v5248 = vld [vmem:[%s4 + $0xc8] sm:$0xff]
        %v5249 = vld [vmem:[%s4 + $0xd0] sm:$0xff]
        %v5250 = vld [vmem:[%s4 + $0xd8] sm:$0xff]
        %v5251 = vld [vmem:[%s4 + $0xe0] sm:$0xff]
        %v5252 = vld [vmem:[%s4 + $0xe8] sm:$0xff]
        %v5253 = vld [vmem:[%s4 + $0xf0] sm:$0xff]
        %v5254 = vld [vmem:[%s4 + $0xf8] sm:$0xff]
        %v5255 = vld [vmem:[%s4 + $0x100] sm:$0xff]
        %v5256 = vld [vmem:[%s4 + $0x108] sm:$0xff]
        %v5257 = vld [vmem:[%s4 + $0x110] sm:$0xff]
        %v5258 = vld [vmem:[%s4 + $0x118] sm:$0xff]
        %v5259 = vld [vmem:[%s4 + $0x120] sm:$0xff]
        %v5260 = vld [vmem:[%s4 + $0x128] sm:$0xff]
        %v5261 = vld [vmem:[%s4 + $0x130] sm:$0xff]
        %v5262 = vld [vmem:[%s4 + $0x138] sm:$0xff]
        %v5263 = vld [vmem:[%s4 + $0x140] sm:$0xff]
        %v5264 = vld [vmem:[%s4 + $0x148] sm:$0xff]
        %v5265 = vld [vmem:[%s4 + $0x150] sm:$0xff]
        %v5266 = vld [vmem:[%s4 + $0x158] sm:$0xff]
        %v5267 = vld [vmem:[%s4 + $0x160] sm:$0xff]
        %v5268 = vld [vmem:[%s4 + $0x168] sm:$0xff]
        %v5269 = vld [vmem:[%s4 + $0x170] sm:$0xff]
        %v5270 = vld [vmem:[%s4 + $0x178] sm:$0xff]
        %v5271 = vld [vmem:[%s4 + $0x180] sm:$0xff]
        %v5272 = vld [vmem:[%s4 + $0x188] sm:$0xff]
        %v5274 = vsel %vm542, %v1825, 0
        %v5277 = vsel %vm542, %v1826, 0
        %v5280 = vsel %vm542, %v1827, 0
        %v5283 = vsel %vm542, %v1828, 0
        %v5286 = vsel %vm542, %v1829, 0
        %v5289 = vsel %vm542, %v1830, 0
        %v5292 = vsel %vm542, %v1831, 0
        %v5295 = vsel %vm542, %v1832, 0
        %v5298 = vsel %vm542, %v1833, 0
        %v5301 = vsel %vm542, %v1834, 0
        %v5304 = vsel %vm542, %v1835, 0
        %v5307 = vsel %vm542, %v1836, 0
        %v5310 = vsel %vm542, %v1837, 0
        %v5313 = vsel %vm542, %v1838, 0
        %v5316 = vsel %vm542, %v1839, 0
        %v5319 = vsel %vm542, %v1840, 0
        %v5322 = vsel %vm542, %v1841, 0
        %v5325 = vsel %vm542, %v1842, 0
        %v5328 = vsel %vm542, %v1843, 0
        %v5331 = vsel %vm542, %v1844, 0
        %v5334 = vsel %vm542, %v1845, 0
        %v5337 = vsel %vm542, %v1846, 0
        %v5340 = vsel %vm542, %v1847, 0
        %v5343 = vsel %vm542, %v1848, 0
        %v5346 = vsel %vm542, %v1849, 0
        %v5349 = vsel %vm542, %v1850, 0
        %v5352 = vsel %vm542, %v1851, 0
        %v5355 = vsel %vm542, %v1852, 0
        %v5358 = vsel %vm542, %v1853, 0
        %v5361 = vsel %vm542, %v1854, 0
        %v5364 = vsel %vm542, %v1855, 0
        %v5367 = vsel %vm542, %v1856, 0
        %5369 = vmatprep.subr.mxu0 0.0
        %5370 = vmatpush1.msra.mxu0 %v5223
        %5371 = vmatprep.subr.mxu0 0.0
        %5372 = vmatpush1.msra.mxu0 %v5224
        %5373 = vmatprep.subr.mxu0 0.0
        %5374 = vmatpush1.msra.mxu0 %v5225
        %5375 = vmatprep.subr.mxu0 0.0
        %5376 = vmatpush1.msra.mxu0 %v5226
        %5377 = vmatprep.subr.mxu0 0.0
        %5378 = vmatpush1.msra.mxu0 %v5227
        %5379 = vmatprep.subr.mxu0 0.0
        %5380 = vmatpush1.msra.mxu0 %v5228
        %5381 = vmatprep.subr.mxu0 0.0
        %5382 = vmatpush1.msra.mxu0 %v5229
        %5383 = vmatprep.subr.mxu0 0.0
        %5384 = vmatpush1.msra.mxu0 %v5230
        %5385 = vmatprep.subr.mxu0 0.0
        %5386 = vmatpush1.msra.mxu0 %v5231
        %5387 = vmatprep.subr.mxu0 0.0
        %5388 = vmatpush1.msra.mxu0 %v5232
        %5389 = vmatprep.subr.mxu0 0.0
        %5390 = vmatpush1.msra.mxu0 %v5233
        %5391 = vmatprep.subr.mxu0 0.0
        %5392 = vmatpush1.msra.mxu0 %v5234
        %5393 = vmatprep.subr.mxu0 0.0
        %5394 = vmatpush1.msra.mxu0 %v5235
        %5395 = vmatprep.subr.mxu0 0.0
        %5396 = vmatpush1.msra.mxu0 %v5236
        %5397 = vmatprep.subr.mxu0 0.0
        %5398 = vmatpush1.msra.mxu0 %v5237
        %5399 = vmatprep.subr.mxu0 0.0
        %5400 = vmatpush1.msra.mxu0 %v5238
        %5401 = vmatprep.subr.mxu0 0.0
        %5402 = vmatpush1.msra.mxu0 %v5239
        %5403 = vmatprep.subr.mxu0 0.0
        %5404 = vmatpush1.msra.mxu0 %v5240
        %5405 = vmatprep.subr.mxu0 0.0
        %5406 = vmatpush1.msra.mxu0 %v5241
        %5407 = vmatprep.subr.mxu0 0.0
        %5408 = vmatpush1.msra.mxu0 %v5242
        %5409 = vmatprep.subr.mxu0 0.0
        %5410 = vmatpush1.msra.mxu0 %v5243
        %5411 = vmatprep.subr.mxu0 0.0
        %5412 = vmatpush1.msra.mxu0 %v5244
        %5413 = vmatprep.subr.mxu0 0.0
        %5414 = vmatpush1.msra.mxu0 %v5245
        %5415 = vmatprep.subr.mxu0 0.0
        %5416 = vmatpush1.msra.mxu0 %v5246
        %5417 = vmatprep.subr.mxu0 0.0
        %5418 = vmatpush1.msra.mxu0 %v5247
        %5419 = vmatprep.subr.mxu0 0.0
        %5420 = vmatpush1.msra.mxu0 %v5248
        %5421 = vmatprep.subr.mxu0 0.0
        %5422 = vmatpush1.msra.mxu0 %v5249
        %5423 = vmatprep.subr.mxu0 0.0
        %5424 = vmatpush1.msra.mxu0 %v5250
        %5425 = vmatprep.subr.mxu0 0.0
        %5426 = vmatpush1.msra.mxu0 %v5251
        %5427 = vmatprep.subr.mxu0 0.0
        %5428 = vmatpush1.msra.mxu0 %v5252
        %5429 = vmatprep.subr.mxu0 0.0
        %5430 = vmatpush1.msra.mxu0 %v5253
        %5431 = vmatprep.subr.mxu0 0.0
        %5432 = vmatpush1.msra.mxu0 %v5254
        %5433 = vmatprep.mubr.f32.mxu0 %v4071
        %5434 = vmatmul.mubr.f32.gmra.mrb[0].mxu0 %v3847
        %v5435 = vpop.f32.mrb[0].mxu0
        %v5436 = vadd.f32 0.0, %v5435
        %v5437 = vpop.f32.mrb[0].mxu0
        %5438 = vmatprep.mubr.f32.mxu0 %v4072
        %5439 = vmatmul.mubr.f32.gmra.mrb[0].mxu0 %v3848
        %v5440 = vpop.f32.mrb[0].mxu0
        %v5441 = vadd.f32 0.0, %v5440
        %v5442 = vpop.f32.mrb[0].mxu0
        %5443 = vmatprep.mubr.f32.mxu0 %v4073
        %5444 = vmatmul.mubr.f32.gmra.mrb[0].mxu0 %v3849
        %v5445 = vpop.f32.mrb[0].mxu0
        %v5446 = vadd.f32 0.0, %v5445
        %v5447 = vpop.f32.mrb[0].mxu0
        %5448 = vmatprep.mubr.f32.mxu0 %v4074
        %5449 = vmatmul.mubr.f32.gmra.mrb[0].mxu0 %v3850
        %v5450 = vpop.f32.mrb[0].mxu0
        %v5451 = vadd.f32 0.0, %v5450
        %v5452 = vpop.f32.mrb[0].mxu0
        %5453 = vmatprep.mubr.f32.mxu0 %v4075
        %5454 = vmatmul.mubr.f32.gmra.mrb[0].mxu0 %v3851
        %v5455 = vpop.f32.mrb[0].mxu0
        %v5456 = vadd.f32 0.0, %v5455
        %v5457 = vpop.f32.mrb[0].mxu0
        %5458 = vmatprep.mubr.f32.mxu0 %v4076
        %5459 = vmatmul.mubr.f32.gmra.mrb[0].mxu0 %v3852
        %v5460 = vpop.f32.mrb[0].mxu0
        %v5461 = vadd.f32 0.0, %v5460
        %v5462 = vpop.f32.mrb[0].mxu0
        %5463 = vmatprep.mubr.f32.mxu0 %v4077
        %5464 = vmatmul.mubr.f32.gmra.mrb[0].mxu0 %v3853
        %v5465 = vpop.f32.mrb[0].mxu0
        %v5466 = vadd.f32 0.0, %v5465
        %v5467 = vpop.f32.mrb[0].mxu0
        %5468 = vmatprep.mubr.f32.mxu0 %v4078
        %5469 = vmatmul.mubr.f32.gmra.mrb[0].mxu0 %v3854
        %v5470 = vpop.f32.mrb[0].mxu0
        %v5471 = vadd.f32 0.0, %v5470
        %v5472 = vpop.f32.mrb[0].mxu0
        %5473 = vmatprep.mubr.f32.mxu0 %v4079
        %5474 = vmatmul.mubr.f32.gmra.mrb[0].mxu0 %v3855
        %v5475 = vpop.f32.mrb[0].mxu0
        %v5476 = vadd.f32 0.0, %v5475
        %v5477 = vpop.f32.mrb[0].mxu0
        %5478 = vmatprep.mubr.f32.mxu0 %v4080
        %5479 = vmatmul.mubr.f32.gmra.mrb[0].mxu0 %v3856
        %v5480 = vpop.f32.mrb[0].mxu0
        %v5481 = vadd.f32 0.0, %v5480
        %v5482 = vpop.f32.mrb[0].mxu0
        %5483 = vmatprep.mubr.f32.mxu0 %v4081
        %5484 = vmatmul.mubr.f32.gmra.mrb[0].mxu0 %v3857
        %v5485 = vpop.f32.mrb[0].mxu0
        %v5486 = vadd.f32 0.0, %v5485
        %v5487 = vpop.f32.mrb[0].mxu0
        %5488 = vmatprep.mubr.f32.mxu0 %v4082
        %5489 = vmatmul.mubr.f32.gmra.mrb[0].mxu0 %v3858
        %v5490 = vpop.f32.mrb[0].mxu0
        %v5491 = vadd.f32 0.0, %v5490
        %v5492 = vpop.f32.mrb[0].mxu0
        %5493 = vmatprep.mubr.f32.mxu0 %v4083
        %5494 = vmatmul.mubr.f32.gmra.mrb[0].mxu0 %v3859
        %v5495 = vpop.f32.mrb[0].mxu0
        %v5496 = vadd.f32 0.0, %v5495
        %v5497 = vpop.f32.mrb[0].mxu0
        %5498 = vmatprep.mubr.f32.mxu0 %v4084
        %5499 = vmatmul.mubr.f32.gmra.mrb[0].mxu0 %v3860
        %v5500 = vpop.f32.mrb[0].mxu0
        %v5501 = vadd.f32 0.0, %v5500
        %v5502 = vpop.f32.mrb[0].mxu0
        %5503 = vmatprep.mubr.f32.mxu0 %v4085
        %5504 = vmatmul.mubr.f32.gmra.mrb[0].mxu0 %v3861
        %v5505 = vpop.f32.mrb[0].mxu0
        %v5506 = vadd.f32 0.0, %v5505
        %v5507 = vpop.f32.mrb[0].mxu0
        %5508 = vmatprep.mubr.f32.mxu0 %v4086
        %5509 = vmatmul.mubr.f32.gmra.mrb[0].mxu0 %v3862
        %v5510 = vpop.f32.mrb[0].mxu0
        %v5511 = vadd.f32 0.0, %v5510
        %v5512 = vpop.f32.mrb[0].mxu0
        %5513 = vmatprep.mubr.f32.mxu0 %v4087
        %5514 = vmatmul.mubr.f32.gmra.mrb[0].mxu0 %v3863
        %v5515 = vpop.f32.mrb[0].mxu0
        %v5516 = vadd.f32 0.0, %v5515
        %v5517 = vpop.f32.mrb[0].mxu0
        %5518 = vmatprep.mubr.f32.mxu0 %v4088
        %5519 = vmatmul.mubr.f32.gmra.mrb[0].mxu0 %v3864
        %v5520 = vpop.f32.mrb[0].mxu0
        %v5521 = vadd.f32 0.0, %v5520
        %v5522 = vpop.f32.mrb[0].mxu0
        %5523 = vmatprep.mubr.f32.mxu0 %v4089
        %5524 = vmatmul.mubr.f32.gmra.mrb[0].mxu0 %v3865
        %v5525 = vpop.f32.mrb[0].mxu0
        %v5526 = vadd.f32 0.0, %v5525
        %v5527 = vpop.f32.mrb[0].mxu0
        %5528 = vmatprep.mubr.f32.mxu0 %v4090
        %5529 = vmatmul.mubr.f32.gmra.mrb[0].mxu0 %v3866
        %v5530 = vpop.f32.mrb[0].mxu0
        %v5531 = vadd.f32 0.0, %v5530
        %v5532 = vpop.f32.mrb[0].mxu0
        %5533 = vmatprep.mubr.f32.mxu0 %v4091
        %5534 = vmatmul.mubr.f32.gmra.mrb[0].mxu0 %v3867
        %v5535 = vpop.f32.mrb[0].mxu0
        %v5536 = vadd.f32 0.0, %v5535
        %v5537 = vpop.f32.mrb[0].mxu0
        %5538 = vmatprep.mubr.f32.mxu0 %v4092
        %5539 = vmatmul.mubr.f32.gmra.mrb[0].mxu0 %v3868
        %v5540 = vpop.f32.mrb[0].mxu0
        %v5541 = vadd.f32 0.0, %v5540
        %v5542 = vpop.f32.mrb[0].mxu0
        %5543 = vmatprep.mubr.f32.mxu0 %v4093
        %5544 = vmatmul.mubr.f32.gmra.mrb[0].mxu0 %v3869
        %v5545 = vpop.f32.mrb[0].mxu0
        %v5546 = vadd.f32 0.0, %v5545
        %v5547 = vpop.f32.mrb[0].mxu0
        %5548 = vmatprep.mubr.f32.mxu0 %v4094
        %5549 = vmatmul.mubr.f32.gmra.mrb[0].mxu0 %v3870
        %v5550 = vpop.f32.mrb[0].mxu0
        %v5551 = vadd.f32 0.0, %v5550
        %v5552 = vpop.f32.mrb[0].mxu0
        %5553 = vmatprep.mubr.f32.mxu0 %v4095
        %5554 = vmatmul.mubr.f32.gmra.mrb[0].mxu0 %v3871
        %v5555 = vpop.f32.mrb[0].mxu0
        %v5556 = vadd.f32 0.0, %v5555
        %v5557 = vpop.f32.mrb[0].mxu0
        %5558 = vmatprep.mubr.f32.mxu0 %v4096
        %5559 = vmatmul.mubr.f32.gmra.mrb[0].mxu0 %v3872
        %v5560 = vpop.f32.mrb[0].mxu0
        %v5561 = vadd.f32 0.0, %v5560
        %v5562 = vpop.f32.mrb[0].mxu0
        %5563 = vmatprep.mubr.f32.mxu0 %v4097
        %5564 = vmatmul.mubr.f32.gmra.mrb[0].mxu0 %v3873
        %v5565 = vpop.f32.mrb[0].mxu0
        %v5566 = vadd.f32 0.0, %v5565
        %v5567 = vpop.f32.mrb[0].mxu0
        %5568 = vmatprep.mubr.f32.mxu0 %v4098
        %5569 = vmatmul.mubr.f32.gmra.mrb[0].mxu0 %v3874
        %v5570 = vpop.f32.mrb[0].mxu0
        %v5571 = vadd.f32 0.0, %v5570
        %v5572 = vpop.f32.mrb[0].mxu0
        %5573 = vmatprep.mubr.f32.mxu0 %v4099
        %5574 = vmatmul.mubr.f32.gmra.mrb[0].mxu0 %v3875
        %v5575 = vpop.f32.mrb[0].mxu0
        %v5576 = vadd.f32 0.0, %v5575
        %v5577 = vpop.f32.mrb[0].mxu0
        %5578 = vmatprep.mubr.f32.mxu0 %v4100
        %5579 = vmatmul.mubr.f32.gmra.mrb[0].mxu0 %v3876
        %v5580 = vpop.f32.mrb[0].mxu0
        %v5581 = vadd.f32 0.0, %v5580
        %v5582 = vpop.f32.mrb[0].mxu0
        %5583 = vmatprep.mubr.f32.mxu0 %v4101
        %5584 = vmatmul.mubr.f32.gmra.mrb[0].mxu0 %v3877
        %v5585 = vpop.f32.mrb[0].mxu0
        %v5586 = vadd.f32 0.0, %v5585
        %v5587 = vpop.f32.mrb[0].mxu0
        %5588 = vmatprep.mubr.f32.mxu0 %v4102
        %5589 = vmatmul.mubr.f32.gmra.mrb[0].mxu0 %v3878
        %v5590 = vpop.f32.mrb[0].mxu0
        %v5591 = vadd.f32 0.0, %v5590
        %v5592 = vpop.f32.mrb[0].mxu0
        %5593 = vdwg.mxu0
        %5594 = vmatprep.subr.mxu0 0.0
        %5595 = vmatpush1.msra.mxu0 %v5255
        %5596 = vmatprep.subr.mxu0 0.0
        %5597 = vmatpush1.msra.mxu0 %v5256
        %5598 = vmatprep.subr.mxu0 0.0
        %5599 = vmatpush1.msra.mxu0 %v5257
        %5600 = vmatprep.subr.mxu0 0.0
        %5601 = vmatpush1.msra.mxu0 %v5258
        %5602 = vmatprep.subr.mxu0 0.0
        %5603 = vmatpush1.msra.mxu0 %v5259
        %5604 = vmatprep.subr.mxu0 0.0
        %5605 = vmatpush1.msra.mxu0 %v5260
        %5606 = vmatprep.subr.mxu0 0.0
        %5607 = vmatpush1.msra.mxu0 %v5261
        %5608 = vmatprep.subr.mxu0 0.0
        %5609 = vmatpush1.msra.mxu0 %v5262
        %5610 = vmatprep.subr.mxu0 0.0
        %5611 = vmatpush1.msra.mxu0 %v5263
        %5612 = vmatprep.subr.mxu0 0.0
        %5613 = vmatpush1.msra.mxu0 %v5264
        %5614 = vmatprep.subr.mxu0 0.0
        %5615 = vmatpush1.msra.mxu0 %v5265
        %5616 = vmatprep.subr.mxu0 0.0
        %5617 = vmatpush1.msra.mxu0 %v5266
        %5618 = vmatprep.subr.mxu0 0.0
        %5619 = vmatpush1.msra.mxu0 %v5267
        %5620 = vmatprep.subr.mxu0 0.0
        %5621 = vmatpush1.msra.mxu0 %v5268
        %5622 = vmatprep.subr.mxu0 0.0
        %5623 = vmatpush1.msra.mxu0 %v5269
        %5624 = vmatprep.subr.mxu0 0.0
        %5625 = vmatpush1.msra.mxu0 %v5270
        %5626 = vmatprep.subr.mxu0 0.0
        %5627 = vmatpush1.msra.mxu0 %v5271
        %5628 = vmatprep.subr.mxu0 0.0
        %5629 = vmatpush1.msra.mxu0 %v5272
        %5630 = vmatprep.subr.mxu0 0.0
        %5631 = vmatpush1.msra.mxu0 0.0
        %5632 = vmatprep.subr.mxu0 0.0
        %5633 = vmatpush1.msra.mxu0 0.0
        %5634 = vmatprep.subr.mxu0 0.0
        %5635 = vmatpush1.msra.mxu0 0.0
        %5636 = vmatprep.subr.mxu0 0.0
        %5637 = vmatpush1.msra.mxu0 0.0
        %5638 = vmatprep.subr.mxu0 0.0
        %5639 = vmatpush1.msra.mxu0 0.0
        %5640 = vmatprep.subr.mxu0 0.0
        %5641 = vmatpush1.msra.mxu0 0.0
        %5642 = vmatprep.subr.mxu0 0.0
        %5643 = vmatpush1.msra.mxu0 0.0
        %5644 = vmatprep.subr.mxu0 0.0
        %5645 = vmatpush1.msra.mxu0 0.0
        %5646 = vmatprep.subr.mxu0 0.0
        %5647 = vmatpush1.msra.mxu0 0.0
        %5648 = vmatprep.subr.mxu0 0.0
        %5649 = vmatpush1.msra.mxu0 0.0
        %5650 = vmatprep.subr.mxu0 0.0
        %5651 = vmatpush1.msra.mxu0 0.0
        %5652 = vmatprep.subr.mxu0 0.0
        %5653 = vmatpush1.msra.mxu0 0.0
        %5654 = vmatprep.subr.mxu0 0.0
        %5655 = vmatpush1.msra.mxu0 0.0
        %5656 = vmatprep.subr.mxu0 0.0
        %5657 = vmatpush1.msra.mxu0 0.0
        %5658 = vmatprep.mubr.f32.mxu0 %v5274
        %5659 = vmatmul.mubr.f32.gmra.mrb[0].mxu0 %v5191
        %v5660 = vpop.f32.mrb[0].mxu0
        %v5661 = vadd.f32 %v5436, %v5660
        %v5662 = vpop.f32.mrb[0].mxu0
        %5663 = vmatprep.mubr.f32.mxu0 %v5277
        %5664 = vmatmul.mubr.f32.gmra.mrb[0].mxu0 %v5192
        %v5665 = vpop.f32.mrb[0].mxu0
        %v5666 = vadd.f32 %v5441, %v5665
        %v5667 = vpop.f32.mrb[0].mxu0
        %5668 = vmatprep.mubr.f32.mxu0 %v5280
        %5669 = vmatmul.mubr.f32.gmra.mrb[0].mxu0 %v5193
        %v5670 = vpop.f32.mrb[0].mxu0
        %v5671 = vadd.f32 %v5446, %v5670
        %v5672 = vpop.f32.mrb[0].mxu0
        %5673 = vmatprep.mubr.f32.mxu0 %v5283
        %5674 = vmatmul.mubr.f32.gmra.mrb[0].mxu0 %v5194
        %v5675 = vpop.f32.mrb[0].mxu0
        %v5676 = vadd.f32 %v5451, %v5675
        %v5677 = vpop.f32.mrb[0].mxu0
        %5678 = vmatprep.mubr.f32.mxu0 %v5286
        %5679 = vmatmul.mubr.f32.gmra.mrb[0].mxu0 %v5195
        %v5680 = vpop.f32.mrb[0].mxu0
        %v5681 = vadd.f32 %v5456, %v5680
        %v5682 = vpop.f32.mrb[0].mxu0
        %5683 = vmatprep.mubr.f32.mxu0 %v5289
        %5684 = vmatmul.mubr.f32.gmra.mrb[0].mxu0 %v5196
        %v5685 = vpop.f32.mrb[0].mxu0
        %v5686 = vadd.f32 %v5461, %v5685
        %v5687 = vpop.f32.mrb[0].mxu0
        %5688 = vmatprep.mubr.f32.mxu0 %v5292
        %5689 = vmatmul.mubr.f32.gmra.mrb[0].mxu0 %v5197
        %v5690 = vpop.f32.mrb[0].mxu0
        %v5691 = vadd.f32 %v5466, %v5690
        %v5692 = vpop.f32.mrb[0].mxu0
        %5693 = vmatprep.mubr.f32.mxu0 %v5295
        %5694 = vmatmul.mubr.f32.gmra.mrb[0].mxu0 %v5198
        %v5695 = vpop.f32.mrb[0].mxu0
        %v5696 = vadd.f32 %v5471, %v5695
        %v5697 = vpop.f32.mrb[0].mxu0
        %5698 = vmatprep.mubr.f32.mxu0 %v5298
        %5699 = vmatmul.mubr.f32.gmra.mrb[0].mxu0 %v5199
        %v5700 = vpop.f32.mrb[0].mxu0
        %v5701 = vadd.f32 %v5476, %v5700
        %v5702 = vpop.f32.mrb[0].mxu0
        %5703 = vmatprep.mubr.f32.mxu0 %v5301
        %5704 = vmatmul.mubr.f32.gmra.mrb[0].mxu0 %v5200
        %v5705 = vpop.f32.mrb[0].mxu0
        %v5706 = vadd.f32 %v5481, %v5705
        %v5707 = vpop.f32.mrb[0].mxu0
        %5708 = vmatprep.mubr.f32.mxu0 %v5304
        %5709 = vmatmul.mubr.f32.gmra.mrb[0].mxu0 %v5201
        %v5710 = vpop.f32.mrb[0].mxu0
        %v5711 = vadd.f32 %v5486, %v5710
        %v5712 = vpop.f32.mrb[0].mxu0
        %5713 = vmatprep.mubr.f32.mxu0 %v5307
        %5714 = vmatmul.mubr.f32.gmra.mrb[0].mxu0 %v5202
        %v5715 = vpop.f32.mrb[0].mxu0
        %v5716 = vadd.f32 %v5491, %v5715
        %v5717 = vpop.f32.mrb[0].mxu0
        %5718 = vmatprep.mubr.f32.mxu0 %v5310
        %5719 = vmatmul.mubr.f32.gmra.mrb[0].mxu0 %v5203
        %v5720 = vpop.f32.mrb[0].mxu0
        %v5721 = vadd.f32 %v5496, %v5720
        %v5722 = vpop.f32.mrb[0].mxu0
        %5723 = vmatprep.mubr.f32.mxu0 %v5313
        %5724 = vmatmul.mubr.f32.gmra.mrb[0].mxu0 %v5204
        %v5725 = vpop.f32.mrb[0].mxu0
        %v5726 = vadd.f32 %v5501, %v5725
        %v5727 = vpop.f32.mrb[0].mxu0
        %5728 = vmatprep.mubr.f32.mxu0 %v5316
        %5729 = vmatmul.mubr.f32.gmra.mrb[0].mxu0 %v5205
        %v5730 = vpop.f32.mrb[0].mxu0
        %v5731 = vadd.f32 %v5506, %v5730
        %v5732 = vpop.f32.mrb[0].mxu0
        %5733 = vmatprep.mubr.f32.mxu0 %v5319
        %5734 = vmatmul.mubr.f32.gmra.mrb[0].mxu0 %v5206
        %v5735 = vpop.f32.mrb[0].mxu0
        %v5736 = vadd.f32 %v5511, %v5735
        %v5737 = vpop.f32.mrb[0].mxu0
        %5738 = vmatprep.mubr.f32.mxu0 %v5322
        %5739 = vmatmul.mubr.f32.gmra.mrb[0].mxu0 %v5207
        %v5740 = vpop.f32.mrb[0].mxu0
        %v5741 = vadd.f32 %v5516, %v5740
        %v5742 = vpop.f32.mrb[0].mxu0
        %5743 = vmatprep.mubr.f32.mxu0 %v5325
        %5744 = vmatmul.mubr.f32.gmra.mrb[0].mxu0 %v5208
        %v5745 = vpop.f32.mrb[0].mxu0
        %v5746 = vadd.f32 %v5521, %v5745
        %v5747 = vpop.f32.mrb[0].mxu0
        %5748 = vmatprep.mubr.f32.mxu0 %v5328
        %5749 = vmatmul.mubr.f32.gmra.mrb[0].mxu0 %v5209
        %v5750 = vpop.f32.mrb[0].mxu0
        %v5751 = vadd.f32 %v5526, %v5750
        %v5752 = vpop.f32.mrb[0].mxu0
        %5753 = vmatprep.mubr.f32.mxu0 %v5331
        %5754 = vmatmul.mubr.f32.gmra.mrb[0].mxu0 %v5210
        %v5755 = vpop.f32.mrb[0].mxu0
        %v5756 = vadd.f32 %v5531, %v5755
        %v5757 = vpop.f32.mrb[0].mxu0
        %5758 = vmatprep.mubr.f32.mxu0 %v5334
        %5759 = vmatmul.mubr.f32.gmra.mrb[0].mxu0 %v5211
        %v5760 = vpop.f32.mrb[0].mxu0
        %v5761 = vadd.f32 %v5536, %v5760
        %v5762 = vpop.f32.mrb[0].mxu0
        %5763 = vmatprep.mubr.f32.mxu0 %v5337
        %5764 = vmatmul.mubr.f32.gmra.mrb[0].mxu0 %v5212
        %v5765 = vpop.f32.mrb[0].mxu0
        %v5766 = vadd.f32 %v5541, %v5765
        %v5767 = vpop.f32.mrb[0].mxu0
        %5768 = vmatprep.mubr.f32.mxu0 %v5340
        %5769 = vmatmul.mubr.f32.gmra.mrb[0].mxu0 %v5213
        %v5770 = vpop.f32.mrb[0].mxu0
        %v5771 = vadd.f32 %v5546, %v5770
        %v5772 = vpop.f32.mrb[0].mxu0
        %5773 = vmatprep.mubr.f32.mxu0 %v5343
        %5774 = vmatmul.mubr.f32.gmra.mrb[0].mxu0 %v5214
        %v5775 = vpop.f32.mrb[0].mxu0
        %v5776 = vadd.f32 %v5551, %v5775
        %v5777 = vpop.f32.mrb[0].mxu0
        %5778 = vmatprep.mubr.f32.mxu0 %v5346
        %5779 = vmatmul.mubr.f32.gmra.mrb[0].mxu0 %v5215
        %v5780 = vpop.f32.mrb[0].mxu0
        %v5781 = vadd.f32 %v5556, %v5780
        %v5782 = vpop.f32.mrb[0].mxu0
        %5783 = vmatprep.mubr.f32.mxu0 %v5349
        %5784 = vmatmul.mubr.f32.gmra.mrb[0].mxu0 %v5216
        %v5785 = vpop.f32.mrb[0].mxu0
        %v5786 = vadd.f32 %v5561, %v5785
        %v5787 = vpop.f32.mrb[0].mxu0
        %5788 = vmatprep.mubr.f32.mxu0 %v5352
        %5789 = vmatmul.mubr.f32.gmra.mrb[0].mxu0 %v5217
        %v5790 = vpop.f32.mrb[0].mxu0
        %v5791 = vadd.f32 %v5566, %v5790
        %v5792 = vpop.f32.mrb[0].mxu0
        %5793 = vmatprep.mubr.f32.mxu0 %v5355
        %5794 = vmatmul.mubr.f32.gmra.mrb[0].mxu0 %v5218
        %v5795 = vpop.f32.mrb[0].mxu0
        %v5796 = vadd.f32 %v5571, %v5795
        %v5797 = vpop.f32.mrb[0].mxu0
        %5798 = vmatprep.mubr.f32.mxu0 %v5358
        %5799 = vmatmul.mubr.f32.gmra.mrb[0].mxu0 %v5219
        %v5800 = vpop.f32.mrb[0].mxu0
        %v5801 = vadd.f32 %v5576, %v5800
        %v5802 = vpop.f32.mrb[0].mxu0
        %5803 = vmatprep.mubr.f32.mxu0 %v5361
        %5804 = vmatmul.mubr.f32.gmra.mrb[0].mxu0 %v5220
        %v5805 = vpop.f32.mrb[0].mxu0
        %v5806 = vadd.f32 %v5581, %v5805
        %v5807 = vpop.f32.mrb[0].mxu0
        %5808 = vmatprep.mubr.f32.mxu0 %v5364
        %5809 = vmatmul.mubr.f32.gmra.mrb[0].mxu0 %v5221
        %v5810 = vpop.f32.mrb[0].mxu0
        %v5811 = vadd.f32 %v5586, %v5810
        %v5812 = vpop.f32.mrb[0].mxu0
        %5813 = vmatprep.mubr.f32.mxu0 %v5367
        %5814 = vmatmul.mubr.f32.gmra.mrb[0].mxu0 %v5222
        %v5815 = vpop.f32.mrb[0].mxu0
        %v5816 = vadd.f32 %v5591, %v5815
        %v5817 = vpop.f32.mrb[0].mxu0
        %5818 = vdwg.mxu0
        %v5819 = vld [vmem:[%s5] sm:$0x1]
        %v5821 = vlaneseq
        %v5822 = vshrl.u32 %v5821, 7
        %v5823 = vsub.s32 0, %v5822
        %v5824 = vrot.slane %v5819, %v5823
        %v5826 = vmul.f32 %v5661, %v5824
        %v5827 = vmul.f32 %v5666, %v5824
        %v5828 = vmul.f32 %v5671, %v5824
        %v5829 = vmul.f32 %v5676, %v5824
        %v5830 = vmul.f32 %v5681, %v5824
        %v5831 = vmul.f32 %v5686, %v5824
        %v5832 = vmul.f32 %v5691, %v5824
        %v5833 = vmul.f32 %v5696, %v5824
        %v5834 = vmul.f32 %v5701, %v5824
        %v5835 = vmul.f32 %v5706, %v5824
        %v5836 = vmul.f32 %v5711, %v5824
        %v5837 = vmul.f32 %v5716, %v5824
        %v5838 = vmul.f32 %v5721, %v5824
        %v5839 = vmul.f32 %v5726, %v5824
        %v5840 = vmul.f32 %v5731, %v5824
        %v5841 = vmul.f32 %v5736, %v5824
        %v5842 = vmul.f32 %v5741, %v5824
        %v5843 = vmul.f32 %v5746, %v5824
        %v5844 = vmul.f32 %v5751, %v5824
        %v5845 = vmul.f32 %v5756, %v5824
        %v5846 = vmul.f32 %v5761, %v5824
        %v5847 = vmul.f32 %v5766, %v5824
        %v5848 = vmul.f32 %v5771, %v5824
        %v5849 = vmul.f32 %v5776, %v5824
        %v5850 = vmul.f32 %v5781, %v5824
        %v5851 = vmul.f32 %v5786, %v5824
        %v5852 = vmul.f32 %v5791, %v5824
        %v5853 = vmul.f32 %v5796, %v5824
        %v5854 = vmul.f32 %v5801, %v5824
        %v5855 = vmul.f32 %v5806, %v5824
        %v5856 = vmul.f32 %v5811, %v5824
        %v5857 = vmul.f32 %v5816, %v5824
        %v5858 = vld [vmem:[%s6] sm:$0x1]
        %v5860 = vlaneseq
        %v5861 = vshrl.u32 %v5860, 7
        %v5862 = vsub.s32 0, %v5861
        %v5863 = vrot.slane %v5858, %v5862
        %v5865 = vadd.f32 %v5826, %v5863
        %v5866 = vadd.f32 %v5827, %v5863
        %v5867 = vadd.f32 %v5828, %v5863
        %v5868 = vadd.f32 %v5829, %v5863
        %v5869 = vadd.f32 %v5830, %v5863
        %v5870 = vadd.f32 %v5831, %v5863
        %v5871 = vadd.f32 %v5832, %v5863
        %v5872 = vadd.f32 %v5833, %v5863
        %v5873 = vadd.f32 %v5834, %v5863
        %v5874 = vadd.f32 %v5835, %v5863
        %v5875 = vadd.f32 %v5836, %v5863
        %v5876 = vadd.f32 %v5837, %v5863
        %v5877 = vadd.f32 %v5838, %v5863
        %v5878 = vadd.f32 %v5839, %v5863
        %v5879 = vadd.f32 %v5840, %v5863
        %v5880 = vadd.f32 %v5841, %v5863
        %v5881 = vadd.f32 %v5842, %v5863
        %v5882 = vadd.f32 %v5843, %v5863
        %v5883 = vadd.f32 %v5844, %v5863
        %v5884 = vadd.f32 %v5845, %v5863
        %v5885 = vadd.f32 %v5846, %v5863
        %v5886 = vadd.f32 %v5847, %v5863
        %v5887 = vadd.f32 %v5848, %v5863
        %v5888 = vadd.f32 %v5849, %v5863
        %v5889 = vadd.f32 %v5850, %v5863
        %v5890 = vadd.f32 %v5851, %v5863
        %v5891 = vadd.f32 %v5852, %v5863
        %v5892 = vadd.f32 %v5853, %v5863
        %v5893 = vadd.f32 %v5854, %v5863
        %v5894 = vadd.f32 %v5855, %v5863
        %v5895 = vadd.f32 %v5856, %v5863
        %v5896 = vadd.f32 %v5857, %v5863
        %v5897 = vmax.f32 %v5865, 0.0
        %v5898 = vmax.f32 %v5866, 0.0
        %v5899 = vmax.f32 %v5867, 0.0
        %v5900 = vmax.f32 %v5868, 0.0
        %v5901 = vmax.f32 %v5869, 0.0
        %v5902 = vmax.f32 %v5870, 0.0
        %v5903 = vmax.f32 %v5871, 0.0
        %v5904 = vmax.f32 %v5872, 0.0
        %v5905 = vmax.f32 %v5873, 0.0
        %v5906 = vmax.f32 %v5874, 0.0
        %v5907 = vmax.f32 %v5875, 0.0
        %v5908 = vmax.f32 %v5876, 0.0
        %v5909 = vmax.f32 %v5877, 0.0
        %v5910 = vmax.f32 %v5878, 0.0
        %v5911 = vmax.f32 %v5879, 0.0
        %v5912 = vmax.f32 %v5880, 0.0
        %v5913 = vmax.f32 %v5881, 0.0
        %v5914 = vmax.f32 %v5882, 0.0
        %v5915 = vmax.f32 %v5883, 0.0
        %v5916 = vmax.f32 %v5884, 0.0
        %v5917 = vmax.f32 %v5885, 0.0
        %v5918 = vmax.f32 %v5886, 0.0
        %v5919 = vmax.f32 %v5887, 0.0
        %v5920 = vmax.f32 %v5888, 0.0
        %v5921 = vmax.f32 %v5889, 0.0
        %v5922 = vmax.f32 %v5890, 0.0
        %v5923 = vmax.f32 %v5891, 0.0
        %v5924 = vmax.f32 %v5892, 0.0
        %v5925 = vmax.f32 %v5893, 0.0
        %v5926 = vmax.f32 %v5894, 0.0
        %v5927 = vmax.f32 %v5895, 0.0
        %v5928 = vmax.f32 %v5896, 0.0
        %v5929 = vsel %vm3681, %v5897, 0.0
        %v5930 = vsel %vm3681, %v5898, 0.0
        %v5931 = vadd.f32 %v5929, %v5930
        %v5932 = vsel %vm3681, %v5899, 0.0
        %v5933 = vadd.f32 %v5931, %v5932
        %v5934 = vsel %vm3681, %v5900, 0.0
        %v5935 = vadd.f32 %v5933, %v5934
        %v5936 = vsel %vm3681, %v5901, 0.0
        %v5937 = vadd.f32 %v5935, %v5936
        %v5938 = vsel %vm3681, %v5902, 0.0
        %v5939 = vadd.f32 %v5937, %v5938
        %v5940 = vsel %vm3681, %v5903, 0.0
        %v5941 = vadd.f32 %v5939, %v5940
        %v5942 = vsel %vm3681, %v5904, 0.0
        %v5943 = vadd.f32 %v5941, %v5942
        %v5944 = vsel %vm3681, %v5905, 0.0
        %v5945 = vadd.f32 %v5943, %v5944
        %v5946 = vsel %vm3681, %v5906, 0.0
        %v5947 = vadd.f32 %v5945, %v5946
        %v5948 = vsel %vm3681, %v5907, 0.0
        %v5949 = vadd.f32 %v5947, %v5948
        %v5950 = vsel %vm3681, %v5908, 0.0
        %v5951 = vadd.f32 %v5949, %v5950
        %v5952 = vsel %vm3681, %v5909, 0.0
        %v5953 = vadd.f32 %v5951, %v5952
        %v5954 = vsel %vm3681, %v5910, 0.0
        %v5955 = vadd.f32 %v5953, %v5954
        %v5956 = vsel %vm3681, %v5911, 0.0
        %v5957 = vadd.f32 %v5955, %v5956
        %v5958 = vsel %vm3681, %v5912, 0.0
        %v5959 = vadd.f32 %v5957, %v5958
        %v5960 = vsel %vm3681, %v5913, 0.0
        %v5961 = vadd.f32 %v5959, %v5960
        %v5962 = vsel %vm3681, %v5914, 0.0
        %v5963 = vadd.f32 %v5961, %v5962
        %v5964 = vsel %vm3681, %v5915, 0.0
        %v5965 = vadd.f32 %v5963, %v5964
        %v5966 = vsel %vm3681, %v5916, 0.0
        %v5967 = vadd.f32 %v5965, %v5966
        %v5968 = vsel %vm3681, %v5917, 0.0
        %v5969 = vadd.f32 %v5967, %v5968
        %v5970 = vsel %vm3681, %v5918, 0.0
        %v5971 = vadd.f32 %v5969, %v5970
        %v5972 = vsel %vm3681, %v5919, 0.0
        %v5973 = vadd.f32 %v5971, %v5972
        %v5974 = vsel %vm3681, %v5920, 0.0
        %v5975 = vadd.f32 %v5973, %v5974
        %v5976 = vsel %vm3681, %v5921, 0.0
        %v5977 = vadd.f32 %v5975, %v5976
        %v5978 = vsel %vm3681, %v5922, 0.0
        %v5979 = vadd.f32 %v5977, %v5978
        %v5980 = vsel %vm3681, %v5923, 0.0
        %v5981 = vadd.f32 %v5979, %v5980
        %v5982 = vsel %vm3681, %v5924, 0.0
        %v5983 = vadd.f32 %v5981, %v5982
        %v5984 = vsel %vm3681, %v5925, 0.0
        %v5985 = vadd.f32 %v5983, %v5984
        %v5986 = vsel %vm3681, %v5926, 0.0
        %v5987 = vadd.f32 %v5985, %v5986
        %v5988 = vsel %vm3681, %v5927, 0.0
        %v5989 = vadd.f32 %v5987, %v5988
        %v5990 = vsel %vm3681, %v5928, 0.0
        %v5991 = vadd.f32 %v5989, %v5990
        %v5992 = vrot.slane %v5991, 4
        %v5993 = vadd.f32 %v5991, %v5992
        %v5994 = vrot.slane %v5993, 2
        %v5995 = vadd.f32 %v5993, %v5994
        %v5996 = vrot.slane %v5995, 1
        %v5997 = vadd.f32 %v5995, %v5996
        %v5998 = vmul.f32 %v5997, 0.00390625
        %6000 = vrot.lane.b32.xlu0 %v5998, 112
        %v6001 = vpop.permute.xlu0 %6000
        %v6003 = vadd.f32 %v5998, %v6001
        %v6004 = vld [vmem:[%s7] sm:$0xff]
        %v6005 = vld [vmem:[%s7 + $0x8] sm:$0xff]
        %v6006 = vld [vmem:[%s8] sm:$0x1]
        %v6008 = vsel %vm542, %v6003, 0
        %6010 = vmatprep.subr.mxu0 0.0
        %6011 = vmatpush1.msra.mxu0 %v6004
        %6012 = vmatprep.subr.mxu0 0.0
        %6013 = vmatpush1.msra.mxu0 %v6005
        %6014 = vmatprep.subr.mxu0 0.0
        %6015 = vmatpush1.msra.mxu0 0.0
        %6016 = vmatprep.subr.mxu0 0.0
        %6017 = vmatpush1.msra.mxu0 0.0
        %6018 = vmatprep.subr.mxu0 0.0
        %6019 = vmatpush1.msra.mxu0 0.0
        %6020 = vmatprep.subr.mxu0 0.0
        %6021 = vmatpush1.msra.mxu0 0.0
        %6022 = vmatprep.subr.mxu0 0.0
        %6023 = vmatpush1.msra.mxu0 0.0
        %6024 = vmatprep.subr.mxu0 0.0
        %6025 = vmatpush1.msra.mxu0 0.0
        %6026 = vmatprep.subr.mxu0 0.0
        %6027 = vmatpush1.msra.mxu0 0.0
        %6028 = vmatprep.subr.mxu0 0.0
        %6029 = vmatpush1.msra.mxu0 0.0
        %6030 = vmatprep.subr.mxu0 0.0
        %6031 = vmatpush1.msra.mxu0 0.0
        %6032 = vmatprep.subr.mxu0 0.0
        %6033 = vmatpush1.msra.mxu0 0.0
        %6034 = vmatprep.subr.mxu0 0.0
        %6035 = vmatpush1.msra.mxu0 0.0
        %6036 = vmatprep.subr.mxu0 0.0
        %6037 = vmatpush1.msra.mxu0 0.0
        %6038 = vmatprep.subr.mxu0 0.0
        %6039 = vmatpush1.msra.mxu0 0.0
        %6040 = vmatprep.subr.mxu0 0.0
        %6041 = vmatpush1.msra.mxu0 0.0
        %6042 = vmatprep.subr.mxu0 0.0
        %6043 = vmatpush1.msra.mxu0 0.0
        %6044 = vmatprep.subr.mxu0 0.0
        %6045 = vmatpush1.msra.mxu0 0.0
        %6046 = vmatprep.subr.mxu0 0.0
        %6047 = vmatpush1.msra.mxu0 0.0
        %6048 = vmatprep.subr.mxu0 0.0
        %6049 = vmatpush1.msra.mxu0 0.0
        %6050 = vmatprep.subr.mxu0 0.0
        %6051 = vmatpush1.msra.mxu0 0.0
        %6052 = vmatprep.subr.mxu0 0.0
        %6053 = vmatpush1.msra.mxu0 0.0
        %6054 = vmatprep.subr.mxu0 0.0
        %6055 = vmatpush1.msra.mxu0 0.0
        %6056 = vmatprep.subr.mxu0 0.0
        %6057 = vmatpush1.msra.mxu0 0.0
        %6058 = vmatprep.subr.mxu0 0.0
        %6059 = vmatpush1.msra.mxu0 0.0
        %6060 = vmatprep.subr.mxu0 0.0
        %6061 = vmatpush1.msra.mxu0 0.0
        %6062 = vmatprep.subr.mxu0 0.0
        %6063 = vmatpush1.msra.mxu0 0.0
        %6064 = vmatprep.subr.mxu0 0.0
        %6065 = vmatpush1.msra.mxu0 0.0
        %6066 = vmatprep.subr.mxu0 0.0
        %6067 = vmatpush1.msra.mxu0 0.0
        %6068 = vmatprep.subr.mxu0 0.0
        %6069 = vmatpush1.msra.mxu0 0.0
        %6070 = vmatprep.subr.mxu0 0.0
        %6071 = vmatpush1.msra.mxu0 0.0
        %6072 = vmatprep.subr.mxu0 0.0
        %6073 = vmatpush1.msra.mxu0 0.0
        %6074 = vmatprep.mubr.f32.mxu0 0.0
        %6075 = vmatmul.mubr.f32.gmra.mrb[0].mxu0 %v6008
        %v6076 = vpop.f32.mrb[0].mxu0
        %v6077 = vadd.f32 %v6006, %v6076
        %v6078 = vpop.f32.mrb[0].mxu0
        %6079 = vdwg.mxu0
        %v6080 = vld [vmem:[%s9] sm:$0x3]
        %v6081 = vld [vmem:[%s10] sm:$0x1]
        %vm6082 = vcmask 15360
        %v6084 = vsel %vm6082, %v6077, 0
        %vm6086 = vcmask 1041408
        %v6088 = vsel %vm6086, %v6080, 0
        %6090 = vmatprep.subr.mxu0 0.0
        %6091 = vmatpush1.msra.mxu0 %v6088
        %6092 = vmatprep.subr.mxu0 0.0
        %6093 = vmatpush1.msra.mxu0 0.0
        %6094 = vmatprep.subr.mxu0 0.0
        %6095 = vmatpush1.msra.mxu0 0.0
        %6096 = vmatprep.subr.mxu0 0.0
        %6097 = vmatpush1.msra.mxu0 0.0
        %6098 = vmatprep.subr.mxu0 0.0
        %6099 = vmatpush1.msra.mxu0 0.0
        %6100 = vmatprep.subr.mxu0 0.0
        %6101 = vmatpush1.msra.mxu0 0.0
        %6102 = vmatprep.subr.mxu0 0.0
        %6103 = vmatpush1.msra.mxu0 0.0
        %6104 = vmatprep.subr.mxu0 0.0
        %6105 = vmatpush1.msra.mxu0 0.0
        %6106 = vmatprep.subr.mxu0 0.0
        %6107 = vmatpush1.msra.mxu0 0.0
        %6108 = vmatprep.subr.mxu0 0.0
        %6109 = vmatpush1.msra.mxu0 0.0
        %6110 = vmatprep.subr.mxu0 0.0
        %6111 = vmatpush1.msra.mxu0 0.0
        %6112 = vmatprep.subr.mxu0 0.0
        %6113 = vmatpush1.msra.mxu0 0.0
        %6114 = vmatprep.subr.mxu0 0.0
        %6115 = vmatpush1.msra.mxu0 0.0
        %6116 = vmatprep.subr.mxu0 0.0
        %6117 = vmatpush1.msra.mxu0 0.0
        %6118 = vmatprep.subr.mxu0 0.0
        %6119 = vmatpush1.msra.mxu0 0.0
        %6120 = vmatprep.subr.mxu0 0.0
        %6121 = vmatpush1.msra.mxu0 0.0
        %6122 = vmatprep.subr.mxu0 0.0
        %6123 = vmatpush1.msra.mxu0 0.0
        %6124 = vmatprep.subr.mxu0 0.0
        %6125 = vmatpush1.msra.mxu0 0.0
        %6126 = vmatprep.subr.mxu0 0.0
        %6127 = vmatpush1.msra.mxu0 0.0
        %6128 = vmatprep.subr.mxu0 0.0
        %6129 = vmatpush1.msra.mxu0 0.0
        %6130 = vmatprep.subr.mxu0 0.0
        %6131 = vmatpush1.msra.mxu0 0.0
        %6132 = vmatprep.subr.mxu0 0.0
        %6133 = vmatpush1.msra.mxu0 0.0
        %6134 = vmatprep.subr.mxu0 0.0
        %6135 = vmatpush1.msra.mxu0 0.0
        %6136 = vmatprep.subr.mxu0 0.0
        %6137 = vmatpush1.msra.mxu0 0.0
        %6138 = vmatprep.subr.mxu0 0.0
        %6139 = vmatpush1.msra.mxu0 0.0
        %6140 = vmatprep.subr.mxu0 0.0
        %6141 = vmatpush1.msra.mxu0 0.0
        %6142 = vmatprep.subr.mxu0 0.0
        %6143 = vmatpush1.msra.mxu0 0.0
        %6144 = vmatprep.subr.mxu0 0.0
        %6145 = vmatpush1.msra.mxu0 0.0
        %6146 = vmatprep.subr.mxu0 0.0
        %6147 = vmatpush1.msra.mxu0 0.0
        %6148 = vmatprep.subr.mxu0 0.0
        %6149 = vmatpush1.msra.mxu0 0.0
        %6150 = vmatprep.subr.mxu0 0.0
        %6151 = vmatpush1.msra.mxu0 0.0
        %6152 = vmatprep.subr.mxu0 0.0
        %6153 = vmatpush1.msra.mxu0 0.0
        %6154 = vmatprep.mubr.f32.mxu0 0.0
        %6155 = vmatmul.mubr.f32.gmra.mrb[0].mxu0 %v6084
        %v6156 = vpop.f32.mrb[0].mxu0
        %v6157 = vadd.f32 %v6081, %v6156
        %v6158 = vpop.f32.mrb[0].mxu0
        %6159 = vdwg.mxu0
        %6161 = vrot.lane.b32.xlu0 %v6157, 112
        %v6162 = vpop.permute.xlu0 %6161
        %v6164 = vmax.f32 %v6157, %v6162
        %v6165 = vsub.f32 %v6157, %v6164
        %v6166 = vmul.f32 %v6165, 1.442695
        %v6167 = vpow.pop %v6166
        %6169 = vrot.lane.b32.xlu0 %v6164, 16
        %v6170 = vpop.permute.xlu0 %6169
        %v6172 = vsub.f32 %v6157, %v6170
        %v6173 = vmul.f32 %v6172, 1.442695
        %v6174 = vpow.pop %v6173
        %6176 = vrot.lane.b32.xlu0 %v6174, 112
        %v6177 = vpop.permute.xlu0 %6176
        %v6179 = vadd.f32 %v6167, %v6177
        %v6180 = vrcp.pop %v6179
        %v6181 = vmul.f32 1.0, %v6180
        %v6182 = vmul.f32 %v6167, %v6181
        %6184 = vrot.lane.b32.xlu0 %v6181, 16
        %v6185 = vpop.permute.xlu0 %6184
        %v6187 = vmul.f32 %v6174, %v6185
        %v6188 = vlaneseq
        %v6189 = vshrl.u32 %v6188, 7
        %v6190 = vsub.s32 0, %v6189
        %v6191 = vrot.slane %v6182, %v6190
        %v6192 = vmul.f32 %v5897, %v6191
        %v6193 = vmul.f32 %v5898, %v6191
        %v6194 = vmul.f32 %v5899, %v6191
        %v6195 = vmul.f32 %v5900, %v6191
        %v6196 = vmul.f32 %v5901, %v6191
        %v6197 = vmul.f32 %v5902, %v6191
        %v6198 = vmul.f32 %v5903, %v6191
        %v6199 = vmul.f32 %v5904, %v6191
        %v6200 = vmul.f32 %v5905, %v6191
        %v6201 = vmul.f32 %v5906, %v6191
        %v6202 = vmul.f32 %v5907, %v6191
        %v6203 = vmul.f32 %v5908, %v6191
        %v6204 = vmul.f32 %v5909, %v6191
        %v6205 = vmul.f32 %v5910, %v6191
        %v6206 = vmul.f32 %v5911, %v6191
        %v6207 = vmul.f32 %v5912, %v6191
        %v6208 = vmul.f32 %v5913, %v6191
        %v6209 = vmul.f32 %v5914, %v6191
        %v6210 = vmul.f32 %v5915, %v6191
        %v6211 = vmul.f32 %v5916, %v6191
        %v6212 = vmul.f32 %v5917, %v6191
        %v6213 = vmul.f32 %v5918, %v6191
        %v6214 = vmul.f32 %v5919, %v6191
        %v6215 = vmul.f32 %v5920, %v6191
        %v6216 = vmul.f32 %v5921, %v6191
        %v6217 = vmul.f32 %v5922, %v6191
        %v6218 = vmul.f32 %v5923, %v6191
        %v6219 = vmul.f32 %v5924, %v6191
        %v6220 = vmul.f32 %v5925, %v6191
        %v6221 = vmul.f32 %v5926, %v6191
        %v6222 = vmul.f32 %v5927, %v6191
        %v6223 = vmul.f32 %v5928, %v6191
        %v6224 = vlaneseq
        %v6225 = vshrl.u32 %v6224, 7
        %v6226 = vsub.s32 0, %v6225
        %v6227 = vrot.slane %v6187, %v6226
        %v6228 = vmul.f32 %v5897, %v6227
        %v6229 = vmul.f32 %v5898, %v6227
        %v6230 = vmul.f32 %v5899, %v6227
        %v6231 = vmul.f32 %v5900, %v6227
        %v6232 = vmul.f32 %v5901, %v6227
        %v6233 = vmul.f32 %v5902, %v6227
        %v6234 = vmul.f32 %v5903, %v6227
        %v6235 = vmul.f32 %v5904, %v6227
        %v6236 = vmul.f32 %v5905, %v6227
        %v6237 = vmul.f32 %v5906, %v6227
        %v6238 = vmul.f32 %v5907, %v6227
        %v6239 = vmul.f32 %v5908, %v6227
        %v6240 = vmul.f32 %v5909, %v6227
        %v6241 = vmul.f32 %v5910, %v6227
        %v6242 = vmul.f32 %v5911, %v6227
        %v6243 = vmul.f32 %v5912, %v6227
        %v6244 = vmul.f32 %v5913, %v6227
        %v6245 = vmul.f32 %v5914, %v6227
        %v6246 = vmul.f32 %v5915, %v6227
        %v6247 = vmul.f32 %v5916, %v6227
        %v6248 = vmul.f32 %v5917, %v6227
        %v6249 = vmul.f32 %v5918, %v6227
        %v6250 = vmul.f32 %v5919, %v6227
        %v6251 = vmul.f32 %v5920, %v6227
        %v6252 = vmul.f32 %v5921, %v6227
        %v6253 = vmul.f32 %v5922, %v6227
        %v6254 = vmul.f32 %v5923, %v6227
        %v6255 = vmul.f32 %v5924, %v6227
        %v6256 = vmul.f32 %v5925, %v6227
        %v6257 = vmul.f32 %v5926, %v6227
        %v6258 = vmul.f32 %v5927, %v6227
        %v6259 = vmul.f32 %v5928, %v6227
        %6292 = vrot.lane.b32.xlu0 %v6228, 112
        %v6293 = vpop.permute.xlu0 %6292
        %6294 = vrot.lane.b32.xlu0 %v6229, 112
        %v6295 = vpop.permute.xlu0 %6294
        %6296 = vrot.lane.b32.xlu0 %v6230, 112
        %v6297 = vpop.permute.xlu0 %6296
        %6298 = vrot.lane.b32.xlu0 %v6231, 112
        %v6299 = vpop.permute.xlu0 %6298
        %6300 = vrot.lane.b32.xlu0 %v6232, 112
        %v6301 = vpop.permute.xlu0 %6300
        %6302 = vrot.lane.b32.xlu0 %v6233, 112
        %v6303 = vpop.permute.xlu0 %6302
        %6304 = vrot.lane.b32.xlu0 %v6234, 112
        %v6305 = vpop.permute.xlu0 %6304
        %6306 = vrot.lane.b32.xlu0 %v6235, 112
        %v6307 = vpop.permute.xlu0 %6306
        %6308 = vrot.lane.b32.xlu0 %v6236, 112
        %v6309 = vpop.permute.xlu0 %6308
        %6310 = vrot.lane.b32.xlu0 %v6237, 112
        %v6311 = vpop.permute.xlu0 %6310
        %6312 = vrot.lane.b32.xlu0 %v6238, 112
        %v6313 = vpop.permute.xlu0 %6312
        %6314 = vrot.lane.b32.xlu0 %v6239, 112
        %v6315 = vpop.permute.xlu0 %6314
        %6316 = vrot.lane.b32.xlu0 %v6240, 112
        %v6317 = vpop.permute.xlu0 %6316
        %6318 = vrot.lane.b32.xlu0 %v6241, 112
        %v6319 = vpop.permute.xlu0 %6318
        %6320 = vrot.lane.b32.xlu0 %v6242, 112
        %v6321 = vpop.permute.xlu0 %6320
        %6322 = vrot.lane.b32.xlu0 %v6243, 112
        %v6323 = vpop.permute.xlu0 %6322
        %6324 = vrot.lane.b32.xlu0 %v6244, 112
        %v6325 = vpop.permute.xlu0 %6324
        %6326 = vrot.lane.b32.xlu0 %v6245, 112
        %v6327 = vpop.permute.xlu0 %6326
        %6328 = vrot.lane.b32.xlu0 %v6246, 112
        %v6329 = vpop.permute.xlu0 %6328
        %6330 = vrot.lane.b32.xlu0 %v6247, 112
        %v6331 = vpop.permute.xlu0 %6330
        %6332 = vrot.lane.b32.xlu0 %v6248, 112
        %v6333 = vpop.permute.xlu0 %6332
        %6334 = vrot.lane.b32.xlu0 %v6249, 112
        %v6335 = vpop.permute.xlu0 %6334
        %6336 = vrot.lane.b32.xlu0 %v6250, 112
        %v6337 = vpop.permute.xlu0 %6336
        %6338 = vrot.lane.b32.xlu0 %v6251, 112
        %v6339 = vpop.permute.xlu0 %6338
        %6340 = vrot.lane.b32.xlu0 %v6252, 112
        %v6341 = vpop.permute.xlu0 %6340
        %6342 = vrot.lane.b32.xlu0 %v6253, 112
        %v6343 = vpop.permute.xlu0 %6342
        %6344 = vrot.lane.b32.xlu0 %v6254, 112
        %v6345 = vpop.permute.xlu0 %6344
        %6346 = vrot.lane.b32.xlu0 %v6255, 112
        %v6347 = vpop.permute.xlu0 %6346
        %6348 = vrot.lane.b32.xlu0 %v6256, 112
        %v6349 = vpop.permute.xlu0 %6348
        %6350 = vrot.lane.b32.xlu0 %v6257, 112
        %v6351 = vpop.permute.xlu0 %6350
        %6352 = vrot.lane.b32.xlu0 %v6258, 112
        %v6353 = vpop.permute.xlu0 %6352
        %6354 = vrot.lane.b32.xlu0 %v6259, 112
        %v6355 = vpop.permute.xlu0 %6354
        %v6388 = vadd.f32 %v6192, %v6293
        %v6389 = vadd.f32 %v6193, %v6295
        %v6390 = vadd.f32 %v6194, %v6297
        %v6391 = vadd.f32 %v6195, %v6299
        %v6392 = vadd.f32 %v6196, %v6301
        %v6393 = vadd.f32 %v6197, %v6303
        %v6394 = vadd.f32 %v6198, %v6305
        %v6395 = vadd.f32 %v6199, %v6307
        %v6396 = vadd.f32 %v6200, %v6309
        %v6397 = vadd.f32 %v6201, %v6311
        %v6398 = vadd.f32 %v6202, %v6313
        %v6399 = vadd.f32 %v6203, %v6315
        %v6400 = vadd.f32 %v6204, %v6317
        %v6401 = vadd.f32 %v6205, %v6319
        %v6402 = vadd.f32 %v6206, %v6321
        %v6403 = vadd.f32 %v6207, %v6323
        %v6404 = vadd.f32 %v6208, %v6325
        %v6405 = vadd.f32 %v6209, %v6327
        %v6406 = vadd.f32 %v6210, %v6329
        %v6407 = vadd.f32 %v6211, %v6331
        %v6408 = vadd.f32 %v6212, %v6333
        %v6409 = vadd.f32 %v6213, %v6335
        %v6410 = vadd.f32 %v6214, %v6337
        %v6411 = vadd.f32 %v6215, %v6339
        %v6412 = vadd.f32 %v6216, %v6341
        %v6413 = vadd.f32 %v6217, %v6343
        %v6414 = vadd.f32 %v6218, %v6345
        %v6415 = vadd.f32 %v6219, %v6347
        %v6416 = vadd.f32 %v6220, %v6349
        %v6417 = vadd.f32 %v6221, %v6351
        %v6418 = vadd.f32 %v6222, %v6353
        %v6419 = vadd.f32 %v6223, %v6355
        %v6420 = vld [vmem:[%s11] sm:$0x1]
        %v6422 = vlaneseq
        %v6423 = vshrl.u32 %v6422, 7
        %v6424 = vsub.s32 0, %v6423
        %v6425 = vrot.slane %v6420, %v6424
        %v6427 = vmul.f32 %v6388, %v6425
        %v6428 = vmul.f32 %v6389, %v6425
        %v6429 = vmul.f32 %v6390, %v6425
        %v6430 = vmul.f32 %v6391, %v6425
        %v6431 = vmul.f32 %v6392, %v6425
        %v6432 = vmul.f32 %v6393, %v6425
        %v6433 = vmul.f32 %v6394, %v6425
        %v6434 = vmul.f32 %v6395, %v6425
        %v6435 = vmul.f32 %v6396, %v6425
        %v6436 = vmul.f32 %v6397, %v6425
        %v6437 = vmul.f32 %v6398, %v6425
        %v6438 = vmul.f32 %v6399, %v6425
        %v6439 = vmul.f32 %v6400, %v6425
        %v6440 = vmul.f32 %v6401, %v6425
        %v6441 = vmul.f32 %v6402, %v6425
        %v6442 = vmul.f32 %v6403, %v6425
        %v6443 = vmul.f32 %v6404, %v6425
        %v6444 = vmul.f32 %v6405, %v6425
        %v6445 = vmul.f32 %v6406, %v6425
        %v6446 = vmul.f32 %v6407, %v6425
        %v6447 = vmul.f32 %v6408, %v6425
        %v6448 = vmul.f32 %v6409, %v6425
        %v6449 = vmul.f32 %v6410, %v6425
        %v6450 = vmul.f32 %v6411, %v6425
        %v6451 = vmul.f32 %v6412, %v6425
        %v6452 = vmul.f32 %v6413, %v6425
        %v6453 = vmul.f32 %v6414, %v6425
        %v6454 = vmul.f32 %v6415, %v6425
        %v6455 = vmul.f32 %v6416, %v6425
        %v6456 = vmul.f32 %v6417, %v6425
        %v6457 = vmul.f32 %v6418, %v6425
        %v6458 = vmul.f32 %v6419, %v6425
        %v6459 = vld [vmem:[%s12] sm:$0x1]
        %v6461 = vlaneseq
        %v6462 = vshrl.u32 %v6461, 7
        %v6463 = vsub.s32 0, %v6462
        %v6464 = vrot.slane %v6459, %v6463
        %v6466 = vadd.f32 %v6427, %v6464
        %v6467 = vadd.f32 %v6428, %v6464
        %v6468 = vadd.f32 %v6429, %v6464
        %v6469 = vadd.f32 %v6430, %v6464
        %v6470 = vadd.f32 %v6431, %v6464
        %v6471 = vadd.f32 %v6432, %v6464
        %v6472 = vadd.f32 %v6433, %v6464
        %v6473 = vadd.f32 %v6434, %v6464
        %v6474 = vadd.f32 %v6435, %v6464
        %v6475 = vadd.f32 %v6436, %v6464
        %v6476 = vadd.f32 %v6437, %v6464
        %v6477 = vadd.f32 %v6438, %v6464
        %v6478 = vadd.f32 %v6439, %v6464
        %v6479 = vadd.f32 %v6440, %v6464
        %v6480 = vadd.f32 %v6441, %v6464
        %v6481 = vadd.f32 %v6442, %v6464
        %v6482 = vadd.f32 %v6443, %v6464
        %v6483 = vadd.f32 %v6444, %v6464
        %v6484 = vadd.f32 %v6445, %v6464
        %v6485 = vadd.f32 %v6446, %v6464
        %v6486 = vadd.f32 %v6447, %v6464
        %v6487 = vadd.f32 %v6448, %v6464
        %v6488 = vadd.f32 %v6449, %v6464
        %v6489 = vadd.f32 %v6450, %v6464
        %v6490 = vadd.f32 %v6451, %v6464
        %v6491 = vadd.f32 %v6452, %v6464
        %v6492 = vadd.f32 %v6453, %v6464
        %v6493 = vadd.f32 %v6454, %v6464
        %v6494 = vadd.f32 %v6455, %v6464
        %v6495 = vadd.f32 %v6456, %v6464
        %v6496 = vadd.f32 %v6457, %v6464
        %v6497 = vadd.f32 %v6458, %v6464
        %v6498 = vmax.f32 %v6466, 0.0
        %v6499 = vmax.f32 %v6467, 0.0
        %v6500 = vmax.f32 %v6468, 0.0
        %v6501 = vmax.f32 %v6469, 0.0
        %v6502 = vmax.f32 %v6470, 0.0
        %v6503 = vmax.f32 %v6471, 0.0
        %v6504 = vmax.f32 %v6472, 0.0
        %v6505 = vmax.f32 %v6473, 0.0
        %v6506 = vmax.f32 %v6474, 0.0
        %v6507 = vmax.f32 %v6475, 0.0
        %v6508 = vmax.f32 %v6476, 0.0
        %v6509 = vmax.f32 %v6477, 0.0
        %v6510 = vmax.f32 %v6478, 0.0
        %v6511 = vmax.f32 %v6479, 0.0
        %v6512 = vmax.f32 %v6480, 0.0
        %v6513 = vmax.f32 %v6481, 0.0
        %v6514 = vmax.f32 %v6482, 0.0
        %v6515 = vmax.f32 %v6483, 0.0
        %v6516 = vmax.f32 %v6484, 0.0
        %v6517 = vmax.f32 %v6485, 0.0
        %v6518 = vmax.f32 %v6486, 0.0
        %v6519 = vmax.f32 %v6487, 0.0
        %v6520 = vmax.f32 %v6488, 0.0
        %v6521 = vmax.f32 %v6489, 0.0
        %v6522 = vmax.f32 %v6490, 0.0
        %v6523 = vmax.f32 %v6491, 0.0
        %v6524 = vmax.f32 %v6492, 0.0
        %v6525 = vmax.f32 %v6493, 0.0
        %v6526 = vmax.f32 %v6494, 0.0
        %v6527 = vmax.f32 %v6495, 0.0
        %v6528 = vmax.f32 %v6496, 0.0
        %v6529 = vmax.f32 %v6497, 0.0
        %6530 = vrot.lane.b32.xlu0 %v508, 16
        %v6531 = vpop.permute.xlu0 %6530
        %6532 = vrot.lane.b32.xlu0 %v509, 16
        %v6533 = vpop.permute.xlu0 %6532
        %6534 = vrot.lane.b32.xlu0 %v510, 16
        %v6535 = vpop.permute.xlu0 %6534
        %6536 = vrot.lane.b32.xlu0 %v511, 16
        %v6537 = vpop.permute.xlu0 %6536
        %6538 = vrot.lane.b32.xlu0 %v512, 16
        %v6539 = vpop.permute.xlu0 %6538
        %6540 = vrot.lane.b32.xlu0 %v513, 16
        %v6541 = vpop.permute.xlu0 %6540
        %6542 = vrot.lane.b32.xlu0 %v514, 16
        %v6543 = vpop.permute.xlu0 %6542
        %6544 = vrot.lane.b32.xlu0 %v515, 16
        %v6545 = vpop.permute.xlu0 %6544
        %6546 = vrot.lane.b32.xlu0 %v516, 16
        %v6547 = vpop.permute.xlu0 %6546
        %6548 = vrot.lane.b32.xlu0 %v517, 16
        %v6549 = vpop.permute.xlu0 %6548
        %6550 = vrot.lane.b32.xlu0 %v518, 16
        %v6551 = vpop.permute.xlu0 %6550
        %6552 = vrot.lane.b32.xlu0 %v519, 16
        %v6553 = vpop.permute.xlu0 %6552
        %6554 = vrot.lane.b32.xlu0 %v520, 16
        %v6555 = vpop.permute.xlu0 %6554
        %6556 = vrot.lane.b32.xlu0 %v521, 16
        %v6557 = vpop.permute.xlu0 %6556
        %6558 = vrot.lane.b32.xlu0 %v522, 16
        %v6559 = vpop.permute.xlu0 %6558
        %6560 = vrot.lane.b32.xlu0 %v523, 16
        %v6561 = vpop.permute.xlu0 %6560
        %6562 = vrot.lane.b32.xlu0 %v524, 16
        %v6563 = vpop.permute.xlu0 %6562
        %6564 = vrot.lane.b32.xlu0 %v525, 16
        %v6565 = vpop.permute.xlu0 %6564
        %6566 = vrot.lane.b32.xlu0 %v526, 16
        %v6567 = vpop.permute.xlu0 %6566
        %6568 = vrot.lane.b32.xlu0 %v527, 16
        %v6569 = vpop.permute.xlu0 %6568
        %6570 = vrot.lane.b32.xlu0 %v528, 16
        %v6571 = vpop.permute.xlu0 %6570
        %6572 = vrot.lane.b32.xlu0 %v529, 16
        %v6573 = vpop.permute.xlu0 %6572
        %6574 = vrot.lane.b32.xlu0 %v530, 16
        %v6575 = vpop.permute.xlu0 %6574
        %6576 = vrot.lane.b32.xlu0 %v531, 16
        %v6577 = vpop.permute.xlu0 %6576
        %6578 = vrot.lane.b32.xlu0 %v532, 16
        %v6579 = vpop.permute.xlu0 %6578
        %6580 = vrot.lane.b32.xlu0 %v533, 16
        %v6581 = vpop.permute.xlu0 %6580
        %6582 = vrot.lane.b32.xlu0 %v534, 16
        %v6583 = vpop.permute.xlu0 %6582
        %6584 = vrot.lane.b32.xlu0 %v535, 16
        %v6585 = vpop.permute.xlu0 %6584
        %6586 = vrot.lane.b32.xlu0 %v536, 16
        %v6587 = vpop.permute.xlu0 %6586
        %6588 = vrot.lane.b32.xlu0 %v537, 16
        %v6589 = vpop.permute.xlu0 %6588
        %6590 = vrot.lane.b32.xlu0 %v538, 16
        %v6591 = vpop.permute.xlu0 %6590
        %6592 = vrot.lane.b32.xlu0 %v539, 16
        %v6593 = vpop.permute.xlu0 %6592
        %v6626 = vsel %vm542, %v6498, %v6531
        %v6627 = vsel %vm542, %v6499, %v6533
        %v6628 = vsel %vm542, %v6500, %v6535
        %v6629 = vsel %vm542, %v6501, %v6537
        %v6630 = vsel %vm542, %v6502, %v6539
        %v6631 = vsel %vm542, %v6503, %v6541
        %v6632 = vsel %vm542, %v6504, %v6543
        %v6633 = vsel %vm542, %v6505, %v6545
        %v6634 = vsel %vm542, %v6506, %v6547
        %v6635 = vsel %vm542, %v6507, %v6549
        %v6636 = vsel %vm542, %v6508, %v6551
        %v6637 = vsel %vm542, %v6509, %v6553
        %v6638 = vsel %vm542, %v6510, %v6555
        %v6639 = vsel %vm542, %v6511, %v6557
        %v6640 = vsel %vm542, %v6512, %v6559
        %v6641 = vsel %vm542, %v6513, %v6561
        %v6642 = vsel %vm542, %v6514, %v6563
        %v6643 = vsel %vm542, %v6515, %v6565
        %v6644 = vsel %vm542, %v6516, %v6567
        %v6645 = vsel %vm542, %v6517, %v6569
        %v6646 = vsel %vm542, %v6518, %v6571
        %v6647 = vsel %vm542, %v6519, %v6573
        %v6648 = vsel %vm542, %v6520, %v6575
        %v6649 = vsel %vm542, %v6521, %v6577
        %v6650 = vsel %vm542, %v6522, %v6579
        %v6651 = vsel %vm542, %v6523, %v6581
        %v6652 = vsel %vm542, %v6524, %v6583
        %v6653 = vsel %vm542, %v6525, %v6585
        %v6654 = vsel %vm542, %v6526, %v6587
        %v6655 = vsel %vm542, %v6527, %v6589
        %v6656 = vsel %vm542, %v6528, %v6591
        %v6657 = vsel %vm542, %v6529, %v6593
        %v6658 = vld [vmem:[%s13] sm:$0xff]
        %v6659 = vld [vmem:[%s13 + $0x8] sm:$0xff]
        %v6660 = vld [vmem:[%s13 + $0x10] sm:$0xff]
        %v6661 = vld [vmem:[%s13 + $0x18] sm:$0xff]
        %v6662 = vld [vmem:[%s14] sm:$0x1]
        %v6664 = vlaneseq
        %v6665 = vshrl.u32 %v6664, 7
        %v6666 = vsub.s32 0, %v6665
        %v6667 = vrot.slane %v6662, %v6666
        %v6670 = vsel %vm3681, %v6626, 0
        %v6673 = vsel %vm3681, %v6627, 0
        %v6676 = vsel %vm3681, %v6628, 0
        %v6679 = vsel %vm3681, %v6629, 0
        %v6682 = vsel %vm3681, %v6630, 0
        %v6685 = vsel %vm3681, %v6631, 0
        %v6688 = vsel %vm3681, %v6632, 0
        %v6691 = vsel %vm3681, %v6633, 0
        %v6694 = vsel %vm3681, %v6634, 0
        %v6697 = vsel %vm3681, %v6635, 0
        %v6700 = vsel %vm3681, %v6636, 0
        %v6703 = vsel %vm3681, %v6637, 0
        %v6706 = vsel %vm3681, %v6638, 0
        %v6709 = vsel %vm3681, %v6639, 0
        %v6712 = vsel %vm3681, %v6640, 0
        %v6715 = vsel %vm3681, %v6641, 0
        %v6718 = vsel %vm3681, %v6642, 0
        %v6721 = vsel %vm3681, %v6643, 0
        %v6724 = vsel %vm3681, %v6644, 0
        %v6727 = vsel %vm3681, %v6645, 0
        %v6730 = vsel %vm3681, %v6646, 0
        %v6733 = vsel %vm3681, %v6647, 0
        %v6736 = vsel %vm3681, %v6648, 0
        %v6739 = vsel %vm3681, %v6649, 0
        %v6742 = vsel %vm3681, %v6650, 0
        %v6745 = vsel %vm3681, %v6651, 0
        %v6748 = vsel %vm3681, %v6652, 0
        %v6751 = vsel %vm3681, %v6653, 0
        %v6754 = vsel %vm3681, %v6654, 0
        %v6757 = vsel %vm3681, %v6655, 0
        %v6760 = vsel %vm3681, %v6656, 0
        %v6763 = vsel %vm3681, %v6657, 0
        %6765 = vmatprep.subr.mxu0 0.0
        %6766 = vmatpush1.msra.mxu0 %v6658
        %6767 = vmatprep.subr.mxu0 0.0
        %6768 = vmatpush1.msra.mxu0 %v6659
        %6769 = vmatprep.subr.mxu0 0.0
        %6770 = vmatpush1.msra.mxu0 %v6660
        %6771 = vmatprep.subr.mxu0 0.0
        %6772 = vmatpush1.msra.mxu0 %v6661
        %6773 = vmatprep.subr.mxu0 0.0
        %6774 = vmatpush1.msra.mxu0 0.0
        %6775 = vmatprep.subr.mxu0 0.0
        %6776 = vmatpush1.msra.mxu0 0.0
        %6777 = vmatprep.subr.mxu0 0.0
        %6778 = vmatpush1.msra.mxu0 0.0
        %6779 = vmatprep.subr.mxu0 0.0
        %6780 = vmatpush1.msra.mxu0 0.0
        %6781 = vmatprep.subr.mxu0 0.0
        %6782 = vmatpush1.msra.mxu0 0.0
        %6783 = vmatprep.subr.mxu0 0.0
        %6784 = vmatpush1.msra.mxu0 0.0
        %6785 = vmatprep.subr.mxu0 0.0
        %6786 = vmatpush1.msra.mxu0 0.0
        %6787 = vmatprep.subr.mxu0 0.0
        %6788 = vmatpush1.msra.mxu0 0.0
        %6789 = vmatprep.subr.mxu0 0.0
        %6790 = vmatpush1.msra.mxu0 0.0
        %6791 = vmatprep.subr.mxu0 0.0
        %6792 = vmatpush1.msra.mxu0 0.0
        %6793 = vmatprep.subr.mxu0 0.0
        %6794 = vmatpush1.msra.mxu0 0.0
        %6795 = vmatprep.subr.mxu0 0.0
        %6796 = vmatpush1.msra.mxu0 0.0
        %6797 = vmatprep.subr.mxu0 0.0
        %6798 = vmatpush1.msra.mxu0 0.0
        %6799 = vmatprep.subr.mxu0 0.0
        %6800 = vmatpush1.msra.mxu0 0.0
        %6801 = vmatprep.subr.mxu0 0.0
        %6802 = vmatpush1.msra.mxu0 0.0
        %6803 = vmatprep.subr.mxu0 0.0
        %6804 = vmatpush1.msra.mxu0 0.0
        %6805 = vmatprep.subr.mxu0 0.0
        %6806 = vmatpush1.msra.mxu0 0.0
        %6807 = vmatprep.subr.mxu0 0.0
        %6808 = vmatpush1.msra.mxu0 0.0
        %6809 = vmatprep.subr.mxu0 0.0
        %6810 = vmatpush1.msra.mxu0 0.0
        %6811 = vmatprep.subr.mxu0 0.0
        %6812 = vmatpush1.msra.mxu0 0.0
        %6813 = vmatprep.subr.mxu0 0.0
        %6814 = vmatpush1.msra.mxu0 0.0
        %6815 = vmatprep.subr.mxu0 0.0
        %6816 = vmatpush1.msra.mxu0 0.0
        %6817 = vmatprep.subr.mxu0 0.0
        %6818 = vmatpush1.msra.mxu0 0.0
        %6819 = vmatprep.subr.mxu0 0.0
        %6820 = vmatpush1.msra.mxu0 0.0
        %6821 = vmatprep.subr.mxu0 0.0
        %6822 = vmatpush1.msra.mxu0 0.0
        %6823 = vmatprep.subr.mxu0 0.0
        %6824 = vmatpush1.msra.mxu0 0.0
        %6825 = vmatprep.subr.mxu0 0.0
        %6826 = vmatpush1.msra.mxu0 0.0
        %6827 = vmatprep.subr.mxu0 0.0
        %6828 = vmatpush1.msra.mxu0 0.0
        %6829 = vmatprep.mubr.f32.mxu0 0.0
        %6830 = vmatmul.mubr.f32.gmra.mrb[0].mxu0 %v6670
        %v6831 = vpop.f32.mrb[0].mxu0
        %v6832 = vadd.f32 %v6667, %v6831
        %v6833 = vpop.f32.mrb[0].mxu0
        %6834 = vmatprep.mubr.f32.mxu0 0.0
        %6835 = vmatmul.mubr.f32.gmra.mrb[0].mxu0 %v6673
        %v6836 = vpop.f32.mrb[0].mxu0
        %v6837 = vadd.f32 %v6667, %v6836
        %v6838 = vpop.f32.mrb[0].mxu0
        %6839 = vmatprep.mubr.f32.mxu0 0.0
        %6840 = vmatmul.mubr.f32.gmra.mrb[0].mxu0 %v6676
        %v6841 = vpop.f32.mrb[0].mxu0
        %v6842 = vadd.f32 %v6667, %v6841
        %v6843 = vpop.f32.mrb[0].mxu0
        %6844 = vmatprep.mubr.f32.mxu0 0.0
        %6845 = vmatmul.mubr.f32.gmra.mrb[0].mxu0 %v6679
        %v6846 = vpop.f32.mrb[0].mxu0
        %v6847 = vadd.f32 %v6667, %v6846
        %v6848 = vpop.f32.mrb[0].mxu0
        %6849 = vmatprep.mubr.f32.mxu0 0.0
        %6850 = vmatmul.mubr.f32.gmra.mrb[0].mxu0 %v6682
        %v6851 = vpop.f32.mrb[0].mxu0
        %v6852 = vadd.f32 %v6667, %v6851
        %v6853 = vpop.f32.mrb[0].mxu0
        %6854 = vmatprep.mubr.f32.mxu0 0.0
        %6855 = vmatmul.mubr.f32.gmra.mrb[0].mxu0 %v6685
        %v6856 = vpop.f32.mrb[0].mxu0
        %v6857 = vadd.f32 %v6667, %v6856
        %v6858 = vpop.f32.mrb[0].mxu0
        %6859 = vmatprep.mubr.f32.mxu0 0.0
        %6860 = vmatmul.mubr.f32.gmra.mrb[0].mxu0 %v6688
        %v6861 = vpop.f32.mrb[0].mxu0
        %v6862 = vadd.f32 %v6667, %v6861
        %v6863 = vpop.f32.mrb[0].mxu0
        %6864 = vmatprep.mubr.f32.mxu0 0.0
        %6865 = vmatmul.mubr.f32.gmra.mrb[0].mxu0 %v6691
        %v6866 = vpop.f32.mrb[0].mxu0
        %v6867 = vadd.f32 %v6667, %v6866
        %v6868 = vpop.f32.mrb[0].mxu0
        %6869 = vmatprep.mubr.f32.mxu0 0.0
        %6870 = vmatmul.mubr.f32.gmra.mrb[0].mxu0 %v6694
        %v6871 = vpop.f32.mrb[0].mxu0
        %v6872 = vadd.f32 %v6667, %v6871
        %v6873 = vpop.f32.mrb[0].mxu0
        %6874 = vmatprep.mubr.f32.mxu0 0.0
        %6875 = vmatmul.mubr.f32.gmra.mrb[0].mxu0 %v6697
        %v6876 = vpop.f32.mrb[0].mxu0
        %v6877 = vadd.f32 %v6667, %v6876
        %v6878 = vpop.f32.mrb[0].mxu0
        %6879 = vmatprep.mubr.f32.mxu0 0.0
        %6880 = vmatmul.mubr.f32.gmra.mrb[0].mxu0 %v6700
        %v6881 = vpop.f32.mrb[0].mxu0
        %v6882 = vadd.f32 %v6667, %v6881
        %v6883 = vpop.f32.mrb[0].mxu0
        %6884 = vmatprep.mubr.f32.mxu0 0.0
        %6885 = vmatmul.mubr.f32.gmra.mrb[0].mxu0 %v6703
        %v6886 = vpop.f32.mrb[0].mxu0
        %v6887 = vadd.f32 %v6667, %v6886
        %v6888 = vpop.f32.mrb[0].mxu0
        %6889 = vmatprep.mubr.f32.mxu0 0.0
        %6890 = vmatmul.mubr.f32.gmra.mrb[0].mxu0 %v6706
        %v6891 = vpop.f32.mrb[0].mxu0
        %v6892 = vadd.f32 %v6667, %v6891
        %v6893 = vpop.f32.mrb[0].mxu0
        %6894 = vmatprep.mubr.f32.mxu0 0.0
        %6895 = vmatmul.mubr.f32.gmra.mrb[0].mxu0 %v6709
        %v6896 = vpop.f32.mrb[0].mxu0
        %v6897 = vadd.f32 %v6667, %v6896
        %v6898 = vpop.f32.mrb[0].mxu0
        %6899 = vmatprep.mubr.f32.mxu0 0.0
        %6900 = vmatmul.mubr.f32.gmra.mrb[0].mxu0 %v6712
        %v6901 = vpop.f32.mrb[0].mxu0
        %v6902 = vadd.f32 %v6667, %v6901
        %v6903 = vpop.f32.mrb[0].mxu0
        %6904 = vmatprep.mubr.f32.mxu0 0.0
        %6905 = vmatmul.mubr.f32.gmra.mrb[0].mxu0 %v6715
        %v6906 = vpop.f32.mrb[0].mxu0
        %v6907 = vadd.f32 %v6667, %v6906
        %v6908 = vpop.f32.mrb[0].mxu0
        %6909 = vmatprep.mubr.f32.mxu0 0.0
        %6910 = vmatmul.mubr.f32.gmra.mrb[0].mxu0 %v6718
        %v6911 = vpop.f32.mrb[0].mxu0
        %v6912 = vadd.f32 %v6667, %v6911
        %v6913 = vpop.f32.mrb[0].mxu0
        %6914 = vmatprep.mubr.f32.mxu0 0.0
        %6915 = vmatmul.mubr.f32.gmra.mrb[0].mxu0 %v6721
        %v6916 = vpop.f32.mrb[0].mxu0
        %v6917 = vadd.f32 %v6667, %v6916
        %v6918 = vpop.f32.mrb[0].mxu0
        %6919 = vmatprep.mubr.f32.mxu0 0.0
        %6920 = vmatmul.mubr.f32.gmra.mrb[0].mxu0 %v6724
        %v6921 = vpop.f32.mrb[0].mxu0
        %v6922 = vadd.f32 %v6667, %v6921
        %v6923 = vpop.f32.mrb[0].mxu0
        %6924 = vmatprep.mubr.f32.mxu0 0.0
        %6925 = vmatmul.mubr.f32.gmra.mrb[0].mxu0 %v6727
        %v6926 = vpop.f32.mrb[0].mxu0
        %v6927 = vadd.f32 %v6667, %v6926
        %v6928 = vpop.f32.mrb[0].mxu0
        %6929 = vmatprep.mubr.f32.mxu0 0.0
        %6930 = vmatmul.mubr.f32.gmra.mrb[0].mxu0 %v6730
        %v6931 = vpop.f32.mrb[0].mxu0
        %v6932 = vadd.f32 %v6667, %v6931
        %v6933 = vpop.f32.mrb[0].mxu0
        %6934 = vmatprep.mubr.f32.mxu0 0.0
        %6935 = vmatmul.mubr.f32.gmra.mrb[0].mxu0 %v6733
        %v6936 = vpop.f32.mrb[0].mxu0
        %v6937 = vadd.f32 %v6667, %v6936
        %v6938 = vpop.f32.mrb[0].mxu0
        %6939 = vmatprep.mubr.f32.mxu0 0.0
        %6940 = vmatmul.mubr.f32.gmra.mrb[0].mxu0 %v6736
        %v6941 = vpop.f32.mrb[0].mxu0
        %v6942 = vadd.f32 %v6667, %v6941
        %v6943 = vpop.f32.mrb[0].mxu0
        %6944 = vmatprep.mubr.f32.mxu0 0.0
        %6945 = vmatmul.mubr.f32.gmra.mrb[0].mxu0 %v6739
        %v6946 = vpop.f32.mrb[0].mxu0
        %v6947 = vadd.f32 %v6667, %v6946
        %v6948 = vpop.f32.mrb[0].mxu0
        %6949 = vmatprep.mubr.f32.mxu0 0.0
        %6950 = vmatmul.mubr.f32.gmra.mrb[0].mxu0 %v6742
        %v6951 = vpop.f32.mrb[0].mxu0
        %v6952 = vadd.f32 %v6667, %v6951
        %v6953 = vpop.f32.mrb[0].mxu0
        %6954 = vmatprep.mubr.f32.mxu0 0.0
        %6955 = vmatmul.mubr.f32.gmra.mrb[0].mxu0 %v6745
        %v6956 = vpop.f32.mrb[0].mxu0
        %v6957 = vadd.f32 %v6667, %v6956
        %v6958 = vpop.f32.mrb[0].mxu0
        %6959 = vmatprep.mubr.f32.mxu0 0.0
        %6960 = vmatmul.mubr.f32.gmra.mrb[0].mxu0 %v6748
        %v6961 = vpop.f32.mrb[0].mxu0
        %v6962 = vadd.f32 %v6667, %v6961
        %v6963 = vpop.f32.mrb[0].mxu0
        %6964 = vmatprep.mubr.f32.mxu0 0.0
        %6965 = vmatmul.mubr.f32.gmra.mrb[0].mxu0 %v6751
        %v6966 = vpop.f32.mrb[0].mxu0
        %v6967 = vadd.f32 %v6667, %v6966
        %v6968 = vpop.f32.mrb[0].mxu0
        %6969 = vmatprep.mubr.f32.mxu0 0.0
        %6970 = vmatmul.mubr.f32.gmra.mrb[0].mxu0 %v6754
        %v6971 = vpop.f32.mrb[0].mxu0
        %v6972 = vadd.f32 %v6667, %v6971
        %v6973 = vpop.f32.mrb[0].mxu0
        %6974 = vmatprep.mubr.f32.mxu0 0.0
        %6975 = vmatmul.mubr.f32.gmra.mrb[0].mxu0 %v6757
        %v6976 = vpop.f32.mrb[0].mxu0
        %v6977 = vadd.f32 %v6667, %v6976
        %v6978 = vpop.f32.mrb[0].mxu0
        %6979 = vmatprep.mubr.f32.mxu0 0.0
        %6980 = vmatmul.mubr.f32.gmra.mrb[0].mxu0 %v6760
        %v6981 = vpop.f32.mrb[0].mxu0
        %v6982 = vadd.f32 %v6667, %v6981
        %v6983 = vpop.f32.mrb[0].mxu0
        %6984 = vmatprep.mubr.f32.mxu0 0.0
        %6985 = vmatmul.mubr.f32.gmra.mrb[0].mxu0 %v6763
        %v6986 = vpop.f32.mrb[0].mxu0
        %v6987 = vadd.f32 %v6667, %v6986
        %v6988 = vpop.f32.mrb[0].mxu0
        %6989 = vdwg.mxu0
        %v6990 = vmax.f32 %v6832, 0.0
        %v6991 = vmax.f32 %v6837, 0.0
        %v6992 = vmax.f32 %v6842, 0.0
        %v6993 = vmax.f32 %v6847, 0.0
        %v6994 = vmax.f32 %v6852, 0.0
        %v6995 = vmax.f32 %v6857, 0.0
        %v6996 = vmax.f32 %v6862, 0.0
        %v6997 = vmax.f32 %v6867, 0.0
        %v6998 = vmax.f32 %v6872, 0.0
        %v6999 = vmax.f32 %v6877, 0.0
        %v7000 = vmax.f32 %v6882, 0.0
        %v7001 = vmax.f32 %v6887, 0.0
        %v7002 = vmax.f32 %v6892, 0.0
        %v7003 = vmax.f32 %v6897, 0.0
        %v7004 = vmax.f32 %v6902, 0.0
        %v7005 = vmax.f32 %v6907, 0.0
        %v7006 = vmax.f32 %v6912, 0.0
        %v7007 = vmax.f32 %v6917, 0.0
        %v7008 = vmax.f32 %v6922, 0.0
        %v7009 = vmax.f32 %v6927, 0.0
        %v7010 = vmax.f32 %v6932, 0.0
        %v7011 = vmax.f32 %v6937, 0.0
        %v7012 = vmax.f32 %v6942, 0.0
        %v7013 = vmax.f32 %v6947, 0.0
        %v7014 = vmax.f32 %v6952, 0.0
        %v7015 = vmax.f32 %v6957, 0.0
        %v7016 = vmax.f32 %v6962, 0.0
        %v7017 = vmax.f32 %v6967, 0.0
        %v7018 = vmax.f32 %v6972, 0.0
        %v7019 = vmax.f32 %v6977, 0.0
        %v7020 = vmax.f32 %v6982, 0.0
        %v7021 = vmax.f32 %v6987, 0.0
        %7022 = vst.msk [vmem:[%s502] sm:$0xff] %vm3681, %v6990
        %7023 = vst.msk [vmem:[%s502 + $0x8] sm:$0xff] %vm3681, %v6991
        %7024 = vst.msk [vmem:[%s502 + $0x10] sm:$0xff] %vm3681, %v6992
        %7025 = vst.msk [vmem:[%s502 + $0x18] sm:$0xff] %vm3681, %v6993
        %7026 = vst.msk [vmem:[%s502 + $0x20] sm:$0xff] %vm3681, %v6994
        %7027 = vst.msk [vmem:[%s502 + $0x28] sm:$0xff] %vm3681, %v6995
        %7028 = vst.msk [vmem:[%s502 + $0x30] sm:$0xff] %vm3681, %v6996
        %7029 = vst.msk [vmem:[%s502 + $0x38] sm:$0xff] %vm3681, %v6997
        %7030 = vst.msk [vmem:[%s502 + $0x40] sm:$0xff] %vm3681, %v6998
        %7031 = vst.msk [vmem:[%s502 + $0x48] sm:$0xff] %vm3681, %v6999
        %7032 = vst.msk [vmem:[%s502 + $0x50] sm:$0xff] %vm3681, %v7000
        %7033 = vst.msk [vmem:[%s502 + $0x58] sm:$0xff] %vm3681, %v7001
        %7034 = vst.msk [vmem:[%s502 + $0x60] sm:$0xff] %vm3681, %v7002
        %7035 = vst.msk [vmem:[%s502 + $0x68] sm:$0xff] %vm3681, %v7003
        %7036 = vst.msk [vmem:[%s502 + $0x70] sm:$0xff] %vm3681, %v7004
        %7037 = vst.msk [vmem:[%s502 + $0x78] sm:$0xff] %vm3681, %v7005
        %7038 = vst.msk [vmem:[%s502 + $0x80] sm:$0xff] %vm3681, %v7006
        %7039 = vst.msk [vmem:[%s502 + $0x88] sm:$0xff] %vm3681, %v7007
        %7040 = vst.msk [vmem:[%s502 + $0x90] sm:$0xff] %vm3681, %v7008
        %7041 = vst.msk [vmem:[%s502 + $0x98] sm:$0xff] %vm3681, %v7009
        %7042 = vst.msk [vmem:[%s502 + $0xa0] sm:$0xff] %vm3681, %v7010
        %7043 = vst.msk [vmem:[%s502 + $0xa8] sm:$0xff] %vm3681, %v7011
        %7044 = vst.msk [vmem:[%s502 + $0xb0] sm:$0xff] %vm3681, %v7012
        %7045 = vst.msk [vmem:[%s502 + $0xb8] sm:$0xff] %vm3681, %v7013
        %7046 = vst.msk [vmem:[%s502 + $0xc0] sm:$0xff] %vm3681, %v7014
        %7047 = vst.msk [vmem:[%s502 + $0xc8] sm:$0xff] %vm3681, %v7015
        %7048 = vst.msk [vmem:[%s502 + $0xd0] sm:$0xff] %vm3681, %v7016
        %7049 = vst.msk [vmem:[%s502 + $0xd8] sm:$0xff] %vm3681, %v7017
        %7050 = vst.msk [vmem:[%s502 + $0xe0] sm:$0xff] %vm3681, %v7018
        %7051 = vst.msk [vmem:[%s502 + $0xe8] sm:$0xff] %vm3681, %v7019
        %7052 = vst.msk [vmem:[%s502 + $0xf0] sm:$0xff] %vm3681, %v7020
        %7053 = vst.msk [vmem:[%s502 + $0xf8] sm:$0xff] %vm3681, %v7021
        %s7054 = sand.u32 %s358, 1
        %s7055 = scalar_lea.sflag [#allocation5], %s7054
        %s7056 = sand.u32 %s358, 1
        %s7057 = smul.addr %s7056, 256
        %s7058 = scalar_lea.vmem [#allocation6], %s7057
        // Predicated region
        $region85: #{tpu_custom_call.1} parent=79 // pred_check
          %p7059 = pneg %p368
        $region86: #{tpu_custom_call.1} parent=79 // pred_check_branch
          %7061 = sbr.rel (%p7059) target = $region88
        $region87: #{tpu_custom_call.1} parent=79 // pred_region
          %s7063 = ssub.s32 4096, 4096
          %7064 = vsyncadd %s7055, %s7063
          %s7065 = smul.addr %s30, 32
          %s7066 = smul.addr %s7065, 128
          %s7067 = scalar_lea.hbm %s15, %s7066
          %s7068 = sshll.u32 %s7058, 4
          %s7069 = int_to_ptr.vmem [resolvable:$true] %s7068
          %7074 = dma.vmem_to_hbm [thread:$0]  %s7069, 4096, %s7067, %s7055, 128, 128, 8
        $region88: #{tpu_custom_call.1} parent=79 // pred_fallthru
          _
      $region80: #{tpu_custom_call.1} parent=5 // pred_fallthru
        _
      %p7075 = scmp.le.s32.totalorder 2, %s25
      // Predicated region
      $region89: #{tpu_custom_call.1} parent=5 // pred_check
        %p7076 = pneg %p7075
      $region90: #{tpu_custom_call.1} parent=5 // pred_check_branch
        %7078 = sbr.rel (%p7076) target = $region92
      $region91: #{tpu_custom_call.1} parent=5 // pred_region
        %s7079 = ssub.s32 %s25, 2
        // Predicated region
        $region93: #{tpu_custom_call.1} parent=91 // pred_check
          %p7080 = pneg %p374
        $region94: #{tpu_custom_call.1} parent=91 // pred_check_branch
          %7082 = sbr.rel (%p7080) target = $region96
        $region95: #{tpu_custom_call.1} parent=91 // pred_region
          %s7083 = sand.u32 %s359, 1
          %s7084 = scalar_lea.sflag [#allocation5], %s7083
          %s7085 = sand.u32 %s359, 1
          %s7086 = smul.addr %s7085, 256
          %s7087 = scalar_lea.vmem [#allocation6], %s7086
          %7088 = dma.done %s7084, 4096
        $region96: #{tpu_custom_call.1} parent=91 // pred_fallthru
          _
      $region92: #{tpu_custom_call.1} parent=5 // pred_fallthru
        _
    $region6: #{tpu_custom_call.1} parent=1 // loop_footer
      %s29 = sadd.s32 1, %s25
    $region7: #{tpu_custom_call.1} parent=1 // loop_footer_branch
      %24 = sbr.rel target = $region3
    $region8: #{tpu_custom_call.1} parent=1 // loop_exit
      _
    %7089 = vsyncpa [#allocation4], 1
    %s7090 = scalar_lea.sflag [#allocation4], 1
    %7091 = vsyncpa %s7090, 1
    %7092 = vsyncpa [#allocation5], 1
    %s7093 = scalar_lea.sflag [#allocation5], 1
    %7094 = vsyncpa %s7093, 1

</llo_original>
